<compile_context>
chip_gen: v5e
topology: v5e:2x2
jax: 0.10.0
libtpu: 0.0.40
codegen_flags: <defaults>
</compile_context>

<pallas_src>
import jax
import jax.numpy as jnp
from jax.experimental import pallas as pl
from jax.experimental.pallas import tpu as pltpu


IN_F = 48
P_H0, P_H1, P_H2, N_ACT = 1024, 512, 256, 5
V_H0, V_H1, V_H2 = 2048, 1024, 512
OUT_LANES = 128  # fused lane-dense output: action -> lanes 0..4, value -> lane 5


# ---------------------------------------------------------------------------
# Kernel: entire two-branch MLP forward pass.
# ---------------------------------------------------------------------------
def policy_kernel(
    x_ref,
    w0_ref, b0_ref,            # fused first layer  [48, 3072] / [1, 3072]
    pw2_ref, pb2_ref,          # policy L2          [1024, 512]
    pw4_ref, pb4_ref,          # policy L3          [512, 256]
    head_w_p_ref,              # action head padded [256, 128] (lanes 0..4 real)
    head_w_v_ref,              # value head padded  [512, 128] (lane 5 real)
    head_b_ref,                # fused head bias    [1, 128]
    vb2_ref, vb4_ref,          # value-branch biases
    vw2_hbm, vw4_hbm,          # large value-branch weights, left in HBM (pl.ANY)
    out_ref,                   # [B, 128]
    vw2_buf, vw4_buf, dma_sem,
):
    # Kick off the big value-branch weight DMAs first so they overlap with the
    # policy-branch compute below.
    cp2 = pltpu.make_async_copy(vw2_hbm, vw2_buf, dma_sem.at[0])
    cp2.start()
    cp4 = pltpu.make_async_copy(vw4_hbm, vw4_buf, dma_sem.at[1])
    cp4.start()

    x = x_ref[...].astype(jnp.bfloat16)

    def linear_relu(inp, w, b):
        y = jnp.dot(inp, w, preferred_element_type=jnp.float32) + b
        return jnp.maximum(y, 0.0).astype(jnp.bfloat16)

    # Fused first layer: both branches share the same tiny LHS (one MXU pass).
    h0 = linear_relu(x, w0_ref[...], b0_ref[...])      # [B, 3072]
    h_p = h0[:, :P_H0]                                 # [B, 1024]  (lane-aligned slice)
    h_v = h0[:, P_H0:]                                 # [B, 2048]

    # Policy branch (small weights, auto-DMA'd into VMEM by the prologue).
    h_p = linear_relu(h_p, pw2_ref[...], pb2_ref[...])
    h_p = linear_relu(h_p, pw4_ref[...], pb4_ref[...])
    acc = jnp.dot(h_p, head_w_p_ref[...], preferred_element_type=jnp.float32)

    # Value branch: wait on each big weight only when it is actually needed.
    cp2.wait()
    h_v = linear_relu(h_v, vw2_buf[...], vb2_ref[...])
    cp4.wait()
    h_v = linear_relu(h_v, vw4_buf[...], vb4_ref[...])
    acc = acc + jnp.dot(h_v, head_w_v_ref[...], preferred_element_type=jnp.float32)

    out_ref[...] = (acc + head_b_ref[...]).astype(out_ref.dtype)


# ---------------------------------------------------------------------------
# Wrapper
# ---------------------------------------------------------------------------
def policy_forward(x, kp):
    """x: [B, 48] float32. kp: packed kernel params (see pack_params)."""
    B = x.shape[0]
    Bp = ((B + 7) // 8) * 8            # sublane-dense batch tile
    if Bp != B:
        x = jnp.pad(x, ((0, Bp - B), (0, 0)))

    operands = (
        x,
        kp["w0"], kp["b0"],
        kp["pw2"], kp["pb2"],
        kp["pw4"], kp["pb4"],
        kp["head_w_p"], kp["head_w_v"], kp["head_b"],
        kp["vb2"], kp["vb4"],
        kp["vw2"], kp["vw4"],
    )
    vmem_spec = pl.BlockSpec(memory_space=pltpu.MemorySpace.VMEM)
    hbm_spec = pl.BlockSpec(memory_space=pl.ANY)

    weight_elems = (IN_F * (P_H0 + V_H0) + P_H0 * P_H1 + P_H1 * P_H2
                    + P_H2 * OUT_LANES + V_H0 * V_H1 + V_H1 * V_H2
                    + V_H2 * OUT_LANES)
    flops = 2 * Bp * weight_elems
    bytes_accessed = (2 * weight_elems                      # bf16 weights
                      + 4 * (Bp * IN_F + Bp * OUT_LANES)    # f32 input + output
                      + 4 * (3 * OUT_LANES + P_H0 + V_H0 + P_H1 + P_H2 + V_H1 + V_H2))

    out = pl.pallas_call(
        policy_kernel,
        out_shape=jax.ShapeDtypeStruct((Bp, OUT_LANES), jnp.float32),
        in_specs=[vmem_spec] * 12 + [hbm_spec, hbm_spec],
        out_specs=vmem_spec,
        scratch_shapes=[
            pltpu.VMEM((V_H0, V_H1), jnp.bfloat16),   # vw2 buffer (4 MiB)
            pltpu.VMEM((V_H1, V_H2), jnp.bfloat16),   # vw4 buffer (1 MiB)
            pltpu.SemaphoreType.DMA((2,)),
        ],
        cost_estimate=pl.CostEstimate(flops=flops, transcendentals=0,
                                      bytes_accessed=bytes_accessed),
    )(*operands)
    action = out[:B, :N_ACT]
    value = out[:B, N_ACT:N_ACT + 1]
    return action, value


# ---------------------------------------------------------------------------
# Deterministic parameter init (mimics nn.Linear uniform(-1/sqrt(in), +))
# ---------------------------------------------------------------------------
def init_params(key):
    sizes = {
        "p0": (IN_F, P_H0), "p2": (P_H0, P_H1), "p4": (P_H1, P_H2), "a": (P_H2, N_ACT),
        "v0": (IN_F, V_H0), "v2": (V_H0, V_H1), "v4": (V_H1, V_H2), "v": (V_H2, 1),
    }
    name_map = {
        "p0": ("pw0", "pb0"), "p2": ("pw2", "pb2"), "p4": ("pw4", "pb4"),
        "a": ("aw", "ab"),
        "v0": ("vw0", "vb0"), "v2": ("vw2", "vb2"), "v4": ("vw4", "vb4"),
        "v": ("vw", "vb"),
    }
    params = {}
    keys = jax.random.split(key, 2 * len(sizes))
    for i, (name, (fin, fout)) in enumerate(sizes.items()):
        bound = 1.0 / jnp.sqrt(jnp.float32(fin))
        wname, bname = name_map[name]
        params[wname] = jax.random.uniform(keys[2 * i], (fin, fout), jnp.float32, -bound, bound)
        params[bname] = jax.random.uniform(keys[2 * i + 1], (1, fout), jnp.float32, -bound, bound)
    return params


def pack_params(p):
    """Fuse/pad/cast the PyTorch-style params into kernel-ready operands."""
    bf = jnp.bfloat16
    f32 = jnp.float32
    # Fused first layer: [48, 1024 | 2048] -> [48, 3072]
    w0 = jnp.concatenate([p["pw0"], p["vw0"]], axis=1).astype(bf)
    b0 = jnp.concatenate([p["pb0"], p["vb0"]], axis=1).astype(f32)
    # Heads zero-padded into one lane-dense [*, 128] slab.
    head_w_p = jnp.zeros((P_H2, OUT_LANES), f32).at[:, :N_ACT].set(p["aw"]).astype(bf)
    head_w_v = jnp.zeros((V_H2, OUT_LANES), f32).at[:, N_ACT:N_ACT + 1].set(p["vw"]).astype(bf)
    head_b = (jnp.zeros((1, OUT_LANES), f32)
              .at[:, :N_ACT].set(p["ab"])
              .at[:, N_ACT:N_ACT + 1].set(p["vb"]))
    return dict(
        w0=w0, b0=b0,
        pw2=p["pw2"].astype(bf), pb2=p["pb2"].astype(f32),
        pw4=p["pw4"].astype(bf), pb4=p["pb4"].astype(f32),
        head_w_p=head_w_p, head_w_v=head_w_v, head_b=head_b,
        vb2=p["vb2"].astype(f32), vb4=p["vb4"].astype(f32),
        vw2=p["vw2"].astype(bf), vw4=p["vw4"].astype(bf),
    )


# ---------------------------------------------------------------------------
# Pure-JAX reference (same bf16 weight/activation semantics, f32 accumulation)
# ---------------------------------------------------------------------------
def policy_forward_ref(x, p):
    bf = jnp.bfloat16

    def lr(inp, w, b):
        y = jnp.dot(inp.astype(bf), w.astype(bf), preferred_element_type=jnp.float32) + b
        return jnp.maximum(y, 0.0)

    h = lr(x, p["pw0"], p["pb0"])
    h = lr(h, p["pw2"], p["pb2"])
    h = lr(h, p["pw4"], p["pb4"])
    action = jnp.dot(h.astype(bf), p["aw"].astype(bf),
                     preferred_element_type=jnp.float32) + p["ab"]
    v = lr(x, p["vw0"], p["vb0"])
    v = lr(v, p["vw2"], p["vb2"])
    v = lr(v, p["vw4"], p["vb4"])
    value = jnp.dot(v.astype(bf), p["vw"].astype(bf),
                    preferred_element_type=jnp.float32) + p["vb"]
    return action, value


if __name__ == "__main__":
    key = jax.random.PRNGKey(0)
    pkey, xkey = jax.random.split(key)
    params = init_params(pkey)
    kparams = pack_params(params)

    B = 8
    x = jax.random.normal(xkey, (B, IN_F), jnp.float32)

    action, value = policy_forward(x, kparams)
    action = jax.block_until_ready(action)
    value = jax.block_until_ready(value)

    action_ref, value_ref = policy_forward_ref(x, params)

    assert action.shape == (B, N_ACT) and value.shape == (B, 1)
    assert jnp.allclose(action, action_ref, atol=2e-2, rtol=2e-2), \
        float(jnp.max(jnp.abs(action - action_ref)))
    assert jnp.allclose(value, value_ref, atol=2e-2, rtol=2e-2), \
        float(jnp.max(jnp.abs(value - value_ref)))

    # TODO(synk): optional per-generation int8 (v5e/v6e) / fp8 (v7x) weight quant and a
    # 2-TensorCore branch split via core_map on v7x are left out to keep this portable.
    print("KERNEL_OK")
</pallas_src>

<mosaic_0001>
module attributes {stable_mosaic.version = 11 : i64} {
  func.func @policy_kernel(%arg0: memref<8x48xf32, #tpu.memory_space<vmem>>, %arg1: memref<48x3072xbf16, #tpu.memory_space<vmem>>, %arg2: memref<1x3072xf32, #tpu.memory_space<vmem>>, %arg3: memref<1024x512xbf16, #tpu.memory_space<vmem>>, %arg4: memref<1x512xf32, #tpu.memory_space<vmem>>, %arg5: memref<512x256xbf16, #tpu.memory_space<vmem>>, %arg6: memref<1x256xf32, #tpu.memory_space<vmem>>, %arg7: memref<256x128xbf16, #tpu.memory_space<vmem>>, %arg8: memref<512x128xbf16, #tpu.memory_space<vmem>>, %arg9: memref<1x128xf32, #tpu.memory_space<vmem>>, %arg10: memref<1x1024xf32, #tpu.memory_space<vmem>>, %arg11: memref<1x512xf32, #tpu.memory_space<vmem>>, %arg12: memref<2048x1024xbf16, #tpu.memory_space<any>>, %arg13: memref<1024x512xbf16, #tpu.memory_space<any>>, %arg14: memref<8x128xf32, #tpu.memory_space<vmem>>, %arg15: memref<2048x1024xbf16, #tpu.memory_space<vmem>>, %arg16: memref<1024x512xbf16, #tpu.memory_space<vmem>>, %arg17: memref<2x!tpu.dma_semaphore, #tpu.memory_space<semaphore_mem>>) attributes {dimension_semantics = [], scalar_prefetch = 0 : i64, scratch_operands = 3 : i64, tpu.core_type = #tpu.core_type<tc>} {
    %c0_i32 = arith.constant 0 : i32
    %0 = tpu.memref_slice %arg17[%c0_i32] : memref<2x!tpu.dma_semaphore, #tpu.memory_space<semaphore_mem>> -> memref<1x!tpu.dma_semaphore, #tpu.memory_space<semaphore_mem>>
    %1 = tpu.memref_squeeze %0 : memref<1x!tpu.dma_semaphore, #tpu.memory_space<semaphore_mem>> -> memref<!tpu.dma_semaphore, #tpu.memory_space<semaphore_mem>>
    tpu.enqueue_dma source(%arg12 : memref<2048x1024xbf16, #tpu.memory_space<any>>) target(%arg15 : memref<2048x1024xbf16, #tpu.memory_space<vmem>>) target_semaphore(%1 : memref<!tpu.dma_semaphore, #tpu.memory_space<semaphore_mem>>)
    %c1_i32 = arith.constant 1 : i32
    %2 = tpu.memref_slice %arg17[%c1_i32] : memref<2x!tpu.dma_semaphore, #tpu.memory_space<semaphore_mem>> -> memref<1x!tpu.dma_semaphore, #tpu.memory_space<semaphore_mem>>
    %3 = tpu.memref_squeeze %2 : memref<1x!tpu.dma_semaphore, #tpu.memory_space<semaphore_mem>> -> memref<!tpu.dma_semaphore, #tpu.memory_space<semaphore_mem>>
    tpu.enqueue_dma source(%arg13 : memref<1024x512xbf16, #tpu.memory_space<any>>) target(%arg16 : memref<1024x512xbf16, #tpu.memory_space<vmem>>) target_semaphore(%3 : memref<!tpu.dma_semaphore, #tpu.memory_space<semaphore_mem>>)
    %c0 = arith.constant 0 : index
    %c0_0 = arith.constant 0 : index
    %4 = vector.load %arg0[%c0, %c0_0] : memref<8x48xf32, #tpu.memory_space<vmem>>, vector<8x48xf32>
    %5 = arith.truncf %4 : vector<8x48xf32> to vector<8x48xbf16>
    %c0_1 = arith.constant 0 : index
    %c0_2 = arith.constant 0 : index
    %6 = vector.load %arg1[%c0_1, %c0_2] : memref<48x3072xbf16, #tpu.memory_space<vmem>>, vector<48x3072xbf16>
    %c0_3 = arith.constant 0 : index
    %c0_4 = arith.constant 0 : index
    %7 = vector.load %arg2[%c0_3, %c0_4] : memref<1x3072xf32, #tpu.memory_space<vmem>>, vector<1x3072xf32>
    %cst = arith.constant dense<0.000000e+00> : vector<8x3072xf32>
    %8 = tpu.matmul %5, %6, %cst {dimension_numbers = #tpu.dot_dimension_numbers<[1], [0], [0], [1], [0, 0, 1, 1], [], []>} : vector<8x48xbf16>, vector<48x3072xbf16>, vector<8x3072xf32> -> vector<8x3072xf32>
    %9 = vector.broadcast %7 : vector<1x3072xf32> to vector<8x3072xf32>
    %10 = arith.addf %8, %9 : vector<8x3072xf32>
    %cst_5 = arith.constant 0.000000e+00 : f32
    %11 = vector.broadcast %cst_5 : f32 to vector<8x3072xf32>
    %12 = arith.maximumf %10, %11 : vector<8x3072xf32>
    %13 = arith.truncf %12 : vector<8x3072xf32> to vector<8x3072xbf16>
    %14 = vector.extract_strided_slice %13 {offsets = [0, 0], sizes = [8, 1024], strides = [1, 1]} : vector<8x3072xbf16> to vector<8x1024xbf16>
    %15 = vector.extract_strided_slice %13 {offsets = [0, 1024], sizes = [8, 2048], strides = [1, 1]} : vector<8x3072xbf16> to vector<8x2048xbf16>
    %c0_6 = arith.constant 0 : index
    %c0_7 = arith.constant 0 : index
    %16 = vector.load %arg3[%c0_6, %c0_7] : memref<1024x512xbf16, #tpu.memory_space<vmem>>, vector<1024x512xbf16>
    %c0_8 = arith.constant 0 : index
    %c0_9 = arith.constant 0 : index
    %17 = vector.load %arg4[%c0_8, %c0_9] : memref<1x512xf32, #tpu.memory_space<vmem>>, vector<1x512xf32>
    %cst_10 = arith.constant dense<0.000000e+00> : vector<8x512xf32>
    %18 = tpu.matmul %14, %16, %cst_10 {dimension_numbers = #tpu.dot_dimension_numbers<[1], [0], [0], [1], [0, 0, 1, 1], [], []>} : vector<8x1024xbf16>, vector<1024x512xbf16>, vector<8x512xf32> -> vector<8x512xf32>
    %19 = vector.broadcast %17 : vector<1x512xf32> to vector<8x512xf32>
    %20 = arith.addf %18, %19 : vector<8x512xf32>
    %cst_11 = arith.constant 0.000000e+00 : f32
    %21 = vector.broadcast %cst_11 : f32 to vector<8x512xf32>
    %22 = arith.maximumf %20, %21 : vector<8x512xf32>
    %23 = arith.truncf %22 : vector<8x512xf32> to vector<8x512xbf16>
    %c0_12 = arith.constant 0 : index
    %c0_13 = arith.constant 0 : index
    %24 = vector.load %arg5[%c0_12, %c0_13] : memref<512x256xbf16, #tpu.memory_space<vmem>>, vector<512x256xbf16>
    %c0_14 = arith.constant 0 : index
    %c0_15 = arith.constant 0 : index
    %25 = vector.load %arg6[%c0_14, %c0_15] : memref<1x256xf32, #tpu.memory_space<vmem>>, vector<1x256xf32>
    %cst_16 = arith.constant dense<0.000000e+00> : vector<8x256xf32>
    %26 = tpu.matmul %23, %24, %cst_16 {dimension_numbers = #tpu.dot_dimension_numbers<[1], [0], [0], [1], [0, 0, 1, 1], [], []>} : vector<8x512xbf16>, vector<512x256xbf16>, vector<8x256xf32> -> vector<8x256xf32>
    %27 = vector.broadcast %25 : vector<1x256xf32> to vector<8x256xf32>
    %28 = arith.addf %26, %27 : vector<8x256xf32>
    %cst_17 = arith.constant 0.000000e+00 : f32
    %29 = vector.broadcast %cst_17 : f32 to vector<8x256xf32>
    %30 = arith.maximumf %28, %29 : vector<8x256xf32>
    %31 = arith.truncf %30 : vector<8x256xf32> to vector<8x256xbf16>
    %c0_18 = arith.constant 0 : index
    %c0_19 = arith.constant 0 : index
    %32 = vector.load %arg7[%c0_18, %c0_19] : memref<256x128xbf16, #tpu.memory_space<vmem>>, vector<256x128xbf16>
    %cst_20 = arith.constant dense<0.000000e+00> : vector<8x128xf32>
    %33 = tpu.matmul %31, %32, %cst_20 {dimension_numbers = #tpu.dot_dimension_numbers<[1], [0], [0], [1], [0, 0, 1, 1], [], []>} : vector<8x256xbf16>, vector<256x128xbf16>, vector<8x128xf32> -> vector<8x128xf32>
    %c0_i32_21 = arith.constant 0 : i32
    %34 = tpu.memref_slice %arg17[%c0_i32_21] : memref<2x!tpu.dma_semaphore, #tpu.memory_space<semaphore_mem>> -> memref<1x!tpu.dma_semaphore, #tpu.memory_space<semaphore_mem>>
    %35 = tpu.memref_squeeze %34 : memref<1x!tpu.dma_semaphore, #tpu.memory_space<semaphore_mem>> -> memref<!tpu.dma_semaphore, #tpu.memory_space<semaphore_mem>>
    tpu.wait_dma2 semaphore(%35 : memref<!tpu.dma_semaphore, #tpu.memory_space<semaphore_mem>>) src(%arg12 : memref<2048x1024xbf16, #tpu.memory_space<any>>) dst(%arg15 : memref<2048x1024xbf16, #tpu.memory_space<vmem>>)
    %c0_22 = arith.constant 0 : index
    %c0_23 = arith.constant 0 : index
    %36 = vector.load %arg15[%c0_22, %c0_23] : memref<2048x1024xbf16, #tpu.memory_space<vmem>>, vector<2048x1024xbf16>
    %c0_24 = arith.constant 0 : index
    %c0_25 = arith.constant 0 : index
    %37 = vector.load %arg10[%c0_24, %c0_25] : memref<1x1024xf32, #tpu.memory_space<vmem>>, vector<1x1024xf32>
    %cst_26 = arith.constant dense<0.000000e+00> : vector<8x1024xf32>
    %38 = tpu.matmul %15, %36, %cst_26 {dimension_numbers = #tpu.dot_dimension_numbers<[1], [0], [0], [1], [0, 0, 1, 1], [], []>} : vector<8x2048xbf16>, vector<2048x1024xbf16>, vector<8x1024xf32> -> vector<8x1024xf32>
    %39 = vector.broadcast %37 : vector<1x1024xf32> to vector<8x1024xf32>
    %40 = arith.addf %38, %39 : vector<8x1024xf32>
    %cst_27 = arith.constant 0.000000e+00 : f32
    %41 = vector.broadcast %cst_27 : f32 to vector<8x1024xf32>
    %42 = arith.maximumf %40, %41 : vector<8x1024xf32>
    %43 = arith.truncf %42 : vector<8x1024xf32> to vector<8x1024xbf16>
    %c1_i32_28 = arith.constant 1 : i32
    %44 = tpu.memref_slice %arg17[%c1_i32_28] : memref<2x!tpu.dma_semaphore, #tpu.memory_space<semaphore_mem>> -> memref<1x!tpu.dma_semaphore, #tpu.memory_space<semaphore_mem>>
    %45 = tpu.memref_squeeze %44 : memref<1x!tpu.dma_semaphore, #tpu.memory_space<semaphore_mem>> -> memref<!tpu.dma_semaphore, #tpu.memory_space<semaphore_mem>>
    tpu.wait_dma2 semaphore(%45 : memref<!tpu.dma_semaphore, #tpu.memory_space<semaphore_mem>>) src(%arg13 : memref<1024x512xbf16, #tpu.memory_space<any>>) dst(%arg16 : memref<1024x512xbf16, #tpu.memory_space<vmem>>)
    %c0_29 = arith.constant 0 : index
    %c0_30 = arith.constant 0 : index
    %46 = vector.load %arg16[%c0_29, %c0_30] : memref<1024x512xbf16, #tpu.memory_space<vmem>>, vector<1024x512xbf16>
    %c0_31 = arith.constant 0 : index
    %c0_32 = arith.constant 0 : index
    %47 = vector.load %arg11[%c0_31, %c0_32] : memref<1x512xf32, #tpu.memory_space<vmem>>, vector<1x512xf32>
    %cst_33 = arith.constant dense<0.000000e+00> : vector<8x512xf32>
    %48 = tpu.matmul %43, %46, %cst_33 {dimension_numbers = #tpu.dot_dimension_numbers<[1], [0], [0], [1], [0, 0, 1, 1], [], []>} : vector<8x1024xbf16>, vector<1024x512xbf16>, vector<8x512xf32> -> vector<8x512xf32>
    %49 = vector.broadcast %47 : vector<1x512xf32> to vector<8x512xf32>
    %50 = arith.addf %48, %49 : vector<8x512xf32>
    %cst_34 = arith.constant 0.000000e+00 : f32
    %51 = vector.broadcast %cst_34 : f32 to vector<8x512xf32>
    %52 = arith.maximumf %50, %51 : vector<8x512xf32>
    %53 = arith.truncf %52 : vector<8x512xf32> to vector<8x512xbf16>
    %c0_35 = arith.constant 0 : index
    %c0_36 = arith.constant 0 : index
    %54 = vector.load %arg8[%c0_35, %c0_36] : memref<512x128xbf16, #tpu.memory_space<vmem>>, vector<512x128xbf16>
    %cst_37 = arith.constant dense<0.000000e+00> : vector<8x128xf32>
    %55 = tpu.matmul %53, %54, %cst_37 {dimension_numbers = #tpu.dot_dimension_numbers<[1], [0], [0], [1], [0, 0, 1, 1], [], []>} : vector<8x512xbf16>, vector<512x128xbf16>, vector<8x128xf32> -> vector<8x128xf32>
    %56 = arith.addf %33, %55 : vector<8x128xf32>
    %c0_38 = arith.constant 0 : index
    %c0_39 = arith.constant 0 : index
    %57 = vector.load %arg9[%c0_38, %c0_39] : memref<1x128xf32, #tpu.memory_space<vmem>>, vector<1x128xf32>
    %58 = vector.broadcast %57 : vector<1x128xf32> to vector<8x128xf32>
    %59 = arith.addf %56, %58 : vector<8x128xf32>
    %c0_40 = arith.constant 0 : index
    %c0_41 = arith.constant 0 : index
    %60 = vector.load %arg14[%c0_40, %c0_41] : memref<8x128xf32, #tpu.memory_space<vmem>>, vector<8x128xf32>
    tpu.vector_store %arg14[%c0_40, %c0_41], %59 {strides = array<i32>} : memref<8x128xf32, #tpu.memory_space<vmem>>, vector<8x128xf32>,
    return
  }
}

</mosaic_0001>

<llo_original>
// kernel: tpu_custom_call.1
$region0: #{tpu_custom_call.1}
  #allocation0 [shape = 'u32[]', space=smem, size = 0x4, offset = 0x4, fixed_abs, tag = 'smem constant byte address 0x4 - core index']
  #allocation1 [shape = 'u32[72,128]{1,0:T(1,128)}', space=vmem, size = 0x9000, scoped, tag = 'internal scratch']
  #allocation2 [shape = 'bf16[2048,1024]{1,0:T(8,128)(2,1)}', space=vmem, size = 0x400000, scoped, tag = 'scratch operand']
  #allocation3 [shape = 'bf16[1024,512]{1,0:T(8,128)(2,1)}', space=vmem, size = 0x100000, scoped, tag = 'scratch operand']
  #allocation4 [shape = 's32[2]{0}', space=sflag, size = 0x8, scoped, tag = 'scratch operand']
  #allocation26 [shape = 's32[]', space=sflag, size = 0x4, offset = 0, fixed_abs, tag = 'sflag constant byte address 0x0 - dummy sync flag']
  #allocation27 [shape = 's32[]', space=sflag, size = 0x4, offset = 0, fixed_abs, tag = 'sflag constant byte address 0x0 - dummy sync flag']
  #allocation28 [shape = 'u32[]', space=smem, size = 0x4, offset = 0x44, fixed_abs, tag = 'smem constant byte address 0x44 - assertion arg 0']
  #allocation29 [shape = 'u32[]', space=smem, size = 0x4, offset = 0x48, fixed_abs, tag = 'smem constant byte address 0x48 - assertion arg 1']
  #allocation30 [shape = 's32[]', space=sflag, size = 0x4, offset = 0, fixed_abs, tag = 'sflag constant byte address 0x0 - dummy sync flag']
  #allocation31 [shape = 's32[]', space=sflag, size = 0x4, offset = 0, fixed_abs, tag = 'sflag constant byte address 0x0 - dummy sync flag']
  %s0 = inlined_call_operand.hbm [shape: f32[8,48], index: 0, kind: input, shape index: {}]
  %s1 = inlined_call_operand.hbm [shape: bf16[48,3072], index: 1, kind: input, shape index: {}]
  %s2 = inlined_call_operand.hbm [shape: f32[1,3072], index: 2, kind: input, shape index: {}]
  %s3 = inlined_call_operand.hbm [shape: bf16[1024,512], index: 3, kind: input, shape index: {}]
  %s4 = inlined_call_operand.hbm [shape: f32[1,512], index: 4, kind: input, shape index: {}]
  %s5 = inlined_call_operand.hbm [shape: bf16[512,256], index: 5, kind: input, shape index: {}]
  %s6 = inlined_call_operand.hbm [shape: f32[1,256], index: 6, kind: input, shape index: {}]
  %s7 = inlined_call_operand.hbm [shape: bf16[256,128], index: 7, kind: input, shape index: {}]
  %s8 = inlined_call_operand.hbm [shape: bf16[512,128], index: 8, kind: input, shape index: {}]
  %s9 = inlined_call_operand.hbm [shape: f32[1,128], index: 9, kind: input, shape index: {}]
  %s10 = inlined_call_operand.hbm [shape: f32[1,1024], index: 10, kind: input, shape index: {}]
  %s11 = inlined_call_operand.hbm [shape: f32[1,512], index: 11, kind: input, shape index: {}]
  %s12 = inlined_call_operand.hbm [shape: bf16[2048,1024], index: 12, kind: input, shape index: {}]
  %s13 = inlined_call_operand.hbm [shape: bf16[1024,512], index: 13, kind: input, shape index: {}]
  %s14 = inlined_call_operand.hbm [shape: f32[8,128], index: 14, kind: output, shape index: {}]
  %s15 = sld [smem:[#allocation0]]
  $region114: #{tpu_custom_call.1} parent=0
    _
  %s17 = ssub.s32 1, %s15
  %s18 = scalar_select 0, %s17, %s15
  $region1: #{tpu_custom_call.1} parent=0
    #allocation5 [shape = 'u8[4096]{0}', space=vmem, size = 0x1000, scoped, tag = 'input window, operand 0, single buffered']
    #allocation6 [shape = 's32[1]{0}', space=sflag, size = 0x4, scoped, tag = 'scoped memory for tpu_custom_call.1']
    #allocation7 [shape = 's32[1]{0}', space=sflag, size = 0x4, scoped, tag = 'scoped memory for tpu_custom_call.1']
    #allocation8 [shape = 'u8[294912]{0}', space=vmem, size = 0x48000, scoped, tag = 'input window, operand 1, single buffered']
    #allocation9 [shape = 's32[1]{0}', space=sflag, size = 0x4, scoped, tag = 'scoped memory for tpu_custom_call.1']
    #allocation10 [shape = 'u8[12288]{0}', space=vmem, size = 0x3000, scoped, tag = 'input window, operand 2, single buffered']
    #allocation11 [shape = 'u8[1048576]{0}', space=vmem, size = 0x100000, scoped, tag = 'input window, operand 3, single buffered']
    #allocation12 [shape = 's32[1]{0}', space=sflag, size = 0x4, scoped, tag = 'scoped memory for tpu_custom_call.1']
    #allocation13 [shape = 'u8[2048]{0}', space=vmem, size = 0x800, scoped, tag = 'input window, operand 4, single buffered']
    #allocation14 [shape = 'u8[262144]{0}', space=vmem, size = 0x40000, scoped, tag = 'input window, operand 5, single buffered']
    #allocation15 [shape = 's32[1]{0}', space=sflag, size = 0x4, scoped, tag = 'scoped memory for tpu_custom_call.1']
    #allocation16 [shape = 'u8[1024]{0}', space=vmem, size = 0x400, scoped, tag = 'input window, operand 6, single buffered']
    #allocation17 [shape = 'u8[65536]{0}', space=vmem, size = 0x10000, scoped, tag = 'input window, operand 7, single buffered']
    #allocation18 [shape = 's32[1]{0}', space=sflag, size = 0x4, scoped, tag = 'scoped memory for tpu_custom_call.1']
    #allocation19 [shape = 'u8[131072]{0}', space=vmem, size = 0x20000, scoped, tag = 'input window, operand 8, single buffered']
    #allocation20 [shape = 'u8[512]{0}', space=vmem, size = 0x400, scoped, tag = 'input window, operand 9, single buffered']
    #allocation21 [shape = 's32[1]{0}', space=sflag, size = 0x4, scoped, tag = 'scoped memory for tpu_custom_call.1']
    #allocation22 [shape = 'u8[4096]{0}', space=vmem, size = 0x1000, scoped, tag = 'input window, operand 10, single buffered']
    #allocation23 [shape = 'u8[2048]{0}', space=vmem, size = 0x800, scoped, tag = 'input window, operand 11, single buffered']
    #allocation24 [shape = 's32[1]{0}', space=sflag, size = 0x4, scoped, tag = 'scoped memory for tpu_custom_call.1']
    #allocation25 [shape = 'u8[4096]{0}', space=vmem, size = 0x1000, scoped, tag = 'output window, operand 0, single buffered']
    %19 = vsyncpa [#allocation6], 0
    %20 = vsyncpa [#allocation9], 0
    %21 = vsyncpa [#allocation12], 0
    %22 = vsyncpa [#allocation15], 0
    %23 = vsyncpa [#allocation18], 0
    %24 = vsyncpa [#allocation21], 0
    %25 = vsyncpa [#allocation24], 0
    %26 = vsyncpa [#allocation7], 0
    // Predicated region
    $region2: #{tpu_custom_call.1} parent=1 // pred_check
      _
    $region3: #{tpu_custom_call.1} parent=1 // pred_check_branch
      %28 = sbr.rel (0) target = $region5
    $region4: #{tpu_custom_call.1} parent=1 // pred_region
      %30 = vsyncadd [#allocation6], 0
      %s32 = sshll.u32 %s0, 4
      %s33 = int_to_ptr.hbm [resolvable:$true] %s32
      %s34 = sshll.u32 [#allocation5], 4
      %s35 = int_to_ptr.vmem [resolvable:$true] %s34
      %37 = dma.hbm_to_vmem [thread:$0]  %s33, 128, %s35, [#allocation6]
    $region5: #{tpu_custom_call.1} parent=1 // pred_fallthru
      _
    // Predicated region
    $region6: #{tpu_custom_call.1} parent=1 // pred_check
      _
    $region7: #{tpu_custom_call.1} parent=1 // pred_check_branch
      %39 = sbr.rel (0) target = $region9
    $region8: #{tpu_custom_call.1} parent=1 // pred_region
      %41 = vsyncadd [#allocation9], 0
      %s42 = sshll.u32 %s1, 4
      %s43 = int_to_ptr.hbm [resolvable:$true] %s42
      %s44 = sshll.u32 [#allocation8], 4
      %s45 = int_to_ptr.vmem [resolvable:$true] %s44
      %50 = dma.hbm_to_vmem [thread:$0]  %s43, 9216, %s45, [#allocation9], 1536, 1536, 96
    $region9: #{tpu_custom_call.1} parent=1 // pred_fallthru
      _
    // Predicated region
    $region10: #{tpu_custom_call.1} parent=1 // pred_check
      _
    $region11: #{tpu_custom_call.1} parent=1 // pred_check_branch
      %52 = sbr.rel (0) target = $region13
    $region12: #{tpu_custom_call.1} parent=1 // pred_region
      %54 = vsyncadd [#allocation9], 0
      %s56 = sshll.u32 %s2, 4
      %s57 = int_to_ptr.hbm [resolvable:$true] %s56
      %s58 = sshll.u32 [#allocation10], 4
      %s59 = int_to_ptr.vmem [resolvable:$true] %s58
      %61 = dma.hbm_to_vmem [thread:$0]  %s57, 384, %s59, [#allocation9]
    $region13: #{tpu_custom_call.1} parent=1 // pred_fallthru
      _
    // Predicated region
    $region14: #{tpu_custom_call.1} parent=1 // pred_check
      _
    $region15: #{tpu_custom_call.1} parent=1 // pred_check_branch
      %63 = sbr.rel (0) target = $region17
    $region16: #{tpu_custom_call.1} parent=1 // pred_region
      %65 = vsyncadd [#allocation12], 0
      %s66 = sshll.u32 %s3, 4
      %s67 = int_to_ptr.hbm [resolvable:$true] %s66
      %s68 = sshll.u32 [#allocation11], 4
      %s69 = int_to_ptr.vmem [resolvable:$true] %s68
      %74 = dma.hbm_to_vmem [thread:$0]  %s67, 32768, %s69, [#allocation12], 256, 256, 16
    $region17: #{tpu_custom_call.1} parent=1 // pred_fallthru
      _
    // Predicated region
    $region18: #{tpu_custom_call.1} parent=1 // pred_check
      _
    $region19: #{tpu_custom_call.1} parent=1 // pred_check_branch
      %76 = sbr.rel (0) target = $region21
    $region20: #{tpu_custom_call.1} parent=1 // pred_region
      %78 = vsyncadd [#allocation12], 0
      %s80 = sshll.u32 %s4, 4
      %s81 = int_to_ptr.hbm [resolvable:$true] %s80
      %s82 = sshll.u32 [#allocation13], 4
      %s83 = int_to_ptr.vmem [resolvable:$true] %s82
      %85 = dma.hbm_to_vmem [thread:$0]  %s81, 64, %s83, [#allocation12]
    $region21: #{tpu_custom_call.1} parent=1 // pred_fallthru
      _
    // Predicated region
    $region22: #{tpu_custom_call.1} parent=1 // pred_check
      _
    $region23: #{tpu_custom_call.1} parent=1 // pred_check_branch
      %87 = sbr.rel (0) target = $region25
    $region24: #{tpu_custom_call.1} parent=1 // pred_region
      %89 = vsyncadd [#allocation15], 0
      %s90 = sshll.u32 %s5, 4
      %s91 = int_to_ptr.hbm [resolvable:$true] %s90
      %s92 = sshll.u32 [#allocation14], 4
      %s93 = int_to_ptr.vmem [resolvable:$true] %s92
      %98 = dma.hbm_to_vmem [thread:$0]  %s91, 8192, %s93, [#allocation15], 128, 128, 8
    $region25: #{tpu_custom_call.1} parent=1 // pred_fallthru
      _
    // Predicated region
    $region26: #{tpu_custom_call.1} parent=1 // pred_check
      _
    $region27: #{tpu_custom_call.1} parent=1 // pred_check_branch
      %100 = sbr.rel (0) target = $region29
    $region28: #{tpu_custom_call.1} parent=1 // pred_region
      %102 = vsyncadd [#allocation15], 0
      %s104 = sshll.u32 %s6, 4
      %s105 = int_to_ptr.hbm [resolvable:$true] %s104
      %s106 = sshll.u32 [#allocation16], 4
      %s107 = int_to_ptr.vmem [resolvable:$true] %s106
      %109 = dma.hbm_to_vmem [thread:$0]  %s105, 32, %s107, [#allocation15]
    $region29: #{tpu_custom_call.1} parent=1 // pred_fallthru
      _
    // Predicated region
    $region30: #{tpu_custom_call.1} parent=1 // pred_check
      _
    $region31: #{tpu_custom_call.1} parent=1 // pred_check_branch
      %111 = sbr.rel (0) target = $region33
    $region32: #{tpu_custom_call.1} parent=1 // pred_region
      %113 = vsyncadd [#allocation18], 0
      %s114 = sshll.u32 %s7, 4
      %s115 = int_to_ptr.hbm [resolvable:$true] %s114
      %s116 = sshll.u32 [#allocation17], 4
      %s117 = int_to_ptr.vmem [resolvable:$true] %s116
      %122 = dma.hbm_to_vmem [thread:$0]  %s115, 2048, %s117, [#allocation18], 64, 64, 4
    $region33: #{tpu_custom_call.1} parent=1 // pred_fallthru
      _
    // Predicated region
    $region34: #{tpu_custom_call.1} parent=1 // pred_check
      _
    $region35: #{tpu_custom_call.1} parent=1 // pred_check_branch
      %124 = sbr.rel (0) target = $region37
    $region36: #{tpu_custom_call.1} parent=1 // pred_region
      %126 = vsyncadd [#allocation18], 0
      %s127 = sshll.u32 %s8, 4
      %s128 = int_to_ptr.hbm [resolvable:$true] %s127
      %s129 = sshll.u32 [#allocation19], 4
      %s130 = int_to_ptr.vmem [resolvable:$true] %s129
      %135 = dma.hbm_to_vmem [thread:$0]  %s128, 4096, %s130, [#allocation18], 64, 64, 4
    $region37: #{tpu_custom_call.1} parent=1 // pred_fallthru
      _
    // Predicated region
    $region38: #{tpu_custom_call.1} parent=1 // pred_check
      _
    $region39: #{tpu_custom_call.1} parent=1 // pred_check_branch
      %137 = sbr.rel (0) target = $region41
    $region40: #{tpu_custom_call.1} parent=1 // pred_region
      %139 = vsyncadd [#allocation21], 0
      %s141 = sshll.u32 %s9, 4
      %s142 = int_to_ptr.hbm [resolvable:$true] %s141
      %s143 = sshll.u32 [#allocation20], 4
      %s144 = int_to_ptr.vmem [resolvable:$true] %s143
      %146 = dma.hbm_to_vmem [thread:$0]  %s142, 16, %s144, [#allocation21]
    $region41: #{tpu_custom_call.1} parent=1 // pred_fallthru
      _
    // Predicated region
    $region42: #{tpu_custom_call.1} parent=1 // pred_check
      _
    $region43: #{tpu_custom_call.1} parent=1 // pred_check_branch
      %148 = sbr.rel (0) target = $region45
    $region44: #{tpu_custom_call.1} parent=1 // pred_region
      %150 = vsyncadd [#allocation21], 0
      %s152 = sshll.u32 %s10, 4
      %s153 = int_to_ptr.hbm [resolvable:$true] %s152
      %s154 = sshll.u32 [#allocation22], 4
      %s155 = int_to_ptr.vmem [resolvable:$true] %s154
      %157 = dma.hbm_to_vmem [thread:$0]  %s153, 128, %s155, [#allocation21]
    $region45: #{tpu_custom_call.1} parent=1 // pred_fallthru
      _
    // Predicated region
    $region46: #{tpu_custom_call.1} parent=1 // pred_check
      _
    $region47: #{tpu_custom_call.1} parent=1 // pred_check_branch
      %159 = sbr.rel (0) target = $region49
    $region48: #{tpu_custom_call.1} parent=1 // pred_region
      %161 = vsyncadd [#allocation24], 0
      %s163 = sshll.u32 %s11, 4
      %s164 = int_to_ptr.hbm [resolvable:$true] %s163
      %s165 = sshll.u32 [#allocation23], 4
      %s166 = int_to_ptr.vmem [resolvable:$true] %s165
      %168 = dma.hbm_to_vmem [thread:$0]  %s164, 64, %s166, [#allocation24]
    $region49: #{tpu_custom_call.1} parent=1 // pred_fallthru
      _
    // Predicated region
    $region50: #{tpu_custom_call.1} parent=1 // pred_check
      _
    $region51: #{tpu_custom_call.1} parent=1 // pred_check_branch
      %170 = sbr.rel (0) target = $region53
    $region52: #{tpu_custom_call.1} parent=1 // pred_region
      %172 = dma.done [#allocation6], 128
    $region53: #{tpu_custom_call.1} parent=1 // pred_fallthru
      _
    // Predicated region
    $region54: #{tpu_custom_call.1} parent=1 // pred_check
      _
    $region55: #{tpu_custom_call.1} parent=1 // pred_check_branch
      %174 = sbr.rel (0) target = $region57
    $region56: #{tpu_custom_call.1} parent=1 // pred_region
      %176 = dma.done [#allocation9], 9216
    $region57: #{tpu_custom_call.1} parent=1 // pred_fallthru
      _
    // Predicated region
    $region58: #{tpu_custom_call.1} parent=1 // pred_check
      _
    $region59: #{tpu_custom_call.1} parent=1 // pred_check_branch
      %178 = sbr.rel (0) target = $region61
    $region60: #{tpu_custom_call.1} parent=1 // pred_region
      %180 = dma.done [#allocation9], 384
    $region61: #{tpu_custom_call.1} parent=1 // pred_fallthru
      _
    // Predicated region
    $region62: #{tpu_custom_call.1} parent=1 // pred_check
      _
    $region63: #{tpu_custom_call.1} parent=1 // pred_check_branch
      %182 = sbr.rel (0) target = $region65
    $region64: #{tpu_custom_call.1} parent=1 // pred_region
      %184 = dma.done [#allocation12], 32768
    $region65: #{tpu_custom_call.1} parent=1 // pred_fallthru
      _
    // Predicated region
    $region66: #{tpu_custom_call.1} parent=1 // pred_check
      _
    $region67: #{tpu_custom_call.1} parent=1 // pred_check_branch
      %186 = sbr.rel (0) target = $region69
    $region68: #{tpu_custom_call.1} parent=1 // pred_region
      %188 = dma.done [#allocation12], 64
    $region69: #{tpu_custom_call.1} parent=1 // pred_fallthru
      _
    // Predicated region
    $region70: #{tpu_custom_call.1} parent=1 // pred_check
      _
    $region71: #{tpu_custom_call.1} parent=1 // pred_check_branch
      %190 = sbr.rel (0) target = $region73
    $region72: #{tpu_custom_call.1} parent=1 // pred_region
      %192 = dma.done [#allocation15], 8192
    $region73: #{tpu_custom_call.1} parent=1 // pred_fallthru
      _
    // Predicated region
    $region74: #{tpu_custom_call.1} parent=1 // pred_check
      _
    $region75: #{tpu_custom_call.1} parent=1 // pred_check_branch
      %194 = sbr.rel (0) target = $region77
    $region76: #{tpu_custom_call.1} parent=1 // pred_region
      %196 = dma.done [#allocation15], 32
    $region77: #{tpu_custom_call.1} parent=1 // pred_fallthru
      _
    // Predicated region
    $region78: #{tpu_custom_call.1} parent=1 // pred_check
      _
    $region79: #{tpu_custom_call.1} parent=1 // pred_check_branch
      %198 = sbr.rel (0) target = $region81
    $region80: #{tpu_custom_call.1} parent=1 // pred_region
      %200 = dma.done [#allocation18], 2048
    $region81: #{tpu_custom_call.1} parent=1 // pred_fallthru
      _
    // Predicated region
    $region82: #{tpu_custom_call.1} parent=1 // pred_check
      _
    $region83: #{tpu_custom_call.1} parent=1 // pred_check_branch
      %202 = sbr.rel (0) target = $region85
    $region84: #{tpu_custom_call.1} parent=1 // pred_region
      %204 = dma.done [#allocation18], 4096
    $region85: #{tpu_custom_call.1} parent=1 // pred_fallthru
      _
    // Predicated region
    $region86: #{tpu_custom_call.1} parent=1 // pred_check
      _
    $region87: #{tpu_custom_call.1} parent=1 // pred_check_branch
      %206 = sbr.rel (0) target = $region89
    $region88: #{tpu_custom_call.1} parent=1 // pred_region
      %208 = dma.done [#allocation21], 16
    $region89: #{tpu_custom_call.1} parent=1 // pred_fallthru
      _
    // Predicated region
    $region90: #{tpu_custom_call.1} parent=1 // pred_check
      _
    $region91: #{tpu_custom_call.1} parent=1 // pred_check_branch
      %210 = sbr.rel (0) target = $region93
    $region92: #{tpu_custom_call.1} parent=1 // pred_region
      %212 = dma.done [#allocation21], 128
    $region93: #{tpu_custom_call.1} parent=1 // pred_fallthru
      _
    // Predicated region
    $region94: #{tpu_custom_call.1} parent=1 // pred_check
      _
    $region95: #{tpu_custom_call.1} parent=1 // pred_check_branch
      %214 = sbr.rel (0) target = $region97
    $region96: #{tpu_custom_call.1} parent=1 // pred_region
      %216 = dma.done [#allocation24], 64
    $region97: #{tpu_custom_call.1} parent=1 // pred_fallthru
      _
    // Predicated region
    $region98: #{tpu_custom_call.1} parent=1 // pred_check
      _
    $region99: #{tpu_custom_call.1} parent=1 // pred_check_branch
      %219 = sbr.rel target = $region101
    $region100: #{tpu_custom_call.1} parent=1 // pred_region
      %220 = sst [smem:[#allocation28]] [#allocation27]
      %221 = sst [smem:[#allocation29]] [#allocation26]
    $region101: #{tpu_custom_call.1} parent=1 // pred_fallthru
      _
    %223 = shalt.err (0)
    %s225 = sshll.u32 %s12, 4
    %s226 = int_to_ptr.hbm [resolvable:$true] %s225
    %s227 = sshll.u32 [#allocation2], 4
    %s228 = int_to_ptr.vmem [resolvable:$true] %s227
    %230 = dma.hbm_to_vmem [thread:$0]  %s226, 131072, %s228, [#allocation4]
    %s231 = scalar_lea.sflag [#allocation4], 1
    // Predicated region
    $region102: #{tpu_custom_call.1} parent=1 // pred_check
      _
    $region103: #{tpu_custom_call.1} parent=1 // pred_check_branch
      %233 = sbr.rel target = $region105
    $region104: #{tpu_custom_call.1} parent=1 // pred_region
      %234 = sst [smem:[#allocation28]] [#allocation31]
      %235 = sst [smem:[#allocation29]] [#allocation30]
    $region105: #{tpu_custom_call.1} parent=1 // pred_fallthru
      _
    %237 = shalt.err (0)
    %s239 = sshll.u32 %s13, 4
    %s240 = int_to_ptr.hbm [resolvable:$true] %s239
    %s241 = sshll.u32 [#allocation3], 4
    %s242 = int_to_ptr.vmem [resolvable:$true] %s241
    %244 = dma.hbm_to_vmem [thread:$0]  %s240, 32768, %s242, %s231
    %v245 = vld [vmem:[#allocation5] sm:$0xff]
    %v246 = vpack.c.bf16 %v245, %v245
    %v247 = vld [vmem:[#allocation8] sm:$0xff]
    %v248 = vld [vmem:[#allocation8 + $0x8] sm:$0xff]
    %v249 = vld [vmem:[#allocation8 + $0x10] sm:$0xff]
    %v250 = vld [vmem:[#allocation8 + $0x18] sm:$0xff]
    %v251 = vld [vmem:[#allocation8 + $0x20] sm:$0xff]
    %v252 = vld [vmem:[#allocation8 + $0x28] sm:$0xff]
    %v253 = vld [vmem:[#allocation8 + $0x30] sm:$0xff]
    %v254 = vld [vmem:[#allocation8 + $0x38] sm:$0xff]
    %v255 = vld [vmem:[#allocation8 + $0x40] sm:$0xff]
    %v256 = vld [vmem:[#allocation8 + $0x48] sm:$0xff]
    %v257 = vld [vmem:[#allocation8 + $0x50] sm:$0xff]
    %v258 = vld [vmem:[#allocation8 + $0x58] sm:$0xff]
    %v259 = vld [vmem:[#allocation8 + $0x60] sm:$0xff]
    %v260 = vld [vmem:[#allocation8 + $0x68] sm:$0xff]
    %v261 = vld [vmem:[#allocation8 + $0x70] sm:$0xff]
    %v262 = vld [vmem:[#allocation8 + $0x78] sm:$0xff]
    %v263 = vld [vmem:[#allocation8 + $0x80] sm:$0xff]
    %v264 = vld [vmem:[#allocation8 + $0x88] sm:$0xff]
    %v265 = vld [vmem:[#allocation8 + $0x90] sm:$0xff]
    %v266 = vld [vmem:[#allocation8 + $0x98] sm:$0xff]
    %v267 = vld [vmem:[#allocation8 + $0xa0] sm:$0xff]
    %v268 = vld [vmem:[#allocation8 + $0xa8] sm:$0xff]
    %v269 = vld [vmem:[#allocation8 + $0xb0] sm:$0xff]
    %v270 = vld [vmem:[#allocation8 + $0xb8] sm:$0xff]
    %v271 = vld [vmem:[#allocation8 + $0xc0] sm:$0xff]
    %v272 = vld [vmem:[#allocation8 + $0xc8] sm:$0xff]
    %v273 = vld [vmem:[#allocation8 + $0xd0] sm:$0xff]
    %v274 = vld [vmem:[#allocation8 + $0xd8] sm:$0xff]
    %v275 = vld [vmem:[#allocation8 + $0xe0] sm:$0xff]
    %v276 = vld [vmem:[#allocation8 + $0xe8] sm:$0xff]
    %v277 = vld [vmem:[#allocation8 + $0xf0] sm:$0xff]
    %v278 = vld [vmem:[#allocation8 + $0xf8] sm:$0xff]
    %v279 = vld [vmem:[#allocation8 + $0x100] sm:$0xff]
    %v280 = vld [vmem:[#allocation8 + $0x108] sm:$0xff]
    %v281 = vld [vmem:[#allocation8 + $0x110] sm:$0xff]
    %v282 = vld [vmem:[#allocation8 + $0x118] sm:$0xff]
    %v283 = vld [vmem:[#allocation8 + $0x120] sm:$0xff]
    %v284 = vld [vmem:[#allocation8 + $0x128] sm:$0xff]
    %v285 = vld [vmem:[#allocation8 + $0x130] sm:$0xff]
    %v286 = vld [vmem:[#allocation8 + $0x138] sm:$0xff]
    %v287 = vld [vmem:[#allocation8 + $0x140] sm:$0xff]
    %v288 = vld [vmem:[#allocation8 + $0x148] sm:$0xff]
    %v289 = vld [vmem:[#allocation8 + $0x150] sm:$0xff]
    %v290 = vld [vmem:[#allocation8 + $0x158] sm:$0xff]
    %v291 = vld [vmem:[#allocation8 + $0x160] sm:$0xff]
    %v292 = vld [vmem:[#allocation8 + $0x168] sm:$0xff]
    %v293 = vld [vmem:[#allocation8 + $0x170] sm:$0xff]
    %v294 = vld [vmem:[#allocation8 + $0x178] sm:$0xff]
    %v295 = vld [vmem:[#allocation8 + $0x180] sm:$0xff]
    %v296 = vld [vmem:[#allocation8 + $0x188] sm:$0xff]
    %v297 = vld [vmem:[#allocation8 + $0x190] sm:$0xff]
    %v298 = vld [vmem:[#allocation8 + $0x198] sm:$0xff]
    %v299 = vld [vmem:[#allocation8 + $0x1a0] sm:$0xff]
    %v300 = vld [vmem:[#allocation8 + $0x1a8] sm:$0xff]
    %v301 = vld [vmem:[#allocation8 + $0x1b0] sm:$0xff]
    %v302 = vld [vmem:[#allocation8 + $0x1b8] sm:$0xff]
    %v303 = vld [vmem:[#allocation8 + $0x1c0] sm:$0xff]
    %v304 = vld [vmem:[#allocation8 + $0x1c8] sm:$0xff]
    %v305 = vld [vmem:[#allocation8 + $0x1d0] sm:$0xff]
    %v306 = vld [vmem:[#allocation8 + $0x1d8] sm:$0xff]
    %v307 = vld [vmem:[#allocation8 + $0x1e0] sm:$0xff]
    %v308 = vld [vmem:[#allocation8 + $0x1e8] sm:$0xff]
    %v309 = vld [vmem:[#allocation8 + $0x1f0] sm:$0xff]
    %v310 = vld [vmem:[#allocation8 + $0x1f8] sm:$0xff]
    %v311 = vld [vmem:[#allocation8 + $0x200] sm:$0xff]
    %v312 = vld [vmem:[#allocation8 + $0x208] sm:$0xff]
    %v313 = vld [vmem:[#allocation8 + $0x210] sm:$0xff]
    %v314 = vld [vmem:[#allocation8 + $0x218] sm:$0xff]
    %v315 = vld [vmem:[#allocation8 + $0x220] sm:$0xff]
    %v316 = vld [vmem:[#allocation8 + $0x228] sm:$0xff]
    %v317 = vld [vmem:[#allocation8 + $0x230] sm:$0xff]
    %v318 = vld [vmem:[#allocation8 + $0x238] sm:$0xff]
    %v319 = vld [vmem:[#allocation10] sm:$0xff]
    %v320 = vld [vmem:[#allocation10 + $0x8] sm:$0xff]
    %v321 = vld [vmem:[#allocation10 + $0x10] sm:$0xff]
    %v325 = vperm.slane %v319, 0
    %v326 = vperm.slane %v319, 1
    %v327 = vperm.slane %v319, 2
    %v328 = vperm.slane %v319, 3
    %v329 = vperm.slane %v319, 4
    %v330 = vperm.slane %v319, 5
    %v331 = vperm.slane %v319, 6
    %v332 = vperm.slane %v319, 7
    %v333 = vperm.slane %v320, 0
    %v334 = vperm.slane %v320, 1
    %v335 = vperm.slane %v320, 2
    %v336 = vperm.slane %v320, 3
    %v337 = vperm.slane %v320, 4
    %v338 = vperm.slane %v320, 5
    %v339 = vperm.slane %v320, 6
    %v340 = vperm.slane %v320, 7
    %v341 = vperm.slane %v321, 0
    %v342 = vperm.slane %v321, 1
    %v343 = vperm.slane %v321, 2
    %v344 = vperm.slane %v321, 3
    %v345 = vperm.slane %v321, 4
    %v346 = vperm.slane %v321, 5
    %v347 = vperm.slane %v321, 6
    %v348 = vperm.slane %v321, 7
    %v445 = vunpack.c.l.b16 %v247
    %v446 = vunpack.c.h.b16 %v247
    %v447 = vunpack.c.l.b16 %v248
    %v448 = vunpack.c.h.b16 %v248
    %v449 = vunpack.c.l.b16 %v249
    %v450 = vunpack.c.h.b16 %v249
    %v451 = vunpack.c.l.b16 %v250
    %v452 = vunpack.c.h.b16 %v250
    %v453 = vunpack.c.l.b16 %v251
    %v454 = vunpack.c.h.b16 %v251
    %v455 = vunpack.c.l.b16 %v252
    %v456 = vunpack.c.h.b16 %v252
    %v457 = vunpack.c.l.b16 %v253
    %v458 = vunpack.c.h.b16 %v253
    %v459 = vunpack.c.l.b16 %v254
    %v460 = vunpack.c.h.b16 %v254
    %v461 = vunpack.c.l.b16 %v255
    %v462 = vunpack.c.h.b16 %v255
    %v463 = vunpack.c.l.b16 %v256
    %v464 = vunpack.c.h.b16 %v256
    %v465 = vunpack.c.l.b16 %v257
    %v466 = vunpack.c.h.b16 %v257
    %v467 = vunpack.c.l.b16 %v258
    %v468 = vunpack.c.h.b16 %v258
    %v469 = vunpack.c.l.b16 %v259
    %v470 = vunpack.c.h.b16 %v259
    %v471 = vunpack.c.l.b16 %v260
    %v472 = vunpack.c.h.b16 %v260
    %v473 = vunpack.c.l.b16 %v261
    %v474 = vunpack.c.h.b16 %v261
    %v475 = vunpack.c.l.b16 %v262
    %v476 = vunpack.c.h.b16 %v262
    %v477 = vunpack.c.l.b16 %v263
    %v478 = vunpack.c.h.b16 %v263
    %v479 = vunpack.c.l.b16 %v264
    %v480 = vunpack.c.h.b16 %v264
    %v481 = vunpack.c.l.b16 %v265
    %v482 = vunpack.c.h.b16 %v265
    %v483 = vunpack.c.l.b16 %v266
    %v484 = vunpack.c.h.b16 %v266
    %v485 = vunpack.c.l.b16 %v267
    %v486 = vunpack.c.h.b16 %v267
    %v487 = vunpack.c.l.b16 %v268
    %v488 = vunpack.c.h.b16 %v268
    %v489 = vunpack.c.l.b16 %v269
    %v490 = vunpack.c.h.b16 %v269
    %v491 = vunpack.c.l.b16 %v270
    %v492 = vunpack.c.h.b16 %v270
    %v493 = vunpack.c.l.b16 %v271
    %v494 = vunpack.c.h.b16 %v271
    %v495 = vunpack.c.l.b16 %v272
    %v496 = vunpack.c.h.b16 %v272
    %v497 = vunpack.c.l.b16 %v273
    %v498 = vunpack.c.h.b16 %v273
    %v499 = vunpack.c.l.b16 %v274
    %v500 = vunpack.c.h.b16 %v274
    %v501 = vunpack.c.l.b16 %v275
    %v502 = vunpack.c.h.b16 %v275
    %v503 = vunpack.c.l.b16 %v276
    %v504 = vunpack.c.h.b16 %v276
    %v505 = vunpack.c.l.b16 %v277
    %v506 = vunpack.c.h.b16 %v277
    %v507 = vunpack.c.l.b16 %v278
    %v508 = vunpack.c.h.b16 %v278
    %v509 = vunpack.c.l.b16 %v279
    %v510 = vunpack.c.h.b16 %v279
    %v511 = vunpack.c.l.b16 %v280
    %v512 = vunpack.c.h.b16 %v280
    %v513 = vunpack.c.l.b16 %v281
    %v514 = vunpack.c.h.b16 %v281
    %v515 = vunpack.c.l.b16 %v282
    %v516 = vunpack.c.h.b16 %v282
    %v517 = vunpack.c.l.b16 %v283
    %v518 = vunpack.c.h.b16 %v283
    %v519 = vunpack.c.l.b16 %v284
    %v520 = vunpack.c.h.b16 %v284
    %v521 = vunpack.c.l.b16 %v285
    %v522 = vunpack.c.h.b16 %v285
    %v523 = vunpack.c.l.b16 %v286
    %v524 = vunpack.c.h.b16 %v286
    %v525 = vunpack.c.l.b16 %v287
    %v526 = vunpack.c.h.b16 %v287
    %v527 = vunpack.c.l.b16 %v288
    %v528 = vunpack.c.h.b16 %v288
    %v529 = vunpack.c.l.b16 %v289
    %v530 = vunpack.c.h.b16 %v289
    %v531 = vunpack.c.l.b16 %v290
    %v532 = vunpack.c.h.b16 %v290
    %v533 = vunpack.c.l.b16 %v291
    %v534 = vunpack.c.h.b16 %v291
    %v535 = vunpack.c.l.b16 %v292
    %v536 = vunpack.c.h.b16 %v292
    %v537 = vunpack.c.l.b16 %v293
    %v538 = vunpack.c.h.b16 %v293
    %v539 = vunpack.c.l.b16 %v294
    %v540 = vunpack.c.h.b16 %v294
    %v541 = vunpack.c.l.b16 %v295
    %v542 = vunpack.c.h.b16 %v295
    %v543 = vunpack.c.l.b16 %v296
    %v544 = vunpack.c.h.b16 %v296
    %v545 = vunpack.c.l.b16 %v297
    %v546 = vunpack.c.h.b16 %v297
    %v547 = vunpack.c.l.b16 %v298
    %v548 = vunpack.c.h.b16 %v298
    %v549 = vunpack.c.l.b16 %v299
    %v550 = vunpack.c.h.b16 %v299
    %v551 = vunpack.c.l.b16 %v300
    %v552 = vunpack.c.h.b16 %v300
    %v553 = vunpack.c.l.b16 %v301
    %v554 = vunpack.c.h.b16 %v301
    %v555 = vunpack.c.l.b16 %v302
    %v556 = vunpack.c.h.b16 %v302
    %v557 = vunpack.c.l.b16 %v303
    %v558 = vunpack.c.h.b16 %v303
    %v559 = vunpack.c.l.b16 %v304
    %v560 = vunpack.c.h.b16 %v304
    %v561 = vunpack.c.l.b16 %v305
    %v562 = vunpack.c.h.b16 %v305
    %v563 = vunpack.c.l.b16 %v306
    %v564 = vunpack.c.h.b16 %v306
    %v565 = vunpack.c.l.b16 %v307
    %v566 = vunpack.c.h.b16 %v307
    %v567 = vunpack.c.l.b16 %v308
    %v568 = vunpack.c.h.b16 %v308
    %v569 = vunpack.c.l.b16 %v309
    %v570 = vunpack.c.h.b16 %v309
    %v571 = vunpack.c.l.b16 %v310
    %v572 = vunpack.c.h.b16 %v310
    %v573 = vunpack.c.l.b16 %v311
    %v574 = vunpack.c.h.b16 %v311
    %v575 = vunpack.c.l.b16 %v312
    %v576 = vunpack.c.h.b16 %v312
    %v577 = vunpack.c.l.b16 %v313
    %v578 = vunpack.c.h.b16 %v313
    %v579 = vunpack.c.l.b16 %v314
    %v580 = vunpack.c.h.b16 %v314
    %v581 = vunpack.c.l.b16 %v315
    %v582 = vunpack.c.h.b16 %v315
    %v583 = vunpack.c.l.b16 %v316
    %v584 = vunpack.c.h.b16 %v316
    %v585 = vunpack.c.l.b16 %v317
    %v586 = vunpack.c.h.b16 %v317
    %v587 = vunpack.c.l.b16 %v318
    %v588 = vunpack.c.h.b16 %v318
    %v589 = vpack.c.b16 %v469, %v445
    %v590 = vpack.c.b16 %v470, %v446
    %v591 = vpack.c.b16 %v471, %v447
    %v592 = vpack.c.b16 %v472, %v448
    %v593 = vpack.c.b16 %v473, %v449
    %v594 = vpack.c.b16 %v474, %v450
    %v595 = vpack.c.b16 %v475, %v451
    %v596 = vpack.c.b16 %v476, %v452
    %v597 = vpack.c.b16 %v477, %v453
    %v598 = vpack.c.b16 %v478, %v454
    %v599 = vpack.c.b16 %v479, %v455
    %v600 = vpack.c.b16 %v480, %v456
    %v601 = vpack.c.b16 %v481, %v457
    %v602 = vpack.c.b16 %v482, %v458
    %v603 = vpack.c.b16 %v483, %v459
    %v604 = vpack.c.b16 %v484, %v460
    %v605 = vpack.c.b16 %v485, %v461
    %v606 = vpack.c.b16 %v486, %v462
    %v607 = vpack.c.b16 %v487, %v463
    %v608 = vpack.c.b16 %v488, %v464
    %v609 = vpack.c.b16 %v489, %v465
    %v610 = vpack.c.b16 %v490, %v466
    %v611 = vpack.c.b16 %v491, %v467
    %v612 = vpack.c.b16 %v492, %v468
    %v613 = vpack.c.b16 %v517, %v493
    %v614 = vpack.c.b16 %v518, %v494
    %v615 = vpack.c.b16 %v519, %v495
    %v616 = vpack.c.b16 %v520, %v496
    %v617 = vpack.c.b16 %v521, %v497
    %v618 = vpack.c.b16 %v522, %v498
    %v619 = vpack.c.b16 %v523, %v499
    %v620 = vpack.c.b16 %v524, %v500
    %v621 = vpack.c.b16 %v525, %v501
    %v622 = vpack.c.b16 %v526, %v502
    %v623 = vpack.c.b16 %v527, %v503
    %v624 = vpack.c.b16 %v528, %v504
    %v625 = vpack.c.b16 %v529, %v505
    %v626 = vpack.c.b16 %v530, %v506
    %v627 = vpack.c.b16 %v531, %v507
    %v628 = vpack.c.b16 %v532, %v508
    %v629 = vpack.c.b16 %v533, %v509
    %v630 = vpack.c.b16 %v534, %v510
    %v631 = vpack.c.b16 %v535, %v511
    %v632 = vpack.c.b16 %v536, %v512
    %v633 = vpack.c.b16 %v537, %v513
    %v634 = vpack.c.b16 %v538, %v514
    %v635 = vpack.c.b16 %v539, %v515
    %v636 = vpack.c.b16 %v540, %v516
    %v637 = vpack.c.b16 %v565, %v541
    %v638 = vpack.c.b16 %v566, %v542
    %v639 = vpack.c.b16 %v567, %v543
    %v640 = vpack.c.b16 %v568, %v544
    %v641 = vpack.c.b16 %v569, %v545
    %v642 = vpack.c.b16 %v570, %v546
    %v643 = vpack.c.b16 %v571, %v547
    %v644 = vpack.c.b16 %v572, %v548
    %v645 = vpack.c.b16 %v573, %v549
    %v646 = vpack.c.b16 %v574, %v550
    %v647 = vpack.c.b16 %v575, %v551
    %v648 = vpack.c.b16 %v576, %v552
    %v649 = vpack.c.b16 %v577, %v553
    %v650 = vpack.c.b16 %v578, %v554
    %v651 = vpack.c.b16 %v579, %v555
    %v652 = vpack.c.b16 %v580, %v556
    %v653 = vpack.c.b16 %v581, %v557
    %v654 = vpack.c.b16 %v582, %v558
    %v655 = vpack.c.b16 %v583, %v559
    %v656 = vpack.c.b16 %v584, %v560
    %v657 = vpack.c.b16 %v585, %v561
    %v658 = vpack.c.b16 %v586, %v562
    %v659 = vpack.c.b16 %v587, %v563
    %v660 = vpack.c.b16 %v588, %v564
    %vm733 = vcmask 392192
    %v735 = vsel %vm733, %v246, 0
    %737 = vmatpush.bf16.msra.mxu0 0
    %738 = vmatpush.bf16.msra.mxu0 0
    %739 = vmatpush.bf16.msra.mxu0 0
    %740 = vmatpush.bf16.msra.mxu0 0
    %741 = vmatpush.bf16.msra.mxu0 0
    %742 = vmatpush.bf16.msra.mxu0 %v637
    %743 = vmatpush.bf16.msra.mxu0 %v613
    %744 = vmatpush.bf16.msra.mxu0 %v589
    %745 = vmatmul.bf16.gmra.mxu0 %v735
    %v746 = vpop.f32.mrf.mxu0
    %v747 = vadd.f32 %v325, %v746
    %v748 = vpop.f32.mrf.mxu0
    %749 = vdwg.mxu0
    %750 = vmatpush.bf16.msra.mxu0 0
    %751 = vmatpush.bf16.msra.mxu0 0
    %752 = vmatpush.bf16.msra.mxu0 0
    %753 = vmatpush.bf16.msra.mxu0 0
    %754 = vmatpush.bf16.msra.mxu0 0
    %755 = vmatpush.bf16.msra.mxu0 %v638
    %756 = vmatpush.bf16.msra.mxu0 %v614
    %757 = vmatpush.bf16.msra.mxu0 %v590
    %758 = vmatmul.bf16.gmra.mxu0 %v735
    %v759 = vpop.f32.mrf.mxu0
    %v760 = vadd.f32 %v326, %v759
    %v761 = vpop.f32.mrf.mxu0
    %762 = vdwg.mxu0
    %763 = vmatpush.bf16.msra.mxu0 0
    %764 = vmatpush.bf16.msra.mxu0 0
    %765 = vmatpush.bf16.msra.mxu0 0
    %766 = vmatpush.bf16.msra.mxu0 0
    %767 = vmatpush.bf16.msra.mxu0 0
    %768 = vmatpush.bf16.msra.mxu0 %v639
    %769 = vmatpush.bf16.msra.mxu0 %v615
    %770 = vmatpush.bf16.msra.mxu0 %v591
    %771 = vmatmul.bf16.gmra.mxu0 %v735
    %v772 = vpop.f32.mrf.mxu0
    %v773 = vadd.f32 %v327, %v772
    %v774 = vpop.f32.mrf.mxu0
    %775 = vdwg.mxu0
    %776 = vmatpush.bf16.msra.mxu0 0
    %777 = vmatpush.bf16.msra.mxu0 0
    %778 = vmatpush.bf16.msra.mxu0 0
    %779 = vmatpush.bf16.msra.mxu0 0
    %780 = vmatpush.bf16.msra.mxu0 0
    %781 = vmatpush.bf16.msra.mxu0 %v640
    %782 = vmatpush.bf16.msra.mxu0 %v616
    %783 = vmatpush.bf16.msra.mxu0 %v592
    %784 = vmatmul.bf16.gmra.mxu0 %v735
    %v785 = vpop.f32.mrf.mxu0
    %v786 = vadd.f32 %v328, %v785
    %v787 = vpop.f32.mrf.mxu0
    %788 = vdwg.mxu0
    %789 = vmatpush.bf16.msra.mxu0 0
    %790 = vmatpush.bf16.msra.mxu0 0
    %791 = vmatpush.bf16.msra.mxu0 0
    %792 = vmatpush.bf16.msra.mxu0 0
    %793 = vmatpush.bf16.msra.mxu0 0
    %794 = vmatpush.bf16.msra.mxu0 %v641
    %795 = vmatpush.bf16.msra.mxu0 %v617
    %796 = vmatpush.bf16.msra.mxu0 %v593
    %797 = vmatmul.bf16.gmra.mxu0 %v735
    %v798 = vpop.f32.mrf.mxu0
    %v799 = vadd.f32 %v329, %v798
    %v800 = vpop.f32.mrf.mxu0
    %801 = vdwg.mxu0
    %802 = vmatpush.bf16.msra.mxu0 0
    %803 = vmatpush.bf16.msra.mxu0 0
    %804 = vmatpush.bf16.msra.mxu0 0
    %805 = vmatpush.bf16.msra.mxu0 0
    %806 = vmatpush.bf16.msra.mxu0 0
    %807 = vmatpush.bf16.msra.mxu0 %v642
    %808 = vmatpush.bf16.msra.mxu0 %v618
    %809 = vmatpush.bf16.msra.mxu0 %v594
    %810 = vmatmul.bf16.gmra.mxu0 %v735
    %v811 = vpop.f32.mrf.mxu0
    %v812 = vadd.f32 %v330, %v811
    %v813 = vpop.f32.mrf.mxu0
    %814 = vdwg.mxu0
    %815 = vmatpush.bf16.msra.mxu0 0
    %816 = vmatpush.bf16.msra.mxu0 0
    %817 = vmatpush.bf16.msra.mxu0 0
    %818 = vmatpush.bf16.msra.mxu0 0
    %819 = vmatpush.bf16.msra.mxu0 0
    %820 = vmatpush.bf16.msra.mxu0 %v643
    %821 = vmatpush.bf16.msra.mxu0 %v619
    %822 = vmatpush.bf16.msra.mxu0 %v595
    %823 = vmatmul.bf16.gmra.mxu0 %v735
    %v824 = vpop.f32.mrf.mxu0
    %v825 = vadd.f32 %v331, %v824
    %v826 = vpop.f32.mrf.mxu0
    %827 = vdwg.mxu0
    %828 = vmatpush.bf16.msra.mxu0 0
    %829 = vmatpush.bf16.msra.mxu0 0
    %830 = vmatpush.bf16.msra.mxu0 0
    %831 = vmatpush.bf16.msra.mxu0 0
    %832 = vmatpush.bf16.msra.mxu0 0
    %833 = vmatpush.bf16.msra.mxu0 %v644
    %834 = vmatpush.bf16.msra.mxu0 %v620
    %835 = vmatpush.bf16.msra.mxu0 %v596
    %836 = vmatmul.bf16.gmra.mxu0 %v735
    %v837 = vpop.f32.mrf.mxu0
    %v838 = vadd.f32 %v332, %v837
    %v839 = vpop.f32.mrf.mxu0
    %840 = vdwg.mxu0
    %841 = vmatpush.bf16.msra.mxu0 0
    %842 = vmatpush.bf16.msra.mxu0 0
    %843 = vmatpush.bf16.msra.mxu0 0
    %844 = vmatpush.bf16.msra.mxu0 0
    %845 = vmatpush.bf16.msra.mxu0 0
    %846 = vmatpush.bf16.msra.mxu0 %v645
    %847 = vmatpush.bf16.msra.mxu0 %v621
    %848 = vmatpush.bf16.msra.mxu0 %v597
    %849 = vmatmul.bf16.gmra.mxu0 %v735
    %v850 = vpop.f32.mrf.mxu0
    %v851 = vadd.f32 %v333, %v850
    %v852 = vpop.f32.mrf.mxu0
    %853 = vdwg.mxu0
    %854 = vmatpush.bf16.msra.mxu0 0
    %855 = vmatpush.bf16.msra.mxu0 0
    %856 = vmatpush.bf16.msra.mxu0 0
    %857 = vmatpush.bf16.msra.mxu0 0
    %858 = vmatpush.bf16.msra.mxu0 0
    %859 = vmatpush.bf16.msra.mxu0 %v646
    %860 = vmatpush.bf16.msra.mxu0 %v622
    %861 = vmatpush.bf16.msra.mxu0 %v598
    %862 = vmatmul.bf16.gmra.mxu0 %v735
    %v863 = vpop.f32.mrf.mxu0
    %v864 = vadd.f32 %v334, %v863
    %v865 = vpop.f32.mrf.mxu0
    %866 = vdwg.mxu0
    %867 = vmatpush.bf16.msra.mxu0 0
    %868 = vmatpush.bf16.msra.mxu0 0
    %869 = vmatpush.bf16.msra.mxu0 0
    %870 = vmatpush.bf16.msra.mxu0 0
    %871 = vmatpush.bf16.msra.mxu0 0
    %872 = vmatpush.bf16.msra.mxu0 %v647
    %873 = vmatpush.bf16.msra.mxu0 %v623
    %874 = vmatpush.bf16.msra.mxu0 %v599
    %875 = vmatmul.bf16.gmra.mxu0 %v735
    %v876 = vpop.f32.mrf.mxu0
    %v877 = vadd.f32 %v335, %v876
    %v878 = vpop.f32.mrf.mxu0
    %879 = vdwg.mxu0
    %880 = vmatpush.bf16.msra.mxu0 0
    %881 = vmatpush.bf16.msra.mxu0 0
    %882 = vmatpush.bf16.msra.mxu0 0
    %883 = vmatpush.bf16.msra.mxu0 0
    %884 = vmatpush.bf16.msra.mxu0 0
    %885 = vmatpush.bf16.msra.mxu0 %v648
    %886 = vmatpush.bf16.msra.mxu0 %v624
    %887 = vmatpush.bf16.msra.mxu0 %v600
    %888 = vmatmul.bf16.gmra.mxu0 %v735
    %v889 = vpop.f32.mrf.mxu0
    %v890 = vadd.f32 %v336, %v889
    %v891 = vpop.f32.mrf.mxu0
    %892 = vdwg.mxu0
    %893 = vmatpush.bf16.msra.mxu0 0
    %894 = vmatpush.bf16.msra.mxu0 0
    %895 = vmatpush.bf16.msra.mxu0 0
    %896 = vmatpush.bf16.msra.mxu0 0
    %897 = vmatpush.bf16.msra.mxu0 0
    %898 = vmatpush.bf16.msra.mxu0 %v649
    %899 = vmatpush.bf16.msra.mxu0 %v625
    %900 = vmatpush.bf16.msra.mxu0 %v601
    %901 = vmatmul.bf16.gmra.mxu0 %v735
    %v902 = vpop.f32.mrf.mxu0
    %v903 = vadd.f32 %v337, %v902
    %v904 = vpop.f32.mrf.mxu0
    %905 = vdwg.mxu0
    %906 = vmatpush.bf16.msra.mxu0 0
    %907 = vmatpush.bf16.msra.mxu0 0
    %908 = vmatpush.bf16.msra.mxu0 0
    %909 = vmatpush.bf16.msra.mxu0 0
    %910 = vmatpush.bf16.msra.mxu0 0
    %911 = vmatpush.bf16.msra.mxu0 %v650
    %912 = vmatpush.bf16.msra.mxu0 %v626
    %913 = vmatpush.bf16.msra.mxu0 %v602
    %914 = vmatmul.bf16.gmra.mxu0 %v735
    %v915 = vpop.f32.mrf.mxu0
    %v916 = vadd.f32 %v338, %v915
    %v917 = vpop.f32.mrf.mxu0
    %918 = vdwg.mxu0
    %919 = vmatpush.bf16.msra.mxu0 0
    %920 = vmatpush.bf16.msra.mxu0 0
    %921 = vmatpush.bf16.msra.mxu0 0
    %922 = vmatpush.bf16.msra.mxu0 0
    %923 = vmatpush.bf16.msra.mxu0 0
    %924 = vmatpush.bf16.msra.mxu0 %v651
    %925 = vmatpush.bf16.msra.mxu0 %v627
    %926 = vmatpush.bf16.msra.mxu0 %v603
    %927 = vmatmul.bf16.gmra.mxu0 %v735
    %v928 = vpop.f32.mrf.mxu0
    %v929 = vadd.f32 %v339, %v928
    %v930 = vpop.f32.mrf.mxu0
    %931 = vdwg.mxu0
    %932 = vmatpush.bf16.msra.mxu0 0
    %933 = vmatpush.bf16.msra.mxu0 0
    %934 = vmatpush.bf16.msra.mxu0 0
    %935 = vmatpush.bf16.msra.mxu0 0
    %936 = vmatpush.bf16.msra.mxu0 0
    %937 = vmatpush.bf16.msra.mxu0 %v652
    %938 = vmatpush.bf16.msra.mxu0 %v628
    %939 = vmatpush.bf16.msra.mxu0 %v604
    %940 = vmatmul.bf16.gmra.mxu0 %v735
    %v941 = vpop.f32.mrf.mxu0
    %v942 = vadd.f32 %v340, %v941
    %v943 = vpop.f32.mrf.mxu0
    %944 = vdwg.mxu0
    %945 = vmatpush.bf16.msra.mxu0 0
    %946 = vmatpush.bf16.msra.mxu0 0
    %947 = vmatpush.bf16.msra.mxu0 0
    %948 = vmatpush.bf16.msra.mxu0 0
    %949 = vmatpush.bf16.msra.mxu0 0
    %950 = vmatpush.bf16.msra.mxu0 %v653
    %951 = vmatpush.bf16.msra.mxu0 %v629
    %952 = vmatpush.bf16.msra.mxu0 %v605
    %953 = vmatmul.bf16.gmra.mxu0 %v735
    %v954 = vpop.f32.mrf.mxu0
    %v955 = vadd.f32 %v341, %v954
    %v956 = vpop.f32.mrf.mxu0
    %957 = vdwg.mxu0
    %958 = vmatpush.bf16.msra.mxu0 0
    %959 = vmatpush.bf16.msra.mxu0 0
    %960 = vmatpush.bf16.msra.mxu0 0
    %961 = vmatpush.bf16.msra.mxu0 0
    %962 = vmatpush.bf16.msra.mxu0 0
    %963 = vmatpush.bf16.msra.mxu0 %v654
    %964 = vmatpush.bf16.msra.mxu0 %v630
    %965 = vmatpush.bf16.msra.mxu0 %v606
    %966 = vmatmul.bf16.gmra.mxu0 %v735
    %v967 = vpop.f32.mrf.mxu0
    %v968 = vadd.f32 %v342, %v967
    %v969 = vpop.f32.mrf.mxu0
    %970 = vdwg.mxu0
    %971 = vmatpush.bf16.msra.mxu0 0
    %972 = vmatpush.bf16.msra.mxu0 0
    %973 = vmatpush.bf16.msra.mxu0 0
    %974 = vmatpush.bf16.msra.mxu0 0
    %975 = vmatpush.bf16.msra.mxu0 0
    %976 = vmatpush.bf16.msra.mxu0 %v655
    %977 = vmatpush.bf16.msra.mxu0 %v631
    %978 = vmatpush.bf16.msra.mxu0 %v607
    %979 = vmatmul.bf16.gmra.mxu0 %v735
    %v980 = vpop.f32.mrf.mxu0
    %v981 = vadd.f32 %v343, %v980
    %v982 = vpop.f32.mrf.mxu0
    %983 = vdwg.mxu0
    %984 = vmatpush.bf16.msra.mxu0 0
    %985 = vmatpush.bf16.msra.mxu0 0
    %986 = vmatpush.bf16.msra.mxu0 0
    %987 = vmatpush.bf16.msra.mxu0 0
    %988 = vmatpush.bf16.msra.mxu0 0
    %989 = vmatpush.bf16.msra.mxu0 %v656
    %990 = vmatpush.bf16.msra.mxu0 %v632
    %991 = vmatpush.bf16.msra.mxu0 %v608
    %992 = vmatmul.bf16.gmra.mxu0 %v735
    %v993 = vpop.f32.mrf.mxu0
    %v994 = vadd.f32 %v344, %v993
    %v995 = vpop.f32.mrf.mxu0
    %996 = vdwg.mxu0
    %997 = vmatpush.bf16.msra.mxu0 0
    %998 = vmatpush.bf16.msra.mxu0 0
    %999 = vmatpush.bf16.msra.mxu0 0
    %1000 = vmatpush.bf16.msra.mxu0 0
    %1001 = vmatpush.bf16.msra.mxu0 0
    %1002 = vmatpush.bf16.msra.mxu0 %v657
    %1003 = vmatpush.bf16.msra.mxu0 %v633
    %1004 = vmatpush.bf16.msra.mxu0 %v609
    %1005 = vmatmul.bf16.gmra.mxu0 %v735
    %v1006 = vpop.f32.mrf.mxu0
    %v1007 = vadd.f32 %v345, %v1006
    %v1008 = vpop.f32.mrf.mxu0
    %1009 = vdwg.mxu0
    %1010 = vmatpush.bf16.msra.mxu0 0
    %1011 = vmatpush.bf16.msra.mxu0 0
    %1012 = vmatpush.bf16.msra.mxu0 0
    %1013 = vmatpush.bf16.msra.mxu0 0
    %1014 = vmatpush.bf16.msra.mxu0 0
    %1015 = vmatpush.bf16.msra.mxu0 %v658
    %1016 = vmatpush.bf16.msra.mxu0 %v634
    %1017 = vmatpush.bf16.msra.mxu0 %v610
    %1018 = vmatmul.bf16.gmra.mxu0 %v735
    %v1019 = vpop.f32.mrf.mxu0
    %v1020 = vadd.f32 %v346, %v1019
    %v1021 = vpop.f32.mrf.mxu0
    %1022 = vdwg.mxu0
    %1023 = vmatpush.bf16.msra.mxu0 0
    %1024 = vmatpush.bf16.msra.mxu0 0
    %1025 = vmatpush.bf16.msra.mxu0 0
    %1026 = vmatpush.bf16.msra.mxu0 0
    %1027 = vmatpush.bf16.msra.mxu0 0
    %1028 = vmatpush.bf16.msra.mxu0 %v659
    %1029 = vmatpush.bf16.msra.mxu0 %v635
    %1030 = vmatpush.bf16.msra.mxu0 %v611
    %1031 = vmatmul.bf16.gmra.mxu0 %v735
    %v1032 = vpop.f32.mrf.mxu0
    %v1033 = vadd.f32 %v347, %v1032
    %v1034 = vpop.f32.mrf.mxu0
    %1035 = vdwg.mxu0
    %1036 = vmatpush.bf16.msra.mxu0 0
    %1037 = vmatpush.bf16.msra.mxu0 0
    %1038 = vmatpush.bf16.msra.mxu0 0
    %1039 = vmatpush.bf16.msra.mxu0 0
    %1040 = vmatpush.bf16.msra.mxu0 0
    %1041 = vmatpush.bf16.msra.mxu0 %v660
    %1042 = vmatpush.bf16.msra.mxu0 %v636
    %1043 = vmatpush.bf16.msra.mxu0 %v612
    %1044 = vmatmul.bf16.gmra.mxu0 %v735
    %v1045 = vpop.f32.mrf.mxu0
    %v1046 = vadd.f32 %v348, %v1045
    %v1047 = vpop.f32.mrf.mxu0
    %1048 = vdwg.mxu0
    %v1049 = vmax.f32 %v747, 0.0
    %v1050 = vmax.f32 %v760, 0.0
    %v1051 = vmax.f32 %v773, 0.0
    %v1052 = vmax.f32 %v786, 0.0
    %v1053 = vmax.f32 %v799, 0.0
    %v1054 = vmax.f32 %v812, 0.0
    %v1055 = vmax.f32 %v825, 0.0
    %v1056 = vmax.f32 %v838, 0.0
    %v1057 = vmax.f32 %v851, 0.0
    %v1058 = vmax.f32 %v864, 0.0
    %v1059 = vmax.f32 %v877, 0.0
    %v1060 = vmax.f32 %v890, 0.0
    %v1061 = vmax.f32 %v903, 0.0
    %v1062 = vmax.f32 %v916, 0.0
    %v1063 = vmax.f32 %v929, 0.0
    %v1064 = vmax.f32 %v942, 0.0
    %v1065 = vmax.f32 %v955, 0.0
    %v1066 = vmax.f32 %v968, 0.0
    %v1067 = vmax.f32 %v981, 0.0
    %v1068 = vmax.f32 %v994, 0.0
    %v1069 = vmax.f32 %v1007, 0.0
    %v1070 = vmax.f32 %v1020, 0.0
    %v1071 = vmax.f32 %v1033, 0.0
    %v1072 = vmax.f32 %v1046, 0.0
    %v1073 = vpack.c.bf16 %v1050, %v1049
    %v1074 = vpack.c.bf16 %v1052, %v1051
    %v1075 = vpack.c.bf16 %v1054, %v1053
    %v1076 = vpack.c.bf16 %v1056, %v1055
    %v1077 = vpack.c.bf16 %v1058, %v1057
    %v1078 = vpack.c.bf16 %v1060, %v1059
    %v1079 = vpack.c.bf16 %v1062, %v1061
    %v1080 = vpack.c.bf16 %v1064, %v1063
    %v1081 = vpack.c.bf16 %v1066, %v1065
    %v1082 = vpack.c.bf16 %v1068, %v1067
    %v1083 = vpack.c.bf16 %v1070, %v1069
    %v1084 = vpack.c.bf16 %v1072, %v1071
    %v1085 = vld [vmem:[#allocation11] sm:$0xff]
    %v1086 = vld [vmem:[#allocation11 + $0x8] sm:$0xff]
    %v1087 = vld [vmem:[#allocation11 + $0x10] sm:$0xff]
    %v1088 = vld [vmem:[#allocation11 + $0x18] sm:$0xff]
    %v1089 = vld [vmem:[#allocation11 + $0x20] sm:$0xff]
    %v1090 = vld [vmem:[#allocation11 + $0x28] sm:$0xff]
    %v1091 = vld [vmem:[#allocation11 + $0x30] sm:$0xff]
    %v1092 = vld [vmem:[#allocation11 + $0x38] sm:$0xff]
    %v1093 = vld [vmem:[#allocation11 + $0x40] sm:$0xff]
    %v1094 = vld [vmem:[#allocation11 + $0x48] sm:$0xff]
    %v1095 = vld [vmem:[#allocation11 + $0x50] sm:$0xff]
    %v1096 = vld [vmem:[#allocation11 + $0x58] sm:$0xff]
    %v1097 = vld [vmem:[#allocation11 + $0x60] sm:$0xff]
    %v1098 = vld [vmem:[#allocation11 + $0x68] sm:$0xff]
    %v1099 = vld [vmem:[#allocation11 + $0x70] sm:$0xff]
    %v1100 = vld [vmem:[#allocation11 + $0x78] sm:$0xff]
    %v1101 = vld [vmem:[#allocation11 + $0x80] sm:$0xff]
    %v1102 = vld [vmem:[#allocation11 + $0x88] sm:$0xff]
    %v1103 = vld [vmem:[#allocation11 + $0x90] sm:$0xff]
    %v1104 = vld [vmem:[#allocation11 + $0x98] sm:$0xff]
    %v1105 = vld [vmem:[#allocation11 + $0xa0] sm:$0xff]
    %v1106 = vld [vmem:[#allocation11 + $0xa8] sm:$0xff]
    %v1107 = vld [vmem:[#allocation11 + $0xb0] sm:$0xff]
    %v1108 = vld [vmem:[#allocation11 + $0xb8] sm:$0xff]
    %v1109 = vld [vmem:[#allocation11 + $0xc0] sm:$0xff]
    %v1110 = vld [vmem:[#allocation11 + $0xc8] sm:$0xff]
    %v1111 = vld [vmem:[#allocation11 + $0xd0] sm:$0xff]
    %v1112 = vld [vmem:[#allocation11 + $0xd8] sm:$0xff]
    %v1113 = vld [vmem:[#allocation11 + $0xe0] sm:$0xff]
    %v1114 = vld [vmem:[#allocation11 + $0xe8] sm:$0xff]
    %v1115 = vld [vmem:[#allocation11 + $0xf0] sm:$0xff]
    %v1116 = vld [vmem:[#allocation11 + $0xf8] sm:$0xff]
    %v1117 = vld [vmem:[#allocation11 + $0x100] sm:$0xff]
    %v1118 = vld [vmem:[#allocation11 + $0x108] sm:$0xff]
    %v1119 = vld [vmem:[#allocation11 + $0x110] sm:$0xff]
    %v1120 = vld [vmem:[#allocation11 + $0x118] sm:$0xff]
    %v1121 = vld [vmem:[#allocation11 + $0x120] sm:$0xff]
    %v1122 = vld [vmem:[#allocation11 + $0x128] sm:$0xff]
    %v1123 = vld [vmem:[#allocation11 + $0x130] sm:$0xff]
    %v1124 = vld [vmem:[#allocation11 + $0x138] sm:$0xff]
    %v1125 = vld [vmem:[#allocation11 + $0x140] sm:$0xff]
    %v1126 = vld [vmem:[#allocation11 + $0x148] sm:$0xff]
    %v1127 = vld [vmem:[#allocation11 + $0x150] sm:$0xff]
    %v1128 = vld [vmem:[#allocation11 + $0x158] sm:$0xff]
    %v1129 = vld [vmem:[#allocation11 + $0x160] sm:$0xff]
    %v1130 = vld [vmem:[#allocation11 + $0x168] sm:$0xff]
    %v1131 = vld [vmem:[#allocation11 + $0x170] sm:$0xff]
    %v1132 = vld [vmem:[#allocation11 + $0x178] sm:$0xff]
    %v1133 = vld [vmem:[#allocation11 + $0x180] sm:$0xff]
    %v1134 = vld [vmem:[#allocation11 + $0x188] sm:$0xff]
    %v1135 = vld [vmem:[#allocation11 + $0x190] sm:$0xff]
    %v1136 = vld [vmem:[#allocation11 + $0x198] sm:$0xff]
    %v1137 = vld [vmem:[#allocation11 + $0x1a0] sm:$0xff]
    %v1138 = vld [vmem:[#allocation11 + $0x1a8] sm:$0xff]
    %v1139 = vld [vmem:[#allocation11 + $0x1b0] sm:$0xff]
    %v1140 = vld [vmem:[#allocation11 + $0x1b8] sm:$0xff]
    %v1141 = vld [vmem:[#allocation11 + $0x1c0] sm:$0xff]
    %v1142 = vld [vmem:[#allocation11 + $0x1c8] sm:$0xff]
    %v1143 = vld [vmem:[#allocation11 + $0x1d0] sm:$0xff]
    %v1144 = vld [vmem:[#allocation11 + $0x1d8] sm:$0xff]
    %v1145 = vld [vmem:[#allocation11 + $0x1e0] sm:$0xff]
    %v1146 = vld [vmem:[#allocation11 + $0x1e8] sm:$0xff]
    %v1147 = vld [vmem:[#allocation11 + $0x1f0] sm:$0xff]
    %v1148 = vld [vmem:[#allocation11 + $0x1f8] sm:$0xff]
    %v1149 = vld [vmem:[#allocation11 + $0x200] sm:$0xff]
    %v1150 = vld [vmem:[#allocation11 + $0x208] sm:$0xff]
    %v1151 = vld [vmem:[#allocation11 + $0x210] sm:$0xff]
    %v1152 = vld [vmem:[#allocation11 + $0x218] sm:$0xff]
    %v1153 = vld [vmem:[#allocation11 + $0x220] sm:$0xff]
    %v1154 = vld [vmem:[#allocation11 + $0x228] sm:$0xff]
    %v1155 = vld [vmem:[#allocation11 + $0x230] sm:$0xff]
    %v1156 = vld [vmem:[#allocation11 + $0x238] sm:$0xff]
    %v1157 = vld [vmem:[#allocation11 + $0x240] sm:$0xff]
    %v1158 = vld [vmem:[#allocation11 + $0x248] sm:$0xff]
    %v1159 = vld [vmem:[#allocation11 + $0x250] sm:$0xff]
    %v1160 = vld [vmem:[#allocation11 + $0x258] sm:$0xff]
    %v1161 = vld [vmem:[#allocation11 + $0x260] sm:$0xff]
    %v1162 = vld [vmem:[#allocation11 + $0x268] sm:$0xff]
    %v1163 = vld [vmem:[#allocation11 + $0x270] sm:$0xff]
    %v1164 = vld [vmem:[#allocation11 + $0x278] sm:$0xff]
    %v1165 = vld [vmem:[#allocation11 + $0x280] sm:$0xff]
    %v1166 = vld [vmem:[#allocation11 + $0x288] sm:$0xff]
    %v1167 = vld [vmem:[#allocation11 + $0x290] sm:$0xff]
    %v1168 = vld [vmem:[#allocation11 + $0x298] sm:$0xff]
    %v1169 = vld [vmem:[#allocation11 + $0x2a0] sm:$0xff]
    %v1170 = vld [vmem:[#allocation11 + $0x2a8] sm:$0xff]
    %v1171 = vld [vmem:[#allocation11 + $0x2b0] sm:$0xff]
    %v1172 = vld [vmem:[#allocation11 + $0x2b8] sm:$0xff]
    %v1173 = vld [vmem:[#allocation11 + $0x2c0] sm:$0xff]
    %v1174 = vld [vmem:[#allocation11 + $0x2c8] sm:$0xff]
    %v1175 = vld [vmem:[#allocation11 + $0x2d0] sm:$0xff]
    %v1176 = vld [vmem:[#allocation11 + $0x2d8] sm:$0xff]
    %v1177 = vld [vmem:[#allocation11 + $0x2e0] sm:$0xff]
    %v1178 = vld [vmem:[#allocation11 + $0x2e8] sm:$0xff]
    %v1179 = vld [vmem:[#allocation11 + $0x2f0] sm:$0xff]
    %v1180 = vld [vmem:[#allocation11 + $0x2f8] sm:$0xff]
    %v1181 = vld [vmem:[#allocation11 + $0x300] sm:$0xff]
    %v1182 = vld [vmem:[#allocation11 + $0x308] sm:$0xff]
    %v1183 = vld [vmem:[#allocation11 + $0x310] sm:$0xff]
    %v1184 = vld [vmem:[#allocation11 + $0x318] sm:$0xff]
    %v1185 = vld [vmem:[#allocation11 + $0x320] sm:$0xff]
    %v1186 = vld [vmem:[#allocation11 + $0x328] sm:$0xff]
    %v1187 = vld [vmem:[#allocation11 + $0x330] sm:$0xff]
    %v1188 = vld [vmem:[#allocation11 + $0x338] sm:$0xff]
    %v1189 = vld [vmem:[#allocation11 + $0x340] sm:$0xff]
    %v1190 = vld [vmem:[#allocation11 + $0x348] sm:$0xff]
    %v1191 = vld [vmem:[#allocation11 + $0x350] sm:$0xff]
    %v1192 = vld [vmem:[#allocation11 + $0x358] sm:$0xff]
    %v1193 = vld [vmem:[#allocation11 + $0x360] sm:$0xff]
    %v1194 = vld [vmem:[#allocation11 + $0x368] sm:$0xff]
    %v1195 = vld [vmem:[#allocation11 + $0x370] sm:$0xff]
    %v1196 = vld [vmem:[#allocation11 + $0x378] sm:$0xff]
    %v1197 = vld [vmem:[#allocation11 + $0x380] sm:$0xff]
    %v1198 = vld [vmem:[#allocation11 + $0x388] sm:$0xff]
    %v1199 = vld [vmem:[#allocation11 + $0x390] sm:$0xff]
    %v1200 = vld [vmem:[#allocation11 + $0x398] sm:$0xff]
    %v1201 = vld [vmem:[#allocation11 + $0x3a0] sm:$0xff]
    %v1202 = vld [vmem:[#allocation11 + $0x3a8] sm:$0xff]
    %v1203 = vld [vmem:[#allocation11 + $0x3b0] sm:$0xff]
    %v1204 = vld [vmem:[#allocation11 + $0x3b8] sm:$0xff]
    %v1205 = vld [vmem:[#allocation11 + $0x3c0] sm:$0xff]
    %v1206 = vld [vmem:[#allocation11 + $0x3c8] sm:$0xff]
    %v1207 = vld [vmem:[#allocation11 + $0x3d0] sm:$0xff]
    %v1208 = vld [vmem:[#allocation11 + $0x3d8] sm:$0xff]
    %v1209 = vld [vmem:[#allocation11 + $0x3e0] sm:$0xff]
    %v1210 = vld [vmem:[#allocation11 + $0x3e8] sm:$0xff]
    %v1211 = vld [vmem:[#allocation11 + $0x3f0] sm:$0xff]
    %v1212 = vld [vmem:[#allocation11 + $0x3f8] sm:$0xff]
    %v1213 = vld [vmem:[#allocation11 + $0x400] sm:$0xff]
    %v1214 = vld [vmem:[#allocation11 + $0x408] sm:$0xff]
    %v1215 = vld [vmem:[#allocation11 + $0x410] sm:$0xff]
    %v1216 = vld [vmem:[#allocation11 + $0x418] sm:$0xff]
    %v1217 = vld [vmem:[#allocation11 + $0x420] sm:$0xff]
    %v1218 = vld [vmem:[#allocation11 + $0x428] sm:$0xff]
    %v1219 = vld [vmem:[#allocation11 + $0x430] sm:$0xff]
    %v1220 = vld [vmem:[#allocation11 + $0x438] sm:$0xff]
    %v1221 = vld [vmem:[#allocation11 + $0x440] sm:$0xff]
    %v1222 = vld [vmem:[#allocation11 + $0x448] sm:$0xff]
    %v1223 = vld [vmem:[#allocation11 + $0x450] sm:$0xff]
    %v1224 = vld [vmem:[#allocation11 + $0x458] sm:$0xff]
    %v1225 = vld [vmem:[#allocation11 + $0x460] sm:$0xff]
    %v1226 = vld [vmem:[#allocation11 + $0x468] sm:$0xff]
    %v1227 = vld [vmem:[#allocation11 + $0x470] sm:$0xff]
    %v1228 = vld [vmem:[#allocation11 + $0x478] sm:$0xff]
    %v1229 = vld [vmem:[#allocation11 + $0x480] sm:$0xff]
    %v1230 = vld [vmem:[#allocation11 + $0x488] sm:$0xff]
    %v1231 = vld [vmem:[#allocation11 + $0x490] sm:$0xff]
    %v1232 = vld [vmem:[#allocation11 + $0x498] sm:$0xff]
    %v1233 = vld [vmem:[#allocation11 + $0x4a0] sm:$0xff]
    %v1234 = vld [vmem:[#allocation11 + $0x4a8] sm:$0xff]
    %v1235 = vld [vmem:[#allocation11 + $0x4b0] sm:$0xff]
    %v1236 = vld [vmem:[#allocation11 + $0x4b8] sm:$0xff]
    %v1237 = vld [vmem:[#allocation11 + $0x4c0] sm:$0xff]
    %v1238 = vld [vmem:[#allocation11 + $0x4c8] sm:$0xff]
    %v1239 = vld [vmem:[#allocation11 + $0x4d0] sm:$0xff]
    %v1240 = vld [vmem:[#allocation11 + $0x4d8] sm:$0xff]
    %v1241 = vld [vmem:[#allocation11 + $0x4e0] sm:$0xff]
    %v1242 = vld [vmem:[#allocation11 + $0x4e8] sm:$0xff]
    %v1243 = vld [vmem:[#allocation11 + $0x4f0] sm:$0xff]
    %v1244 = vld [vmem:[#allocation11 + $0x4f8] sm:$0xff]
    %v1245 = vld [vmem:[#allocation11 + $0x500] sm:$0xff]
    %v1246 = vld [vmem:[#allocation11 + $0x508] sm:$0xff]
    %v1247 = vld [vmem:[#allocation11 + $0x510] sm:$0xff]
    %v1248 = vld [vmem:[#allocation11 + $0x518] sm:$0xff]
    %v1249 = vld [vmem:[#allocation11 + $0x520] sm:$0xff]
    %v1250 = vld [vmem:[#allocation11 + $0x528] sm:$0xff]
    %v1251 = vld [vmem:[#allocation11 + $0x530] sm:$0xff]
    %v1252 = vld [vmem:[#allocation11 + $0x538] sm:$0xff]
    %v1253 = vld [vmem:[#allocation11 + $0x540] sm:$0xff]
    %v1254 = vld [vmem:[#allocation11 + $0x548] sm:$0xff]
    %v1255 = vld [vmem:[#allocation11 + $0x550] sm:$0xff]
    %v1256 = vld [vmem:[#allocation11 + $0x558] sm:$0xff]
    %v1257 = vld [vmem:[#allocation11 + $0x560] sm:$0xff]
    %v1258 = vld [vmem:[#allocation11 + $0x568] sm:$0xff]
    %v1259 = vld [vmem:[#allocation11 + $0x570] sm:$0xff]
    %v1260 = vld [vmem:[#allocation11 + $0x578] sm:$0xff]
    %v1261 = vld [vmem:[#allocation11 + $0x580] sm:$0xff]
    %v1262 = vld [vmem:[#allocation11 + $0x588] sm:$0xff]
    %v1263 = vld [vmem:[#allocation11 + $0x590] sm:$0xff]
    %v1264 = vld [vmem:[#allocation11 + $0x598] sm:$0xff]
    %v1265 = vld [vmem:[#allocation11 + $0x5a0] sm:$0xff]
    %v1266 = vld [vmem:[#allocation11 + $0x5a8] sm:$0xff]
    %v1267 = vld [vmem:[#allocation11 + $0x5b0] sm:$0xff]
    %v1268 = vld [vmem:[#allocation11 + $0x5b8] sm:$0xff]
    %v1269 = vld [vmem:[#allocation11 + $0x5c0] sm:$0xff]
    %v1270 = vld [vmem:[#allocation11 + $0x5c8] sm:$0xff]
    %v1271 = vld [vmem:[#allocation11 + $0x5d0] sm:$0xff]
    %v1272 = vld [vmem:[#allocation11 + $0x5d8] sm:$0xff]
    %v1273 = vld [vmem:[#allocation11 + $0x5e0] sm:$0xff]
    %v1274 = vld [vmem:[#allocation11 + $0x5e8] sm:$0xff]
    %v1275 = vld [vmem:[#allocation11 + $0x5f0] sm:$0xff]
    %v1276 = vld [vmem:[#allocation11 + $0x5f8] sm:$0xff]
    %v1277 = vld [vmem:[#allocation11 + $0x600] sm:$0xff]
    %v1278 = vld [vmem:[#allocation11 + $0x608] sm:$0xff]
    %v1279 = vld [vmem:[#allocation11 + $0x610] sm:$0xff]
    %v1280 = vld [vmem:[#allocation11 + $0x618] sm:$0xff]
    %v1281 = vld [vmem:[#allocation11 + $0x620] sm:$0xff]
    %v1282 = vld [vmem:[#allocation11 + $0x628] sm:$0xff]
    %v1283 = vld [vmem:[#allocation11 + $0x630] sm:$0xff]
    %v1284 = vld [vmem:[#allocation11 + $0x638] sm:$0xff]
    %v1285 = vld [vmem:[#allocation11 + $0x640] sm:$0xff]
    %v1286 = vld [vmem:[#allocation11 + $0x648] sm:$0xff]
    %v1287 = vld [vmem:[#allocation11 + $0x650] sm:$0xff]
    %v1288 = vld [vmem:[#allocation11 + $0x658] sm:$0xff]
    %v1289 = vld [vmem:[#allocation11 + $0x660] sm:$0xff]
    %v1290 = vld [vmem:[#allocation11 + $0x668] sm:$0xff]
    %v1291 = vld [vmem:[#allocation11 + $0x670] sm:$0xff]
    %v1292 = vld [vmem:[#allocation11 + $0x678] sm:$0xff]
    %v1293 = vld [vmem:[#allocation11 + $0x680] sm:$0xff]
    %v1294 = vld [vmem:[#allocation11 + $0x688] sm:$0xff]
    %v1295 = vld [vmem:[#allocation11 + $0x690] sm:$0xff]
    %v1296 = vld [vmem:[#allocation11 + $0x698] sm:$0xff]
    %v1297 = vld [vmem:[#allocation11 + $0x6a0] sm:$0xff]
    %v1298 = vld [vmem:[#allocation11 + $0x6a8] sm:$0xff]
    %v1299 = vld [vmem:[#allocation11 + $0x6b0] sm:$0xff]
    %v1300 = vld [vmem:[#allocation11 + $0x6b8] sm:$0xff]
    %v1301 = vld [vmem:[#allocation11 + $0x6c0] sm:$0xff]
    %v1302 = vld [vmem:[#allocation11 + $0x6c8] sm:$0xff]
    %v1303 = vld [vmem:[#allocation11 + $0x6d0] sm:$0xff]
    %v1304 = vld [vmem:[#allocation11 + $0x6d8] sm:$0xff]
    %v1305 = vld [vmem:[#allocation11 + $0x6e0] sm:$0xff]
    %v1306 = vld [vmem:[#allocation11 + $0x6e8] sm:$0xff]
    %v1307 = vld [vmem:[#allocation11 + $0x6f0] sm:$0xff]
    %v1308 = vld [vmem:[#allocation11 + $0x6f8] sm:$0xff]
    %v1309 = vld [vmem:[#allocation11 + $0x700] sm:$0xff]
    %v1310 = vld [vmem:[#allocation11 + $0x708] sm:$0xff]
    %v1311 = vld [vmem:[#allocation11 + $0x710] sm:$0xff]
    %v1312 = vld [vmem:[#allocation11 + $0x718] sm:$0xff]
    %v1313 = vld [vmem:[#allocation11 + $0x720] sm:$0xff]
    %v1314 = vld [vmem:[#allocation11 + $0x728] sm:$0xff]
    %v1315 = vld [vmem:[#allocation11 + $0x730] sm:$0xff]
    %v1316 = vld [vmem:[#allocation11 + $0x738] sm:$0xff]
    %v1317 = vld [vmem:[#allocation11 + $0x740] sm:$0xff]
    %v1318 = vld [vmem:[#allocation11 + $0x748] sm:$0xff]
    %v1319 = vld [vmem:[#allocation11 + $0x750] sm:$0xff]
    %v1320 = vld [vmem:[#allocation11 + $0x758] sm:$0xff]
    %v1321 = vld [vmem:[#allocation11 + $0x760] sm:$0xff]
    %v1322 = vld [vmem:[#allocation11 + $0x768] sm:$0xff]
    %v1323 = vld [vmem:[#allocation11 + $0x770] sm:$0xff]
    %v1324 = vld [vmem:[#allocation11 + $0x778] sm:$0xff]
    %v1325 = vld [vmem:[#allocation11 + $0x780] sm:$0xff]
    %v1326 = vld [vmem:[#allocation11 + $0x788] sm:$0xff]
    %v1327 = vld [vmem:[#allocation11 + $0x790] sm:$0xff]
    %v1328 = vld [vmem:[#allocation11 + $0x798] sm:$0xff]
    %v1329 = vld [vmem:[#allocation11 + $0x7a0] sm:$0xff]
    %v1330 = vld [vmem:[#allocation11 + $0x7a8] sm:$0xff]
    %v1331 = vld [vmem:[#allocation11 + $0x7b0] sm:$0xff]
    %v1332 = vld [vmem:[#allocation11 + $0x7b8] sm:$0xff]
    %v1333 = vld [vmem:[#allocation11 + $0x7c0] sm:$0xff]
    %v1334 = vld [vmem:[#allocation11 + $0x7c8] sm:$0xff]
    %v1335 = vld [vmem:[#allocation11 + $0x7d0] sm:$0xff]
    %v1336 = vld [vmem:[#allocation11 + $0x7d8] sm:$0xff]
    %v1337 = vld [vmem:[#allocation11 + $0x7e0] sm:$0xff]
    %v1338 = vld [vmem:[#allocation11 + $0x7e8] sm:$0xff]
    %v1339 = vld [vmem:[#allocation11 + $0x7f0] sm:$0xff]
    %v1340 = vld [vmem:[#allocation11 + $0x7f8] sm:$0xff]
    %v1341 = vld [vmem:[#allocation13] sm:$0xf]
    %v1343 = vperm.slane %v1341, 0
    %v1344 = vperm.slane %v1341, 1
    %v1345 = vperm.slane %v1341, 2
    %v1346 = vperm.slane %v1341, 3
    %v1355 = vunpack.c.l.b16 %v1073
    %v1356 = vunpack.c.h.b16 %v1073
    %v1357 = vunpack.c.l.b16 %v1074
    %v1358 = vunpack.c.h.b16 %v1074
    %v1359 = vunpack.c.l.b16 %v1075
    %v1360 = vunpack.c.h.b16 %v1075
    %v1361 = vunpack.c.l.b16 %v1076
    %v1362 = vunpack.c.h.b16 %v1076
    %v1363 = vpack.c.b16 %v1355, %v1355
    %v1364 = vpack.c.b16 %v1356, %v1356
    %v1365 = vpack.c.b16 %v1357, %v1357
    %v1366 = vpack.c.b16 %v1358, %v1358
    %v1367 = vpack.c.b16 %v1359, %v1359
    %v1368 = vpack.c.b16 %v1360, %v1360
    %v1369 = vpack.c.b16 %v1361, %v1361
    %v1370 = vpack.c.b16 %v1362, %v1362
    %v1635 = vunpack.c.l.b16 %v1085
    %v1636 = vunpack.c.h.b16 %v1085
    %v1637 = vunpack.c.l.b16 %v1086
    %v1638 = vunpack.c.h.b16 %v1086
    %v1639 = vunpack.c.l.b16 %v1087
    %v1640 = vunpack.c.h.b16 %v1087
    %v1641 = vunpack.c.l.b16 %v1088
    %v1642 = vunpack.c.h.b16 %v1088
    %v1643 = vunpack.c.l.b16 %v1089
    %v1644 = vunpack.c.h.b16 %v1089
    %v1645 = vunpack.c.l.b16 %v1090
    %v1646 = vunpack.c.h.b16 %v1090
    %v1647 = vunpack.c.l.b16 %v1091
    %v1648 = vunpack.c.h.b16 %v1091
    %v1649 = vunpack.c.l.b16 %v1092
    %v1650 = vunpack.c.h.b16 %v1092
    %v1651 = vunpack.c.l.b16 %v1093
    %v1652 = vunpack.c.h.b16 %v1093
    %v1653 = vunpack.c.l.b16 %v1094
    %v1654 = vunpack.c.h.b16 %v1094
    %v1655 = vunpack.c.l.b16 %v1095
    %v1656 = vunpack.c.h.b16 %v1095
    %v1657 = vunpack.c.l.b16 %v1096
    %v1658 = vunpack.c.h.b16 %v1096
    %v1659 = vunpack.c.l.b16 %v1097
    %v1660 = vunpack.c.h.b16 %v1097
    %v1661 = vunpack.c.l.b16 %v1098
    %v1662 = vunpack.c.h.b16 %v1098
    %v1663 = vunpack.c.l.b16 %v1099
    %v1664 = vunpack.c.h.b16 %v1099
    %v1665 = vunpack.c.l.b16 %v1100
    %v1666 = vunpack.c.h.b16 %v1100
    %v1667 = vunpack.c.l.b16 %v1101
    %v1668 = vunpack.c.h.b16 %v1101
    %v1669 = vunpack.c.l.b16 %v1102
    %v1670 = vunpack.c.h.b16 %v1102
    %v1671 = vunpack.c.l.b16 %v1103
    %v1672 = vunpack.c.h.b16 %v1103
    %v1673 = vunpack.c.l.b16 %v1104
    %v1674 = vunpack.c.h.b16 %v1104
    %v1675 = vunpack.c.l.b16 %v1105
    %v1676 = vunpack.c.h.b16 %v1105
    %v1677 = vunpack.c.l.b16 %v1106
    %v1678 = vunpack.c.h.b16 %v1106
    %v1679 = vunpack.c.l.b16 %v1107
    %v1680 = vunpack.c.h.b16 %v1107
    %v1681 = vunpack.c.l.b16 %v1108
    %v1682 = vunpack.c.h.b16 %v1108
    %v1683 = vunpack.c.l.b16 %v1109
    %v1684 = vunpack.c.h.b16 %v1109
    %v1685 = vunpack.c.l.b16 %v1110
    %v1686 = vunpack.c.h.b16 %v1110
    %v1687 = vunpack.c.l.b16 %v1111
    %v1688 = vunpack.c.h.b16 %v1111
    %v1689 = vunpack.c.l.b16 %v1112
    %v1690 = vunpack.c.h.b16 %v1112
    %v1691 = vunpack.c.l.b16 %v1113
    %v1692 = vunpack.c.h.b16 %v1113
    %v1693 = vunpack.c.l.b16 %v1114
    %v1694 = vunpack.c.h.b16 %v1114
    %v1695 = vunpack.c.l.b16 %v1115
    %v1696 = vunpack.c.h.b16 %v1115
    %v1697 = vunpack.c.l.b16 %v1116
    %v1698 = vunpack.c.h.b16 %v1116
    %v1699 = vunpack.c.l.b16 %v1117
    %v1700 = vunpack.c.h.b16 %v1117
    %v1701 = vunpack.c.l.b16 %v1118
    %v1702 = vunpack.c.h.b16 %v1118
    %v1703 = vunpack.c.l.b16 %v1119
    %v1704 = vunpack.c.h.b16 %v1119
    %v1705 = vunpack.c.l.b16 %v1120
    %v1706 = vunpack.c.h.b16 %v1120
    %v1707 = vunpack.c.l.b16 %v1121
    %v1708 = vunpack.c.h.b16 %v1121
    %v1709 = vunpack.c.l.b16 %v1122
    %v1710 = vunpack.c.h.b16 %v1122
    %v1711 = vunpack.c.l.b16 %v1123
    %v1712 = vunpack.c.h.b16 %v1123
    %v1713 = vunpack.c.l.b16 %v1124
    %v1714 = vunpack.c.h.b16 %v1124
    %v1715 = vunpack.c.l.b16 %v1125
    %v1716 = vunpack.c.h.b16 %v1125
    %v1717 = vunpack.c.l.b16 %v1126
    %v1718 = vunpack.c.h.b16 %v1126
    %v1719 = vunpack.c.l.b16 %v1127
    %v1720 = vunpack.c.h.b16 %v1127
    %v1721 = vunpack.c.l.b16 %v1128
    %v1722 = vunpack.c.h.b16 %v1128
    %v1723 = vunpack.c.l.b16 %v1129
    %v1724 = vunpack.c.h.b16 %v1129
    %v1725 = vunpack.c.l.b16 %v1130
    %v1726 = vunpack.c.h.b16 %v1130
    %v1727 = vunpack.c.l.b16 %v1131
    %v1728 = vunpack.c.h.b16 %v1131
    %v1729 = vunpack.c.l.b16 %v1132
    %v1730 = vunpack.c.h.b16 %v1132
    %v1731 = vunpack.c.l.b16 %v1133
    %v1732 = vunpack.c.h.b16 %v1133
    %v1733 = vunpack.c.l.b16 %v1134
    %v1734 = vunpack.c.h.b16 %v1134
    %v1735 = vunpack.c.l.b16 %v1135
    %v1736 = vunpack.c.h.b16 %v1135
    %v1737 = vunpack.c.l.b16 %v1136
    %v1738 = vunpack.c.h.b16 %v1136
    %v1739 = vunpack.c.l.b16 %v1137
    %v1740 = vunpack.c.h.b16 %v1137
    %v1741 = vunpack.c.l.b16 %v1138
    %v1742 = vunpack.c.h.b16 %v1138
    %v1743 = vunpack.c.l.b16 %v1139
    %v1744 = vunpack.c.h.b16 %v1139
    %v1745 = vunpack.c.l.b16 %v1140
    %v1746 = vunpack.c.h.b16 %v1140
    %v1747 = vunpack.c.l.b16 %v1141
    %v1748 = vunpack.c.h.b16 %v1141
    %v1749 = vunpack.c.l.b16 %v1142
    %v1750 = vunpack.c.h.b16 %v1142
    %v1751 = vunpack.c.l.b16 %v1143
    %v1752 = vunpack.c.h.b16 %v1143
    %v1753 = vunpack.c.l.b16 %v1144
    %v1754 = vunpack.c.h.b16 %v1144
    %v1755 = vunpack.c.l.b16 %v1145
    %v1756 = vunpack.c.h.b16 %v1145
    %v1757 = vunpack.c.l.b16 %v1146
    %v1758 = vunpack.c.h.b16 %v1146
    %v1759 = vunpack.c.l.b16 %v1147
    %v1760 = vunpack.c.h.b16 %v1147
    %v1761 = vunpack.c.l.b16 %v1148
    %v1762 = vunpack.c.h.b16 %v1148
    %v1763 = vunpack.c.l.b16 %v1149
    %v1764 = vunpack.c.h.b16 %v1149
    %v1765 = vunpack.c.l.b16 %v1150
    %v1766 = vunpack.c.h.b16 %v1150
    %v1767 = vunpack.c.l.b16 %v1151
    %v1768 = vunpack.c.h.b16 %v1151
    %v1769 = vunpack.c.l.b16 %v1152
    %v1770 = vunpack.c.h.b16 %v1152
    %v1771 = vunpack.c.l.b16 %v1153
    %v1772 = vunpack.c.h.b16 %v1153
    %v1773 = vunpack.c.l.b16 %v1154
    %v1774 = vunpack.c.h.b16 %v1154
    %v1775 = vunpack.c.l.b16 %v1155
    %v1776 = vunpack.c.h.b16 %v1155
    %v1777 = vunpack.c.l.b16 %v1156
    %v1778 = vunpack.c.h.b16 %v1156
    %v1779 = vunpack.c.l.b16 %v1157
    %v1780 = vunpack.c.h.b16 %v1157
    %v1781 = vunpack.c.l.b16 %v1158
    %v1782 = vunpack.c.h.b16 %v1158
    %v1783 = vunpack.c.l.b16 %v1159
    %v1784 = vunpack.c.h.b16 %v1159
    %v1785 = vunpack.c.l.b16 %v1160
    %v1786 = vunpack.c.h.b16 %v1160
    %v1787 = vunpack.c.l.b16 %v1161
    %v1788 = vunpack.c.h.b16 %v1161
    %v1789 = vunpack.c.l.b16 %v1162
    %v1790 = vunpack.c.h.b16 %v1162
    %v1791 = vunpack.c.l.b16 %v1163
    %v1792 = vunpack.c.h.b16 %v1163
    %v1793 = vunpack.c.l.b16 %v1164
    %v1794 = vunpack.c.h.b16 %v1164
    %v1795 = vunpack.c.l.b16 %v1165
    %v1796 = vunpack.c.h.b16 %v1165
    %v1797 = vunpack.c.l.b16 %v1166
    %v1798 = vunpack.c.h.b16 %v1166
    %v1799 = vunpack.c.l.b16 %v1167
    %v1800 = vunpack.c.h.b16 %v1167
    %v1801 = vunpack.c.l.b16 %v1168
    %v1802 = vunpack.c.h.b16 %v1168
    %v1803 = vunpack.c.l.b16 %v1169
    %v1804 = vunpack.c.h.b16 %v1169
    %v1805 = vunpack.c.l.b16 %v1170
    %v1806 = vunpack.c.h.b16 %v1170
    %v1807 = vunpack.c.l.b16 %v1171
    %v1808 = vunpack.c.h.b16 %v1171
    %v1809 = vunpack.c.l.b16 %v1172
    %v1810 = vunpack.c.h.b16 %v1172
    %v1811 = vunpack.c.l.b16 %v1173
    %v1812 = vunpack.c.h.b16 %v1173
    %v1813 = vunpack.c.l.b16 %v1174
    %v1814 = vunpack.c.h.b16 %v1174
    %v1815 = vunpack.c.l.b16 %v1175
    %v1816 = vunpack.c.h.b16 %v1175
    %v1817 = vunpack.c.l.b16 %v1176
    %v1818 = vunpack.c.h.b16 %v1176
    %v1819 = vunpack.c.l.b16 %v1177
    %v1820 = vunpack.c.h.b16 %v1177
    %v1821 = vunpack.c.l.b16 %v1178
    %v1822 = vunpack.c.h.b16 %v1178
    %v1823 = vunpack.c.l.b16 %v1179
    %v1824 = vunpack.c.h.b16 %v1179
    %v1825 = vunpack.c.l.b16 %v1180
    %v1826 = vunpack.c.h.b16 %v1180
    %v1827 = vunpack.c.l.b16 %v1181
    %v1828 = vunpack.c.h.b16 %v1181
    %v1829 = vunpack.c.l.b16 %v1182
    %v1830 = vunpack.c.h.b16 %v1182
    %v1831 = vunpack.c.l.b16 %v1183
    %v1832 = vunpack.c.h.b16 %v1183
    %v1833 = vunpack.c.l.b16 %v1184
    %v1834 = vunpack.c.h.b16 %v1184
    %v1835 = vunpack.c.l.b16 %v1185
    %v1836 = vunpack.c.h.b16 %v1185
    %v1837 = vunpack.c.l.b16 %v1186
    %v1838 = vunpack.c.h.b16 %v1186
    %v1839 = vunpack.c.l.b16 %v1187
    %v1840 = vunpack.c.h.b16 %v1187
    %v1841 = vunpack.c.l.b16 %v1188
    %v1842 = vunpack.c.h.b16 %v1188
    %v1843 = vunpack.c.l.b16 %v1189
    %v1844 = vunpack.c.h.b16 %v1189
    %v1845 = vunpack.c.l.b16 %v1190
    %v1846 = vunpack.c.h.b16 %v1190
    %v1847 = vunpack.c.l.b16 %v1191
    %v1848 = vunpack.c.h.b16 %v1191
    %v1849 = vunpack.c.l.b16 %v1192
    %v1850 = vunpack.c.h.b16 %v1192
    %v1851 = vunpack.c.l.b16 %v1193
    %v1852 = vunpack.c.h.b16 %v1193
    %v1853 = vunpack.c.l.b16 %v1194
    %v1854 = vunpack.c.h.b16 %v1194
    %v1855 = vunpack.c.l.b16 %v1195
    %v1856 = vunpack.c.h.b16 %v1195
    %v1857 = vunpack.c.l.b16 %v1196
    %v1858 = vunpack.c.h.b16 %v1196
    %v1859 = vunpack.c.l.b16 %v1197
    %v1860 = vunpack.c.h.b16 %v1197
    %v1861 = vunpack.c.l.b16 %v1198
    %v1862 = vunpack.c.h.b16 %v1198
    %v1863 = vunpack.c.l.b16 %v1199
    %v1864 = vunpack.c.h.b16 %v1199
    %v1865 = vunpack.c.l.b16 %v1200
    %v1866 = vunpack.c.h.b16 %v1200
    %v1867 = vunpack.c.l.b16 %v1201
    %v1868 = vunpack.c.h.b16 %v1201
    %v1869 = vunpack.c.l.b16 %v1202
    %v1870 = vunpack.c.h.b16 %v1202
    %v1871 = vunpack.c.l.b16 %v1203
    %v1872 = vunpack.c.h.b16 %v1203
    %v1873 = vunpack.c.l.b16 %v1204
    %v1874 = vunpack.c.h.b16 %v1204
    %v1875 = vunpack.c.l.b16 %v1205
    %v1876 = vunpack.c.h.b16 %v1205
    %v1877 = vunpack.c.l.b16 %v1206
    %v1878 = vunpack.c.h.b16 %v1206
    %v1879 = vunpack.c.l.b16 %v1207
    %v1880 = vunpack.c.h.b16 %v1207
    %v1881 = vunpack.c.l.b16 %v1208
    %v1882 = vunpack.c.h.b16 %v1208
    %v1883 = vunpack.c.l.b16 %v1209
    %v1884 = vunpack.c.h.b16 %v1209
    %v1885 = vunpack.c.l.b16 %v1210
    %v1886 = vunpack.c.h.b16 %v1210
    %v1887 = vunpack.c.l.b16 %v1211
    %v1888 = vunpack.c.h.b16 %v1211
    %v1889 = vunpack.c.l.b16 %v1212
    %v1890 = vunpack.c.h.b16 %v1212
    %v1891 = vunpack.c.l.b16 %v1213
    %v1892 = vunpack.c.h.b16 %v1213
    %v1893 = vunpack.c.l.b16 %v1214
    %v1894 = vunpack.c.h.b16 %v1214
    %v1895 = vunpack.c.l.b16 %v1215
    %v1896 = vunpack.c.h.b16 %v1215
    %v1897 = vunpack.c.l.b16 %v1216
    %v1898 = vunpack.c.h.b16 %v1216
    %v1899 = vunpack.c.l.b16 %v1217
    %v1900 = vunpack.c.h.b16 %v1217
    %v1901 = vunpack.c.l.b16 %v1218
    %v1902 = vunpack.c.h.b16 %v1218
    %v1903 = vunpack.c.l.b16 %v1219
    %v1904 = vunpack.c.h.b16 %v1219
    %v1905 = vunpack.c.l.b16 %v1220
    %v1906 = vunpack.c.h.b16 %v1220
    %v1907 = vunpack.c.l.b16 %v1221
    %v1908 = vunpack.c.h.b16 %v1221
    %v1909 = vunpack.c.l.b16 %v1222
    %v1910 = vunpack.c.h.b16 %v1222
    %v1911 = vunpack.c.l.b16 %v1223
    %v1912 = vunpack.c.h.b16 %v1223
    %v1913 = vunpack.c.l.b16 %v1224
    %v1914 = vunpack.c.h.b16 %v1224
    %v1915 = vunpack.c.l.b16 %v1225
    %v1916 = vunpack.c.h.b16 %v1225
    %v1917 = vunpack.c.l.b16 %v1226
    %v1918 = vunpack.c.h.b16 %v1226
    %v1919 = vunpack.c.l.b16 %v1227
    %v1920 = vunpack.c.h.b16 %v1227
    %v1921 = vunpack.c.l.b16 %v1228
    %v1922 = vunpack.c.h.b16 %v1228
    %v1923 = vunpack.c.l.b16 %v1229
    %v1924 = vunpack.c.h.b16 %v1229
    %v1925 = vunpack.c.l.b16 %v1230
    %v1926 = vunpack.c.h.b16 %v1230
    %v1927 = vunpack.c.l.b16 %v1231
    %v1928 = vunpack.c.h.b16 %v1231
    %v1929 = vunpack.c.l.b16 %v1232
    %v1930 = vunpack.c.h.b16 %v1232
    %v1931 = vunpack.c.l.b16 %v1233
    %v1932 = vunpack.c.h.b16 %v1233
    %v1933 = vunpack.c.l.b16 %v1234
    %v1934 = vunpack.c.h.b16 %v1234
    %v1935 = vunpack.c.l.b16 %v1235
    %v1936 = vunpack.c.h.b16 %v1235
    %v1937 = vunpack.c.l.b16 %v1236
    %v1938 = vunpack.c.h.b16 %v1236
    %v1939 = vunpack.c.l.b16 %v1237
    %v1940 = vunpack.c.h.b16 %v1237
    %v1941 = vunpack.c.l.b16 %v1238
    %v1942 = vunpack.c.h.b16 %v1238
    %v1943 = vunpack.c.l.b16 %v1239
    %v1944 = vunpack.c.h.b16 %v1239
    %v1945 = vunpack.c.l.b16 %v1240
    %v1946 = vunpack.c.h.b16 %v1240
    %v1947 = vunpack.c.l.b16 %v1241
    %v1948 = vunpack.c.h.b16 %v1241
    %v1949 = vunpack.c.l.b16 %v1242
    %v1950 = vunpack.c.h.b16 %v1242
    %v1951 = vunpack.c.l.b16 %v1243
    %v1952 = vunpack.c.h.b16 %v1243
    %v1953 = vunpack.c.l.b16 %v1244
    %v1954 = vunpack.c.h.b16 %v1244
    %v1955 = vunpack.c.l.b16 %v1245
    %v1956 = vunpack.c.h.b16 %v1245
    %v1957 = vunpack.c.l.b16 %v1246
    %v1958 = vunpack.c.h.b16 %v1246
    %v1959 = vunpack.c.l.b16 %v1247
    %v1960 = vunpack.c.h.b16 %v1247
    %v1961 = vunpack.c.l.b16 %v1248
    %v1962 = vunpack.c.h.b16 %v1248
    %v1963 = vunpack.c.l.b16 %v1249
    %v1964 = vunpack.c.h.b16 %v1249
    %v1965 = vunpack.c.l.b16 %v1250
    %v1966 = vunpack.c.h.b16 %v1250
    %v1967 = vunpack.c.l.b16 %v1251
    %v1968 = vunpack.c.h.b16 %v1251
    %v1969 = vunpack.c.l.b16 %v1252
    %v1970 = vunpack.c.h.b16 %v1252
    %v1971 = vunpack.c.l.b16 %v1253
    %v1972 = vunpack.c.h.b16 %v1253
    %v1973 = vunpack.c.l.b16 %v1254
    %v1974 = vunpack.c.h.b16 %v1254
    %v1975 = vunpack.c.l.b16 %v1255
    %v1976 = vunpack.c.h.b16 %v1255
    %v1977 = vunpack.c.l.b16 %v1256
    %v1978 = vunpack.c.h.b16 %v1256
    %v1979 = vunpack.c.l.b16 %v1257
    %v1980 = vunpack.c.h.b16 %v1257
    %v1981 = vunpack.c.l.b16 %v1258
    %v1982 = vunpack.c.h.b16 %v1258
    %v1983 = vunpack.c.l.b16 %v1259
    %v1984 = vunpack.c.h.b16 %v1259
    %v1985 = vunpack.c.l.b16 %v1260
    %v1986 = vunpack.c.h.b16 %v1260
    %v1987 = vunpack.c.l.b16 %v1261
    %v1988 = vunpack.c.h.b16 %v1261
    %v1989 = vunpack.c.l.b16 %v1262
    %v1990 = vunpack.c.h.b16 %v1262
    %v1991 = vunpack.c.l.b16 %v1263
    %v1992 = vunpack.c.h.b16 %v1263
    %v1993 = vunpack.c.l.b16 %v1264
    %v1994 = vunpack.c.h.b16 %v1264
    %v1995 = vunpack.c.l.b16 %v1265
    %v1996 = vunpack.c.h.b16 %v1265
    %v1997 = vunpack.c.l.b16 %v1266
    %v1998 = vunpack.c.h.b16 %v1266
    %v1999 = vunpack.c.l.b16 %v1267
    %v2000 = vunpack.c.h.b16 %v1267
    %v2001 = vunpack.c.l.b16 %v1268
    %v2002 = vunpack.c.h.b16 %v1268
    %v2003 = vunpack.c.l.b16 %v1269
    %v2004 = vunpack.c.h.b16 %v1269
    %v2005 = vunpack.c.l.b16 %v1270
    %v2006 = vunpack.c.h.b16 %v1270
    %v2007 = vunpack.c.l.b16 %v1271
    %v2008 = vunpack.c.h.b16 %v1271
    %v2009 = vunpack.c.l.b16 %v1272
    %v2010 = vunpack.c.h.b16 %v1272
    %v2011 = vunpack.c.l.b16 %v1273
    %v2012 = vunpack.c.h.b16 %v1273
    %v2013 = vunpack.c.l.b16 %v1274
    %v2014 = vunpack.c.h.b16 %v1274
    %v2015 = vunpack.c.l.b16 %v1275
    %v2016 = vunpack.c.h.b16 %v1275
    %v2017 = vunpack.c.l.b16 %v1276
    %v2018 = vunpack.c.h.b16 %v1276
    %v2019 = vunpack.c.l.b16 %v1277
    %v2020 = vunpack.c.h.b16 %v1277
    %v2021 = vunpack.c.l.b16 %v1278
    %v2022 = vunpack.c.h.b16 %v1278
    %v2023 = vunpack.c.l.b16 %v1279
    %v2024 = vunpack.c.h.b16 %v1279
    %v2025 = vunpack.c.l.b16 %v1280
    %v2026 = vunpack.c.h.b16 %v1280
    %v2027 = vunpack.c.l.b16 %v1281
    %v2028 = vunpack.c.h.b16 %v1281
    %v2029 = vunpack.c.l.b16 %v1282
    %v2030 = vunpack.c.h.b16 %v1282
    %v2031 = vunpack.c.l.b16 %v1283
    %v2032 = vunpack.c.h.b16 %v1283
    %v2033 = vunpack.c.l.b16 %v1284
    %v2034 = vunpack.c.h.b16 %v1284
    %v2035 = vunpack.c.l.b16 %v1285
    %v2036 = vunpack.c.h.b16 %v1285
    %v2037 = vunpack.c.l.b16 %v1286
    %v2038 = vunpack.c.h.b16 %v1286
    %v2039 = vunpack.c.l.b16 %v1287
    %v2040 = vunpack.c.h.b16 %v1287
    %v2041 = vunpack.c.l.b16 %v1288
    %v2042 = vunpack.c.h.b16 %v1288
    %v2043 = vunpack.c.l.b16 %v1289
    %v2044 = vunpack.c.h.b16 %v1289
    %v2045 = vunpack.c.l.b16 %v1290
    %v2046 = vunpack.c.h.b16 %v1290
    %v2047 = vunpack.c.l.b16 %v1291
    %v2048 = vunpack.c.h.b16 %v1291
    %v2049 = vunpack.c.l.b16 %v1292
    %v2050 = vunpack.c.h.b16 %v1292
    %v2051 = vunpack.c.l.b16 %v1293
    %v2052 = vunpack.c.h.b16 %v1293
    %v2053 = vunpack.c.l.b16 %v1294
    %v2054 = vunpack.c.h.b16 %v1294
    %v2055 = vunpack.c.l.b16 %v1295
    %v2056 = vunpack.c.h.b16 %v1295
    %v2057 = vunpack.c.l.b16 %v1296
    %v2058 = vunpack.c.h.b16 %v1296
    %v2059 = vunpack.c.l.b16 %v1297
    %v2060 = vunpack.c.h.b16 %v1297
    %v2061 = vunpack.c.l.b16 %v1298
    %v2062 = vunpack.c.h.b16 %v1298
    %v2063 = vunpack.c.l.b16 %v1299
    %v2064 = vunpack.c.h.b16 %v1299
    %v2065 = vunpack.c.l.b16 %v1300
    %v2066 = vunpack.c.h.b16 %v1300
    %v2067 = vunpack.c.l.b16 %v1301
    %v2068 = vunpack.c.h.b16 %v1301
    %v2069 = vunpack.c.l.b16 %v1302
    %v2070 = vunpack.c.h.b16 %v1302
    %v2071 = vunpack.c.l.b16 %v1303
    %v2072 = vunpack.c.h.b16 %v1303
    %v2073 = vunpack.c.l.b16 %v1304
    %v2074 = vunpack.c.h.b16 %v1304
    %v2075 = vunpack.c.l.b16 %v1305
    %v2076 = vunpack.c.h.b16 %v1305
    %v2077 = vunpack.c.l.b16 %v1306
    %v2078 = vunpack.c.h.b16 %v1306
    %v2079 = vunpack.c.l.b16 %v1307
    %v2080 = vunpack.c.h.b16 %v1307
    %v2081 = vunpack.c.l.b16 %v1308
    %v2082 = vunpack.c.h.b16 %v1308
    %v2083 = vunpack.c.l.b16 %v1309
    %v2084 = vunpack.c.h.b16 %v1309
    %v2085 = vunpack.c.l.b16 %v1310
    %v2086 = vunpack.c.h.b16 %v1310
    %v2087 = vunpack.c.l.b16 %v1311
    %v2088 = vunpack.c.h.b16 %v1311
    %v2089 = vunpack.c.l.b16 %v1312
    %v2090 = vunpack.c.h.b16 %v1312
    %v2091 = vunpack.c.l.b16 %v1313
    %v2092 = vunpack.c.h.b16 %v1313
    %v2093 = vunpack.c.l.b16 %v1314
    %v2094 = vunpack.c.h.b16 %v1314
    %v2095 = vunpack.c.l.b16 %v1315
    %v2096 = vunpack.c.h.b16 %v1315
    %v2097 = vunpack.c.l.b16 %v1316
    %v2098 = vunpack.c.h.b16 %v1316
    %v2099 = vunpack.c.l.b16 %v1317
    %v2100 = vunpack.c.h.b16 %v1317
    %v2101 = vunpack.c.l.b16 %v1318
    %v2102 = vunpack.c.h.b16 %v1318
    %v2103 = vunpack.c.l.b16 %v1319
    %v2104 = vunpack.c.h.b16 %v1319
    %v2105 = vunpack.c.l.b16 %v1320
    %v2106 = vunpack.c.h.b16 %v1320
    %v2107 = vunpack.c.l.b16 %v1321
    %v2108 = vunpack.c.h.b16 %v1321
    %v2109 = vunpack.c.l.b16 %v1322
    %v2110 = vunpack.c.h.b16 %v1322
    %v2111 = vunpack.c.l.b16 %v1323
    %v2112 = vunpack.c.h.b16 %v1323
    %v2113 = vunpack.c.l.b16 %v1324
    %v2114 = vunpack.c.h.b16 %v1324
    %v2115 = vunpack.c.l.b16 %v1325
    %v2116 = vunpack.c.h.b16 %v1325
    %v2117 = vunpack.c.l.b16 %v1326
    %v2118 = vunpack.c.h.b16 %v1326
    %v2119 = vunpack.c.l.b16 %v1327
    %v2120 = vunpack.c.h.b16 %v1327
    %v2121 = vunpack.c.l.b16 %v1328
    %v2122 = vunpack.c.h.b16 %v1328
    %v2123 = vunpack.c.l.b16 %v1329
    %v2124 = vunpack.c.h.b16 %v1329
    %v2125 = vunpack.c.l.b16 %v1330
    %v2126 = vunpack.c.h.b16 %v1330
    %v2127 = vunpack.c.l.b16 %v1331
    %v2128 = vunpack.c.h.b16 %v1331
    %v2129 = vunpack.c.l.b16 %v1332
    %v2130 = vunpack.c.h.b16 %v1332
    %v2131 = vunpack.c.l.b16 %v1333
    %v2132 = vunpack.c.h.b16 %v1333
    %v2133 = vunpack.c.l.b16 %v1334
    %v2134 = vunpack.c.h.b16 %v1334
    %v2135 = vunpack.c.l.b16 %v1335
    %v2136 = vunpack.c.h.b16 %v1335
    %v2137 = vunpack.c.l.b16 %v1336
    %v2138 = vunpack.c.h.b16 %v1336
    %v2139 = vunpack.c.l.b16 %v1337
    %v2140 = vunpack.c.h.b16 %v1337
    %v2141 = vunpack.c.l.b16 %v1338
    %v2142 = vunpack.c.h.b16 %v1338
    %v2143 = vunpack.c.l.b16 %v1339
    %v2144 = vunpack.c.h.b16 %v1339
    %v2145 = vunpack.c.l.b16 %v1340
    %v2146 = vunpack.c.h.b16 %v1340
    %v2147 = vpack.c.b16 %v1639, %v1635
    %v2148 = vpack.c.b16 %v1640, %v1636
    %v2149 = vpack.c.b16 %v1641, %v1637
    %v2150 = vpack.c.b16 %v1642, %v1638
    %v2151 = vpack.c.b16 %v1647, %v1643
    %v2152 = vpack.c.b16 %v1648, %v1644
    %v2153 = vpack.c.b16 %v1649, %v1645
    %v2154 = vpack.c.b16 %v1650, %v1646
    %v2155 = vpack.c.b16 %v1655, %v1651
    %v2156 = vpack.c.b16 %v1656, %v1652
    %v2157 = vpack.c.b16 %v1657, %v1653
    %v2158 = vpack.c.b16 %v1658, %v1654
    %v2159 = vpack.c.b16 %v1663, %v1659
    %v2160 = vpack.c.b16 %v1664, %v1660
    %v2161 = vpack.c.b16 %v1665, %v1661
    %v2162 = vpack.c.b16 %v1666, %v1662
    %v2163 = vpack.c.b16 %v1671, %v1667
    %v2164 = vpack.c.b16 %v1672, %v1668
    %v2165 = vpack.c.b16 %v1673, %v1669
    %v2166 = vpack.c.b16 %v1674, %v1670
    %v2167 = vpack.c.b16 %v1679, %v1675
    %v2168 = vpack.c.b16 %v1680, %v1676
    %v2169 = vpack.c.b16 %v1681, %v1677
    %v2170 = vpack.c.b16 %v1682, %v1678
    %v2171 = vpack.c.b16 %v1687, %v1683
    %v2172 = vpack.c.b16 %v1688, %v1684
    %v2173 = vpack.c.b16 %v1689, %v1685
    %v2174 = vpack.c.b16 %v1690, %v1686
    %v2175 = vpack.c.b16 %v1695, %v1691
    %v2176 = vpack.c.b16 %v1696, %v1692
    %v2177 = vpack.c.b16 %v1697, %v1693
    %v2178 = vpack.c.b16 %v1698, %v1694
    %v2179 = vpack.c.b16 %v1703, %v1699
    %v2180 = vpack.c.b16 %v1704, %v1700
    %v2181 = vpack.c.b16 %v1705, %v1701
    %v2182 = vpack.c.b16 %v1706, %v1702
    %v2183 = vpack.c.b16 %v1711, %v1707
    %v2184 = vpack.c.b16 %v1712, %v1708
    %v2185 = vpack.c.b16 %v1713, %v1709
    %v2186 = vpack.c.b16 %v1714, %v1710
    %v2187 = vpack.c.b16 %v1719, %v1715
    %v2188 = vpack.c.b16 %v1720, %v1716
    %v2189 = vpack.c.b16 %v1721, %v1717
    %v2190 = vpack.c.b16 %v1722, %v1718
    %v2191 = vpack.c.b16 %v1727, %v1723
    %v2192 = vpack.c.b16 %v1728, %v1724
    %v2193 = vpack.c.b16 %v1729, %v1725
    %v2194 = vpack.c.b16 %v1730, %v1726
    %v2195 = vpack.c.b16 %v1735, %v1731
    %v2196 = vpack.c.b16 %v1736, %v1732
    %v2197 = vpack.c.b16 %v1737, %v1733
    %v2198 = vpack.c.b16 %v1738, %v1734
    %v2199 = vpack.c.b16 %v1743, %v1739
    %v2200 = vpack.c.b16 %v1744, %v1740
    %v2201 = vpack.c.b16 %v1745, %v1741
    %v2202 = vpack.c.b16 %v1746, %v1742
    %v2203 = vpack.c.b16 %v1751, %v1747
    %v2204 = vpack.c.b16 %v1752, %v1748
    %v2205 = vpack.c.b16 %v1753, %v1749
    %v2206 = vpack.c.b16 %v1754, %v1750
    %v2207 = vpack.c.b16 %v1759, %v1755
    %v2208 = vpack.c.b16 %v1760, %v1756
    %v2209 = vpack.c.b16 %v1761, %v1757
    %v2210 = vpack.c.b16 %v1762, %v1758
    %v2211 = vpack.c.b16 %v1767, %v1763
    %v2212 = vpack.c.b16 %v1768, %v1764
    %v2213 = vpack.c.b16 %v1769, %v1765
    %v2214 = vpack.c.b16 %v1770, %v1766
    %v2215 = vpack.c.b16 %v1775, %v1771
    %v2216 = vpack.c.b16 %v1776, %v1772
    %v2217 = vpack.c.b16 %v1777, %v1773
    %v2218 = vpack.c.b16 %v1778, %v1774
    %v2219 = vpack.c.b16 %v1783, %v1779
    %v2220 = vpack.c.b16 %v1784, %v1780
    %v2221 = vpack.c.b16 %v1785, %v1781
    %v2222 = vpack.c.b16 %v1786, %v1782
    %v2223 = vpack.c.b16 %v1791, %v1787
    %v2224 = vpack.c.b16 %v1792, %v1788
    %v2225 = vpack.c.b16 %v1793, %v1789
    %v2226 = vpack.c.b16 %v1794, %v1790
    %v2227 = vpack.c.b16 %v1799, %v1795
    %v2228 = vpack.c.b16 %v1800, %v1796
    %v2229 = vpack.c.b16 %v1801, %v1797
    %v2230 = vpack.c.b16 %v1802, %v1798
    %v2231 = vpack.c.b16 %v1807, %v1803
    %v2232 = vpack.c.b16 %v1808, %v1804
    %v2233 = vpack.c.b16 %v1809, %v1805
    %v2234 = vpack.c.b16 %v1810, %v1806
    %v2235 = vpack.c.b16 %v1815, %v1811
    %v2236 = vpack.c.b16 %v1816, %v1812
    %v2237 = vpack.c.b16 %v1817, %v1813
    %v2238 = vpack.c.b16 %v1818, %v1814
    %v2239 = vpack.c.b16 %v1823, %v1819
    %v2240 = vpack.c.b16 %v1824, %v1820
    %v2241 = vpack.c.b16 %v1825, %v1821
    %v2242 = vpack.c.b16 %v1826, %v1822
    %v2243 = vpack.c.b16 %v1831, %v1827
    %v2244 = vpack.c.b16 %v1832, %v1828
    %v2245 = vpack.c.b16 %v1833, %v1829
    %v2246 = vpack.c.b16 %v1834, %v1830
    %v2247 = vpack.c.b16 %v1839, %v1835
    %v2248 = vpack.c.b16 %v1840, %v1836
    %v2249 = vpack.c.b16 %v1841, %v1837
    %v2250 = vpack.c.b16 %v1842, %v1838
    %v2251 = vpack.c.b16 %v1847, %v1843
    %v2252 = vpack.c.b16 %v1848, %v1844
    %v2253 = vpack.c.b16 %v1849, %v1845
    %v2254 = vpack.c.b16 %v1850, %v1846
    %v2255 = vpack.c.b16 %v1855, %v1851
    %v2256 = vpack.c.b16 %v1856, %v1852
    %v2257 = vpack.c.b16 %v1857, %v1853
    %v2258 = vpack.c.b16 %v1858, %v1854
    %v2259 = vpack.c.b16 %v1863, %v1859
    %v2260 = vpack.c.b16 %v1864, %v1860
    %v2261 = vpack.c.b16 %v1865, %v1861
    %v2262 = vpack.c.b16 %v1866, %v1862
    %v2263 = vpack.c.b16 %v1871, %v1867
    %v2264 = vpack.c.b16 %v1872, %v1868
    %v2265 = vpack.c.b16 %v1873, %v1869
    %v2266 = vpack.c.b16 %v1874, %v1870
    %v2267 = vpack.c.b16 %v1879, %v1875
    %v2268 = vpack.c.b16 %v1880, %v1876
    %v2269 = vpack.c.b16 %v1881, %v1877
    %v2270 = vpack.c.b16 %v1882, %v1878
    %v2271 = vpack.c.b16 %v1887, %v1883
    %v2272 = vpack.c.b16 %v1888, %v1884
    %v2273 = vpack.c.b16 %v1889, %v1885
    %v2274 = vpack.c.b16 %v1890, %v1886
    %v2275 = vpack.c.b16 %v1895, %v1891
    %v2276 = vpack.c.b16 %v1896, %v1892
    %v2277 = vpack.c.b16 %v1897, %v1893
    %v2278 = vpack.c.b16 %v1898, %v1894
    %v2279 = vpack.c.b16 %v1903, %v1899
    %v2280 = vpack.c.b16 %v1904, %v1900
    %v2281 = vpack.c.b16 %v1905, %v1901
    %v2282 = vpack.c.b16 %v1906, %v1902
    %v2283 = vpack.c.b16 %v1911, %v1907
    %v2284 = vpack.c.b16 %v1912, %v1908
    %v2285 = vpack.c.b16 %v1913, %v1909
    %v2286 = vpack.c.b16 %v1914, %v1910
    %v2287 = vpack.c.b16 %v1919, %v1915
    %v2288 = vpack.c.b16 %v1920, %v1916
    %v2289 = vpack.c.b16 %v1921, %v1917
    %v2290 = vpack.c.b16 %v1922, %v1918
    %v2291 = vpack.c.b16 %v1927, %v1923
    %v2292 = vpack.c.b16 %v1928, %v1924
    %v2293 = vpack.c.b16 %v1929, %v1925
    %v2294 = vpack.c.b16 %v1930, %v1926
    %v2295 = vpack.c.b16 %v1935, %v1931
    %v2296 = vpack.c.b16 %v1936, %v1932
    %v2297 = vpack.c.b16 %v1937, %v1933
    %v2298 = vpack.c.b16 %v1938, %v1934
    %v2299 = vpack.c.b16 %v1943, %v1939
    %v2300 = vpack.c.b16 %v1944, %v1940
    %v2301 = vpack.c.b16 %v1945, %v1941
    %v2302 = vpack.c.b16 %v1946, %v1942
    %v2303 = vpack.c.b16 %v1951, %v1947
    %v2304 = vpack.c.b16 %v1952, %v1948
    %v2305 = vpack.c.b16 %v1953, %v1949
    %v2306 = vpack.c.b16 %v1954, %v1950
    %v2307 = vpack.c.b16 %v1959, %v1955
    %v2308 = vpack.c.b16 %v1960, %v1956
    %v2309 = vpack.c.b16 %v1961, %v1957
    %v2310 = vpack.c.b16 %v1962, %v1958
    %v2311 = vpack.c.b16 %v1967, %v1963
    %v2312 = vpack.c.b16 %v1968, %v1964
    %v2313 = vpack.c.b16 %v1969, %v1965
    %v2314 = vpack.c.b16 %v1970, %v1966
    %v2315 = vpack.c.b16 %v1975, %v1971
    %v2316 = vpack.c.b16 %v1976, %v1972
    %v2317 = vpack.c.b16 %v1977, %v1973
    %v2318 = vpack.c.b16 %v1978, %v1974
    %v2319 = vpack.c.b16 %v1983, %v1979
    %v2320 = vpack.c.b16 %v1984, %v1980
    %v2321 = vpack.c.b16 %v1985, %v1981
    %v2322 = vpack.c.b16 %v1986, %v1982
    %v2323 = vpack.c.b16 %v1991, %v1987
    %v2324 = vpack.c.b16 %v1992, %v1988
    %v2325 = vpack.c.b16 %v1993, %v1989
    %v2326 = vpack.c.b16 %v1994, %v1990
    %v2327 = vpack.c.b16 %v1999, %v1995
    %v2328 = vpack.c.b16 %v2000, %v1996
    %v2329 = vpack.c.b16 %v2001, %v1997
    %v2330 = vpack.c.b16 %v2002, %v1998
    %v2331 = vpack.c.b16 %v2007, %v2003
    %v2332 = vpack.c.b16 %v2008, %v2004
    %v2333 = vpack.c.b16 %v2009, %v2005
    %v2334 = vpack.c.b16 %v2010, %v2006
    %v2335 = vpack.c.b16 %v2015, %v2011
    %v2336 = vpack.c.b16 %v2016, %v2012
    %v2337 = vpack.c.b16 %v2017, %v2013
    %v2338 = vpack.c.b16 %v2018, %v2014
    %v2339 = vpack.c.b16 %v2023, %v2019
    %v2340 = vpack.c.b16 %v2024, %v2020
    %v2341 = vpack.c.b16 %v2025, %v2021
    %v2342 = vpack.c.b16 %v2026, %v2022
    %v2343 = vpack.c.b16 %v2031, %v2027
    %v2344 = vpack.c.b16 %v2032, %v2028
    %v2345 = vpack.c.b16 %v2033, %v2029
    %v2346 = vpack.c.b16 %v2034, %v2030
    %v2347 = vpack.c.b16 %v2039, %v2035
    %v2348 = vpack.c.b16 %v2040, %v2036
    %v2349 = vpack.c.b16 %v2041, %v2037
    %v2350 = vpack.c.b16 %v2042, %v2038
    %v2351 = vpack.c.b16 %v2047, %v2043
    %v2352 = vpack.c.b16 %v2048, %v2044
    %v2353 = vpack.c.b16 %v2049, %v2045
    %v2354 = vpack.c.b16 %v2050, %v2046
    %v2355 = vpack.c.b16 %v2055, %v2051
    %v2356 = vpack.c.b16 %v2056, %v2052
    %v2357 = vpack.c.b16 %v2057, %v2053
    %v2358 = vpack.c.b16 %v2058, %v2054
    %v2359 = vpack.c.b16 %v2063, %v2059
    %v2360 = vpack.c.b16 %v2064, %v2060
    %v2361 = vpack.c.b16 %v2065, %v2061
    %v2362 = vpack.c.b16 %v2066, %v2062
    %v2363 = vpack.c.b16 %v2071, %v2067
    %v2364 = vpack.c.b16 %v2072, %v2068
    %v2365 = vpack.c.b16 %v2073, %v2069
    %v2366 = vpack.c.b16 %v2074, %v2070
    %v2367 = vpack.c.b16 %v2079, %v2075
    %v2368 = vpack.c.b16 %v2080, %v2076
    %v2369 = vpack.c.b16 %v2081, %v2077
    %v2370 = vpack.c.b16 %v2082, %v2078
    %v2371 = vpack.c.b16 %v2087, %v2083
    %v2372 = vpack.c.b16 %v2088, %v2084
    %v2373 = vpack.c.b16 %v2089, %v2085
    %v2374 = vpack.c.b16 %v2090, %v2086
    %v2375 = vpack.c.b16 %v2095, %v2091
    %v2376 = vpack.c.b16 %v2096, %v2092
    %v2377 = vpack.c.b16 %v2097, %v2093
    %v2378 = vpack.c.b16 %v2098, %v2094
    %v2379 = vpack.c.b16 %v2103, %v2099
    %v2380 = vpack.c.b16 %v2104, %v2100
    %v2381 = vpack.c.b16 %v2105, %v2101
    %v2382 = vpack.c.b16 %v2106, %v2102
    %v2383 = vpack.c.b16 %v2111, %v2107
    %v2384 = vpack.c.b16 %v2112, %v2108
    %v2385 = vpack.c.b16 %v2113, %v2109
    %v2386 = vpack.c.b16 %v2114, %v2110
    %v2387 = vpack.c.b16 %v2119, %v2115
    %v2388 = vpack.c.b16 %v2120, %v2116
    %v2389 = vpack.c.b16 %v2121, %v2117
    %v2390 = vpack.c.b16 %v2122, %v2118
    %v2391 = vpack.c.b16 %v2127, %v2123
    %v2392 = vpack.c.b16 %v2128, %v2124
    %v2393 = vpack.c.b16 %v2129, %v2125
    %v2394 = vpack.c.b16 %v2130, %v2126
    %v2395 = vpack.c.b16 %v2135, %v2131
    %v2396 = vpack.c.b16 %v2136, %v2132
    %v2397 = vpack.c.b16 %v2137, %v2133
    %v2398 = vpack.c.b16 %v2138, %v2134
    %v2399 = vpack.c.b16 %v2143, %v2139
    %v2400 = vpack.c.b16 %v2144, %v2140
    %v2401 = vpack.c.b16 %v2145, %v2141
    %v2402 = vpack.c.b16 %v2146, %v2142
    %2659 = vmatpush.bf16.msra.mxu0 %v2175
    %2660 = vmatpush.bf16.msra.mxu0 %v2171
    %2661 = vmatpush.bf16.msra.mxu0 %v2167
    %2662 = vmatpush.bf16.msra.mxu0 %v2163
    %2663 = vmatpush.bf16.msra.mxu0 %v2159
    %2664 = vmatpush.bf16.msra.mxu0 %v2155
    %2665 = vmatpush.bf16.msra.mxu0 %v2151
    %2666 = vmatpush.bf16.msra.mxu0 %v2147
    %2667 = vmatmul.bf16.gmra.mxu0 %v1363
    %v2668 = vpop.f32.mrf.mxu0
    %v2669 = vadd.f32 %v1343, %v2668
    %v2670 = vpop.f32.mrf.mxu0
    %2671 = vdwg.mxu0
    %2672 = vmatpush.bf16.msra.mxu0 %v2207
    %2673 = vmatpush.bf16.msra.mxu0 %v2203
    %2674 = vmatpush.bf16.msra.mxu0 %v2199
    %2675 = vmatpush.bf16.msra.mxu0 %v2195
    %2676 = vmatpush.bf16.msra.mxu0 %v2191
    %2677 = vmatpush.bf16.msra.mxu0 %v2187
    %2678 = vmatpush.bf16.msra.mxu0 %v2183
    %2679 = vmatpush.bf16.msra.mxu0 %v2179
    %2680 = vmatmul.bf16.gmra.mxu0 %v1364
    %v2681 = vpop.f32.mrf.mxu0
    %v2682 = vadd.f32 %v2669, %v2681
    %v2683 = vpop.f32.mrf.mxu0
    %2684 = vdwg.mxu0
    %2685 = vmatpush.bf16.msra.mxu0 %v2239
    %2686 = vmatpush.bf16.msra.mxu0 %v2235
    %2687 = vmatpush.bf16.msra.mxu0 %v2231
    %2688 = vmatpush.bf16.msra.mxu0 %v2227
    %2689 = vmatpush.bf16.msra.mxu0 %v2223
    %2690 = vmatpush.bf16.msra.mxu0 %v2219
    %2691 = vmatpush.bf16.msra.mxu0 %v2215
    %2692 = vmatpush.bf16.msra.mxu0 %v2211
    %2693 = vmatmul.bf16.gmra.mxu0 %v1365
    %v2694 = vpop.f32.mrf.mxu0
    %v2695 = vadd.f32 %v2682, %v2694
    %v2696 = vpop.f32.mrf.mxu0
    %2697 = vdwg.mxu0
    %2698 = vmatpush.bf16.msra.mxu0 %v2271
    %2699 = vmatpush.bf16.msra.mxu0 %v2267
    %2700 = vmatpush.bf16.msra.mxu0 %v2263
    %2701 = vmatpush.bf16.msra.mxu0 %v2259
    %2702 = vmatpush.bf16.msra.mxu0 %v2255
    %2703 = vmatpush.bf16.msra.mxu0 %v2251
    %2704 = vmatpush.bf16.msra.mxu0 %v2247
    %2705 = vmatpush.bf16.msra.mxu0 %v2243
    %2706 = vmatmul.bf16.gmra.mxu0 %v1366
    %v2707 = vpop.f32.mrf.mxu0
    %v2708 = vadd.f32 %v2695, %v2707
    %v2709 = vpop.f32.mrf.mxu0
    %2710 = vdwg.mxu0
    %2711 = vmatpush.bf16.msra.mxu0 %v2303
    %2712 = vmatpush.bf16.msra.mxu0 %v2299
    %2713 = vmatpush.bf16.msra.mxu0 %v2295
    %2714 = vmatpush.bf16.msra.mxu0 %v2291
    %2715 = vmatpush.bf16.msra.mxu0 %v2287
    %2716 = vmatpush.bf16.msra.mxu0 %v2283
    %2717 = vmatpush.bf16.msra.mxu0 %v2279
    %2718 = vmatpush.bf16.msra.mxu0 %v2275
    %2719 = vmatmul.bf16.gmra.mxu0 %v1367
    %v2720 = vpop.f32.mrf.mxu0
    %v2721 = vadd.f32 %v2708, %v2720
    %v2722 = vpop.f32.mrf.mxu0
    %2723 = vdwg.mxu0
    %2724 = vmatpush.bf16.msra.mxu0 %v2335
    %2725 = vmatpush.bf16.msra.mxu0 %v2331
    %2726 = vmatpush.bf16.msra.mxu0 %v2327
    %2727 = vmatpush.bf16.msra.mxu0 %v2323
    %2728 = vmatpush.bf16.msra.mxu0 %v2319
    %2729 = vmatpush.bf16.msra.mxu0 %v2315
    %2730 = vmatpush.bf16.msra.mxu0 %v2311
    %2731 = vmatpush.bf16.msra.mxu0 %v2307
    %2732 = vmatmul.bf16.gmra.mxu0 %v1368
    %v2733 = vpop.f32.mrf.mxu0
    %v2734 = vadd.f32 %v2721, %v2733
    %v2735 = vpop.f32.mrf.mxu0
    %2736 = vdwg.mxu0
    %2737 = vmatpush.bf16.msra.mxu0 %v2367
    %2738 = vmatpush.bf16.msra.mxu0 %v2363
    %2739 = vmatpush.bf16.msra.mxu0 %v2359
    %2740 = vmatpush.bf16.msra.mxu0 %v2355
    %2741 = vmatpush.bf16.msra.mxu0 %v2351
    %2742 = vmatpush.bf16.msra.mxu0 %v2347
    %2743 = vmatpush.bf16.msra.mxu0 %v2343
    %2744 = vmatpush.bf16.msra.mxu0 %v2339
    %2745 = vmatmul.bf16.gmra.mxu0 %v1369
    %v2746 = vpop.f32.mrf.mxu0
    %v2747 = vadd.f32 %v2734, %v2746
    %v2748 = vpop.f32.mrf.mxu0
    %2749 = vdwg.mxu0
    %2750 = vmatpush.bf16.msra.mxu0 %v2399
    %2751 = vmatpush.bf16.msra.mxu0 %v2395
    %2752 = vmatpush.bf16.msra.mxu0 %v2391
    %2753 = vmatpush.bf16.msra.mxu0 %v2387
    %2754 = vmatpush.bf16.msra.mxu0 %v2383
    %2755 = vmatpush.bf16.msra.mxu0 %v2379
    %2756 = vmatpush.bf16.msra.mxu0 %v2375
    %2757 = vmatpush.bf16.msra.mxu0 %v2371
    %2758 = vmatmul.bf16.gmra.mxu0 %v1370
    %v2759 = vpop.f32.mrf.mxu0
    %v2760 = vadd.f32 %v2747, %v2759
    %v2761 = vpop.f32.mrf.mxu0
    %2762 = vdwg.mxu0
    %2763 = vmatpush.bf16.msra.mxu0 %v2176
    %2764 = vmatpush.bf16.msra.mxu0 %v2172
    %2765 = vmatpush.bf16.msra.mxu0 %v2168
    %2766 = vmatpush.bf16.msra.mxu0 %v2164
    %2767 = vmatpush.bf16.msra.mxu0 %v2160
    %2768 = vmatpush.bf16.msra.mxu0 %v2156
    %2769 = vmatpush.bf16.msra.mxu0 %v2152
    %2770 = vmatpush.bf16.msra.mxu0 %v2148
    %2771 = vmatmul.bf16.gmra.mxu0 %v1363
    %v2772 = vpop.f32.mrf.mxu0
    %v2773 = vadd.f32 %v1344, %v2772
    %v2774 = vpop.f32.mrf.mxu0
    %2775 = vdwg.mxu0
    %2776 = vmatpush.bf16.msra.mxu0 %v2208
    %2777 = vmatpush.bf16.msra.mxu0 %v2204
    %2778 = vmatpush.bf16.msra.mxu0 %v2200
    %2779 = vmatpush.bf16.msra.mxu0 %v2196
    %2780 = vmatpush.bf16.msra.mxu0 %v2192
    %2781 = vmatpush.bf16.msra.mxu0 %v2188
    %2782 = vmatpush.bf16.msra.mxu0 %v2184
    %2783 = vmatpush.bf16.msra.mxu0 %v2180
    %2784 = vmatmul.bf16.gmra.mxu0 %v1364
    %v2785 = vpop.f32.mrf.mxu0
    %v2786 = vadd.f32 %v2773, %v2785
    %v2787 = vpop.f32.mrf.mxu0
    %2788 = vdwg.mxu0
    %2789 = vmatpush.bf16.msra.mxu0 %v2240
    %2790 = vmatpush.bf16.msra.mxu0 %v2236
    %2791 = vmatpush.bf16.msra.mxu0 %v2232
    %2792 = vmatpush.bf16.msra.mxu0 %v2228
    %2793 = vmatpush.bf16.msra.mxu0 %v2224
    %2794 = vmatpush.bf16.msra.mxu0 %v2220
    %2795 = vmatpush.bf16.msra.mxu0 %v2216
    %2796 = vmatpush.bf16.msra.mxu0 %v2212
    %2797 = vmatmul.bf16.gmra.mxu0 %v1365
    %v2798 = vpop.f32.mrf.mxu0
    %v2799 = vadd.f32 %v2786, %v2798
    %v2800 = vpop.f32.mrf.mxu0
    %2801 = vdwg.mxu0
    %2802 = vmatpush.bf16.msra.mxu0 %v2272
    %2803 = vmatpush.bf16.msra.mxu0 %v2268
    %2804 = vmatpush.bf16.msra.mxu0 %v2264
    %2805 = vmatpush.bf16.msra.mxu0 %v2260
    %2806 = vmatpush.bf16.msra.mxu0 %v2256
    %2807 = vmatpush.bf16.msra.mxu0 %v2252
    %2808 = vmatpush.bf16.msra.mxu0 %v2248
    %2809 = vmatpush.bf16.msra.mxu0 %v2244
    %2810 = vmatmul.bf16.gmra.mxu0 %v1366
    %v2811 = vpop.f32.mrf.mxu0
    %v2812 = vadd.f32 %v2799, %v2811
    %v2813 = vpop.f32.mrf.mxu0
    %2814 = vdwg.mxu0
    %2815 = vmatpush.bf16.msra.mxu0 %v2304
    %2816 = vmatpush.bf16.msra.mxu0 %v2300
    %2817 = vmatpush.bf16.msra.mxu0 %v2296
    %2818 = vmatpush.bf16.msra.mxu0 %v2292
    %2819 = vmatpush.bf16.msra.mxu0 %v2288
    %2820 = vmatpush.bf16.msra.mxu0 %v2284
    %2821 = vmatpush.bf16.msra.mxu0 %v2280
    %2822 = vmatpush.bf16.msra.mxu0 %v2276
    %2823 = vmatmul.bf16.gmra.mxu0 %v1367
    %v2824 = vpop.f32.mrf.mxu0
    %v2825 = vadd.f32 %v2812, %v2824
    %v2826 = vpop.f32.mrf.mxu0
    %2827 = vdwg.mxu0
    %2828 = vmatpush.bf16.msra.mxu0 %v2336
    %2829 = vmatpush.bf16.msra.mxu0 %v2332
    %2830 = vmatpush.bf16.msra.mxu0 %v2328
    %2831 = vmatpush.bf16.msra.mxu0 %v2324
    %2832 = vmatpush.bf16.msra.mxu0 %v2320
    %2833 = vmatpush.bf16.msra.mxu0 %v2316
    %2834 = vmatpush.bf16.msra.mxu0 %v2312
    %2835 = vmatpush.bf16.msra.mxu0 %v2308
    %2836 = vmatmul.bf16.gmra.mxu0 %v1368
    %v2837 = vpop.f32.mrf.mxu0
    %v2838 = vadd.f32 %v2825, %v2837
    %v2839 = vpop.f32.mrf.mxu0
    %2840 = vdwg.mxu0
    %2841 = vmatpush.bf16.msra.mxu0 %v2368
    %2842 = vmatpush.bf16.msra.mxu0 %v2364
    %2843 = vmatpush.bf16.msra.mxu0 %v2360
    %2844 = vmatpush.bf16.msra.mxu0 %v2356
    %2845 = vmatpush.bf16.msra.mxu0 %v2352
    %2846 = vmatpush.bf16.msra.mxu0 %v2348
    %2847 = vmatpush.bf16.msra.mxu0 %v2344
    %2848 = vmatpush.bf16.msra.mxu0 %v2340
    %2849 = vmatmul.bf16.gmra.mxu0 %v1369
    %v2850 = vpop.f32.mrf.mxu0
    %v2851 = vadd.f32 %v2838, %v2850
    %v2852 = vpop.f32.mrf.mxu0
    %2853 = vdwg.mxu0
    %2854 = vmatpush.bf16.msra.mxu0 %v2400
    %2855 = vmatpush.bf16.msra.mxu0 %v2396
    %2856 = vmatpush.bf16.msra.mxu0 %v2392
    %2857 = vmatpush.bf16.msra.mxu0 %v2388
    %2858 = vmatpush.bf16.msra.mxu0 %v2384
    %2859 = vmatpush.bf16.msra.mxu0 %v2380
    %2860 = vmatpush.bf16.msra.mxu0 %v2376
    %2861 = vmatpush.bf16.msra.mxu0 %v2372
    %2862 = vmatmul.bf16.gmra.mxu0 %v1370
    %v2863 = vpop.f32.mrf.mxu0
    %v2864 = vadd.f32 %v2851, %v2863
    %v2865 = vpop.f32.mrf.mxu0
    %2866 = vdwg.mxu0
    %2867 = vmatpush.bf16.msra.mxu0 %v2177
    %2868 = vmatpush.bf16.msra.mxu0 %v2173
    %2869 = vmatpush.bf16.msra.mxu0 %v2169
    %2870 = vmatpush.bf16.msra.mxu0 %v2165
    %2871 = vmatpush.bf16.msra.mxu0 %v2161
    %2872 = vmatpush.bf16.msra.mxu0 %v2157
    %2873 = vmatpush.bf16.msra.mxu0 %v2153
    %2874 = vmatpush.bf16.msra.mxu0 %v2149
    %2875 = vmatmul.bf16.gmra.mxu0 %v1363
    %v2876 = vpop.f32.mrf.mxu0
    %v2877 = vadd.f32 %v1345, %v2876
    %v2878 = vpop.f32.mrf.mxu0
    %2879 = vdwg.mxu0
    %2880 = vmatpush.bf16.msra.mxu0 %v2209
    %2881 = vmatpush.bf16.msra.mxu0 %v2205
    %2882 = vmatpush.bf16.msra.mxu0 %v2201
    %2883 = vmatpush.bf16.msra.mxu0 %v2197
    %2884 = vmatpush.bf16.msra.mxu0 %v2193
    %2885 = vmatpush.bf16.msra.mxu0 %v2189
    %2886 = vmatpush.bf16.msra.mxu0 %v2185
    %2887 = vmatpush.bf16.msra.mxu0 %v2181
    %2888 = vmatmul.bf16.gmra.mxu0 %v1364
    %v2889 = vpop.f32.mrf.mxu0
    %v2890 = vadd.f32 %v2877, %v2889
    %v2891 = vpop.f32.mrf.mxu0
    %2892 = vdwg.mxu0
    %2893 = vmatpush.bf16.msra.mxu0 %v2241
    %2894 = vmatpush.bf16.msra.mxu0 %v2237
    %2895 = vmatpush.bf16.msra.mxu0 %v2233
    %2896 = vmatpush.bf16.msra.mxu0 %v2229
    %2897 = vmatpush.bf16.msra.mxu0 %v2225
    %2898 = vmatpush.bf16.msra.mxu0 %v2221
    %2899 = vmatpush.bf16.msra.mxu0 %v2217
    %2900 = vmatpush.bf16.msra.mxu0 %v2213
    %2901 = vmatmul.bf16.gmra.mxu0 %v1365
    %v2902 = vpop.f32.mrf.mxu0
    %v2903 = vadd.f32 %v2890, %v2902
    %v2904 = vpop.f32.mrf.mxu0
    %2905 = vdwg.mxu0
    %2906 = vmatpush.bf16.msra.mxu0 %v2273
    %2907 = vmatpush.bf16.msra.mxu0 %v2269
    %2908 = vmatpush.bf16.msra.mxu0 %v2265
    %2909 = vmatpush.bf16.msra.mxu0 %v2261
    %2910 = vmatpush.bf16.msra.mxu0 %v2257
    %2911 = vmatpush.bf16.msra.mxu0 %v2253
    %2912 = vmatpush.bf16.msra.mxu0 %v2249
    %2913 = vmatpush.bf16.msra.mxu0 %v2245
    %2914 = vmatmul.bf16.gmra.mxu0 %v1366
    %v2915 = vpop.f32.mrf.mxu0
    %v2916 = vadd.f32 %v2903, %v2915
    %v2917 = vpop.f32.mrf.mxu0
    %2918 = vdwg.mxu0
    %2919 = vmatpush.bf16.msra.mxu0 %v2305
    %2920 = vmatpush.bf16.msra.mxu0 %v2301
    %2921 = vmatpush.bf16.msra.mxu0 %v2297
    %2922 = vmatpush.bf16.msra.mxu0 %v2293
    %2923 = vmatpush.bf16.msra.mxu0 %v2289
    %2924 = vmatpush.bf16.msra.mxu0 %v2285
    %2925 = vmatpush.bf16.msra.mxu0 %v2281
    %2926 = vmatpush.bf16.msra.mxu0 %v2277
    %2927 = vmatmul.bf16.gmra.mxu0 %v1367
    %v2928 = vpop.f32.mrf.mxu0
    %v2929 = vadd.f32 %v2916, %v2928
    %v2930 = vpop.f32.mrf.mxu0
    %2931 = vdwg.mxu0
    %2932 = vmatpush.bf16.msra.mxu0 %v2337
    %2933 = vmatpush.bf16.msra.mxu0 %v2333
    %2934 = vmatpush.bf16.msra.mxu0 %v2329
    %2935 = vmatpush.bf16.msra.mxu0 %v2325
    %2936 = vmatpush.bf16.msra.mxu0 %v2321
    %2937 = vmatpush.bf16.msra.mxu0 %v2317
    %2938 = vmatpush.bf16.msra.mxu0 %v2313
    %2939 = vmatpush.bf16.msra.mxu0 %v2309
    %2940 = vmatmul.bf16.gmra.mxu0 %v1368
    %v2941 = vpop.f32.mrf.mxu0
    %v2942 = vadd.f32 %v2929, %v2941
    %v2943 = vpop.f32.mrf.mxu0
    %2944 = vdwg.mxu0
    %2945 = vmatpush.bf16.msra.mxu0 %v2369
    %2946 = vmatpush.bf16.msra.mxu0 %v2365
    %2947 = vmatpush.bf16.msra.mxu0 %v2361
    %2948 = vmatpush.bf16.msra.mxu0 %v2357
    %2949 = vmatpush.bf16.msra.mxu0 %v2353
    %2950 = vmatpush.bf16.msra.mxu0 %v2349
    %2951 = vmatpush.bf16.msra.mxu0 %v2345
    %2952 = vmatpush.bf16.msra.mxu0 %v2341
    %2953 = vmatmul.bf16.gmra.mxu0 %v1369
    %v2954 = vpop.f32.mrf.mxu0
    %v2955 = vadd.f32 %v2942, %v2954
    %v2956 = vpop.f32.mrf.mxu0
    %2957 = vdwg.mxu0
    %2958 = vmatpush.bf16.msra.mxu0 %v2401
    %2959 = vmatpush.bf16.msra.mxu0 %v2397
    %2960 = vmatpush.bf16.msra.mxu0 %v2393
    %2961 = vmatpush.bf16.msra.mxu0 %v2389
    %2962 = vmatpush.bf16.msra.mxu0 %v2385
    %2963 = vmatpush.bf16.msra.mxu0 %v2381
    %2964 = vmatpush.bf16.msra.mxu0 %v2377
    %2965 = vmatpush.bf16.msra.mxu0 %v2373
    %2966 = vmatmul.bf16.gmra.mxu0 %v1370
    %v2967 = vpop.f32.mrf.mxu0
    %v2968 = vadd.f32 %v2955, %v2967
    %v2969 = vpop.f32.mrf.mxu0
    %2970 = vdwg.mxu0
    %2971 = vmatpush.bf16.msra.mxu0 %v2178
    %2972 = vmatpush.bf16.msra.mxu0 %v2174
    %2973 = vmatpush.bf16.msra.mxu0 %v2170
    %2974 = vmatpush.bf16.msra.mxu0 %v2166
    %2975 = vmatpush.bf16.msra.mxu0 %v2162
    %2976 = vmatpush.bf16.msra.mxu0 %v2158
    %2977 = vmatpush.bf16.msra.mxu0 %v2154
    %2978 = vmatpush.bf16.msra.mxu0 %v2150
    %2979 = vmatmul.bf16.gmra.mxu0 %v1363
    %v2980 = vpop.f32.mrf.mxu0
    %v2981 = vadd.f32 %v1346, %v2980
    %v2982 = vpop.f32.mrf.mxu0
    %2983 = vdwg.mxu0
    %2984 = vmatpush.bf16.msra.mxu0 %v2210
    %2985 = vmatpush.bf16.msra.mxu0 %v2206
    %2986 = vmatpush.bf16.msra.mxu0 %v2202
    %2987 = vmatpush.bf16.msra.mxu0 %v2198
    %2988 = vmatpush.bf16.msra.mxu0 %v2194
    %2989 = vmatpush.bf16.msra.mxu0 %v2190
    %2990 = vmatpush.bf16.msra.mxu0 %v2186
    %2991 = vmatpush.bf16.msra.mxu0 %v2182
    %2992 = vmatmul.bf16.gmra.mxu0 %v1364
    %v2993 = vpop.f32.mrf.mxu0
    %v2994 = vadd.f32 %v2981, %v2993
    %v2995 = vpop.f32.mrf.mxu0
    %2996 = vdwg.mxu0
    %2997 = vmatpush.bf16.msra.mxu0 %v2242
    %2998 = vmatpush.bf16.msra.mxu0 %v2238
    %2999 = vmatpush.bf16.msra.mxu0 %v2234
    %3000 = vmatpush.bf16.msra.mxu0 %v2230
    %3001 = vmatpush.bf16.msra.mxu0 %v2226
    %3002 = vmatpush.bf16.msra.mxu0 %v2222
    %3003 = vmatpush.bf16.msra.mxu0 %v2218
    %3004 = vmatpush.bf16.msra.mxu0 %v2214
    %3005 = vmatmul.bf16.gmra.mxu0 %v1365
    %v3006 = vpop.f32.mrf.mxu0
    %v3007 = vadd.f32 %v2994, %v3006
    %v3008 = vpop.f32.mrf.mxu0
    %3009 = vdwg.mxu0
    %3010 = vmatpush.bf16.msra.mxu0 %v2274
    %3011 = vmatpush.bf16.msra.mxu0 %v2270
    %3012 = vmatpush.bf16.msra.mxu0 %v2266
    %3013 = vmatpush.bf16.msra.mxu0 %v2262
    %3014 = vmatpush.bf16.msra.mxu0 %v2258
    %3015 = vmatpush.bf16.msra.mxu0 %v2254
    %3016 = vmatpush.bf16.msra.mxu0 %v2250
    %3017 = vmatpush.bf16.msra.mxu0 %v2246
    %3018 = vmatmul.bf16.gmra.mxu0 %v1366
    %v3019 = vpop.f32.mrf.mxu0
    %v3020 = vadd.f32 %v3007, %v3019
    %v3021 = vpop.f32.mrf.mxu0
    %3022 = vdwg.mxu0
    %3023 = vmatpush.bf16.msra.mxu0 %v2306
    %3024 = vmatpush.bf16.msra.mxu0 %v2302
    %3025 = vmatpush.bf16.msra.mxu0 %v2298
    %3026 = vmatpush.bf16.msra.mxu0 %v2294
    %3027 = vmatpush.bf16.msra.mxu0 %v2290
    %3028 = vmatpush.bf16.msra.mxu0 %v2286
    %3029 = vmatpush.bf16.msra.mxu0 %v2282
    %3030 = vmatpush.bf16.msra.mxu0 %v2278
    %3031 = vmatmul.bf16.gmra.mxu0 %v1367
    %v3032 = vpop.f32.mrf.mxu0
    %v3033 = vadd.f32 %v3020, %v3032
    %v3034 = vpop.f32.mrf.mxu0
    %3035 = vdwg.mxu0
    %3036 = vmatpush.bf16.msra.mxu0 %v2338
    %3037 = vmatpush.bf16.msra.mxu0 %v2334
    %3038 = vmatpush.bf16.msra.mxu0 %v2330
    %3039 = vmatpush.bf16.msra.mxu0 %v2326
    %3040 = vmatpush.bf16.msra.mxu0 %v2322
    %3041 = vmatpush.bf16.msra.mxu0 %v2318
    %3042 = vmatpush.bf16.msra.mxu0 %v2314
    %3043 = vmatpush.bf16.msra.mxu0 %v2310
    %3044 = vmatmul.bf16.gmra.mxu0 %v1368
    %v3045 = vpop.f32.mrf.mxu0
    %v3046 = vadd.f32 %v3033, %v3045
    %v3047 = vpop.f32.mrf.mxu0
    %3048 = vdwg.mxu0
    %3049 = vmatpush.bf16.msra.mxu0 %v2370
    %3050 = vmatpush.bf16.msra.mxu0 %v2366
    %3051 = vmatpush.bf16.msra.mxu0 %v2362
    %3052 = vmatpush.bf16.msra.mxu0 %v2358
    %3053 = vmatpush.bf16.msra.mxu0 %v2354
    %3054 = vmatpush.bf16.msra.mxu0 %v2350
    %3055 = vmatpush.bf16.msra.mxu0 %v2346
    %3056 = vmatpush.bf16.msra.mxu0 %v2342
    %3057 = vmatmul.bf16.gmra.mxu0 %v1369
    %v3058 = vpop.f32.mrf.mxu0
    %v3059 = vadd.f32 %v3046, %v3058
    %v3060 = vpop.f32.mrf.mxu0
    %3061 = vdwg.mxu0
    %3062 = vmatpush.bf16.msra.mxu0 %v2402
    %3063 = vmatpush.bf16.msra.mxu0 %v2398
    %3064 = vmatpush.bf16.msra.mxu0 %v2394
    %3065 = vmatpush.bf16.msra.mxu0 %v2390
    %3066 = vmatpush.bf16.msra.mxu0 %v2386
    %3067 = vmatpush.bf16.msra.mxu0 %v2382
    %3068 = vmatpush.bf16.msra.mxu0 %v2378
    %3069 = vmatpush.bf16.msra.mxu0 %v2374
    %3070 = vmatmul.bf16.gmra.mxu0 %v1370
    %v3071 = vpop.f32.mrf.mxu0
    %v3072 = vadd.f32 %v3059, %v3071
    %v3073 = vpop.f32.mrf.mxu0
    %3074 = vdwg.mxu0
    %v3075 = vmax.f32 %v2760, 0.0
    %v3076 = vmax.f32 %v2864, 0.0
    %v3077 = vmax.f32 %v2968, 0.0
    %v3078 = vmax.f32 %v3072, 0.0
    %v3079 = vpack.c.bf16 %v3075, %v3075
    %v3080 = vpack.c.bf16 %v3076, %v3076
    %v3081 = vpack.c.bf16 %v3077, %v3077
    %v3082 = vpack.c.bf16 %v3078, %v3078
    %v3083 = vld [vmem:[#allocation14] sm:$0xff]
    %v3084 = vld [vmem:[#allocation14 + $0x8] sm:$0xff]
    %v3085 = vld [vmem:[#allocation14 + $0x10] sm:$0xff]
    %v3086 = vld [vmem:[#allocation14 + $0x18] sm:$0xff]
    %v3087 = vld [vmem:[#allocation14 + $0x20] sm:$0xff]
    %v3088 = vld [vmem:[#allocation14 + $0x28] sm:$0xff]
    %v3089 = vld [vmem:[#allocation14 + $0x30] sm:$0xff]
    %v3090 = vld [vmem:[#allocation14 + $0x38] sm:$0xff]
    %v3091 = vld [vmem:[#allocation14 + $0x40] sm:$0xff]
    %v3092 = vld [vmem:[#allocation14 + $0x48] sm:$0xff]
    %v3093 = vld [vmem:[#allocation14 + $0x50] sm:$0xff]
    %v3094 = vld [vmem:[#allocation14 + $0x58] sm:$0xff]
    %v3095 = vld [vmem:[#allocation14 + $0x60] sm:$0xff]
    %v3096 = vld [vmem:[#allocation14 + $0x68] sm:$0xff]
    %v3097 = vld [vmem:[#allocation14 + $0x70] sm:$0xff]
    %v3098 = vld [vmem:[#allocation14 + $0x78] sm:$0xff]
    %v3099 = vld [vmem:[#allocation14 + $0x80] sm:$0xff]
    %v3100 = vld [vmem:[#allocation14 + $0x88] sm:$0xff]
    %v3101 = vld [vmem:[#allocation14 + $0x90] sm:$0xff]
    %v3102 = vld [vmem:[#allocation14 + $0x98] sm:$0xff]
    %v3103 = vld [vmem:[#allocation14 + $0xa0] sm:$0xff]
    %v3104 = vld [vmem:[#allocation14 + $0xa8] sm:$0xff]
    %v3105 = vld [vmem:[#allocation14 + $0xb0] sm:$0xff]
    %v3106 = vld [vmem:[#allocation14 + $0xb8] sm:$0xff]
    %v3107 = vld [vmem:[#allocation14 + $0xc0] sm:$0xff]
    %v3108 = vld [vmem:[#allocation14 + $0xc8] sm:$0xff]
    %v3109 = vld [vmem:[#allocation14 + $0xd0] sm:$0xff]
    %v3110 = vld [vmem:[#allocation14 + $0xd8] sm:$0xff]
    %v3111 = vld [vmem:[#allocation14 + $0xe0] sm:$0xff]
    %v3112 = vld [vmem:[#allocation14 + $0xe8] sm:$0xff]
    %v3113 = vld [vmem:[#allocation14 + $0xf0] sm:$0xff]
    %v3114 = vld [vmem:[#allocation14 + $0xf8] sm:$0xff]
    %v3115 = vld [vmem:[#allocation14 + $0x100] sm:$0xff]
    %v3116 = vld [vmem:[#allocation14 + $0x108] sm:$0xff]
    %v3117 = vld [vmem:[#allocation14 + $0x110] sm:$0xff]
    %v3118 = vld [vmem:[#allocation14 + $0x118] sm:$0xff]
    %v3119 = vld [vmem:[#allocation14 + $0x120] sm:$0xff]
    %v3120 = vld [vmem:[#allocation14 + $0x128] sm:$0xff]
    %v3121 = vld [vmem:[#allocation14 + $0x130] sm:$0xff]
    %v3122 = vld [vmem:[#allocation14 + $0x138] sm:$0xff]
    %v3123 = vld [vmem:[#allocation14 + $0x140] sm:$0xff]
    %v3124 = vld [vmem:[#allocation14 + $0x148] sm:$0xff]
    %v3125 = vld [vmem:[#allocation14 + $0x150] sm:$0xff]
    %v3126 = vld [vmem:[#allocation14 + $0x158] sm:$0xff]
    %v3127 = vld [vmem:[#allocation14 + $0x160] sm:$0xff]
    %v3128 = vld [vmem:[#allocation14 + $0x168] sm:$0xff]
    %v3129 = vld [vmem:[#allocation14 + $0x170] sm:$0xff]
    %v3130 = vld [vmem:[#allocation14 + $0x178] sm:$0xff]
    %v3131 = vld [vmem:[#allocation14 + $0x180] sm:$0xff]
    %v3132 = vld [vmem:[#allocation14 + $0x188] sm:$0xff]
    %v3133 = vld [vmem:[#allocation14 + $0x190] sm:$0xff]
    %v3134 = vld [vmem:[#allocation14 + $0x198] sm:$0xff]
    %v3135 = vld [vmem:[#allocation14 + $0x1a0] sm:$0xff]
    %v3136 = vld [vmem:[#allocation14 + $0x1a8] sm:$0xff]
    %v3137 = vld [vmem:[#allocation14 + $0x1b0] sm:$0xff]
    %v3138 = vld [vmem:[#allocation14 + $0x1b8] sm:$0xff]
    %v3139 = vld [vmem:[#allocation14 + $0x1c0] sm:$0xff]
    %v3140 = vld [vmem:[#allocation14 + $0x1c8] sm:$0xff]
    %v3141 = vld [vmem:[#allocation14 + $0x1d0] sm:$0xff]
    %v3142 = vld [vmem:[#allocation14 + $0x1d8] sm:$0xff]
    %v3143 = vld [vmem:[#allocation14 + $0x1e0] sm:$0xff]
    %v3144 = vld [vmem:[#allocation14 + $0x1e8] sm:$0xff]
    %v3145 = vld [vmem:[#allocation14 + $0x1f0] sm:$0xff]
    %v3146 = vld [vmem:[#allocation14 + $0x1f8] sm:$0xff]
    %v3147 = vld [vmem:[#allocation16] sm:$0x3]
    %v3149 = vperm.slane %v3147, 0
    %v3150 = vperm.slane %v3147, 1
    %v3217 = vunpack.c.l.b16 %v3083
    %v3218 = vunpack.c.h.b16 %v3083
    %v3219 = vunpack.c.l.b16 %v3084
    %v3220 = vunpack.c.h.b16 %v3084
    %v3221 = vunpack.c.l.b16 %v3085
    %v3222 = vunpack.c.h.b16 %v3085
    %v3223 = vunpack.c.l.b16 %v3086
    %v3224 = vunpack.c.h.b16 %v3086
    %v3225 = vunpack.c.l.b16 %v3087
    %v3226 = vunpack.c.h.b16 %v3087
    %v3227 = vunpack.c.l.b16 %v3088
    %v3228 = vunpack.c.h.b16 %v3088
    %v3229 = vunpack.c.l.b16 %v3089
    %v3230 = vunpack.c.h.b16 %v3089
    %v3231 = vunpack.c.l.b16 %v3090
    %v3232 = vunpack.c.h.b16 %v3090
    %v3233 = vunpack.c.l.b16 %v3091
    %v3234 = vunpack.c.h.b16 %v3091
    %v3235 = vunpack.c.l.b16 %v3092
    %v3236 = vunpack.c.h.b16 %v3092
    %v3237 = vunpack.c.l.b16 %v3093
    %v3238 = vunpack.c.h.b16 %v3093
    %v3239 = vunpack.c.l.b16 %v3094
    %v3240 = vunpack.c.h.b16 %v3094
    %v3241 = vunpack.c.l.b16 %v3095
    %v3242 = vunpack.c.h.b16 %v3095
    %v3243 = vunpack.c.l.b16 %v3096
    %v3244 = vunpack.c.h.b16 %v3096
    %v3245 = vunpack.c.l.b16 %v3097
    %v3246 = vunpack.c.h.b16 %v3097
    %v3247 = vunpack.c.l.b16 %v3098
    %v3248 = vunpack.c.h.b16 %v3098
    %v3249 = vunpack.c.l.b16 %v3099
    %v3250 = vunpack.c.h.b16 %v3099
    %v3251 = vunpack.c.l.b16 %v3100
    %v3252 = vunpack.c.h.b16 %v3100
    %v3253 = vunpack.c.l.b16 %v3101
    %v3254 = vunpack.c.h.b16 %v3101
    %v3255 = vunpack.c.l.b16 %v3102
    %v3256 = vunpack.c.h.b16 %v3102
    %v3257 = vunpack.c.l.b16 %v3103
    %v3258 = vunpack.c.h.b16 %v3103
    %v3259 = vunpack.c.l.b16 %v3104
    %v3260 = vunpack.c.h.b16 %v3104
    %v3261 = vunpack.c.l.b16 %v3105
    %v3262 = vunpack.c.h.b16 %v3105
    %v3263 = vunpack.c.l.b16 %v3106
    %v3264 = vunpack.c.h.b16 %v3106
    %v3265 = vunpack.c.l.b16 %v3107
    %v3266 = vunpack.c.h.b16 %v3107
    %v3267 = vunpack.c.l.b16 %v3108
    %v3268 = vunpack.c.h.b16 %v3108
    %v3269 = vunpack.c.l.b16 %v3109
    %v3270 = vunpack.c.h.b16 %v3109
    %v3271 = vunpack.c.l.b16 %v3110
    %v3272 = vunpack.c.h.b16 %v3110
    %v3273 = vunpack.c.l.b16 %v3111
    %v3274 = vunpack.c.h.b16 %v3111
    %v3275 = vunpack.c.l.b16 %v3112
    %v3276 = vunpack.c.h.b16 %v3112
    %v3277 = vunpack.c.l.b16 %v3113
    %v3278 = vunpack.c.h.b16 %v3113
    %v3279 = vunpack.c.l.b16 %v3114
    %v3280 = vunpack.c.h.b16 %v3114
    %v3281 = vunpack.c.l.b16 %v3115
    %v3282 = vunpack.c.h.b16 %v3115
    %v3283 = vunpack.c.l.b16 %v3116
    %v3284 = vunpack.c.h.b16 %v3116
    %v3285 = vunpack.c.l.b16 %v3117
    %v3286 = vunpack.c.h.b16 %v3117
    %v3287 = vunpack.c.l.b16 %v3118
    %v3288 = vunpack.c.h.b16 %v3118
    %v3289 = vunpack.c.l.b16 %v3119
    %v3290 = vunpack.c.h.b16 %v3119
    %v3291 = vunpack.c.l.b16 %v3120
    %v3292 = vunpack.c.h.b16 %v3120
    %v3293 = vunpack.c.l.b16 %v3121
    %v3294 = vunpack.c.h.b16 %v3121
    %v3295 = vunpack.c.l.b16 %v3122
    %v3296 = vunpack.c.h.b16 %v3122
    %v3297 = vunpack.c.l.b16 %v3123
    %v3298 = vunpack.c.h.b16 %v3123
    %v3299 = vunpack.c.l.b16 %v3124
    %v3300 = vunpack.c.h.b16 %v3124
    %v3301 = vunpack.c.l.b16 %v3125
    %v3302 = vunpack.c.h.b16 %v3125
    %v3303 = vunpack.c.l.b16 %v3126
    %v3304 = vunpack.c.h.b16 %v3126
    %v3305 = vunpack.c.l.b16 %v3127
    %v3306 = vunpack.c.h.b16 %v3127
    %v3307 = vunpack.c.l.b16 %v3128
    %v3308 = vunpack.c.h.b16 %v3128
    %v3309 = vunpack.c.l.b16 %v3129
    %v3310 = vunpack.c.h.b16 %v3129
    %v3311 = vunpack.c.l.b16 %v3130
    %v3312 = vunpack.c.h.b16 %v3130
    %v3313 = vunpack.c.l.b16 %v3131
    %v3314 = vunpack.c.h.b16 %v3131
    %v3315 = vunpack.c.l.b16 %v3132
    %v3316 = vunpack.c.h.b16 %v3132
    %v3317 = vunpack.c.l.b16 %v3133
    %v3318 = vunpack.c.h.b16 %v3133
    %v3319 = vunpack.c.l.b16 %v3134
    %v3320 = vunpack.c.h.b16 %v3134
    %v3321 = vunpack.c.l.b16 %v3135
    %v3322 = vunpack.c.h.b16 %v3135
    %v3323 = vunpack.c.l.b16 %v3136
    %v3324 = vunpack.c.h.b16 %v3136
    %v3325 = vunpack.c.l.b16 %v3137
    %v3326 = vunpack.c.h.b16 %v3137
    %v3327 = vunpack.c.l.b16 %v3138
    %v3328 = vunpack.c.h.b16 %v3138
    %v3329 = vunpack.c.l.b16 %v3139
    %v3330 = vunpack.c.h.b16 %v3139
    %v3331 = vunpack.c.l.b16 %v3140
    %v3332 = vunpack.c.h.b16 %v3140
    %v3333 = vunpack.c.l.b16 %v3141
    %v3334 = vunpack.c.h.b16 %v3141
    %v3335 = vunpack.c.l.b16 %v3142
    %v3336 = vunpack.c.h.b16 %v3142
    %v3337 = vunpack.c.l.b16 %v3143
    %v3338 = vunpack.c.h.b16 %v3143
    %v3339 = vunpack.c.l.b16 %v3144
    %v3340 = vunpack.c.h.b16 %v3144
    %v3341 = vunpack.c.l.b16 %v3145
    %v3342 = vunpack.c.h.b16 %v3145
    %v3343 = vunpack.c.l.b16 %v3146
    %v3344 = vunpack.c.h.b16 %v3146
    %v3345 = vpack.c.b16 %v3219, %v3217
    %v3346 = vpack.c.b16 %v3220, %v3218
    %v3347 = vpack.c.b16 %v3223, %v3221
    %v3348 = vpack.c.b16 %v3224, %v3222
    %v3349 = vpack.c.b16 %v3227, %v3225
    %v3350 = vpack.c.b16 %v3228, %v3226
    %v3351 = vpack.c.b16 %v3231, %v3229
    %v3352 = vpack.c.b16 %v3232, %v3230
    %v3353 = vpack.c.b16 %v3235, %v3233
    %v3354 = vpack.c.b16 %v3236, %v3234
    %v3355 = vpack.c.b16 %v3239, %v3237
    %v3356 = vpack.c.b16 %v3240, %v3238
    %v3357 = vpack.c.b16 %v3243, %v3241
    %v3358 = vpack.c.b16 %v3244, %v3242
    %v3359 = vpack.c.b16 %v3247, %v3245
    %v3360 = vpack.c.b16 %v3248, %v3246
    %v3361 = vpack.c.b16 %v3251, %v3249
    %v3362 = vpack.c.b16 %v3252, %v3250
    %v3363 = vpack.c.b16 %v3255, %v3253
    %v3364 = vpack.c.b16 %v3256, %v3254
    %v3365 = vpack.c.b16 %v3259, %v3257
    %v3366 = vpack.c.b16 %v3260, %v3258
    %v3367 = vpack.c.b16 %v3263, %v3261
    %v3368 = vpack.c.b16 %v3264, %v3262
    %v3369 = vpack.c.b16 %v3267, %v3265
    %v3370 = vpack.c.b16 %v3268, %v3266
    %v3371 = vpack.c.b16 %v3271, %v3269
    %v3372 = vpack.c.b16 %v3272, %v3270
    %v3373 = vpack.c.b16 %v3275, %v3273
    %v3374 = vpack.c.b16 %v3276, %v3274
    %v3375 = vpack.c.b16 %v3279, %v3277
    %v3376 = vpack.c.b16 %v3280, %v3278
    %v3377 = vpack.c.b16 %v3283, %v3281
    %v3378 = vpack.c.b16 %v3284, %v3282
    %v3379 = vpack.c.b16 %v3287, %v3285
    %v3380 = vpack.c.b16 %v3288, %v3286
    %v3381 = vpack.c.b16 %v3291, %v3289
    %v3382 = vpack.c.b16 %v3292, %v3290
    %v3383 = vpack.c.b16 %v3295, %v3293
    %v3384 = vpack.c.b16 %v3296, %v3294
    %v3385 = vpack.c.b16 %v3299, %v3297
    %v3386 = vpack.c.b16 %v3300, %v3298
    %v3387 = vpack.c.b16 %v3303, %v3301
    %v3388 = vpack.c.b16 %v3304, %v3302
    %v3389 = vpack.c.b16 %v3307, %v3305
    %v3390 = vpack.c.b16 %v3308, %v3306
    %v3391 = vpack.c.b16 %v3311, %v3309
    %v3392 = vpack.c.b16 %v3312, %v3310
    %v3393 = vpack.c.b16 %v3315, %v3313
    %v3394 = vpack.c.b16 %v3316, %v3314
    %v3395 = vpack.c.b16 %v3319, %v3317
    %v3396 = vpack.c.b16 %v3320, %v3318
    %v3397 = vpack.c.b16 %v3323, %v3321
    %v3398 = vpack.c.b16 %v3324, %v3322
    %v3399 = vpack.c.b16 %v3327, %v3325
    %v3400 = vpack.c.b16 %v3328, %v3326
    %v3401 = vpack.c.b16 %v3331, %v3329
    %v3402 = vpack.c.b16 %v3332, %v3330
    %v3403 = vpack.c.b16 %v3335, %v3333
    %v3404 = vpack.c.b16 %v3336, %v3334
    %v3405 = vpack.c.b16 %v3339, %v3337
    %v3406 = vpack.c.b16 %v3340, %v3338
    %v3407 = vpack.c.b16 %v3343, %v3341
    %v3408 = vpack.c.b16 %v3344, %v3342
    %3473 = vmatpush.bf16.msra.mxu0 %v3359
    %3474 = vmatpush.bf16.msra.mxu0 %v3357
    %3475 = vmatpush.bf16.msra.mxu0 %v3355
    %3476 = vmatpush.bf16.msra.mxu0 %v3353
    %3477 = vmatpush.bf16.msra.mxu0 %v3351
    %3478 = vmatpush.bf16.msra.mxu0 %v3349
    %3479 = vmatpush.bf16.msra.mxu0 %v3347
    %3480 = vmatpush.bf16.msra.mxu0 %v3345
    %3481 = vmatmul.bf16.gmra.mxu0 %v3079
    %v3482 = vpop.f32.mrf.mxu0
    %v3483 = vadd.f32 %v3149, %v3482
    %v3484 = vpop.f32.mrf.mxu0
    %3485 = vdwg.mxu0
    %3486 = vmatpush.bf16.msra.mxu0 %v3375
    %3487 = vmatpush.bf16.msra.mxu0 %v3373
    %3488 = vmatpush.bf16.msra.mxu0 %v3371
    %3489 = vmatpush.bf16.msra.mxu0 %v3369
    %3490 = vmatpush.bf16.msra.mxu0 %v3367
    %3491 = vmatpush.bf16.msra.mxu0 %v3365
    %3492 = vmatpush.bf16.msra.mxu0 %v3363
    %3493 = vmatpush.bf16.msra.mxu0 %v3361
    %3494 = vmatmul.bf16.gmra.mxu0 %v3080
    %v3495 = vpop.f32.mrf.mxu0
    %v3496 = vadd.f32 %v3483, %v3495
    %v3497 = vpop.f32.mrf.mxu0
    %3498 = vdwg.mxu0
    %3499 = vmatpush.bf16.msra.mxu0 %v3391
    %3500 = vmatpush.bf16.msra.mxu0 %v3389
    %3501 = vmatpush.bf16.msra.mxu0 %v3387
    %3502 = vmatpush.bf16.msra.mxu0 %v3385
    %3503 = vmatpush.bf16.msra.mxu0 %v3383
    %3504 = vmatpush.bf16.msra.mxu0 %v3381
    %3505 = vmatpush.bf16.msra.mxu0 %v3379
    %3506 = vmatpush.bf16.msra.mxu0 %v3377
    %3507 = vmatmul.bf16.gmra.mxu0 %v3081
    %v3508 = vpop.f32.mrf.mxu0
    %v3509 = vadd.f32 %v3496, %v3508
    %v3510 = vpop.f32.mrf.mxu0
    %3511 = vdwg.mxu0
    %3512 = vmatpush.bf16.msra.mxu0 %v3407
    %3513 = vmatpush.bf16.msra.mxu0 %v3405
    %3514 = vmatpush.bf16.msra.mxu0 %v3403
    %3515 = vmatpush.bf16.msra.mxu0 %v3401
    %3516 = vmatpush.bf16.msra.mxu0 %v3399
    %3517 = vmatpush.bf16.msra.mxu0 %v3397
    %3518 = vmatpush.bf16.msra.mxu0 %v3395
    %3519 = vmatpush.bf16.msra.mxu0 %v3393
    %3520 = vmatmul.bf16.gmra.mxu0 %v3082
    %v3521 = vpop.f32.mrf.mxu0
    %v3522 = vadd.f32 %v3509, %v3521
    %v3523 = vpop.f32.mrf.mxu0
    %3524 = vdwg.mxu0
    %3525 = vmatpush.bf16.msra.mxu0 %v3360
    %3526 = vmatpush.bf16.msra.mxu0 %v3358
    %3527 = vmatpush.bf16.msra.mxu0 %v3356
    %3528 = vmatpush.bf16.msra.mxu0 %v3354
    %3529 = vmatpush.bf16.msra.mxu0 %v3352
    %3530 = vmatpush.bf16.msra.mxu0 %v3350
    %3531 = vmatpush.bf16.msra.mxu0 %v3348
    %3532 = vmatpush.bf16.msra.mxu0 %v3346
    %3533 = vmatmul.bf16.gmra.mxu0 %v3079
    %v3534 = vpop.f32.mrf.mxu0
    %v3535 = vadd.f32 %v3150, %v3534
    %v3536 = vpop.f32.mrf.mxu0
    %3537 = vdwg.mxu0
    %3538 = vmatpush.bf16.msra.mxu0 %v3376
    %3539 = vmatpush.bf16.msra.mxu0 %v3374
    %3540 = vmatpush.bf16.msra.mxu0 %v3372
    %3541 = vmatpush.bf16.msra.mxu0 %v3370
    %3542 = vmatpush.bf16.msra.mxu0 %v3368
    %3543 = vmatpush.bf16.msra.mxu0 %v3366
    %3544 = vmatpush.bf16.msra.mxu0 %v3364
    %3545 = vmatpush.bf16.msra.mxu0 %v3362
    %3546 = vmatmul.bf16.gmra.mxu0 %v3080
    %v3547 = vpop.f32.mrf.mxu0
    %v3548 = vadd.f32 %v3535, %v3547
    %v3549 = vpop.f32.mrf.mxu0
    %3550 = vdwg.mxu0
    %3551 = vmatpush.bf16.msra.mxu0 %v3392
    %3552 = vmatpush.bf16.msra.mxu0 %v3390
    %3553 = vmatpush.bf16.msra.mxu0 %v3388
    %3554 = vmatpush.bf16.msra.mxu0 %v3386
    %3555 = vmatpush.bf16.msra.mxu0 %v3384
    %3556 = vmatpush.bf16.msra.mxu0 %v3382
    %3557 = vmatpush.bf16.msra.mxu0 %v3380
    %3558 = vmatpush.bf16.msra.mxu0 %v3378
    %3559 = vmatmul.bf16.gmra.mxu0 %v3081
    %v3560 = vpop.f32.mrf.mxu0
    %v3561 = vadd.f32 %v3548, %v3560
    %v3562 = vpop.f32.mrf.mxu0
    %3563 = vdwg.mxu0
    %3564 = vmatpush.bf16.msra.mxu0 %v3408
    %3565 = vmatpush.bf16.msra.mxu0 %v3406
    %3566 = vmatpush.bf16.msra.mxu0 %v3404
    %3567 = vmatpush.bf16.msra.mxu0 %v3402
    %3568 = vmatpush.bf16.msra.mxu0 %v3400
    %3569 = vmatpush.bf16.msra.mxu0 %v3398
    %3570 = vmatpush.bf16.msra.mxu0 %v3396
    %3571 = vmatpush.bf16.msra.mxu0 %v3394
    %3572 = vmatmul.bf16.gmra.mxu0 %v3082
    %v3573 = vpop.f32.mrf.mxu0
    %v3574 = vadd.f32 %v3561, %v3573
    %v3575 = vpop.f32.mrf.mxu0
    %3576 = vdwg.mxu0
    %v3577 = vmax.f32 %v3522, 0.0
    %v3578 = vmax.f32 %v3574, 0.0
    %v3579 = vpack.c.bf16 %v3577, %v3577
    %v3580 = vpack.c.bf16 %v3578, %v3578
    %v3581 = vld [vmem:[#allocation17] sm:$0xf]
    %v3582 = vld [vmem:[#allocation17 + $0x4] sm:$0xf]
    %v3583 = vld [vmem:[#allocation17 + $0x8] sm:$0xf]
    %v3584 = vld [vmem:[#allocation17 + $0xc] sm:$0xf]
    %v3585 = vld [vmem:[#allocation17 + $0x10] sm:$0xf]
    %v3586 = vld [vmem:[#allocation17 + $0x14] sm:$0xf]
    %v3587 = vld [vmem:[#allocation17 + $0x18] sm:$0xf]
    %v3588 = vld [vmem:[#allocation17 + $0x1c] sm:$0xf]
    %v3589 = vld [vmem:[#allocation17 + $0x20] sm:$0xf]
    %v3590 = vld [vmem:[#allocation17 + $0x24] sm:$0xf]
    %v3591 = vld [vmem:[#allocation17 + $0x28] sm:$0xf]
    %v3592 = vld [vmem:[#allocation17 + $0x2c] sm:$0xf]
    %v3593 = vld [vmem:[#allocation17 + $0x30] sm:$0xf]
    %v3594 = vld [vmem:[#allocation17 + $0x34] sm:$0xf]
    %v3595 = vld [vmem:[#allocation17 + $0x38] sm:$0xf]
    %v3596 = vld [vmem:[#allocation17 + $0x3c] sm:$0xf]
    %v3597 = vld [vmem:[#allocation17 + $0x40] sm:$0xf]
    %v3598 = vld [vmem:[#allocation17 + $0x44] sm:$0xf]
    %v3599 = vld [vmem:[#allocation17 + $0x48] sm:$0xf]
    %v3600 = vld [vmem:[#allocation17 + $0x4c] sm:$0xf]
    %v3601 = vld [vmem:[#allocation17 + $0x50] sm:$0xf]
    %v3602 = vld [vmem:[#allocation17 + $0x54] sm:$0xf]
    %v3603 = vld [vmem:[#allocation17 + $0x58] sm:$0xf]
    %v3604 = vld [vmem:[#allocation17 + $0x5c] sm:$0xf]
    %v3605 = vld [vmem:[#allocation17 + $0x60] sm:$0xf]
    %v3606 = vld [vmem:[#allocation17 + $0x64] sm:$0xf]
    %v3607 = vld [vmem:[#allocation17 + $0x68] sm:$0xf]
    %v3608 = vld [vmem:[#allocation17 + $0x6c] sm:$0xf]
    %v3609 = vld [vmem:[#allocation17 + $0x70] sm:$0xf]
    %v3610 = vld [vmem:[#allocation17 + $0x74] sm:$0xf]
    %v3611 = vld [vmem:[#allocation17 + $0x78] sm:$0xf]
    %v3612 = vld [vmem:[#allocation17 + $0x7c] sm:$0xf]
    %s3613 = smul.u32 4, 256
    %s3614 = smul.u32 %s3613, 8
    %s3615 = sshll.u32 %s3614, 4
    %3616 = dma.done [#allocation4], %s3615
    %v3617 = vld [vmem:[#allocation2] sm:$0xff]
    %v3618 = vld [vmem:[#allocation2 + $0x8] sm:$0xff]
    %v3619 = vld [vmem:[#allocation2 + $0x10] sm:$0xff]
    %v3620 = vld [vmem:[#allocation2 + $0x18] sm:$0xff]
    %v3621 = vld [vmem:[#allocation2 + $0x20] sm:$0xff]
    %v3622 = vld [vmem:[#allocation2 + $0x28] sm:$0xff]
    %v3623 = vld [vmem:[#allocation2 + $0x30] sm:$0xff]
    %v3624 = vld [vmem:[#allocation2 + $0x38] sm:$0xff]
    %v3625 = vld [vmem:[#allocation2 + $0x40] sm:$0xff]
    %v3626 = vld [vmem:[#allocation2 + $0x48] sm:$0xff]
    %v3627 = vld [vmem:[#allocation2 + $0x50] sm:$0xff]
    %v3628 = vld [vmem:[#allocation2 + $0x58] sm:$0xff]
    %v3629 = vld [vmem:[#allocation2 + $0x60] sm:$0xff]
    %v3630 = vld [vmem:[#allocation2 + $0x68] sm:$0xff]
    %v3631 = vld [vmem:[#allocation2 + $0x70] sm:$0xff]
    %v3632 = vld [vmem:[#allocation2 + $0x78] sm:$0xff]
    %v3633 = vld [vmem:[#allocation2 + $0x80] sm:$0xff]
    %v3634 = vld [vmem:[#allocation2 + $0x88] sm:$0xff]
    %v3635 = vld [vmem:[#allocation2 + $0x90] sm:$0xff]
    %v3636 = vld [vmem:[#allocation2 + $0x98] sm:$0xff]
    %v3637 = vld [vmem:[#allocation2 + $0xa0] sm:$0xff]
    %v3638 = vld [vmem:[#allocation2 + $0xa8] sm:$0xff]
    %v3639 = vld [vmem:[#allocation2 + $0xb0] sm:$0xff]
    %v3640 = vld [vmem:[#allocation2 + $0xb8] sm:$0xff]
    %v3641 = vld [vmem:[#allocation2 + $0xc0] sm:$0xff]
    %v3642 = vld [vmem:[#allocation2 + $0xc8] sm:$0xff]
    %v3643 = vld [vmem:[#allocation2 + $0xd0] sm:$0xff]
    %v3644 = vld [vmem:[#allocation2 + $0xd8] sm:$0xff]
    %v3645 = vld [vmem:[#allocation2 + $0xe0] sm:$0xff]
    %v3646 = vld [vmem:[#allocation2 + $0xe8] sm:$0xff]
    %v3647 = vld [vmem:[#allocation2 + $0xf0] sm:$0xff]
    %v3648 = vld [vmem:[#allocation2 + $0xf8] sm:$0xff]
    %v3649 = vld [vmem:[#allocation2 + $0x100] sm:$0xff]
    %v3650 = vld [vmem:[#allocation2 + $0x108] sm:$0xff]
    %v3651 = vld [vmem:[#allocation2 + $0x110] sm:$0xff]
    %v3652 = vld [vmem:[#allocation2 + $0x118] sm:$0xff]
    %v3653 = vld [vmem:[#allocation2 + $0x120] sm:$0xff]
    %v3654 = vld [vmem:[#allocation2 + $0x128] sm:$0xff]
    %v3655 = vld [vmem:[#allocation2 + $0x130] sm:$0xff]
    %v3656 = vld [vmem:[#allocation2 + $0x138] sm:$0xff]
    %v3657 = vld [vmem:[#allocation2 + $0x140] sm:$0xff]
    %v3658 = vld [vmem:[#allocation2 + $0x148] sm:$0xff]
    %v3659 = vld [vmem:[#allocation2 + $0x150] sm:$0xff]
    %v3660 = vld [vmem:[#allocation2 + $0x158] sm:$0xff]
    %v3661 = vld [vmem:[#allocation2 + $0x160] sm:$0xff]
    %v3662 = vld [vmem:[#allocation2 + $0x168] sm:$0xff]
    %v3663 = vld [vmem:[#allocation2 + $0x170] sm:$0xff]
    %v3664 = vld [vmem:[#allocation2 + $0x178] sm:$0xff]
    %v3665 = vld [vmem:[#allocation2 + $0x180] sm:$0xff]
    %v3666 = vld [vmem:[#allocation2 + $0x188] sm:$0xff]
    %v3667 = vld [vmem:[#allocation2 + $0x190] sm:$0xff]
    %v3668 = vld [vmem:[#allocation2 + $0x198] sm:$0xff]
    %v3669 = vld [vmem:[#allocation2 + $0x1a0] sm:$0xff]
    %v3670 = vld [vmem:[#allocation2 + $0x1a8] sm:$0xff]
    %v3671 = vld [vmem:[#allocation2 + $0x1b0] sm:$0xff]
    %v3672 = vld [vmem:[#allocation2 + $0x1b8] sm:$0xff]
    %v3673 = vld [vmem:[#allocation2 + $0x1c0] sm:$0xff]
    %v3674 = vld [vmem:[#allocation2 + $0x1c8] sm:$0xff]
    %v3675 = vld [vmem:[#allocation2 + $0x1d0] sm:$0xff]
    %v3676 = vld [vmem:[#allocation2 + $0x1d8] sm:$0xff]
    %v3677 = vld [vmem:[#allocation2 + $0x1e0] sm:$0xff]
    %v3678 = vld [vmem:[#allocation2 + $0x1e8] sm:$0xff]
    %v3679 = vld [vmem:[#allocation2 + $0x1f0] sm:$0xff]
    %v3680 = vld [vmem:[#allocation2 + $0x1f8] sm:$0xff]
    %v3681 = vld [vmem:[#allocation2 + $0x200] sm:$0xff]
    %v3682 = vld [vmem:[#allocation2 + $0x208] sm:$0xff]
    %v3683 = vld [vmem:[#allocation2 + $0x210] sm:$0xff]
    %v3684 = vld [vmem:[#allocation2 + $0x218] sm:$0xff]
    %v3685 = vld [vmem:[#allocation2 + $0x220] sm:$0xff]
    %v3686 = vld [vmem:[#allocation2 + $0x228] sm:$0xff]
    %v3687 = vld [vmem:[#allocation2 + $0x230] sm:$0xff]
    %v3688 = vld [vmem:[#allocation2 + $0x238] sm:$0xff]
    %v3689 = vld [vmem:[#allocation2 + $0x240] sm:$0xff]
    %v3690 = vld [vmem:[#allocation2 + $0x248] sm:$0xff]
    %v3691 = vld [vmem:[#allocation2 + $0x250] sm:$0xff]
    %v3692 = vld [vmem:[#allocation2 + $0x258] sm:$0xff]
    %v3693 = vld [vmem:[#allocation2 + $0x260] sm:$0xff]
    %v3694 = vld [vmem:[#allocation2 + $0x268] sm:$0xff]
    %v3695 = vld [vmem:[#allocation2 + $0x270] sm:$0xff]
    %v3696 = vld [vmem:[#allocation2 + $0x278] sm:$0xff]
    %v3697 = vld [vmem:[#allocation2 + $0x280] sm:$0xff]
    %v3698 = vld [vmem:[#allocation2 + $0x288] sm:$0xff]
    %v3699 = vld [vmem:[#allocation2 + $0x290] sm:$0xff]
    %v3700 = vld [vmem:[#allocation2 + $0x298] sm:$0xff]
    %v3701 = vld [vmem:[#allocation2 + $0x2a0] sm:$0xff]
    %v3702 = vld [vmem:[#allocation2 + $0x2a8] sm:$0xff]
    %v3703 = vld [vmem:[#allocation2 + $0x2b0] sm:$0xff]
    %v3704 = vld [vmem:[#allocation2 + $0x2b8] sm:$0xff]
    %v3705 = vld [vmem:[#allocation2 + $0x2c0] sm:$0xff]
    %v3706 = vld [vmem:[#allocation2 + $0x2c8] sm:$0xff]
    %v3707 = vld [vmem:[#allocation2 + $0x2d0] sm:$0xff]
    %v3708 = vld [vmem:[#allocation2 + $0x2d8] sm:$0xff]
    %v3709 = vld [vmem:[#allocation2 + $0x2e0] sm:$0xff]
    %v3710 = vld [vmem:[#allocation2 + $0x2e8] sm:$0xff]
    %v3711 = vld [vmem:[#allocation2 + $0x2f0] sm:$0xff]
    %v3712 = vld [vmem:[#allocation2 + $0x2f8] sm:$0xff]
    %v3713 = vld [vmem:[#allocation2 + $0x300] sm:$0xff]
    %v3714 = vld [vmem:[#allocation2 + $0x308] sm:$0xff]
    %v3715 = vld [vmem:[#allocation2 + $0x310] sm:$0xff]
    %v3716 = vld [vmem:[#allocation2 + $0x318] sm:$0xff]
    %v3717 = vld [vmem:[#allocation2 + $0x320] sm:$0xff]
    %v3718 = vld [vmem:[#allocation2 + $0x328] sm:$0xff]
    %v3719 = vld [vmem:[#allocation2 + $0x330] sm:$0xff]
    %v3720 = vld [vmem:[#allocation2 + $0x338] sm:$0xff]
    %v3721 = vld [vmem:[#allocation2 + $0x340] sm:$0xff]
    %v3722 = vld [vmem:[#allocation2 + $0x348] sm:$0xff]
    %v3723 = vld [vmem:[#allocation2 + $0x350] sm:$0xff]
    %v3724 = vld [vmem:[#allocation2 + $0x358] sm:$0xff]
    %v3725 = vld [vmem:[#allocation2 + $0x360] sm:$0xff]
    %v3726 = vld [vmem:[#allocation2 + $0x368] sm:$0xff]
    %v3727 = vld [vmem:[#allocation2 + $0x370] sm:$0xff]
    %v3728 = vld [vmem:[#allocation2 + $0x378] sm:$0xff]
    %v3729 = vld [vmem:[#allocation2 + $0x380] sm:$0xff]
    %v3730 = vld [vmem:[#allocation2 + $0x388] sm:$0xff]
    %v3731 = vld [vmem:[#allocation2 + $0x390] sm:$0xff]
    %v3732 = vld [vmem:[#allocation2 + $0x398] sm:$0xff]
    %v3733 = vld [vmem:[#allocation2 + $0x3a0] sm:$0xff]
    %v3734 = vld [vmem:[#allocation2 + $0x3a8] sm:$0xff]
    %v3735 = vld [vmem:[#allocation2 + $0x3b0] sm:$0xff]
    %v3736 = vld [vmem:[#allocation2 + $0x3b8] sm:$0xff]
    %v3737 = vld [vmem:[#allocation2 + $0x3c0] sm:$0xff]
    %v3738 = vld [vmem:[#allocation2 + $0x3c8] sm:$0xff]
    %v3739 = vld [vmem:[#allocation2 + $0x3d0] sm:$0xff]
    %v3740 = vld [vmem:[#allocation2 + $0x3d8] sm:$0xff]
    %v3741 = vld [vmem:[#allocation2 + $0x3e0] sm:$0xff]
    %v3742 = vld [vmem:[#allocation2 + $0x3e8] sm:$0xff]
    %v3743 = vld [vmem:[#allocation2 + $0x3f0] sm:$0xff]
    %v3744 = vld [vmem:[#allocation2 + $0x3f8] sm:$0xff]
    %v3745 = vld [vmem:[#allocation2 + $0x400] sm:$0xff]
    %v3746 = vld [vmem:[#allocation2 + $0x408] sm:$0xff]
    %v3747 = vld [vmem:[#allocation2 + $0x410] sm:$0xff]
    %v3748 = vld [vmem:[#allocation2 + $0x418] sm:$0xff]
    %v3749 = vld [vmem:[#allocation2 + $0x420] sm:$0xff]
    %v3750 = vld [vmem:[#allocation2 + $0x428] sm:$0xff]
    %v3751 = vld [vmem:[#allocation2 + $0x430] sm:$0xff]
    %v3752 = vld [vmem:[#allocation2 + $0x438] sm:$0xff]
    %v3753 = vld [vmem:[#allocation2 + $0x440] sm:$0xff]
    %v3754 = vld [vmem:[#allocation2 + $0x448] sm:$0xff]
    %v3755 = vld [vmem:[#allocation2 + $0x450] sm:$0xff]
    %v3756 = vld [vmem:[#allocation2 + $0x458] sm:$0xff]
    %v3757 = vld [vmem:[#allocation2 + $0x460] sm:$0xff]
    %v3758 = vld [vmem:[#allocation2 + $0x468] sm:$0xff]
    %v3759 = vld [vmem:[#allocation2 + $0x470] sm:$0xff]
    %v3760 = vld [vmem:[#allocation2 + $0x478] sm:$0xff]
    %v3761 = vld [vmem:[#allocation2 + $0x480] sm:$0xff]
    %v3762 = vld [vmem:[#allocation2 + $0x488] sm:$0xff]
    %v3763 = vld [vmem:[#allocation2 + $0x490] sm:$0xff]
    %v3764 = vld [vmem:[#allocation2 + $0x498] sm:$0xff]
    %v3765 = vld [vmem:[#allocation2 + $0x4a0] sm:$0xff]
    %v3766 = vld [vmem:[#allocation2 + $0x4a8] sm:$0xff]
    %v3767 = vld [vmem:[#allocation2 + $0x4b0] sm:$0xff]
    %v3768 = vld [vmem:[#allocation2 + $0x4b8] sm:$0xff]
    %v3769 = vld [vmem:[#allocation2 + $0x4c0] sm:$0xff]
    %v3770 = vld [vmem:[#allocation2 + $0x4c8] sm:$0xff]
    %v3771 = vld [vmem:[#allocation2 + $0x4d0] sm:$0xff]
    %v3772 = vld [vmem:[#allocation2 + $0x4d8] sm:$0xff]
    %v3773 = vld [vmem:[#allocation2 + $0x4e0] sm:$0xff]
    %v3774 = vld [vmem:[#allocation2 + $0x4e8] sm:$0xff]
    %v3775 = vld [vmem:[#allocation2 + $0x4f0] sm:$0xff]
    %v3776 = vld [vmem:[#allocation2 + $0x4f8] sm:$0xff]
    %v3777 = vld [vmem:[#allocation2 + $0x500] sm:$0xff]
    %v3778 = vld [vmem:[#allocation2 + $0x508] sm:$0xff]
    %v3779 = vld [vmem:[#allocation2 + $0x510] sm:$0xff]
    %v3780 = vld [vmem:[#allocation2 + $0x518] sm:$0xff]
    %v3781 = vld [vmem:[#allocation2 + $0x520] sm:$0xff]
    %v3782 = vld [vmem:[#allocation2 + $0x528] sm:$0xff]
    %v3783 = vld [vmem:[#allocation2 + $0x530] sm:$0xff]
    %v3784 = vld [vmem:[#allocation2 + $0x538] sm:$0xff]
    %v3785 = vld [vmem:[#allocation2 + $0x540] sm:$0xff]
    %v3786 = vld [vmem:[#allocation2 + $0x548] sm:$0xff]
    %v3787 = vld [vmem:[#allocation2 + $0x550] sm:$0xff]
    %v3788 = vld [vmem:[#allocation2 + $0x558] sm:$0xff]
    %v3789 = vld [vmem:[#allocation2 + $0x560] sm:$0xff]
    %v3790 = vld [vmem:[#allocation2 + $0x568] sm:$0xff]
    %v3791 = vld [vmem:[#allocation2 + $0x570] sm:$0xff]
    %v3792 = vld [vmem:[#allocation2 + $0x578] sm:$0xff]
    %v3793 = vld [vmem:[#allocation2 + $0x580] sm:$0xff]
    %v3794 = vld [vmem:[#allocation2 + $0x588] sm:$0xff]
    %v3795 = vld [vmem:[#allocation2 + $0x590] sm:$0xff]
    %v3796 = vld [vmem:[#allocation2 + $0x598] sm:$0xff]
    %v3797 = vld [vmem:[#allocation2 + $0x5a0] sm:$0xff]
    %v3798 = vld [vmem:[#allocation2 + $0x5a8] sm:$0xff]
    %v3799 = vld [vmem:[#allocation2 + $0x5b0] sm:$0xff]
    %v3800 = vld [vmem:[#allocation2 + $0x5b8] sm:$0xff]
    %v3801 = vld [vmem:[#allocation2 + $0x5c0] sm:$0xff]
    %v3802 = vld [vmem:[#allocation2 + $0x5c8] sm:$0xff]
    %v3803 = vld [vmem:[#allocation2 + $0x5d0] sm:$0xff]
    %v3804 = vld [vmem:[#allocation2 + $0x5d8] sm:$0xff]
    %v3805 = vld [vmem:[#allocation2 + $0x5e0] sm:$0xff]
    %v3806 = vld [vmem:[#allocation2 + $0x5e8] sm:$0xff]
    %v3807 = vld [vmem:[#allocation2 + $0x5f0] sm:$0xff]
    %v3808 = vld [vmem:[#allocation2 + $0x5f8] sm:$0xff]
    %v3809 = vld [vmem:[#allocation2 + $0x600] sm:$0xff]
    %v3810 = vld [vmem:[#allocation2 + $0x608] sm:$0xff]
    %v3811 = vld [vmem:[#allocation2 + $0x610] sm:$0xff]
    %v3812 = vld [vmem:[#allocation2 + $0x618] sm:$0xff]
    %v3813 = vld [vmem:[#allocation2 + $0x620] sm:$0xff]
    %v3814 = vld [vmem:[#allocation2 + $0x628] sm:$0xff]
    %v3815 = vld [vmem:[#allocation2 + $0x630] sm:$0xff]
    %v3816 = vld [vmem:[#allocation2 + $0x638] sm:$0xff]
    %v3817 = vld [vmem:[#allocation2 + $0x640] sm:$0xff]
    %v3818 = vld [vmem:[#allocation2 + $0x648] sm:$0xff]
    %v3819 = vld [vmem:[#allocation2 + $0x650] sm:$0xff]
    %v3820 = vld [vmem:[#allocation2 + $0x658] sm:$0xff]
    %v3821 = vld [vmem:[#allocation2 + $0x660] sm:$0xff]
    %v3822 = vld [vmem:[#allocation2 + $0x668] sm:$0xff]
    %v3823 = vld [vmem:[#allocation2 + $0x670] sm:$0xff]
    %v3824 = vld [vmem:[#allocation2 + $0x678] sm:$0xff]
    %v3825 = vld [vmem:[#allocation2 + $0x680] sm:$0xff]
    %v3826 = vld [vmem:[#allocation2 + $0x688] sm:$0xff]
    %v3827 = vld [vmem:[#allocation2 + $0x690] sm:$0xff]
    %v3828 = vld [vmem:[#allocation2 + $0x698] sm:$0xff]
    %v3829 = vld [vmem:[#allocation2 + $0x6a0] sm:$0xff]
    %v3830 = vld [vmem:[#allocation2 + $0x6a8] sm:$0xff]
    %v3831 = vld [vmem:[#allocation2 + $0x6b0] sm:$0xff]
    %v3832 = vld [vmem:[#allocation2 + $0x6b8] sm:$0xff]
    %v3833 = vld [vmem:[#allocation2 + $0x6c0] sm:$0xff]
    %v3834 = vld [vmem:[#allocation2 + $0x6c8] sm:$0xff]
    %v3835 = vld [vmem:[#allocation2 + $0x6d0] sm:$0xff]
    %v3836 = vld [vmem:[#allocation2 + $0x6d8] sm:$0xff]
    %v3837 = vld [vmem:[#allocation2 + $0x6e0] sm:$0xff]
    %v3838 = vld [vmem:[#allocation2 + $0x6e8] sm:$0xff]
    %v3839 = vld [vmem:[#allocation2 + $0x6f0] sm:$0xff]
    %v3840 = vld [vmem:[#allocation2 + $0x6f8] sm:$0xff]
    %v3841 = vld [vmem:[#allocation2 + $0x700] sm:$0xff]
    %v3842 = vld [vmem:[#allocation2 + $0x708] sm:$0xff]
    %v3843 = vld [vmem:[#allocation2 + $0x710] sm:$0xff]
    %v3844 = vld [vmem:[#allocation2 + $0x718] sm:$0xff]
    %v3845 = vld [vmem:[#allocation2 + $0x720] sm:$0xff]
    %v3846 = vld [vmem:[#allocation2 + $0x728] sm:$0xff]
    %v3847 = vld [vmem:[#allocation2 + $0x730] sm:$0xff]
    %v3848 = vld [vmem:[#allocation2 + $0x738] sm:$0xff]
    %v3849 = vld [vmem:[#allocation2 + $0x740] sm:$0xff]
    %v3850 = vld [vmem:[#allocation2 + $0x748] sm:$0xff]
    %v3851 = vld [vmem:[#allocation2 + $0x750] sm:$0xff]
    %v3852 = vld [vmem:[#allocation2 + $0x758] sm:$0xff]
    %v3853 = vld [vmem:[#allocation2 + $0x760] sm:$0xff]
    %v3854 = vld [vmem:[#allocation2 + $0x768] sm:$0xff]
    %v3855 = vld [vmem:[#allocation2 + $0x770] sm:$0xff]
    %v3856 = vld [vmem:[#allocation2 + $0x778] sm:$0xff]
    %v3857 = vld [vmem:[#allocation2 + $0x780] sm:$0xff]
    %v3858 = vld [vmem:[#allocation2 + $0x788] sm:$0xff]
    %v3859 = vld [vmem:[#allocation2 + $0x790] sm:$0xff]
    %v3860 = vld [vmem:[#allocation2 + $0x798] sm:$0xff]
    %v3861 = vld [vmem:[#allocation2 + $0x7a0] sm:$0xff]
    %v3862 = vld [vmem:[#allocation2 + $0x7a8] sm:$0xff]
    %v3863 = vld [vmem:[#allocation2 + $0x7b0] sm:$0xff]
    %v3864 = vld [vmem:[#allocation2 + $0x7b8] sm:$0xff]
    %v3865 = vld [vmem:[#allocation2 + $0x7c0] sm:$0xff]
    %v3866 = vld [vmem:[#allocation2 + $0x7c8] sm:$0xff]
    %v3867 = vld [vmem:[#allocation2 + $0x7d0] sm:$0xff]
    %v3868 = vld [vmem:[#allocation2 + $0x7d8] sm:$0xff]
    %v3869 = vld [vmem:[#allocation2 + $0x7e0] sm:$0xff]
    %v3870 = vld [vmem:[#allocation2 + $0x7e8] sm:$0xff]
    %v3871 = vld [vmem:[#allocation2 + $0x7f0] sm:$0xff]
    %v3872 = vld [vmem:[#allocation2 + $0x7f8] sm:$0xff]
    %v3873 = vld [vmem:[#allocation2 + $0x800] sm:$0xff]
    %v3874 = vld [vmem:[#allocation2 + $0x808] sm:$0xff]
    %v3875 = vld [vmem:[#allocation2 + $0x810] sm:$0xff]
    %v3876 = vld [vmem:[#allocation2 + $0x818] sm:$0xff]
    %v3877 = vld [vmem:[#allocation2 + $0x820] sm:$0xff]
    %v3878 = vld [vmem:[#allocation2 + $0x828] sm:$0xff]
    %v3879 = vld [vmem:[#allocation2 + $0x830] sm:$0xff]
    %v3880 = vld [vmem:[#allocation2 + $0x838] sm:$0xff]
    %v3881 = vld [vmem:[#allocation2 + $0x840] sm:$0xff]
    %v3882 = vld [vmem:[#allocation2 + $0x848] sm:$0xff]
    %v3883 = vld [vmem:[#allocation2 + $0x850] sm:$0xff]
    %v3884 = vld [vmem:[#allocation2 + $0x858] sm:$0xff]
    %v3885 = vld [vmem:[#allocation2 + $0x860] sm:$0xff]
    %v3886 = vld [vmem:[#allocation2 + $0x868] sm:$0xff]
    %v3887 = vld [vmem:[#allocation2 + $0x870] sm:$0xff]
    %v3888 = vld [vmem:[#allocation2 + $0x878] sm:$0xff]
    %v3889 = vld [vmem:[#allocation2 + $0x880] sm:$0xff]
    %v3890 = vld [vmem:[#allocation2 + $0x888] sm:$0xff]
    %v3891 = vld [vmem:[#allocation2 + $0x890] sm:$0xff]
    %v3892 = vld [vmem:[#allocation2 + $0x898] sm:$0xff]
    %v3893 = vld [vmem:[#allocation2 + $0x8a0] sm:$0xff]
    %v3894 = vld [vmem:[#allocation2 + $0x8a8] sm:$0xff]
    %v3895 = vld [vmem:[#allocation2 + $0x8b0] sm:$0xff]
    %v3896 = vld [vmem:[#allocation2 + $0x8b8] sm:$0xff]
    %v3897 = vld [vmem:[#allocation2 + $0x8c0] sm:$0xff]
    %v3898 = vld [vmem:[#allocation2 + $0x8c8] sm:$0xff]
    %v3899 = vld [vmem:[#allocation2 + $0x8d0] sm:$0xff]
    %v3900 = vld [vmem:[#allocation2 + $0x8d8] sm:$0xff]
    %v3901 = vld [vmem:[#allocation2 + $0x8e0] sm:$0xff]
    %v3902 = vld [vmem:[#allocation2 + $0x8e8] sm:$0xff]
    %v3903 = vld [vmem:[#allocation2 + $0x8f0] sm:$0xff]
    %v3904 = vld [vmem:[#allocation2 + $0x8f8] sm:$0xff]
    %v3905 = vld [vmem:[#allocation2 + $0x900] sm:$0xff]
    %v3906 = vld [vmem:[#allocation2 + $0x908] sm:$0xff]
    %v3907 = vld [vmem:[#allocation2 + $0x910] sm:$0xff]
    %v3908 = vld [vmem:[#allocation2 + $0x918] sm:$0xff]
    %v3909 = vld [vmem:[#allocation2 + $0x920] sm:$0xff]
    %v3910 = vld [vmem:[#allocation2 + $0x928] sm:$0xff]
    %v3911 = vld [vmem:[#allocation2 + $0x930] sm:$0xff]
    %v3912 = vld [vmem:[#allocation2 + $0x938] sm:$0xff]
    %v3913 = vld [vmem:[#allocation2 + $0x940] sm:$0xff]
    %v3914 = vld [vmem:[#allocation2 + $0x948] sm:$0xff]
    %v3915 = vld [vmem:[#allocation2 + $0x950] sm:$0xff]
    %v3916 = vld [vmem:[#allocation2 + $0x958] sm:$0xff]
    %v3917 = vld [vmem:[#allocation2 + $0x960] sm:$0xff]
    %v3918 = vld [vmem:[#allocation2 + $0x968] sm:$0xff]
    %v3919 = vld [vmem:[#allocation2 + $0x970] sm:$0xff]
    %v3920 = vld [vmem:[#allocation2 + $0x978] sm:$0xff]
    %v3921 = vld [vmem:[#allocation2 + $0x980] sm:$0xff]
    %v3922 = vld [vmem:[#allocation2 + $0x988] sm:$0xff]
    %v3923 = vld [vmem:[#allocation2 + $0x990] sm:$0xff]
    %v3924 = vld [vmem:[#allocation2 + $0x998] sm:$0xff]
    %v3925 = vld [vmem:[#allocation2 + $0x9a0] sm:$0xff]
    %v3926 = vld [vmem:[#allocation2 + $0x9a8] sm:$0xff]
    %v3927 = vld [vmem:[#allocation2 + $0x9b0] sm:$0xff]
    %v3928 = vld [vmem:[#allocation2 + $0x9b8] sm:$0xff]
    %v3929 = vld [vmem:[#allocation2 + $0x9c0] sm:$0xff]
    %v3930 = vld [vmem:[#allocation2 + $0x9c8] sm:$0xff]
    %v3931 = vld [vmem:[#allocation2 + $0x9d0] sm:$0xff]
    %v3932 = vld [vmem:[#allocation2 + $0x9d8] sm:$0xff]
    %v3933 = vld [vmem:[#allocation2 + $0x9e0] sm:$0xff]
    %v3934 = vld [vmem:[#allocation2 + $0x9e8] sm:$0xff]
    %v3935 = vld [vmem:[#allocation2 + $0x9f0] sm:$0xff]
    %v3936 = vld [vmem:[#allocation2 + $0x9f8] sm:$0xff]
    %v3937 = vld [vmem:[#allocation2 + $0xa00] sm:$0xff]
    %v3938 = vld [vmem:[#allocation2 + $0xa08] sm:$0xff]
    %v3939 = vld [vmem:[#allocation2 + $0xa10] sm:$0xff]
    %v3940 = vld [vmem:[#allocation2 + $0xa18] sm:$0xff]
    %v3941 = vld [vmem:[#allocation2 + $0xa20] sm:$0xff]
    %v3942 = vld [vmem:[#allocation2 + $0xa28] sm:$0xff]
    %v3943 = vld [vmem:[#allocation2 + $0xa30] sm:$0xff]
    %v3944 = vld [vmem:[#allocation2 + $0xa38] sm:$0xff]
    %v3945 = vld [vmem:[#allocation2 + $0xa40] sm:$0xff]
    %v3946 = vld [vmem:[#allocation2 + $0xa48] sm:$0xff]
    %v3947 = vld [vmem:[#allocation2 + $0xa50] sm:$0xff]
    %v3948 = vld [vmem:[#allocation2 + $0xa58] sm:$0xff]
    %v3949 = vld [vmem:[#allocation2 + $0xa60] sm:$0xff]
    %v3950 = vld [vmem:[#allocation2 + $0xa68] sm:$0xff]
    %v3951 = vld [vmem:[#allocation2 + $0xa70] sm:$0xff]
    %v3952 = vld [vmem:[#allocation2 + $0xa78] sm:$0xff]
    %v3953 = vld [vmem:[#allocation2 + $0xa80] sm:$0xff]
    %v3954 = vld [vmem:[#allocation2 + $0xa88] sm:$0xff]
    %v3955 = vld [vmem:[#allocation2 + $0xa90] sm:$0xff]
    %v3956 = vld [vmem:[#allocation2 + $0xa98] sm:$0xff]
    %v3957 = vld [vmem:[#allocation2 + $0xaa0] sm:$0xff]
    %v3958 = vld [vmem:[#allocation2 + $0xaa8] sm:$0xff]
    %v3959 = vld [vmem:[#allocation2 + $0xab0] sm:$0xff]
    %v3960 = vld [vmem:[#allocation2 + $0xab8] sm:$0xff]
    %v3961 = vld [vmem:[#allocation2 + $0xac0] sm:$0xff]
    %v3962 = vld [vmem:[#allocation2 + $0xac8] sm:$0xff]
    %v3963 = vld [vmem:[#allocation2 + $0xad0] sm:$0xff]
    %v3964 = vld [vmem:[#allocation2 + $0xad8] sm:$0xff]
    %v3965 = vld [vmem:[#allocation2 + $0xae0] sm:$0xff]
    %v3966 = vld [vmem:[#allocation2 + $0xae8] sm:$0xff]
    %v3967 = vld [vmem:[#allocation2 + $0xaf0] sm:$0xff]
    %v3968 = vld [vmem:[#allocation2 + $0xaf8] sm:$0xff]
    %v3969 = vld [vmem:[#allocation2 + $0xb00] sm:$0xff]
    %v3970 = vld [vmem:[#allocation2 + $0xb08] sm:$0xff]
    %v3971 = vld [vmem:[#allocation2 + $0xb10] sm:$0xff]
    %v3972 = vld [vmem:[#allocation2 + $0xb18] sm:$0xff]
    %v3973 = vld [vmem:[#allocation2 + $0xb20] sm:$0xff]
    %v3974 = vld [vmem:[#allocation2 + $0xb28] sm:$0xff]
    %v3975 = vld [vmem:[#allocation2 + $0xb30] sm:$0xff]
    %v3976 = vld [vmem:[#allocation2 + $0xb38] sm:$0xff]
    %v3977 = vld [vmem:[#allocation2 + $0xb40] sm:$0xff]
    %v3978 = vld [vmem:[#allocation2 + $0xb48] sm:$0xff]
    %v3979 = vld [vmem:[#allocation2 + $0xb50] sm:$0xff]
    %v3980 = vld [vmem:[#allocation2 + $0xb58] sm:$0xff]
    %v3981 = vld [vmem:[#allocation2 + $0xb60] sm:$0xff]
    %v3982 = vld [vmem:[#allocation2 + $0xb68] sm:$0xff]
    %v3983 = vld [vmem:[#allocation2 + $0xb70] sm:$0xff]
    %v3984 = vld [vmem:[#allocation2 + $0xb78] sm:$0xff]
    %v3985 = vld [vmem:[#allocation2 + $0xb80] sm:$0xff]
    %v3986 = vld [vmem:[#allocation2 + $0xb88] sm:$0xff]
    %v3987 = vld [vmem:[#allocation2 + $0xb90] sm:$0xff]
    %v3988 = vld [vmem:[#allocation2 + $0xb98] sm:$0xff]
    %v3989 = vld [vmem:[#allocation2 + $0xba0] sm:$0xff]
    %v3990 = vld [vmem:[#allocation2 + $0xba8] sm:$0xff]
    %v3991 = vld [vmem:[#allocation2 + $0xbb0] sm:$0xff]
    %v3992 = vld [vmem:[#allocation2 + $0xbb8] sm:$0xff]
    %v3993 = vld [vmem:[#allocation2 + $0xbc0] sm:$0xff]
    %v3994 = vld [vmem:[#allocation2 + $0xbc8] sm:$0xff]
    %v3995 = vld [vmem:[#allocation2 + $0xbd0] sm:$0xff]
    %v3996 = vld [vmem:[#allocation2 + $0xbd8] sm:$0xff]
    %v3997 = vld [vmem:[#allocation2 + $0xbe0] sm:$0xff]
    %v3998 = vld [vmem:[#allocation2 + $0xbe8] sm:$0xff]
    %v3999 = vld [vmem:[#allocation2 + $0xbf0] sm:$0xff]
    %v4000 = vld [vmem:[#allocation2 + $0xbf8] sm:$0xff]
    %v4001 = vld [vmem:[#allocation2 + $0xc00] sm:$0xff]
    %v4002 = vld [vmem:[#allocation2 + $0xc08] sm:$0xff]
    %v4003 = vld [vmem:[#allocation2 + $0xc10] sm:$0xff]
    %v4004 = vld [vmem:[#allocation2 + $0xc18] sm:$0xff]
    %v4005 = vld [vmem:[#allocation2 + $0xc20] sm:$0xff]
    %v4006 = vld [vmem:[#allocation2 + $0xc28] sm:$0xff]
    %v4007 = vld [vmem:[#allocation2 + $0xc30] sm:$0xff]
    %v4008 = vld [vmem:[#allocation2 + $0xc38] sm:$0xff]
    %v4009 = vld [vmem:[#allocation2 + $0xc40] sm:$0xff]
    %v4010 = vld [vmem:[#allocation2 + $0xc48] sm:$0xff]
    %v4011 = vld [vmem:[#allocation2 + $0xc50] sm:$0xff]
    %v4012 = vld [vmem:[#allocation2 + $0xc58] sm:$0xff]
    %v4013 = vld [vmem:[#allocation2 + $0xc60] sm:$0xff]
    %v4014 = vld [vmem:[#allocation2 + $0xc68] sm:$0xff]
    %v4015 = vld [vmem:[#allocation2 + $0xc70] sm:$0xff]
    %v4016 = vld [vmem:[#allocation2 + $0xc78] sm:$0xff]
    %v4017 = vld [vmem:[#allocation2 + $0xc80] sm:$0xff]
    %v4018 = vld [vmem:[#allocation2 + $0xc88] sm:$0xff]
    %v4019 = vld [vmem:[#allocation2 + $0xc90] sm:$0xff]
    %v4020 = vld [vmem:[#allocation2 + $0xc98] sm:$0xff]
    %v4021 = vld [vmem:[#allocation2 + $0xca0] sm:$0xff]
    %v4022 = vld [vmem:[#allocation2 + $0xca8] sm:$0xff]
    %v4023 = vld [vmem:[#allocation2 + $0xcb0] sm:$0xff]
    %v4024 = vld [vmem:[#allocation2 + $0xcb8] sm:$0xff]
    %v4025 = vld [vmem:[#allocation2 + $0xcc0] sm:$0xff]
    %v4026 = vld [vmem:[#allocation2 + $0xcc8] sm:$0xff]
    %v4027 = vld [vmem:[#allocation2 + $0xcd0] sm:$0xff]
    %v4028 = vld [vmem:[#allocation2 + $0xcd8] sm:$0xff]
    %v4029 = vld [vmem:[#allocation2 + $0xce0] sm:$0xff]
    %v4030 = vld [vmem:[#allocation2 + $0xce8] sm:$0xff]
    %v4031 = vld [vmem:[#allocation2 + $0xcf0] sm:$0xff]
    %v4032 = vld [vmem:[#allocation2 + $0xcf8] sm:$0xff]
    %v4033 = vld [vmem:[#allocation2 + $0xd00] sm:$0xff]
    %v4034 = vld [vmem:[#allocation2 + $0xd08] sm:$0xff]
    %v4035 = vld [vmem:[#allocation2 + $0xd10] sm:$0xff]
    %v4036 = vld [vmem:[#allocation2 + $0xd18] sm:$0xff]
    %v4037 = vld [vmem:[#allocation2 + $0xd20] sm:$0xff]
    %v4038 = vld [vmem:[#allocation2 + $0xd28] sm:$0xff]
    %v4039 = vld [vmem:[#allocation2 + $0xd30] sm:$0xff]
    %v4040 = vld [vmem:[#allocation2 + $0xd38] sm:$0xff]
    %v4041 = vld [vmem:[#allocation2 + $0xd40] sm:$0xff]
    %v4042 = vld [vmem:[#allocation2 + $0xd48] sm:$0xff]
    %v4043 = vld [vmem:[#allocation2 + $0xd50] sm:$0xff]
    %v4044 = vld [vmem:[#allocation2 + $0xd58] sm:$0xff]
    %v4045 = vld [vmem:[#allocation2 + $0xd60] sm:$0xff]
    %v4046 = vld [vmem:[#allocation2 + $0xd68] sm:$0xff]
    %v4047 = vld [vmem:[#allocation2 + $0xd70] sm:$0xff]
    %v4048 = vld [vmem:[#allocation2 + $0xd78] sm:$0xff]
    %v4049 = vld [vmem:[#allocation2 + $0xd80] sm:$0xff]
    %v4050 = vld [vmem:[#allocation2 + $0xd88] sm:$0xff]
    %v4051 = vld [vmem:[#allocation2 + $0xd90] sm:$0xff]
    %v4052 = vld [vmem:[#allocation2 + $0xd98] sm:$0xff]
    %v4053 = vld [vmem:[#allocation2 + $0xda0] sm:$0xff]
    %v4054 = vld [vmem:[#allocation2 + $0xda8] sm:$0xff]
    %v4055 = vld [vmem:[#allocation2 + $0xdb0] sm:$0xff]
    %v4056 = vld [vmem:[#allocation2 + $0xdb8] sm:$0xff]
    %v4057 = vld [vmem:[#allocation2 + $0xdc0] sm:$0xff]
    %v4058 = vld [vmem:[#allocation2 + $0xdc8] sm:$0xff]
    %v4059 = vld [vmem:[#allocation2 + $0xdd0] sm:$0xff]
    %v4060 = vld [vmem:[#allocation2 + $0xdd8] sm:$0xff]
    %v4061 = vld [vmem:[#allocation2 + $0xde0] sm:$0xff]
    %v4062 = vld [vmem:[#allocation2 + $0xde8] sm:$0xff]
    %v4063 = vld [vmem:[#allocation2 + $0xdf0] sm:$0xff]
    %v4064 = vld [vmem:[#allocation2 + $0xdf8] sm:$0xff]
    %v4065 = vld [vmem:[#allocation2 + $0xe00] sm:$0xff]
    %v4066 = vld [vmem:[#allocation2 + $0xe08] sm:$0xff]
    %v4067 = vld [vmem:[#allocation2 + $0xe10] sm:$0xff]
    %v4068 = vld [vmem:[#allocation2 + $0xe18] sm:$0xff]
    %v4069 = vld [vmem:[#allocation2 + $0xe20] sm:$0xff]
    %v4070 = vld [vmem:[#allocation2 + $0xe28] sm:$0xff]
    %v4071 = vld [vmem:[#allocation2 + $0xe30] sm:$0xff]
    %v4072 = vld [vmem:[#allocation2 + $0xe38] sm:$0xff]
    %v4073 = vld [vmem:[#allocation2 + $0xe40] sm:$0xff]
    %v4074 = vld [vmem:[#allocation2 + $0xe48] sm:$0xff]
    %v4075 = vld [vmem:[#allocation2 + $0xe50] sm:$0xff]
    %v4076 = vld [vmem:[#allocation2 + $0xe58] sm:$0xff]
    %v4077 = vld [vmem:[#allocation2 + $0xe60] sm:$0xff]
    %v4078 = vld [vmem:[#allocation2 + $0xe68] sm:$0xff]
    %v4079 = vld [vmem:[#allocation2 + $0xe70] sm:$0xff]
    %v4080 = vld [vmem:[#allocation2 + $0xe78] sm:$0xff]
    %v4081 = vld [vmem:[#allocation2 + $0xe80] sm:$0xff]
    %v4082 = vld [vmem:[#allocation2 + $0xe88] sm:$0xff]
    %v4083 = vld [vmem:[#allocation2 + $0xe90] sm:$0xff]
    %v4084 = vld [vmem:[#allocation2 + $0xe98] sm:$0xff]
    %v4085 = vld [vmem:[#allocation2 + $0xea0] sm:$0xff]
    %v4086 = vld [vmem:[#allocation2 + $0xea8] sm:$0xff]
    %v4087 = vld [vmem:[#allocation2 + $0xeb0] sm:$0xff]
    %v4088 = vld [vmem:[#allocation2 + $0xeb8] sm:$0xff]
    %v4089 = vld [vmem:[#allocation2 + $0xec0] sm:$0xff]
    %v4090 = vld [vmem:[#allocation2 + $0xec8] sm:$0xff]
    %v4091 = vld [vmem:[#allocation2 + $0xed0] sm:$0xff]
    %v4092 = vld [vmem:[#allocation2 + $0xed8] sm:$0xff]
    %v4093 = vld [vmem:[#allocation2 + $0xee0] sm:$0xff]
    %v4094 = vld [vmem:[#allocation2 + $0xee8] sm:$0xff]
    %v4095 = vld [vmem:[#allocation2 + $0xef0] sm:$0xff]
    %v4096 = vld [vmem:[#allocation2 + $0xef8] sm:$0xff]
    %v4097 = vld [vmem:[#allocation2 + $0xf00] sm:$0xff]
    %v4098 = vld [vmem:[#allocation2 + $0xf08] sm:$0xff]
    %v4099 = vld [vmem:[#allocation2 + $0xf10] sm:$0xff]
    %v4100 = vld [vmem:[#allocation2 + $0xf18] sm:$0xff]
    %v4101 = vld [vmem:[#allocation2 + $0xf20] sm:$0xff]
    %v4102 = vld [vmem:[#allocation2 + $0xf28] sm:$0xff]
    %v4103 = vld [vmem:[#allocation2 + $0xf30] sm:$0xff]
    %v4104 = vld [vmem:[#allocation2 + $0xf38] sm:$0xff]
    %v4105 = vld [vmem:[#allocation2 + $0xf40] sm:$0xff]
    %v4106 = vld [vmem:[#allocation2 + $0xf48] sm:$0xff]
    %v4107 = vld [vmem:[#allocation2 + $0xf50] sm:$0xff]
    %v4108 = vld [vmem:[#allocation2 + $0xf58] sm:$0xff]
    %v4109 = vld [vmem:[#allocation2 + $0xf60] sm:$0xff]
    %v4110 = vld [vmem:[#allocation2 + $0xf68] sm:$0xff]
    %v4111 = vld [vmem:[#allocation2 + $0xf70] sm:$0xff]
    %v4112 = vld [vmem:[#allocation2 + $0xf78] sm:$0xff]
    %v4113 = vld [vmem:[#allocation2 + $0xf80] sm:$0xff]
    %v4114 = vld [vmem:[#allocation2 + $0xf88] sm:$0xff]
    %v4115 = vld [vmem:[#allocation2 + $0xf90] sm:$0xff]
    %v4116 = vld [vmem:[#allocation2 + $0xf98] sm:$0xff]
    %v4117 = vld [vmem:[#allocation2 + $0xfa0] sm:$0xff]
    %v4118 = vld [vmem:[#allocation2 + $0xfa8] sm:$0xff]
    %v4119 = vld [vmem:[#allocation2 + $0xfb0] sm:$0xff]
    %v4120 = vld [vmem:[#allocation2 + $0xfb8] sm:$0xff]
    %v4121 = vld [vmem:[#allocation2 + $0xfc0] sm:$0xff]
    %v4122 = vld [vmem:[#allocation2 + $0xfc8] sm:$0xff]
    %v4123 = vld [vmem:[#allocation2 + $0xfd0] sm:$0xff]
    %v4124 = vld [vmem:[#allocation2 + $0xfd8] sm:$0xff]
    %v4125 = vld [vmem:[#allocation2 + $0xfe0] sm:$0xff]
    %v4126 = vld [vmem:[#allocation2 + $0xfe8] sm:$0xff]
    %v4127 = vld [vmem:[#allocation2 + $0xff0] sm:$0xff]
    %v4128 = vld [vmem:[#allocation2 + $0xff8] sm:$0xff]
    %v4129 = vld [vmem:[#allocation2 + $0x1000] sm:$0xff]
    %v4130 = vld [vmem:[#allocation2 + $0x1008] sm:$0xff]
    %v4131 = vld [vmem:[#allocation2 + $0x1010] sm:$0xff]
    %v4132 = vld [vmem:[#allocation2 + $0x1018] sm:$0xff]
    %v4133 = vld [vmem:[#allocation2 + $0x1020] sm:$0xff]
    %v4134 = vld [vmem:[#allocation2 + $0x1028] sm:$0xff]
    %v4135 = vld [vmem:[#allocation2 + $0x1030] sm:$0xff]
    %v4136 = vld [vmem:[#allocation2 + $0x1038] sm:$0xff]
    %v4137 = vld [vmem:[#allocation2 + $0x1040] sm:$0xff]
    %v4138 = vld [vmem:[#allocation2 + $0x1048] sm:$0xff]
    %v4139 = vld [vmem:[#allocation2 + $0x1050] sm:$0xff]
    %v4140 = vld [vmem:[#allocation2 + $0x1058] sm:$0xff]
    %v4141 = vld [vmem:[#allocation2 + $0x1060] sm:$0xff]
    %v4142 = vld [vmem:[#allocation2 + $0x1068] sm:$0xff]
    %v4143 = vld [vmem:[#allocation2 + $0x1070] sm:$0xff]
    %v4144 = vld [vmem:[#allocation2 + $0x1078] sm:$0xff]
    %v4145 = vld [vmem:[#allocation2 + $0x1080] sm:$0xff]
    %v4146 = vld [vmem:[#allocation2 + $0x1088] sm:$0xff]
    %v4147 = vld [vmem:[#allocation2 + $0x1090] sm:$0xff]
    %v4148 = vld [vmem:[#allocation2 + $0x1098] sm:$0xff]
    %v4149 = vld [vmem:[#allocation2 + $0x10a0] sm:$0xff]
    %v4150 = vld [vmem:[#allocation2 + $0x10a8] sm:$0xff]
    %v4151 = vld [vmem:[#allocation2 + $0x10b0] sm:$0xff]
    %v4152 = vld [vmem:[#allocation2 + $0x10b8] sm:$0xff]
    %v4153 = vld [vmem:[#allocation2 + $0x10c0] sm:$0xff]
    %v4154 = vld [vmem:[#allocation2 + $0x10c8] sm:$0xff]
    %v4155 = vld [vmem:[#allocation2 + $0x10d0] sm:$0xff]
    %v4156 = vld [vmem:[#allocation2 + $0x10d8] sm:$0xff]
    %v4157 = vld [vmem:[#allocation2 + $0x10e0] sm:$0xff]
    %v4158 = vld [vmem:[#allocation2 + $0x10e8] sm:$0xff]
    %v4159 = vld [vmem:[#allocation2 + $0x10f0] sm:$0xff]
    %v4160 = vld [vmem:[#allocation2 + $0x10f8] sm:$0xff]
    %v4161 = vld [vmem:[#allocation2 + $0x1100] sm:$0xff]
    %v4162 = vld [vmem:[#allocation2 + $0x1108] sm:$0xff]
    %v4163 = vld [vmem:[#allocation2 + $0x1110] sm:$0xff]
    %v4164 = vld [vmem:[#allocation2 + $0x1118] sm:$0xff]
    %v4165 = vld [vmem:[#allocation2 + $0x1120] sm:$0xff]
    %v4166 = vld [vmem:[#allocation2 + $0x1128] sm:$0xff]
    %v4167 = vld [vmem:[#allocation2 + $0x1130] sm:$0xff]
    %v4168 = vld [vmem:[#allocation2 + $0x1138] sm:$0xff]
    %v4169 = vld [vmem:[#allocation2 + $0x1140] sm:$0xff]
    %v4170 = vld [vmem:[#allocation2 + $0x1148] sm:$0xff]
    %v4171 = vld [vmem:[#allocation2 + $0x1150] sm:$0xff]
    %v4172 = vld [vmem:[#allocation2 + $0x1158] sm:$0xff]
    %v4173 = vld [vmem:[#allocation2 + $0x1160] sm:$0xff]
    %v4174 = vld [vmem:[#allocation2 + $0x1168] sm:$0xff]
    %v4175 = vld [vmem:[#allocation2 + $0x1170] sm:$0xff]
    %v4176 = vld [vmem:[#allocation2 + $0x1178] sm:$0xff]
    %v4177 = vld [vmem:[#allocation2 + $0x1180] sm:$0xff]
    %v4178 = vld [vmem:[#allocation2 + $0x1188] sm:$0xff]
    %v4179 = vld [vmem:[#allocation2 + $0x1190] sm:$0xff]
    %v4180 = vld [vmem:[#allocation2 + $0x1198] sm:$0xff]
    %v4181 = vld [vmem:[#allocation2 + $0x11a0] sm:$0xff]
    %v4182 = vld [vmem:[#allocation2 + $0x11a8] sm:$0xff]
    %v4183 = vld [vmem:[#allocation2 + $0x11b0] sm:$0xff]
    %v4184 = vld [vmem:[#allocation2 + $0x11b8] sm:$0xff]
    %v4185 = vld [vmem:[#allocation2 + $0x11c0] sm:$0xff]
    %v4186 = vld [vmem:[#allocation2 + $0x11c8] sm:$0xff]
    %v4187 = vld [vmem:[#allocation2 + $0x11d0] sm:$0xff]
    %v4188 = vld [vmem:[#allocation2 + $0x11d8] sm:$0xff]
    %v4189 = vld [vmem:[#allocation2 + $0x11e0] sm:$0xff]
    %v4190 = vld [vmem:[#allocation2 + $0x11e8] sm:$0xff]
    %v4191 = vld [vmem:[#allocation2 + $0x11f0] sm:$0xff]
    %v4192 = vld [vmem:[#allocation2 + $0x11f8] sm:$0xff]
    %v4193 = vld [vmem:[#allocation2 + $0x1200] sm:$0xff]
    %v4194 = vld [vmem:[#allocation2 + $0x1208] sm:$0xff]
    %v4195 = vld [vmem:[#allocation2 + $0x1210] sm:$0xff]
    %v4196 = vld [vmem:[#allocation2 + $0x1218] sm:$0xff]
    %v4197 = vld [vmem:[#allocation2 + $0x1220] sm:$0xff]
    %v4198 = vld [vmem:[#allocation2 + $0x1228] sm:$0xff]
    %v4199 = vld [vmem:[#allocation2 + $0x1230] sm:$0xff]
    %v4200 = vld [vmem:[#allocation2 + $0x1238] sm:$0xff]
    %v4201 = vld [vmem:[#allocation2 + $0x1240] sm:$0xff]
    %v4202 = vld [vmem:[#allocation2 + $0x1248] sm:$0xff]
    %v4203 = vld [vmem:[#allocation2 + $0x1250] sm:$0xff]
    %v4204 = vld [vmem:[#allocation2 + $0x1258] sm:$0xff]
    %v4205 = vld [vmem:[#allocation2 + $0x1260] sm:$0xff]
    %v4206 = vld [vmem:[#allocation2 + $0x1268] sm:$0xff]
    %v4207 = vld [vmem:[#allocation2 + $0x1270] sm:$0xff]
    %v4208 = vld [vmem:[#allocation2 + $0x1278] sm:$0xff]
    %v4209 = vld [vmem:[#allocation2 + $0x1280] sm:$0xff]
    %v4210 = vld [vmem:[#allocation2 + $0x1288] sm:$0xff]
    %v4211 = vld [vmem:[#allocation2 + $0x1290] sm:$0xff]
    %v4212 = vld [vmem:[#allocation2 + $0x1298] sm:$0xff]
    %v4213 = vld [vmem:[#allocation2 + $0x12a0] sm:$0xff]
    %v4214 = vld [vmem:[#allocation2 + $0x12a8] sm:$0xff]
    %v4215 = vld [vmem:[#allocation2 + $0x12b0] sm:$0xff]
    %v4216 = vld [vmem:[#allocation2 + $0x12b8] sm:$0xff]
    %v4217 = vld [vmem:[#allocation2 + $0x12c0] sm:$0xff]
    %v4218 = vld [vmem:[#allocation2 + $0x12c8] sm:$0xff]
    %v4219 = vld [vmem:[#allocation2 + $0x12d0] sm:$0xff]
    %v4220 = vld [vmem:[#allocation2 + $0x12d8] sm:$0xff]
    %v4221 = vld [vmem:[#allocation2 + $0x12e0] sm:$0xff]
    %v4222 = vld [vmem:[#allocation2 + $0x12e8] sm:$0xff]
    %v4223 = vld [vmem:[#allocation2 + $0x12f0] sm:$0xff]
    %v4224 = vld [vmem:[#allocation2 + $0x12f8] sm:$0xff]
    %v4225 = vld [vmem:[#allocation2 + $0x1300] sm:$0xff]
    %v4226 = vld [vmem:[#allocation2 + $0x1308] sm:$0xff]
    %v4227 = vld [vmem:[#allocation2 + $0x1310] sm:$0xff]
    %v4228 = vld [vmem:[#allocation2 + $0x1318] sm:$0xff]
    %v4229 = vld [vmem:[#allocation2 + $0x1320] sm:$0xff]
    %v4230 = vld [vmem:[#allocation2 + $0x1328] sm:$0xff]
    %v4231 = vld [vmem:[#allocation2 + $0x1330] sm:$0xff]
    %v4232 = vld [vmem:[#allocation2 + $0x1338] sm:$0xff]
    %v4233 = vld [vmem:[#allocation2 + $0x1340] sm:$0xff]
    %v4234 = vld [vmem:[#allocation2 + $0x1348] sm:$0xff]
    %v4235 = vld [vmem:[#allocation2 + $0x1350] sm:$0xff]
    %v4236 = vld [vmem:[#allocation2 + $0x1358] sm:$0xff]
    %v4237 = vld [vmem:[#allocation2 + $0x1360] sm:$0xff]
    %v4238 = vld [vmem:[#allocation2 + $0x1368] sm:$0xff]
    %v4239 = vld [vmem:[#allocation2 + $0x1370] sm:$0xff]
    %v4240 = vld [vmem:[#allocation2 + $0x1378] sm:$0xff]
    %v4241 = vld [vmem:[#allocation2 + $0x1380] sm:$0xff]
    %v4242 = vld [vmem:[#allocation2 + $0x1388] sm:$0xff]
    %v4243 = vld [vmem:[#allocation2 + $0x1390] sm:$0xff]
    %v4244 = vld [vmem:[#allocation2 + $0x1398] sm:$0xff]
    %v4245 = vld [vmem:[#allocation2 + $0x13a0] sm:$0xff]
    %v4246 = vld [vmem:[#allocation2 + $0x13a8] sm:$0xff]
    %v4247 = vld [vmem:[#allocation2 + $0x13b0] sm:$0xff]
    %v4248 = vld [vmem:[#allocation2 + $0x13b8] sm:$0xff]
    %v4249 = vld [vmem:[#allocation2 + $0x13c0] sm:$0xff]
    %v4250 = vld [vmem:[#allocation2 + $0x13c8] sm:$0xff]
    %v4251 = vld [vmem:[#allocation2 + $0x13d0] sm:$0xff]
    %v4252 = vld [vmem:[#allocation2 + $0x13d8] sm:$0xff]
    %v4253 = vld [vmem:[#allocation2 + $0x13e0] sm:$0xff]
    %v4254 = vld [vmem:[#allocation2 + $0x13e8] sm:$0xff]
    %v4255 = vld [vmem:[#allocation2 + $0x13f0] sm:$0xff]
    %v4256 = vld [vmem:[#allocation2 + $0x13f8] sm:$0xff]
    %v4257 = vld [vmem:[#allocation2 + $0x1400] sm:$0xff]
    %v4258 = vld [vmem:[#allocation2 + $0x1408] sm:$0xff]
    %v4259 = vld [vmem:[#allocation2 + $0x1410] sm:$0xff]
    %v4260 = vld [vmem:[#allocation2 + $0x1418] sm:$0xff]
    %v4261 = vld [vmem:[#allocation2 + $0x1420] sm:$0xff]
    %v4262 = vld [vmem:[#allocation2 + $0x1428] sm:$0xff]
    %v4263 = vld [vmem:[#allocation2 + $0x1430] sm:$0xff]
    %v4264 = vld [vmem:[#allocation2 + $0x1438] sm:$0xff]
    %v4265 = vld [vmem:[#allocation2 + $0x1440] sm:$0xff]
    %v4266 = vld [vmem:[#allocation2 + $0x1448] sm:$0xff]
    %v4267 = vld [vmem:[#allocation2 + $0x1450] sm:$0xff]
    %v4268 = vld [vmem:[#allocation2 + $0x1458] sm:$0xff]
    %v4269 = vld [vmem:[#allocation2 + $0x1460] sm:$0xff]
    %v4270 = vld [vmem:[#allocation2 + $0x1468] sm:$0xff]
    %v4271 = vld [vmem:[#allocation2 + $0x1470] sm:$0xff]
    %v4272 = vld [vmem:[#allocation2 + $0x1478] sm:$0xff]
    %v4273 = vld [vmem:[#allocation2 + $0x1480] sm:$0xff]
    %v4274 = vld [vmem:[#allocation2 + $0x1488] sm:$0xff]
    %v4275 = vld [vmem:[#allocation2 + $0x1490] sm:$0xff]
    %v4276 = vld [vmem:[#allocation2 + $0x1498] sm:$0xff]
    %v4277 = vld [vmem:[#allocation2 + $0x14a0] sm:$0xff]
    %v4278 = vld [vmem:[#allocation2 + $0x14a8] sm:$0xff]
    %v4279 = vld [vmem:[#allocation2 + $0x14b0] sm:$0xff]
    %v4280 = vld [vmem:[#allocation2 + $0x14b8] sm:$0xff]
    %v4281 = vld [vmem:[#allocation2 + $0x14c0] sm:$0xff]
    %v4282 = vld [vmem:[#allocation2 + $0x14c8] sm:$0xff]
    %v4283 = vld [vmem:[#allocation2 + $0x14d0] sm:$0xff]
    %v4284 = vld [vmem:[#allocation2 + $0x14d8] sm:$0xff]
    %v4285 = vld [vmem:[#allocation2 + $0x14e0] sm:$0xff]
    %v4286 = vld [vmem:[#allocation2 + $0x14e8] sm:$0xff]
    %v4287 = vld [vmem:[#allocation2 + $0x14f0] sm:$0xff]
    %v4288 = vld [vmem:[#allocation2 + $0x14f8] sm:$0xff]
    %v4289 = vld [vmem:[#allocation2 + $0x1500] sm:$0xff]
    %v4290 = vld [vmem:[#allocation2 + $0x1508] sm:$0xff]
    %v4291 = vld [vmem:[#allocation2 + $0x1510] sm:$0xff]
    %v4292 = vld [vmem:[#allocation2 + $0x1518] sm:$0xff]
    %v4293 = vld [vmem:[#allocation2 + $0x1520] sm:$0xff]
    %v4294 = vld [vmem:[#allocation2 + $0x1528] sm:$0xff]
    %v4295 = vld [vmem:[#allocation2 + $0x1530] sm:$0xff]
    %v4296 = vld [vmem:[#allocation2 + $0x1538] sm:$0xff]
    %v4297 = vld [vmem:[#allocation2 + $0x1540] sm:$0xff]
    %v4298 = vld [vmem:[#allocation2 + $0x1548] sm:$0xff]
    %v4299 = vld [vmem:[#allocation2 + $0x1550] sm:$0xff]
    %v4300 = vld [vmem:[#allocation2 + $0x1558] sm:$0xff]
    %v4301 = vld [vmem:[#allocation2 + $0x1560] sm:$0xff]
    %v4302 = vld [vmem:[#allocation2 + $0x1568] sm:$0xff]
    %v4303 = vld [vmem:[#allocation2 + $0x1570] sm:$0xff]
    %v4304 = vld [vmem:[#allocation2 + $0x1578] sm:$0xff]
    %v4305 = vld [vmem:[#allocation2 + $0x1580] sm:$0xff]
    %v4306 = vld [vmem:[#allocation2 + $0x1588] sm:$0xff]
    %v4307 = vld [vmem:[#allocation2 + $0x1590] sm:$0xff]
    %v4308 = vld [vmem:[#allocation2 + $0x1598] sm:$0xff]
    %v4309 = vld [vmem:[#allocation2 + $0x15a0] sm:$0xff]
    %v4310 = vld [vmem:[#allocation2 + $0x15a8] sm:$0xff]
    %v4311 = vld [vmem:[#allocation2 + $0x15b0] sm:$0xff]
    %v4312 = vld [vmem:[#allocation2 + $0x15b8] sm:$0xff]
    %v4313 = vld [vmem:[#allocation2 + $0x15c0] sm:$0xff]
    %v4314 = vld [vmem:[#allocation2 + $0x15c8] sm:$0xff]
    %v4315 = vld [vmem:[#allocation2 + $0x15d0] sm:$0xff]
    %v4316 = vld [vmem:[#allocation2 + $0x15d8] sm:$0xff]
    %v4317 = vld [vmem:[#allocation2 + $0x15e0] sm:$0xff]
    %v4318 = vld [vmem:[#allocation2 + $0x15e8] sm:$0xff]
    %v4319 = vld [vmem:[#allocation2 + $0x15f0] sm:$0xff]
    %v4320 = vld [vmem:[#allocation2 + $0x15f8] sm:$0xff]
    %v4321 = vld [vmem:[#allocation2 + $0x1600] sm:$0xff]
    %v4322 = vld [vmem:[#allocation2 + $0x1608] sm:$0xff]
    %v4323 = vld [vmem:[#allocation2 + $0x1610] sm:$0xff]
    %v4324 = vld [vmem:[#allocation2 + $0x1618] sm:$0xff]
    %v4325 = vld [vmem:[#allocation2 + $0x1620] sm:$0xff]
    %v4326 = vld [vmem:[#allocation2 + $0x1628] sm:$0xff]
    %v4327 = vld [vmem:[#allocation2 + $0x1630] sm:$0xff]
    %v4328 = vld [vmem:[#allocation2 + $0x1638] sm:$0xff]
    %v4329 = vld [vmem:[#allocation2 + $0x1640] sm:$0xff]
    %v4330 = vld [vmem:[#allocation2 + $0x1648] sm:$0xff]
    %v4331 = vld [vmem:[#allocation2 + $0x1650] sm:$0xff]
    %v4332 = vld [vmem:[#allocation2 + $0x1658] sm:$0xff]
    %v4333 = vld [vmem:[#allocation2 + $0x1660] sm:$0xff]
    %v4334 = vld [vmem:[#allocation2 + $0x1668] sm:$0xff]
    %v4335 = vld [vmem:[#allocation2 + $0x1670] sm:$0xff]
    %v4336 = vld [vmem:[#allocation2 + $0x1678] sm:$0xff]
    %v4337 = vld [vmem:[#allocation2 + $0x1680] sm:$0xff]
    %v4338 = vld [vmem:[#allocation2 + $0x1688] sm:$0xff]
    %v4339 = vld [vmem:[#allocation2 + $0x1690] sm:$0xff]
    %v4340 = vld [vmem:[#allocation2 + $0x1698] sm:$0xff]
    %v4341 = vld [vmem:[#allocation2 + $0x16a0] sm:$0xff]
    %v4342 = vld [vmem:[#allocation2 + $0x16a8] sm:$0xff]
    %v4343 = vld [vmem:[#allocation2 + $0x16b0] sm:$0xff]
    %v4344 = vld [vmem:[#allocation2 + $0x16b8] sm:$0xff]
    %v4345 = vld [vmem:[#allocation2 + $0x16c0] sm:$0xff]
    %v4346 = vld [vmem:[#allocation2 + $0x16c8] sm:$0xff]
    %v4347 = vld [vmem:[#allocation2 + $0x16d0] sm:$0xff]
    %v4348 = vld [vmem:[#allocation2 + $0x16d8] sm:$0xff]
    %v4349 = vld [vmem:[#allocation2 + $0x16e0] sm:$0xff]
    %v4350 = vld [vmem:[#allocation2 + $0x16e8] sm:$0xff]
    %v4351 = vld [vmem:[#allocation2 + $0x16f0] sm:$0xff]
    %v4352 = vld [vmem:[#allocation2 + $0x16f8] sm:$0xff]
    %v4353 = vld [vmem:[#allocation2 + $0x1700] sm:$0xff]
    %v4354 = vld [vmem:[#allocation2 + $0x1708] sm:$0xff]
    %v4355 = vld [vmem:[#allocation2 + $0x1710] sm:$0xff]
    %v4356 = vld [vmem:[#allocation2 + $0x1718] sm:$0xff]
    %v4357 = vld [vmem:[#allocation2 + $0x1720] sm:$0xff]
    %v4358 = vld [vmem:[#allocation2 + $0x1728] sm:$0xff]
    %v4359 = vld [vmem:[#allocation2 + $0x1730] sm:$0xff]
    %v4360 = vld [vmem:[#allocation2 + $0x1738] sm:$0xff]
    %v4361 = vld [vmem:[#allocation2 + $0x1740] sm:$0xff]
    %v4362 = vld [vmem:[#allocation2 + $0x1748] sm:$0xff]
    %v4363 = vld [vmem:[#allocation2 + $0x1750] sm:$0xff]
    %v4364 = vld [vmem:[#allocation2 + $0x1758] sm:$0xff]
    %v4365 = vld [vmem:[#allocation2 + $0x1760] sm:$0xff]
    %v4366 = vld [vmem:[#allocation2 + $0x1768] sm:$0xff]
    %v4367 = vld [vmem:[#allocation2 + $0x1770] sm:$0xff]
    %v4368 = vld [vmem:[#allocation2 + $0x1778] sm:$0xff]
    %v4369 = vld [vmem:[#allocation2 + $0x1780] sm:$0xff]
    %v4370 = vld [vmem:[#allocation2 + $0x1788] sm:$0xff]
    %v4371 = vld [vmem:[#allocation2 + $0x1790] sm:$0xff]
    %v4372 = vld [vmem:[#allocation2 + $0x1798] sm:$0xff]
    %v4373 = vld [vmem:[#allocation2 + $0x17a0] sm:$0xff]
    %v4374 = vld [vmem:[#allocation2 + $0x17a8] sm:$0xff]
    %v4375 = vld [vmem:[#allocation2 + $0x17b0] sm:$0xff]
    %v4376 = vld [vmem:[#allocation2 + $0x17b8] sm:$0xff]
    %v4377 = vld [vmem:[#allocation2 + $0x17c0] sm:$0xff]
    %v4378 = vld [vmem:[#allocation2 + $0x17c8] sm:$0xff]
    %v4379 = vld [vmem:[#allocation2 + $0x17d0] sm:$0xff]
    %v4380 = vld [vmem:[#allocation2 + $0x17d8] sm:$0xff]
    %v4381 = vld [vmem:[#allocation2 + $0x17e0] sm:$0xff]
    %v4382 = vld [vmem:[#allocation2 + $0x17e8] sm:$0xff]
    %v4383 = vld [vmem:[#allocation2 + $0x17f0] sm:$0xff]
    %v4384 = vld [vmem:[#allocation2 + $0x17f8] sm:$0xff]
    %v4385 = vld [vmem:[#allocation2 + $0x1800] sm:$0xff]
    %v4386 = vld [vmem:[#allocation2 + $0x1808] sm:$0xff]
    %v4387 = vld [vmem:[#allocation2 + $0x1810] sm:$0xff]
    %v4388 = vld [vmem:[#allocation2 + $0x1818] sm:$0xff]
    %v4389 = vld [vmem:[#allocation2 + $0x1820] sm:$0xff]
    %v4390 = vld [vmem:[#allocation2 + $0x1828] sm:$0xff]
    %v4391 = vld [vmem:[#allocation2 + $0x1830] sm:$0xff]
    %v4392 = vld [vmem:[#allocation2 + $0x1838] sm:$0xff]
    %v4393 = vld [vmem:[#allocation2 + $0x1840] sm:$0xff]
    %v4394 = vld [vmem:[#allocation2 + $0x1848] sm:$0xff]
    %v4395 = vld [vmem:[#allocation2 + $0x1850] sm:$0xff]
    %v4396 = vld [vmem:[#allocation2 + $0x1858] sm:$0xff]
    %v4397 = vld [vmem:[#allocation2 + $0x1860] sm:$0xff]
    %v4398 = vld [vmem:[#allocation2 + $0x1868] sm:$0xff]
    %v4399 = vld [vmem:[#allocation2 + $0x1870] sm:$0xff]
    %v4400 = vld [vmem:[#allocation2 + $0x1878] sm:$0xff]
    %v4401 = vld [vmem:[#allocation2 + $0x1880] sm:$0xff]
    %v4402 = vld [vmem:[#allocation2 + $0x1888] sm:$0xff]
    %v4403 = vld [vmem:[#allocation2 + $0x1890] sm:$0xff]
    %v4404 = vld [vmem:[#allocation2 + $0x1898] sm:$0xff]
    %v4405 = vld [vmem:[#allocation2 + $0x18a0] sm:$0xff]
    %v4406 = vld [vmem:[#allocation2 + $0x18a8] sm:$0xff]
    %v4407 = vld [vmem:[#allocation2 + $0x18b0] sm:$0xff]
    %v4408 = vld [vmem:[#allocation2 + $0x18b8] sm:$0xff]
    %v4409 = vld [vmem:[#allocation2 + $0x18c0] sm:$0xff]
    %v4410 = vld [vmem:[#allocation2 + $0x18c8] sm:$0xff]
    %v4411 = vld [vmem:[#allocation2 + $0x18d0] sm:$0xff]
    %v4412 = vld [vmem:[#allocation2 + $0x18d8] sm:$0xff]
    %v4413 = vld [vmem:[#allocation2 + $0x18e0] sm:$0xff]
    %v4414 = vld [vmem:[#allocation2 + $0x18e8] sm:$0xff]
    %v4415 = vld [vmem:[#allocation2 + $0x18f0] sm:$0xff]
    %v4416 = vld [vmem:[#allocation2 + $0x18f8] sm:$0xff]
    %v4417 = vld [vmem:[#allocation2 + $0x1900] sm:$0xff]
    %v4418 = vld [vmem:[#allocation2 + $0x1908] sm:$0xff]
    %v4419 = vld [vmem:[#allocation2 + $0x1910] sm:$0xff]
    %v4420 = vld [vmem:[#allocation2 + $0x1918] sm:$0xff]
    %v4421 = vld [vmem:[#allocation2 + $0x1920] sm:$0xff]
    %v4422 = vld [vmem:[#allocation2 + $0x1928] sm:$0xff]
    %v4423 = vld [vmem:[#allocation2 + $0x1930] sm:$0xff]
    %v4424 = vld [vmem:[#allocation2 + $0x1938] sm:$0xff]
    %v4425 = vld [vmem:[#allocation2 + $0x1940] sm:$0xff]
    %v4426 = vld [vmem:[#allocation2 + $0x1948] sm:$0xff]
    %v4427 = vld [vmem:[#allocation2 + $0x1950] sm:$0xff]
    %v4428 = vld [vmem:[#allocation2 + $0x1958] sm:$0xff]
    %v4429 = vld [vmem:[#allocation2 + $0x1960] sm:$0xff]
    %v4430 = vld [vmem:[#allocation2 + $0x1968] sm:$0xff]
    %v4431 = vld [vmem:[#allocation2 + $0x1970] sm:$0xff]
    %v4432 = vld [vmem:[#allocation2 + $0x1978] sm:$0xff]
    %v4433 = vld [vmem:[#allocation2 + $0x1980] sm:$0xff]
    %v4434 = vld [vmem:[#allocation2 + $0x1988] sm:$0xff]
    %v4435 = vld [vmem:[#allocation2 + $0x1990] sm:$0xff]
    %v4436 = vld [vmem:[#allocation2 + $0x1998] sm:$0xff]
    %v4437 = vld [vmem:[#allocation2 + $0x19a0] sm:$0xff]
    %v4438 = vld [vmem:[#allocation2 + $0x19a8] sm:$0xff]
    %v4439 = vld [vmem:[#allocation2 + $0x19b0] sm:$0xff]
    %v4440 = vld [vmem:[#allocation2 + $0x19b8] sm:$0xff]
    %v4441 = vld [vmem:[#allocation2 + $0x19c0] sm:$0xff]
    %v4442 = vld [vmem:[#allocation2 + $0x19c8] sm:$0xff]
    %v4443 = vld [vmem:[#allocation2 + $0x19d0] sm:$0xff]
    %v4444 = vld [vmem:[#allocation2 + $0x19d8] sm:$0xff]
    %v4445 = vld [vmem:[#allocation2 + $0x19e0] sm:$0xff]
    %v4446 = vld [vmem:[#allocation2 + $0x19e8] sm:$0xff]
    %v4447 = vld [vmem:[#allocation2 + $0x19f0] sm:$0xff]
    %v4448 = vld [vmem:[#allocation2 + $0x19f8] sm:$0xff]
    %v4449 = vld [vmem:[#allocation2 + $0x1a00] sm:$0xff]
    %v4450 = vld [vmem:[#allocation2 + $0x1a08] sm:$0xff]
    %v4451 = vld [vmem:[#allocation2 + $0x1a10] sm:$0xff]
    %v4452 = vld [vmem:[#allocation2 + $0x1a18] sm:$0xff]
    %v4453 = vld [vmem:[#allocation2 + $0x1a20] sm:$0xff]
    %v4454 = vld [vmem:[#allocation2 + $0x1a28] sm:$0xff]
    %v4455 = vld [vmem:[#allocation2 + $0x1a30] sm:$0xff]
    %v4456 = vld [vmem:[#allocation2 + $0x1a38] sm:$0xff]
    %v4457 = vld [vmem:[#allocation2 + $0x1a40] sm:$0xff]
    %v4458 = vld [vmem:[#allocation2 + $0x1a48] sm:$0xff]
    %v4459 = vld [vmem:[#allocation2 + $0x1a50] sm:$0xff]
    %v4460 = vld [vmem:[#allocation2 + $0x1a58] sm:$0xff]
    %v4461 = vld [vmem:[#allocation2 + $0x1a60] sm:$0xff]
    %v4462 = vld [vmem:[#allocation2 + $0x1a68] sm:$0xff]
    %v4463 = vld [vmem:[#allocation2 + $0x1a70] sm:$0xff]
    %v4464 = vld [vmem:[#allocation2 + $0x1a78] sm:$0xff]
    %v4465 = vld [vmem:[#allocation2 + $0x1a80] sm:$0xff]
    %v4466 = vld [vmem:[#allocation2 + $0x1a88] sm:$0xff]
    %v4467 = vld [vmem:[#allocation2 + $0x1a90] sm:$0xff]
    %v4468 = vld [vmem:[#allocation2 + $0x1a98] sm:$0xff]
    %v4469 = vld [vmem:[#allocation2 + $0x1aa0] sm:$0xff]
    %v4470 = vld [vmem:[#allocation2 + $0x1aa8] sm:$0xff]
    %v4471 = vld [vmem:[#allocation2 + $0x1ab0] sm:$0xff]
    %v4472 = vld [vmem:[#allocation2 + $0x1ab8] sm:$0xff]
    %v4473 = vld [vmem:[#allocation2 + $0x1ac0] sm:$0xff]
    %v4474 = vld [vmem:[#allocation2 + $0x1ac8] sm:$0xff]
    %v4475 = vld [vmem:[#allocation2 + $0x1ad0] sm:$0xff]
    %v4476 = vld [vmem:[#allocation2 + $0x1ad8] sm:$0xff]
    %v4477 = vld [vmem:[#allocation2 + $0x1ae0] sm:$0xff]
    %v4478 = vld [vmem:[#allocation2 + $0x1ae8] sm:$0xff]
    %v4479 = vld [vmem:[#allocation2 + $0x1af0] sm:$0xff]
    %v4480 = vld [vmem:[#allocation2 + $0x1af8] sm:$0xff]
    %v4481 = vld [vmem:[#allocation2 + $0x1b00] sm:$0xff]
    %v4482 = vld [vmem:[#allocation2 + $0x1b08] sm:$0xff]
    %v4483 = vld [vmem:[#allocation2 + $0x1b10] sm:$0xff]
    %v4484 = vld [vmem:[#allocation2 + $0x1b18] sm:$0xff]
    %v4485 = vld [vmem:[#allocation2 + $0x1b20] sm:$0xff]
    %v4486 = vld [vmem:[#allocation2 + $0x1b28] sm:$0xff]
    %v4487 = vld [vmem:[#allocation2 + $0x1b30] sm:$0xff]
    %v4488 = vld [vmem:[#allocation2 + $0x1b38] sm:$0xff]
    %v4489 = vld [vmem:[#allocation2 + $0x1b40] sm:$0xff]
    %v4490 = vld [vmem:[#allocation2 + $0x1b48] sm:$0xff]
    %v4491 = vld [vmem:[#allocation2 + $0x1b50] sm:$0xff]
    %v4492 = vld [vmem:[#allocation2 + $0x1b58] sm:$0xff]
    %v4493 = vld [vmem:[#allocation2 + $0x1b60] sm:$0xff]
    %v4494 = vld [vmem:[#allocation2 + $0x1b68] sm:$0xff]
    %v4495 = vld [vmem:[#allocation2 + $0x1b70] sm:$0xff]
    %v4496 = vld [vmem:[#allocation2 + $0x1b78] sm:$0xff]
    %v4497 = vld [vmem:[#allocation2 + $0x1b80] sm:$0xff]
    %v4498 = vld [vmem:[#allocation2 + $0x1b88] sm:$0xff]
    %v4499 = vld [vmem:[#allocation2 + $0x1b90] sm:$0xff]
    %v4500 = vld [vmem:[#allocation2 + $0x1b98] sm:$0xff]
    %v4501 = vld [vmem:[#allocation2 + $0x1ba0] sm:$0xff]
    %v4502 = vld [vmem:[#allocation2 + $0x1ba8] sm:$0xff]
    %v4503 = vld [vmem:[#allocation2 + $0x1bb0] sm:$0xff]
    %v4504 = vld [vmem:[#allocation2 + $0x1bb8] sm:$0xff]
    %v4505 = vld [vmem:[#allocation2 + $0x1bc0] sm:$0xff]
    %v4506 = vld [vmem:[#allocation2 + $0x1bc8] sm:$0xff]
    %v4507 = vld [vmem:[#allocation2 + $0x1bd0] sm:$0xff]
    %v4508 = vld [vmem:[#allocation2 + $0x1bd8] sm:$0xff]
    %v4509 = vld [vmem:[#allocation2 + $0x1be0] sm:$0xff]
    %v4510 = vld [vmem:[#allocation2 + $0x1be8] sm:$0xff]
    %v4511 = vld [vmem:[#allocation2 + $0x1bf0] sm:$0xff]
    %v4512 = vld [vmem:[#allocation2 + $0x1bf8] sm:$0xff]
    %v4513 = vld [vmem:[#allocation2 + $0x1c00] sm:$0xff]
    %v4514 = vld [vmem:[#allocation2 + $0x1c08] sm:$0xff]
    %v4515 = vld [vmem:[#allocation2 + $0x1c10] sm:$0xff]
    %v4516 = vld [vmem:[#allocation2 + $0x1c18] sm:$0xff]
    %v4517 = vld [vmem:[#allocation2 + $0x1c20] sm:$0xff]
    %v4518 = vld [vmem:[#allocation2 + $0x1c28] sm:$0xff]
    %v4519 = vld [vmem:[#allocation2 + $0x1c30] sm:$0xff]
    %v4520 = vld [vmem:[#allocation2 + $0x1c38] sm:$0xff]
    %v4521 = vld [vmem:[#allocation2 + $0x1c40] sm:$0xff]
    %v4522 = vld [vmem:[#allocation2 + $0x1c48] sm:$0xff]
    %v4523 = vld [vmem:[#allocation2 + $0x1c50] sm:$0xff]
    %v4524 = vld [vmem:[#allocation2 + $0x1c58] sm:$0xff]
    %v4525 = vld [vmem:[#allocation2 + $0x1c60] sm:$0xff]
    %v4526 = vld [vmem:[#allocation2 + $0x1c68] sm:$0xff]
    %v4527 = vld [vmem:[#allocation2 + $0x1c70] sm:$0xff]
    %v4528 = vld [vmem:[#allocation2 + $0x1c78] sm:$0xff]
    %v4529 = vld [vmem:[#allocation2 + $0x1c80] sm:$0xff]
    %v4530 = vld [vmem:[#allocation2 + $0x1c88] sm:$0xff]
    %v4531 = vld [vmem:[#allocation2 + $0x1c90] sm:$0xff]
    %v4532 = vld [vmem:[#allocation2 + $0x1c98] sm:$0xff]
    %v4533 = vld [vmem:[#allocation2 + $0x1ca0] sm:$0xff]
    %v4534 = vld [vmem:[#allocation2 + $0x1ca8] sm:$0xff]
    %v4535 = vld [vmem:[#allocation2 + $0x1cb0] sm:$0xff]
    %v4536 = vld [vmem:[#allocation2 + $0x1cb8] sm:$0xff]
    %v4537 = vld [vmem:[#allocation2 + $0x1cc0] sm:$0xff]
    %v4538 = vld [vmem:[#allocation2 + $0x1cc8] sm:$0xff]
    %v4539 = vld [vmem:[#allocation2 + $0x1cd0] sm:$0xff]
    %v4540 = vld [vmem:[#allocation2 + $0x1cd8] sm:$0xff]
    %v4541 = vld [vmem:[#allocation2 + $0x1ce0] sm:$0xff]
    %v4542 = vld [vmem:[#allocation2 + $0x1ce8] sm:$0xff]
    %v4543 = vld [vmem:[#allocation2 + $0x1cf0] sm:$0xff]
    %v4544 = vld [vmem:[#allocation2 + $0x1cf8] sm:$0xff]
    %v4545 = vld [vmem:[#allocation2 + $0x1d00] sm:$0xff]
    %v4546 = vld [vmem:[#allocation2 + $0x1d08] sm:$0xff]
    %v4547 = vld [vmem:[#allocation2 + $0x1d10] sm:$0xff]
    %v4548 = vld [vmem:[#allocation2 + $0x1d18] sm:$0xff]
    %v4549 = vld [vmem:[#allocation2 + $0x1d20] sm:$0xff]
    %v4550 = vld [vmem:[#allocation2 + $0x1d28] sm:$0xff]
    %v4551 = vld [vmem:[#allocation2 + $0x1d30] sm:$0xff]
    %v4552 = vld [vmem:[#allocation2 + $0x1d38] sm:$0xff]
    %v4553 = vld [vmem:[#allocation2 + $0x1d40] sm:$0xff]
    %v4554 = vld [vmem:[#allocation2 + $0x1d48] sm:$0xff]
    %v4555 = vld [vmem:[#allocation2 + $0x1d50] sm:$0xff]
    %v4556 = vld [vmem:[#allocation2 + $0x1d58] sm:$0xff]
    %v4557 = vld [vmem:[#allocation2 + $0x1d60] sm:$0xff]
    %v4558 = vld [vmem:[#allocation2 + $0x1d68] sm:$0xff]
    %v4559 = vld [vmem:[#allocation2 + $0x1d70] sm:$0xff]
    %v4560 = vld [vmem:[#allocation2 + $0x1d78] sm:$0xff]
    %v4561 = vld [vmem:[#allocation2 + $0x1d80] sm:$0xff]
    %v4562 = vld [vmem:[#allocation2 + $0x1d88] sm:$0xff]
    %v4563 = vld [vmem:[#allocation2 + $0x1d90] sm:$0xff]
    %v4564 = vld [vmem:[#allocation2 + $0x1d98] sm:$0xff]
    %v4565 = vld [vmem:[#allocation2 + $0x1da0] sm:$0xff]
    %v4566 = vld [vmem:[#allocation2 + $0x1da8] sm:$0xff]
    %v4567 = vld [vmem:[#allocation2 + $0x1db0] sm:$0xff]
    %v4568 = vld [vmem:[#allocation2 + $0x1db8] sm:$0xff]
    %v4569 = vld [vmem:[#allocation2 + $0x1dc0] sm:$0xff]
    %v4570 = vld [vmem:[#allocation2 + $0x1dc8] sm:$0xff]
    %v4571 = vld [vmem:[#allocation2 + $0x1dd0] sm:$0xff]
    %v4572 = vld [vmem:[#allocation2 + $0x1dd8] sm:$0xff]
    %v4573 = vld [vmem:[#allocation2 + $0x1de0] sm:$0xff]
    %v4574 = vld [vmem:[#allocation2 + $0x1de8] sm:$0xff]
    %v4575 = vld [vmem:[#allocation2 + $0x1df0] sm:$0xff]
    %v4576 = vld [vmem:[#allocation2 + $0x1df8] sm:$0xff]
    %v4577 = vld [vmem:[#allocation2 + $0x1e00] sm:$0xff]
    %v4578 = vld [vmem:[#allocation2 + $0x1e08] sm:$0xff]
    %v4579 = vld [vmem:[#allocation2 + $0x1e10] sm:$0xff]
    %v4580 = vld [vmem:[#allocation2 + $0x1e18] sm:$0xff]
    %v4581 = vld [vmem:[#allocation2 + $0x1e20] sm:$0xff]
    %v4582 = vld [vmem:[#allocation2 + $0x1e28] sm:$0xff]
    %v4583 = vld [vmem:[#allocation2 + $0x1e30] sm:$0xff]
    %v4584 = vld [vmem:[#allocation2 + $0x1e38] sm:$0xff]
    %v4585 = vld [vmem:[#allocation2 + $0x1e40] sm:$0xff]
    %v4586 = vld [vmem:[#allocation2 + $0x1e48] sm:$0xff]
    %v4587 = vld [vmem:[#allocation2 + $0x1e50] sm:$0xff]
    %v4588 = vld [vmem:[#allocation2 + $0x1e58] sm:$0xff]
    %v4589 = vld [vmem:[#allocation2 + $0x1e60] sm:$0xff]
    %v4590 = vld [vmem:[#allocation2 + $0x1e68] sm:$0xff]
    %v4591 = vld [vmem:[#allocation2 + $0x1e70] sm:$0xff]
    %v4592 = vld [vmem:[#allocation2 + $0x1e78] sm:$0xff]
    %v4593 = vld [vmem:[#allocation2 + $0x1e80] sm:$0xff]
    %v4594 = vld [vmem:[#allocation2 + $0x1e88] sm:$0xff]
    %v4595 = vld [vmem:[#allocation2 + $0x1e90] sm:$0xff]
    %v4596 = vld [vmem:[#allocation2 + $0x1e98] sm:$0xff]
    %v4597 = vld [vmem:[#allocation2 + $0x1ea0] sm:$0xff]
    %v4598 = vld [vmem:[#allocation2 + $0x1ea8] sm:$0xff]
    %v4599 = vld [vmem:[#allocation2 + $0x1eb0] sm:$0xff]
    %v4600 = vld [vmem:[#allocation2 + $0x1eb8] sm:$0xff]
    %v4601 = vld [vmem:[#allocation2 + $0x1ec0] sm:$0xff]
    %v4602 = vld [vmem:[#allocation2 + $0x1ec8] sm:$0xff]
    %v4603 = vld [vmem:[#allocation2 + $0x1ed0] sm:$0xff]
    %v4604 = vld [vmem:[#allocation2 + $0x1ed8] sm:$0xff]
    %v4605 = vld [vmem:[#allocation2 + $0x1ee0] sm:$0xff]
    %v4606 = vld [vmem:[#allocation2 + $0x1ee8] sm:$0xff]
    %v4607 = vld [vmem:[#allocation2 + $0x1ef0] sm:$0xff]
    %v4608 = vld [vmem:[#allocation2 + $0x1ef8] sm:$0xff]
    %v4609 = vld [vmem:[#allocation2 + $0x1f00] sm:$0xff]
    %v4610 = vld [vmem:[#allocation2 + $0x1f08] sm:$0xff]
    %v4611 = vld [vmem:[#allocation2 + $0x1f10] sm:$0xff]
    %v4612 = vld [vmem:[#allocation2 + $0x1f18] sm:$0xff]
    %v4613 = vld [vmem:[#allocation2 + $0x1f20] sm:$0xff]
    %v4614 = vld [vmem:[#allocation2 + $0x1f28] sm:$0xff]
    %v4615 = vld [vmem:[#allocation2 + $0x1f30] sm:$0xff]
    %v4616 = vld [vmem:[#allocation2 + $0x1f38] sm:$0xff]
    %v4617 = vld [vmem:[#allocation2 + $0x1f40] sm:$0xff]
    %v4618 = vld [vmem:[#allocation2 + $0x1f48] sm:$0xff]
    %v4619 = vld [vmem:[#allocation2 + $0x1f50] sm:$0xff]
    %v4620 = vld [vmem:[#allocation2 + $0x1f58] sm:$0xff]
    %v4621 = vld [vmem:[#allocation2 + $0x1f60] sm:$0xff]
    %v4622 = vld [vmem:[#allocation2 + $0x1f68] sm:$0xff]
    %v4623 = vld [vmem:[#allocation2 + $0x1f70] sm:$0xff]
    %v4624 = vld [vmem:[#allocation2 + $0x1f78] sm:$0xff]
    %v4625 = vld [vmem:[#allocation2 + $0x1f80] sm:$0xff]
    %v4626 = vld [vmem:[#allocation2 + $0x1f88] sm:$0xff]
    %v4627 = vld [vmem:[#allocation2 + $0x1f90] sm:$0xff]
    %v4628 = vld [vmem:[#allocation2 + $0x1f98] sm:$0xff]
    %v4629 = vld [vmem:[#allocation2 + $0x1fa0] sm:$0xff]
    %v4630 = vld [vmem:[#allocation2 + $0x1fa8] sm:$0xff]
    %v4631 = vld [vmem:[#allocation2 + $0x1fb0] sm:$0xff]
    %v4632 = vld [vmem:[#allocation2 + $0x1fb8] sm:$0xff]
    %v4633 = vld [vmem:[#allocation2 + $0x1fc0] sm:$0xff]
    %v4634 = vld [vmem:[#allocation2 + $0x1fc8] sm:$0xff]
    %v4635 = vld [vmem:[#allocation2 + $0x1fd0] sm:$0xff]
    %v4636 = vld [vmem:[#allocation2 + $0x1fd8] sm:$0xff]
    %v4637 = vld [vmem:[#allocation2 + $0x1fe0] sm:$0xff]
    %v4638 = vld [vmem:[#allocation2 + $0x1fe8] sm:$0xff]
    %v4639 = vld [vmem:[#allocation2 + $0x1ff0] sm:$0xff]
    %v4640 = vld [vmem:[#allocation2 + $0x1ff8] sm:$0xff]
    %v4641 = vld [vmem:[#allocation22] sm:$0xff]
    %v4643 = vperm.slane %v4641, 0
    %v4644 = vperm.slane %v4641, 1
    %v4645 = vperm.slane %v4641, 2
    %v4646 = vperm.slane %v4641, 3
    %v4647 = vperm.slane %v4641, 4
    %v4648 = vperm.slane %v4641, 5
    %v4649 = vperm.slane %v4641, 6
    %v4650 = vperm.slane %v4641, 7
    %v4667 = vunpack.c.l.b16 %v1077
    %v4668 = vunpack.c.h.b16 %v1077
    %v4669 = vunpack.c.l.b16 %v1078
    %v4670 = vunpack.c.h.b16 %v1078
    %v4671 = vunpack.c.l.b16 %v1079
    %v4672 = vunpack.c.h.b16 %v1079
    %v4673 = vunpack.c.l.b16 %v1080
    %v4674 = vunpack.c.h.b16 %v1080
    %v4675 = vunpack.c.l.b16 %v1081
    %v4676 = vunpack.c.h.b16 %v1081
    %v4677 = vunpack.c.l.b16 %v1082
    %v4678 = vunpack.c.h.b16 %v1082
    %v4679 = vunpack.c.l.b16 %v1083
    %v4680 = vunpack.c.h.b16 %v1083
    %v4681 = vunpack.c.l.b16 %v1084
    %v4682 = vunpack.c.h.b16 %v1084
    %v4683 = vpack.c.b16 %v4667, %v4667
    %v4684 = vpack.c.b16 %v4668, %v4668
    %v4685 = vpack.c.b16 %v4669, %v4669
    %v4686 = vpack.c.b16 %v4670, %v4670
    %v4687 = vpack.c.b16 %v4671, %v4671
    %v4688 = vpack.c.b16 %v4672, %v4672
    %v4689 = vpack.c.b16 %v4673, %v4673
    %v4690 = vpack.c.b16 %v4674, %v4674
    %v4691 = vpack.c.b16 %v4675, %v4675
    %v4692 = vpack.c.b16 %v4676, %v4676
    %v4693 = vpack.c.b16 %v4677, %v4677
    %v4694 = vpack.c.b16 %v4678, %v4678
    %v4695 = vpack.c.b16 %v4679, %v4679
    %v4696 = vpack.c.b16 %v4680, %v4680
    %v4697 = vpack.c.b16 %v4681, %v4681
    %v4698 = vpack.c.b16 %v4682, %v4682
    %v5739 = vunpack.c.l.b16 %v3617
    %v5740 = vunpack.c.h.b16 %v3617
    %v5741 = vunpack.c.l.b16 %v3618
    %v5742 = vunpack.c.h.b16 %v3618
    %v5743 = vunpack.c.l.b16 %v3619
    %v5744 = vunpack.c.h.b16 %v3619
    %v5745 = vunpack.c.l.b16 %v3620
    %v5746 = vunpack.c.h.b16 %v3620
    %v5747 = vunpack.c.l.b16 %v3621
    %v5748 = vunpack.c.h.b16 %v3621
    %v5749 = vunpack.c.l.b16 %v3622
    %v5750 = vunpack.c.h.b16 %v3622
    %v5751 = vunpack.c.l.b16 %v3623
    %v5752 = vunpack.c.h.b16 %v3623
    %v5753 = vunpack.c.l.b16 %v3624
    %v5754 = vunpack.c.h.b16 %v3624
    %v5755 = vunpack.c.l.b16 %v3625
    %v5756 = vunpack.c.h.b16 %v3625
    %v5757 = vunpack.c.l.b16 %v3626
    %v5758 = vunpack.c.h.b16 %v3626
    %v5759 = vunpack.c.l.b16 %v3627
    %v5760 = vunpack.c.h.b16 %v3627
    %v5761 = vunpack.c.l.b16 %v3628
    %v5762 = vunpack.c.h.b16 %v3628
    %v5763 = vunpack.c.l.b16 %v3629
    %v5764 = vunpack.c.h.b16 %v3629
    %v5765 = vunpack.c.l.b16 %v3630
    %v5766 = vunpack.c.h.b16 %v3630
    %v5767 = vunpack.c.l.b16 %v3631
    %v5768 = vunpack.c.h.b16 %v3631
    %v5769 = vunpack.c.l.b16 %v3632
    %v5770 = vunpack.c.h.b16 %v3632
    %v5771 = vunpack.c.l.b16 %v3633
    %v5772 = vunpack.c.h.b16 %v3633
    %v5773 = vunpack.c.l.b16 %v3634
    %v5774 = vunpack.c.h.b16 %v3634
    %v5775 = vunpack.c.l.b16 %v3635
    %v5776 = vunpack.c.h.b16 %v3635
    %v5777 = vunpack.c.l.b16 %v3636
    %v5778 = vunpack.c.h.b16 %v3636
    %v5779 = vunpack.c.l.b16 %v3637
    %v5780 = vunpack.c.h.b16 %v3637
    %v5781 = vunpack.c.l.b16 %v3638
    %v5782 = vunpack.c.h.b16 %v3638
    %v5783 = vunpack.c.l.b16 %v3639
    %v5784 = vunpack.c.h.b16 %v3639
    %v5785 = vunpack.c.l.b16 %v3640
    %v5786 = vunpack.c.h.b16 %v3640
    %v5787 = vunpack.c.l.b16 %v3641
    %v5788 = vunpack.c.h.b16 %v3641
    %v5789 = vunpack.c.l.b16 %v3642
    %v5790 = vunpack.c.h.b16 %v3642
    %v5791 = vunpack.c.l.b16 %v3643
    %v5792 = vunpack.c.h.b16 %v3643
    %v5793 = vunpack.c.l.b16 %v3644
    %v5794 = vunpack.c.h.b16 %v3644
    %v5795 = vunpack.c.l.b16 %v3645
    %v5796 = vunpack.c.h.b16 %v3645
    %v5797 = vunpack.c.l.b16 %v3646
    %v5798 = vunpack.c.h.b16 %v3646
    %v5799 = vunpack.c.l.b16 %v3647
    %v5800 = vunpack.c.h.b16 %v3647
    %v5801 = vunpack.c.l.b16 %v3648
    %v5802 = vunpack.c.h.b16 %v3648
    %v5803 = vunpack.c.l.b16 %v3649
    %v5804 = vunpack.c.h.b16 %v3649
    %v5805 = vunpack.c.l.b16 %v3650
    %v5806 = vunpack.c.h.b16 %v3650
    %v5807 = vunpack.c.l.b16 %v3651
    %v5808 = vunpack.c.h.b16 %v3651
    %v5809 = vunpack.c.l.b16 %v3652
    %v5810 = vunpack.c.h.b16 %v3652
    %v5811 = vunpack.c.l.b16 %v3653
    %v5812 = vunpack.c.h.b16 %v3653
    %v5813 = vunpack.c.l.b16 %v3654
    %v5814 = vunpack.c.h.b16 %v3654
    %v5815 = vunpack.c.l.b16 %v3655
    %v5816 = vunpack.c.h.b16 %v3655
    %v5817 = vunpack.c.l.b16 %v3656
    %v5818 = vunpack.c.h.b16 %v3656
    %v5819 = vunpack.c.l.b16 %v3657
    %v5820 = vunpack.c.h.b16 %v3657
    %v5821 = vunpack.c.l.b16 %v3658
    %v5822 = vunpack.c.h.b16 %v3658
    %v5823 = vunpack.c.l.b16 %v3659
    %v5824 = vunpack.c.h.b16 %v3659
    %v5825 = vunpack.c.l.b16 %v3660
    %v5826 = vunpack.c.h.b16 %v3660
    %v5827 = vunpack.c.l.b16 %v3661
    %v5828 = vunpack.c.h.b16 %v3661
    %v5829 = vunpack.c.l.b16 %v3662
    %v5830 = vunpack.c.h.b16 %v3662
    %v5831 = vunpack.c.l.b16 %v3663
    %v5832 = vunpack.c.h.b16 %v3663
    %v5833 = vunpack.c.l.b16 %v3664
    %v5834 = vunpack.c.h.b16 %v3664
    %v5835 = vunpack.c.l.b16 %v3665
    %v5836 = vunpack.c.h.b16 %v3665
    %v5837 = vunpack.c.l.b16 %v3666
    %v5838 = vunpack.c.h.b16 %v3666
    %v5839 = vunpack.c.l.b16 %v3667
    %v5840 = vunpack.c.h.b16 %v3667
    %v5841 = vunpack.c.l.b16 %v3668
    %v5842 = vunpack.c.h.b16 %v3668
    %v5843 = vunpack.c.l.b16 %v3669
    %v5844 = vunpack.c.h.b16 %v3669
    %v5845 = vunpack.c.l.b16 %v3670
    %v5846 = vunpack.c.h.b16 %v3670
    %v5847 = vunpack.c.l.b16 %v3671
    %v5848 = vunpack.c.h.b16 %v3671
    %v5849 = vunpack.c.l.b16 %v3672
    %v5850 = vunpack.c.h.b16 %v3672
    %v5851 = vunpack.c.l.b16 %v3673
    %v5852 = vunpack.c.h.b16 %v3673
    %v5853 = vunpack.c.l.b16 %v3674
    %v5854 = vunpack.c.h.b16 %v3674
    %v5855 = vunpack.c.l.b16 %v3675
    %v5856 = vunpack.c.h.b16 %v3675
    %v5857 = vunpack.c.l.b16 %v3676
    %v5858 = vunpack.c.h.b16 %v3676
    %v5859 = vunpack.c.l.b16 %v3677
    %v5860 = vunpack.c.h.b16 %v3677
    %v5861 = vunpack.c.l.b16 %v3678
    %v5862 = vunpack.c.h.b16 %v3678
    %v5863 = vunpack.c.l.b16 %v3679
    %v5864 = vunpack.c.h.b16 %v3679
    %v5865 = vunpack.c.l.b16 %v3680
    %v5866 = vunpack.c.h.b16 %v3680
    %v5867 = vunpack.c.l.b16 %v3681
    %v5868 = vunpack.c.h.b16 %v3681
    %v5869 = vunpack.c.l.b16 %v3682
    %v5870 = vunpack.c.h.b16 %v3682
    %v5871 = vunpack.c.l.b16 %v3683
    %v5872 = vunpack.c.h.b16 %v3683
    %v5873 = vunpack.c.l.b16 %v3684
    %v5874 = vunpack.c.h.b16 %v3684
    %v5875 = vunpack.c.l.b16 %v3685
    %v5876 = vunpack.c.h.b16 %v3685
    %v5877 = vunpack.c.l.b16 %v3686
    %v5878 = vunpack.c.h.b16 %v3686
    %v5879 = vunpack.c.l.b16 %v3687
    %v5880 = vunpack.c.h.b16 %v3687
    %v5881 = vunpack.c.l.b16 %v3688
    %v5882 = vunpack.c.h.b16 %v3688
    %v5883 = vunpack.c.l.b16 %v3689
    %v5884 = vunpack.c.h.b16 %v3689
    %v5885 = vunpack.c.l.b16 %v3690
    %v5886 = vunpack.c.h.b16 %v3690
    %v5887 = vunpack.c.l.b16 %v3691
    %v5888 = vunpack.c.h.b16 %v3691
    %v5889 = vunpack.c.l.b16 %v3692
    %v5890 = vunpack.c.h.b16 %v3692
    %v5891 = vunpack.c.l.b16 %v3693
    %v5892 = vunpack.c.h.b16 %v3693
    %v5893 = vunpack.c.l.b16 %v3694
    %v5894 = vunpack.c.h.b16 %v3694
    %v5895 = vunpack.c.l.b16 %v3695
    %v5896 = vunpack.c.h.b16 %v3695
    %v5897 = vunpack.c.l.b16 %v3696
    %v5898 = vunpack.c.h.b16 %v3696
    %v5899 = vunpack.c.l.b16 %v3697
    %v5900 = vunpack.c.h.b16 %v3697
    %v5901 = vunpack.c.l.b16 %v3698
    %v5902 = vunpack.c.h.b16 %v3698
    %v5903 = vunpack.c.l.b16 %v3699
    %v5904 = vunpack.c.h.b16 %v3699
    %v5905 = vunpack.c.l.b16 %v3700
    %v5906 = vunpack.c.h.b16 %v3700
    %v5907 = vunpack.c.l.b16 %v3701
    %v5908 = vunpack.c.h.b16 %v3701
    %v5909 = vunpack.c.l.b16 %v3702
    %v5910 = vunpack.c.h.b16 %v3702
    %v5911 = vunpack.c.l.b16 %v3703
    %v5912 = vunpack.c.h.b16 %v3703
    %v5913 = vunpack.c.l.b16 %v3704
    %v5914 = vunpack.c.h.b16 %v3704
    %v5915 = vunpack.c.l.b16 %v3705
    %v5916 = vunpack.c.h.b16 %v3705
    %v5917 = vunpack.c.l.b16 %v3706
    %v5918 = vunpack.c.h.b16 %v3706
    %v5919 = vunpack.c.l.b16 %v3707
    %v5920 = vunpack.c.h.b16 %v3707
    %v5921 = vunpack.c.l.b16 %v3708
    %v5922 = vunpack.c.h.b16 %v3708
    %v5923 = vunpack.c.l.b16 %v3709
    %v5924 = vunpack.c.h.b16 %v3709
    %v5925 = vunpack.c.l.b16 %v3710
    %v5926 = vunpack.c.h.b16 %v3710
    %v5927 = vunpack.c.l.b16 %v3711
    %v5928 = vunpack.c.h.b16 %v3711
    %v5929 = vunpack.c.l.b16 %v3712
    %v5930 = vunpack.c.h.b16 %v3712
    %v5931 = vunpack.c.l.b16 %v3713
    %v5932 = vunpack.c.h.b16 %v3713
    %v5933 = vunpack.c.l.b16 %v3714
    %v5934 = vunpack.c.h.b16 %v3714
    %v5935 = vunpack.c.l.b16 %v3715
    %v5936 = vunpack.c.h.b16 %v3715
    %v5937 = vunpack.c.l.b16 %v3716
    %v5938 = vunpack.c.h.b16 %v3716
    %v5939 = vunpack.c.l.b16 %v3717
    %v5940 = vunpack.c.h.b16 %v3717
    %v5941 = vunpack.c.l.b16 %v3718
    %v5942 = vunpack.c.h.b16 %v3718
    %v5943 = vunpack.c.l.b16 %v3719
    %v5944 = vunpack.c.h.b16 %v3719
    %v5945 = vunpack.c.l.b16 %v3720
    %v5946 = vunpack.c.h.b16 %v3720
    %v5947 = vunpack.c.l.b16 %v3721
    %v5948 = vunpack.c.h.b16 %v3721
    %v5949 = vunpack.c.l.b16 %v3722
    %v5950 = vunpack.c.h.b16 %v3722
    %v5951 = vunpack.c.l.b16 %v3723
    %v5952 = vunpack.c.h.b16 %v3723
    %v5953 = vunpack.c.l.b16 %v3724
    %v5954 = vunpack.c.h.b16 %v3724
    %v5955 = vunpack.c.l.b16 %v3725
    %v5956 = vunpack.c.h.b16 %v3725
    %v5957 = vunpack.c.l.b16 %v3726
    %v5958 = vunpack.c.h.b16 %v3726
    %v5959 = vunpack.c.l.b16 %v3727
    %v5960 = vunpack.c.h.b16 %v3727
    %v5961 = vunpack.c.l.b16 %v3728
    %v5962 = vunpack.c.h.b16 %v3728
    %v5963 = vunpack.c.l.b16 %v3729
    %v5964 = vunpack.c.h.b16 %v3729
    %v5965 = vunpack.c.l.b16 %v3730
    %v5966 = vunpack.c.h.b16 %v3730
    %v5967 = vunpack.c.l.b16 %v3731
    %v5968 = vunpack.c.h.b16 %v3731
    %v5969 = vunpack.c.l.b16 %v3732
    %v5970 = vunpack.c.h.b16 %v3732
    %v5971 = vunpack.c.l.b16 %v3733
    %v5972 = vunpack.c.h.b16 %v3733
    %v5973 = vunpack.c.l.b16 %v3734
    %v5974 = vunpack.c.h.b16 %v3734
    %v5975 = vunpack.c.l.b16 %v3735
    %v5976 = vunpack.c.h.b16 %v3735
    %v5977 = vunpack.c.l.b16 %v3736
    %v5978 = vunpack.c.h.b16 %v3736
    %v5979 = vunpack.c.l.b16 %v3737
    %v5980 = vunpack.c.h.b16 %v3737
    %v5981 = vunpack.c.l.b16 %v3738
    %v5982 = vunpack.c.h.b16 %v3738
    %v5983 = vunpack.c.l.b16 %v3739
    %v5984 = vunpack.c.h.b16 %v3739
    %v5985 = vunpack.c.l.b16 %v3740
    %v5986 = vunpack.c.h.b16 %v3740
    %v5987 = vunpack.c.l.b16 %v3741
    %v5988 = vunpack.c.h.b16 %v3741
    %v5989 = vunpack.c.l.b16 %v3742
    %v5990 = vunpack.c.h.b16 %v3742
    %v5991 = vunpack.c.l.b16 %v3743
    %v5992 = vunpack.c.h.b16 %v3743
    %v5993 = vunpack.c.l.b16 %v3744
    %v5994 = vunpack.c.h.b16 %v3744
    %v5995 = vunpack.c.l.b16 %v3745
    %v5996 = vunpack.c.h.b16 %v3745
    %v5997 = vunpack.c.l.b16 %v3746
    %v5998 = vunpack.c.h.b16 %v3746
    %v5999 = vunpack.c.l.b16 %v3747
    %v6000 = vunpack.c.h.b16 %v3747
    %v6001 = vunpack.c.l.b16 %v3748
    %v6002 = vunpack.c.h.b16 %v3748
    %v6003 = vunpack.c.l.b16 %v3749
    %v6004 = vunpack.c.h.b16 %v3749
    %v6005 = vunpack.c.l.b16 %v3750
    %v6006 = vunpack.c.h.b16 %v3750
    %v6007 = vunpack.c.l.b16 %v3751
    %v6008 = vunpack.c.h.b16 %v3751
    %v6009 = vunpack.c.l.b16 %v3752
    %v6010 = vunpack.c.h.b16 %v3752
    %v6011 = vunpack.c.l.b16 %v3753
    %v6012 = vunpack.c.h.b16 %v3753
    %v6013 = vunpack.c.l.b16 %v3754
    %v6014 = vunpack.c.h.b16 %v3754
    %v6015 = vunpack.c.l.b16 %v3755
    %v6016 = vunpack.c.h.b16 %v3755
    %v6017 = vunpack.c.l.b16 %v3756
    %v6018 = vunpack.c.h.b16 %v3756
    %v6019 = vunpack.c.l.b16 %v3757
    %v6020 = vunpack.c.h.b16 %v3757
    %v6021 = vunpack.c.l.b16 %v3758
    %v6022 = vunpack.c.h.b16 %v3758
    %v6023 = vunpack.c.l.b16 %v3759
    %v6024 = vunpack.c.h.b16 %v3759
    %v6025 = vunpack.c.l.b16 %v3760
    %v6026 = vunpack.c.h.b16 %v3760
    %v6027 = vunpack.c.l.b16 %v3761
    %v6028 = vunpack.c.h.b16 %v3761
    %v6029 = vunpack.c.l.b16 %v3762
    %v6030 = vunpack.c.h.b16 %v3762
    %v6031 = vunpack.c.l.b16 %v3763
    %v6032 = vunpack.c.h.b16 %v3763
    %v6033 = vunpack.c.l.b16 %v3764
    %v6034 = vunpack.c.h.b16 %v3764
    %v6035 = vunpack.c.l.b16 %v3765
    %v6036 = vunpack.c.h.b16 %v3765
    %v6037 = vunpack.c.l.b16 %v3766
    %v6038 = vunpack.c.h.b16 %v3766
    %v6039 = vunpack.c.l.b16 %v3767
    %v6040 = vunpack.c.h.b16 %v3767
    %v6041 = vunpack.c.l.b16 %v3768
    %v6042 = vunpack.c.h.b16 %v3768
    %v6043 = vunpack.c.l.b16 %v3769
    %v6044 = vunpack.c.h.b16 %v3769
    %v6045 = vunpack.c.l.b16 %v3770
    %v6046 = vunpack.c.h.b16 %v3770
    %v6047 = vunpack.c.l.b16 %v3771
    %v6048 = vunpack.c.h.b16 %v3771
    %v6049 = vunpack.c.l.b16 %v3772
    %v6050 = vunpack.c.h.b16 %v3772
    %v6051 = vunpack.c.l.b16 %v3773
    %v6052 = vunpack.c.h.b16 %v3773
    %v6053 = vunpack.c.l.b16 %v3774
    %v6054 = vunpack.c.h.b16 %v3774
    %v6055 = vunpack.c.l.b16 %v3775
    %v6056 = vunpack.c.h.b16 %v3775
    %v6057 = vunpack.c.l.b16 %v3776
    %v6058 = vunpack.c.h.b16 %v3776
    %v6059 = vunpack.c.l.b16 %v3777
    %v6060 = vunpack.c.h.b16 %v3777
    %v6061 = vunpack.c.l.b16 %v3778
    %v6062 = vunpack.c.h.b16 %v3778
    %v6063 = vunpack.c.l.b16 %v3779
    %v6064 = vunpack.c.h.b16 %v3779
    %v6065 = vunpack.c.l.b16 %v3780
    %v6066 = vunpack.c.h.b16 %v3780
    %v6067 = vunpack.c.l.b16 %v3781
    %v6068 = vunpack.c.h.b16 %v3781
    %v6069 = vunpack.c.l.b16 %v3782
    %v6070 = vunpack.c.h.b16 %v3782
    %v6071 = vunpack.c.l.b16 %v3783
    %v6072 = vunpack.c.h.b16 %v3783
    %v6073 = vunpack.c.l.b16 %v3784
    %v6074 = vunpack.c.h.b16 %v3784
    %v6075 = vunpack.c.l.b16 %v3785
    %v6076 = vunpack.c.h.b16 %v3785
    %v6077 = vunpack.c.l.b16 %v3786
    %v6078 = vunpack.c.h.b16 %v3786
    %v6079 = vunpack.c.l.b16 %v3787
    %v6080 = vunpack.c.h.b16 %v3787
    %v6081 = vunpack.c.l.b16 %v3788
    %v6082 = vunpack.c.h.b16 %v3788
    %v6083 = vunpack.c.l.b16 %v3789
    %v6084 = vunpack.c.h.b16 %v3789
    %v6085 = vunpack.c.l.b16 %v3790
    %v6086 = vunpack.c.h.b16 %v3790
    %v6087 = vunpack.c.l.b16 %v3791
    %v6088 = vunpack.c.h.b16 %v3791
    %v6089 = vunpack.c.l.b16 %v3792
    %v6090 = vunpack.c.h.b16 %v3792
    %v6091 = vunpack.c.l.b16 %v3793
    %v6092 = vunpack.c.h.b16 %v3793
    %v6093 = vunpack.c.l.b16 %v3794
    %v6094 = vunpack.c.h.b16 %v3794
    %v6095 = vunpack.c.l.b16 %v3795
    %v6096 = vunpack.c.h.b16 %v3795
    %v6097 = vunpack.c.l.b16 %v3796
    %v6098 = vunpack.c.h.b16 %v3796
    %v6099 = vunpack.c.l.b16 %v3797
    %v6100 = vunpack.c.h.b16 %v3797
    %v6101 = vunpack.c.l.b16 %v3798
    %v6102 = vunpack.c.h.b16 %v3798
    %v6103 = vunpack.c.l.b16 %v3799
    %v6104 = vunpack.c.h.b16 %v3799
    %v6105 = vunpack.c.l.b16 %v3800
    %v6106 = vunpack.c.h.b16 %v3800
    %v6107 = vunpack.c.l.b16 %v3801
    %v6108 = vunpack.c.h.b16 %v3801
    %v6109 = vunpack.c.l.b16 %v3802
    %v6110 = vunpack.c.h.b16 %v3802
    %v6111 = vunpack.c.l.b16 %v3803
    %v6112 = vunpack.c.h.b16 %v3803
    %v6113 = vunpack.c.l.b16 %v3804
    %v6114 = vunpack.c.h.b16 %v3804
    %v6115 = vunpack.c.l.b16 %v3805
    %v6116 = vunpack.c.h.b16 %v3805
    %v6117 = vunpack.c.l.b16 %v3806
    %v6118 = vunpack.c.h.b16 %v3806
    %v6119 = vunpack.c.l.b16 %v3807
    %v6120 = vunpack.c.h.b16 %v3807
    %v6121 = vunpack.c.l.b16 %v3808
    %v6122 = vunpack.c.h.b16 %v3808
    %v6123 = vunpack.c.l.b16 %v3809
    %v6124 = vunpack.c.h.b16 %v3809
    %v6125 = vunpack.c.l.b16 %v3810
    %v6126 = vunpack.c.h.b16 %v3810
    %v6127 = vunpack.c.l.b16 %v3811
    %v6128 = vunpack.c.h.b16 %v3811
    %v6129 = vunpack.c.l.b16 %v3812
    %v6130 = vunpack.c.h.b16 %v3812
    %v6131 = vunpack.c.l.b16 %v3813
    %v6132 = vunpack.c.h.b16 %v3813
    %v6133 = vunpack.c.l.b16 %v3814
    %v6134 = vunpack.c.h.b16 %v3814
    %v6135 = vunpack.c.l.b16 %v3815
    %v6136 = vunpack.c.h.b16 %v3815
    %v6137 = vunpack.c.l.b16 %v3816
    %v6138 = vunpack.c.h.b16 %v3816
    %v6139 = vunpack.c.l.b16 %v3817
    %v6140 = vunpack.c.h.b16 %v3817
    %v6141 = vunpack.c.l.b16 %v3818
    %v6142 = vunpack.c.h.b16 %v3818
    %v6143 = vunpack.c.l.b16 %v3819
    %v6144 = vunpack.c.h.b16 %v3819
    %v6145 = vunpack.c.l.b16 %v3820
    %v6146 = vunpack.c.h.b16 %v3820
    %v6147 = vunpack.c.l.b16 %v3821
    %v6148 = vunpack.c.h.b16 %v3821
    %v6149 = vunpack.c.l.b16 %v3822
    %v6150 = vunpack.c.h.b16 %v3822
    %v6151 = vunpack.c.l.b16 %v3823
    %v6152 = vunpack.c.h.b16 %v3823
    %v6153 = vunpack.c.l.b16 %v3824
    %v6154 = vunpack.c.h.b16 %v3824
    %v6155 = vunpack.c.l.b16 %v3825
    %v6156 = vunpack.c.h.b16 %v3825
    %v6157 = vunpack.c.l.b16 %v3826
    %v6158 = vunpack.c.h.b16 %v3826
    %v6159 = vunpack.c.l.b16 %v3827
    %v6160 = vunpack.c.h.b16 %v3827
    %v6161 = vunpack.c.l.b16 %v3828
    %v6162 = vunpack.c.h.b16 %v3828
    %v6163 = vunpack.c.l.b16 %v3829
    %v6164 = vunpack.c.h.b16 %v3829
    %v6165 = vunpack.c.l.b16 %v3830
    %v6166 = vunpack.c.h.b16 %v3830
    %v6167 = vunpack.c.l.b16 %v3831
    %v6168 = vunpack.c.h.b16 %v3831
    %v6169 = vunpack.c.l.b16 %v3832
    %v6170 = vunpack.c.h.b16 %v3832
    %v6171 = vunpack.c.l.b16 %v3833
    %v6172 = vunpack.c.h.b16 %v3833
    %v6173 = vunpack.c.l.b16 %v3834
    %v6174 = vunpack.c.h.b16 %v3834
    %v6175 = vunpack.c.l.b16 %v3835
    %v6176 = vunpack.c.h.b16 %v3835
    %v6177 = vunpack.c.l.b16 %v3836
    %v6178 = vunpack.c.h.b16 %v3836
    %v6179 = vunpack.c.l.b16 %v3837
    %v6180 = vunpack.c.h.b16 %v3837
    %v6181 = vunpack.c.l.b16 %v3838
    %v6182 = vunpack.c.h.b16 %v3838
    %v6183 = vunpack.c.l.b16 %v3839
    %v6184 = vunpack.c.h.b16 %v3839
    %v6185 = vunpack.c.l.b16 %v3840
    %v6186 = vunpack.c.h.b16 %v3840
    %v6187 = vunpack.c.l.b16 %v3841
    %v6188 = vunpack.c.h.b16 %v3841
    %v6189 = vunpack.c.l.b16 %v3842
    %v6190 = vunpack.c.h.b16 %v3842
    %v6191 = vunpack.c.l.b16 %v3843
    %v6192 = vunpack.c.h.b16 %v3843
    %v6193 = vunpack.c.l.b16 %v3844
    %v6194 = vunpack.c.h.b16 %v3844
    %v6195 = vunpack.c.l.b16 %v3845
    %v6196 = vunpack.c.h.b16 %v3845
    %v6197 = vunpack.c.l.b16 %v3846
    %v6198 = vunpack.c.h.b16 %v3846
    %v6199 = vunpack.c.l.b16 %v3847
    %v6200 = vunpack.c.h.b16 %v3847
    %v6201 = vunpack.c.l.b16 %v3848
    %v6202 = vunpack.c.h.b16 %v3848
    %v6203 = vunpack.c.l.b16 %v3849
    %v6204 = vunpack.c.h.b16 %v3849
    %v6205 = vunpack.c.l.b16 %v3850
    %v6206 = vunpack.c.h.b16 %v3850
    %v6207 = vunpack.c.l.b16 %v3851
    %v6208 = vunpack.c.h.b16 %v3851
    %v6209 = vunpack.c.l.b16 %v3852
    %v6210 = vunpack.c.h.b16 %v3852
    %v6211 = vunpack.c.l.b16 %v3853
    %v6212 = vunpack.c.h.b16 %v3853
    %v6213 = vunpack.c.l.b16 %v3854
    %v6214 = vunpack.c.h.b16 %v3854
    %v6215 = vunpack.c.l.b16 %v3855
    %v6216 = vunpack.c.h.b16 %v3855
    %v6217 = vunpack.c.l.b16 %v3856
    %v6218 = vunpack.c.h.b16 %v3856
    %v6219 = vunpack.c.l.b16 %v3857
    %v6220 = vunpack.c.h.b16 %v3857
    %v6221 = vunpack.c.l.b16 %v3858
    %v6222 = vunpack.c.h.b16 %v3858
    %v6223 = vunpack.c.l.b16 %v3859
    %v6224 = vunpack.c.h.b16 %v3859
    %v6225 = vunpack.c.l.b16 %v3860
    %v6226 = vunpack.c.h.b16 %v3860
    %v6227 = vunpack.c.l.b16 %v3861
    %v6228 = vunpack.c.h.b16 %v3861
    %v6229 = vunpack.c.l.b16 %v3862
    %v6230 = vunpack.c.h.b16 %v3862
    %v6231 = vunpack.c.l.b16 %v3863
    %v6232 = vunpack.c.h.b16 %v3863
    %v6233 = vunpack.c.l.b16 %v3864
    %v6234 = vunpack.c.h.b16 %v3864
    %v6235 = vunpack.c.l.b16 %v3865
    %v6236 = vunpack.c.h.b16 %v3865
    %v6237 = vunpack.c.l.b16 %v3866
    %v6238 = vunpack.c.h.b16 %v3866
    %v6239 = vunpack.c.l.b16 %v3867
    %v6240 = vunpack.c.h.b16 %v3867
    %v6241 = vunpack.c.l.b16 %v3868
    %v6242 = vunpack.c.h.b16 %v3868
    %v6243 = vunpack.c.l.b16 %v3869
    %v6244 = vunpack.c.h.b16 %v3869
    %v6245 = vunpack.c.l.b16 %v3870
    %v6246 = vunpack.c.h.b16 %v3870
    %v6247 = vunpack.c.l.b16 %v3871
    %v6248 = vunpack.c.h.b16 %v3871
    %v6249 = vunpack.c.l.b16 %v3872
    %v6250 = vunpack.c.h.b16 %v3872
    %v6251 = vunpack.c.l.b16 %v3873
    %v6252 = vunpack.c.h.b16 %v3873
    %v6253 = vunpack.c.l.b16 %v3874
    %v6254 = vunpack.c.h.b16 %v3874
    %v6255 = vunpack.c.l.b16 %v3875
    %v6256 = vunpack.c.h.b16 %v3875
    %v6257 = vunpack.c.l.b16 %v3876
    %v6258 = vunpack.c.h.b16 %v3876
    %v6259 = vunpack.c.l.b16 %v3877
    %v6260 = vunpack.c.h.b16 %v3877
    %v6261 = vunpack.c.l.b16 %v3878
    %v6262 = vunpack.c.h.b16 %v3878
    %v6263 = vunpack.c.l.b16 %v3879
    %v6264 = vunpack.c.h.b16 %v3879
    %v6265 = vunpack.c.l.b16 %v3880
    %v6266 = vunpack.c.h.b16 %v3880
    %v6267 = vunpack.c.l.b16 %v3881
    %v6268 = vunpack.c.h.b16 %v3881
    %v6269 = vunpack.c.l.b16 %v3882
    %v6270 = vunpack.c.h.b16 %v3882
    %v6271 = vunpack.c.l.b16 %v3883
    %v6272 = vunpack.c.h.b16 %v3883
    %v6273 = vunpack.c.l.b16 %v3884
    %v6274 = vunpack.c.h.b16 %v3884
    %v6275 = vunpack.c.l.b16 %v3885
    %v6276 = vunpack.c.h.b16 %v3885
    %v6277 = vunpack.c.l.b16 %v3886
    %v6278 = vunpack.c.h.b16 %v3886
    %v6279 = vunpack.c.l.b16 %v3887
    %v6280 = vunpack.c.h.b16 %v3887
    %v6281 = vunpack.c.l.b16 %v3888
    %v6282 = vunpack.c.h.b16 %v3888
    %v6283 = vunpack.c.l.b16 %v3889
    %v6284 = vunpack.c.h.b16 %v3889
    %v6285 = vunpack.c.l.b16 %v3890
    %v6286 = vunpack.c.h.b16 %v3890
    %v6287 = vunpack.c.l.b16 %v3891
    %v6288 = vunpack.c.h.b16 %v3891
    %v6289 = vunpack.c.l.b16 %v3892
    %v6290 = vunpack.c.h.b16 %v3892
    %v6291 = vunpack.c.l.b16 %v3893
    %v6292 = vunpack.c.h.b16 %v3893
    %v6293 = vunpack.c.l.b16 %v3894
    %v6294 = vunpack.c.h.b16 %v3894
    %v6295 = vunpack.c.l.b16 %v3895
    %v6296 = vunpack.c.h.b16 %v3895
    %v6297 = vunpack.c.l.b16 %v3896
    %v6298 = vunpack.c.h.b16 %v3896
    %v6299 = vunpack.c.l.b16 %v3897
    %v6300 = vunpack.c.h.b16 %v3897
    %v6301 = vunpack.c.l.b16 %v3898
    %v6302 = vunpack.c.h.b16 %v3898
    %v6303 = vunpack.c.l.b16 %v3899
    %v6304 = vunpack.c.h.b16 %v3899
    %v6305 = vunpack.c.l.b16 %v3900
    %v6306 = vunpack.c.h.b16 %v3900
    %v6307 = vunpack.c.l.b16 %v3901
    %v6308 = vunpack.c.h.b16 %v3901
    %v6309 = vunpack.c.l.b16 %v3902
    %v6310 = vunpack.c.h.b16 %v3902
    %v6311 = vunpack.c.l.b16 %v3903
    %v6312 = vunpack.c.h.b16 %v3903
    %v6313 = vunpack.c.l.b16 %v3904
    %v6314 = vunpack.c.h.b16 %v3904
    %v6315 = vunpack.c.l.b16 %v3905
    %v6316 = vunpack.c.h.b16 %v3905
    %v6317 = vunpack.c.l.b16 %v3906
    %v6318 = vunpack.c.h.b16 %v3906
    %v6319 = vunpack.c.l.b16 %v3907
    %v6320 = vunpack.c.h.b16 %v3907
    %v6321 = vunpack.c.l.b16 %v3908
    %v6322 = vunpack.c.h.b16 %v3908
    %v6323 = vunpack.c.l.b16 %v3909
    %v6324 = vunpack.c.h.b16 %v3909
    %v6325 = vunpack.c.l.b16 %v3910
    %v6326 = vunpack.c.h.b16 %v3910
    %v6327 = vunpack.c.l.b16 %v3911
    %v6328 = vunpack.c.h.b16 %v3911
    %v6329 = vunpack.c.l.b16 %v3912
    %v6330 = vunpack.c.h.b16 %v3912
    %v6331 = vunpack.c.l.b16 %v3913
    %v6332 = vunpack.c.h.b16 %v3913
    %v6333 = vunpack.c.l.b16 %v3914
    %v6334 = vunpack.c.h.b16 %v3914
    %v6335 = vunpack.c.l.b16 %v3915
    %v6336 = vunpack.c.h.b16 %v3915
    %v6337 = vunpack.c.l.b16 %v3916
    %v6338 = vunpack.c.h.b16 %v3916
    %v6339 = vunpack.c.l.b16 %v3917
    %v6340 = vunpack.c.h.b16 %v3917
    %v6341 = vunpack.c.l.b16 %v3918
    %v6342 = vunpack.c.h.b16 %v3918
    %v6343 = vunpack.c.l.b16 %v3919
    %v6344 = vunpack.c.h.b16 %v3919
    %v6345 = vunpack.c.l.b16 %v3920
    %v6346 = vunpack.c.h.b16 %v3920
    %v6347 = vunpack.c.l.b16 %v3921
    %v6348 = vunpack.c.h.b16 %v3921
    %v6349 = vunpack.c.l.b16 %v3922
    %v6350 = vunpack.c.h.b16 %v3922
    %v6351 = vunpack.c.l.b16 %v3923
    %v6352 = vunpack.c.h.b16 %v3923
    %v6353 = vunpack.c.l.b16 %v3924
    %v6354 = vunpack.c.h.b16 %v3924
    %v6355 = vunpack.c.l.b16 %v3925
    %v6356 = vunpack.c.h.b16 %v3925
    %v6357 = vunpack.c.l.b16 %v3926
    %v6358 = vunpack.c.h.b16 %v3926
    %v6359 = vunpack.c.l.b16 %v3927
    %v6360 = vunpack.c.h.b16 %v3927
    %v6361 = vunpack.c.l.b16 %v3928
    %v6362 = vunpack.c.h.b16 %v3928
    %v6363 = vunpack.c.l.b16 %v3929
    %v6364 = vunpack.c.h.b16 %v3929
    %v6365 = vunpack.c.l.b16 %v3930
    %v6366 = vunpack.c.h.b16 %v3930
    %v6367 = vunpack.c.l.b16 %v3931
    %v6368 = vunpack.c.h.b16 %v3931
    %v6369 = vunpack.c.l.b16 %v3932
    %v6370 = vunpack.c.h.b16 %v3932
    %v6371 = vunpack.c.l.b16 %v3933
    %v6372 = vunpack.c.h.b16 %v3933
    %v6373 = vunpack.c.l.b16 %v3934
    %v6374 = vunpack.c.h.b16 %v3934
    %v6375 = vunpack.c.l.b16 %v3935
    %v6376 = vunpack.c.h.b16 %v3935
    %v6377 = vunpack.c.l.b16 %v3936
    %v6378 = vunpack.c.h.b16 %v3936
    %v6379 = vunpack.c.l.b16 %v3937
    %v6380 = vunpack.c.h.b16 %v3937
    %v6381 = vunpack.c.l.b16 %v3938
    %v6382 = vunpack.c.h.b16 %v3938
    %v6383 = vunpack.c.l.b16 %v3939
    %v6384 = vunpack.c.h.b16 %v3939
    %v6385 = vunpack.c.l.b16 %v3940
    %v6386 = vunpack.c.h.b16 %v3940
    %v6387 = vunpack.c.l.b16 %v3941
    %v6388 = vunpack.c.h.b16 %v3941
    %v6389 = vunpack.c.l.b16 %v3942
    %v6390 = vunpack.c.h.b16 %v3942
    %v6391 = vunpack.c.l.b16 %v3943
    %v6392 = vunpack.c.h.b16 %v3943
    %v6393 = vunpack.c.l.b16 %v3944
    %v6394 = vunpack.c.h.b16 %v3944
    %v6395 = vunpack.c.l.b16 %v3945
    %v6396 = vunpack.c.h.b16 %v3945
    %v6397 = vunpack.c.l.b16 %v3946
    %v6398 = vunpack.c.h.b16 %v3946
    %v6399 = vunpack.c.l.b16 %v3947
    %v6400 = vunpack.c.h.b16 %v3947
    %v6401 = vunpack.c.l.b16 %v3948
    %v6402 = vunpack.c.h.b16 %v3948
    %v6403 = vunpack.c.l.b16 %v3949
    %v6404 = vunpack.c.h.b16 %v3949
    %v6405 = vunpack.c.l.b16 %v3950
    %v6406 = vunpack.c.h.b16 %v3950
    %v6407 = vunpack.c.l.b16 %v3951
    %v6408 = vunpack.c.h.b16 %v3951
    %v6409 = vunpack.c.l.b16 %v3952
    %v6410 = vunpack.c.h.b16 %v3952
    %v6411 = vunpack.c.l.b16 %v3953
    %v6412 = vunpack.c.h.b16 %v3953
    %v6413 = vunpack.c.l.b16 %v3954
    %v6414 = vunpack.c.h.b16 %v3954
    %v6415 = vunpack.c.l.b16 %v3955
    %v6416 = vunpack.c.h.b16 %v3955
    %v6417 = vunpack.c.l.b16 %v3956
    %v6418 = vunpack.c.h.b16 %v3956
    %v6419 = vunpack.c.l.b16 %v3957
    %v6420 = vunpack.c.h.b16 %v3957
    %v6421 = vunpack.c.l.b16 %v3958
    %v6422 = vunpack.c.h.b16 %v3958
    %v6423 = vunpack.c.l.b16 %v3959
    %v6424 = vunpack.c.h.b16 %v3959
    %v6425 = vunpack.c.l.b16 %v3960
    %v6426 = vunpack.c.h.b16 %v3960
    %v6427 = vunpack.c.l.b16 %v3961
    %v6428 = vunpack.c.h.b16 %v3961
    %v6429 = vunpack.c.l.b16 %v3962
    %v6430 = vunpack.c.h.b16 %v3962
    %v6431 = vunpack.c.l.b16 %v3963
    %v6432 = vunpack.c.h.b16 %v3963
    %v6433 = vunpack.c.l.b16 %v3964
    %v6434 = vunpack.c.h.b16 %v3964
    %v6435 = vunpack.c.l.b16 %v3965
    %v6436 = vunpack.c.h.b16 %v3965
    %v6437 = vunpack.c.l.b16 %v3966
    %v6438 = vunpack.c.h.b16 %v3966
    %v6439 = vunpack.c.l.b16 %v3967
    %v6440 = vunpack.c.h.b16 %v3967
    %v6441 = vunpack.c.l.b16 %v3968
    %v6442 = vunpack.c.h.b16 %v3968
    %v6443 = vunpack.c.l.b16 %v3969
    %v6444 = vunpack.c.h.b16 %v3969
    %v6445 = vunpack.c.l.b16 %v3970
    %v6446 = vunpack.c.h.b16 %v3970
    %v6447 = vunpack.c.l.b16 %v3971
    %v6448 = vunpack.c.h.b16 %v3971
    %v6449 = vunpack.c.l.b16 %v3972
    %v6450 = vunpack.c.h.b16 %v3972
    %v6451 = vunpack.c.l.b16 %v3973
    %v6452 = vunpack.c.h.b16 %v3973
    %v6453 = vunpack.c.l.b16 %v3974
    %v6454 = vunpack.c.h.b16 %v3974
    %v6455 = vunpack.c.l.b16 %v3975
    %v6456 = vunpack.c.h.b16 %v3975
    %v6457 = vunpack.c.l.b16 %v3976
    %v6458 = vunpack.c.h.b16 %v3976
    %v6459 = vunpack.c.l.b16 %v3977
    %v6460 = vunpack.c.h.b16 %v3977
    %v6461 = vunpack.c.l.b16 %v3978
    %v6462 = vunpack.c.h.b16 %v3978
    %v6463 = vunpack.c.l.b16 %v3979
    %v6464 = vunpack.c.h.b16 %v3979
    %v6465 = vunpack.c.l.b16 %v3980
    %v6466 = vunpack.c.h.b16 %v3980
    %v6467 = vunpack.c.l.b16 %v3981
    %v6468 = vunpack.c.h.b16 %v3981
    %v6469 = vunpack.c.l.b16 %v3982
    %v6470 = vunpack.c.h.b16 %v3982
    %v6471 = vunpack.c.l.b16 %v3983
    %v6472 = vunpack.c.h.b16 %v3983
    %v6473 = vunpack.c.l.b16 %v3984
    %v6474 = vunpack.c.h.b16 %v3984
    %v6475 = vunpack.c.l.b16 %v3985
    %v6476 = vunpack.c.h.b16 %v3985
    %v6477 = vunpack.c.l.b16 %v3986
    %v6478 = vunpack.c.h.b16 %v3986
    %v6479 = vunpack.c.l.b16 %v3987
    %v6480 = vunpack.c.h.b16 %v3987
    %v6481 = vunpack.c.l.b16 %v3988
    %v6482 = vunpack.c.h.b16 %v3988
    %v6483 = vunpack.c.l.b16 %v3989
    %v6484 = vunpack.c.h.b16 %v3989
    %v6485 = vunpack.c.l.b16 %v3990
    %v6486 = vunpack.c.h.b16 %v3990
    %v6487 = vunpack.c.l.b16 %v3991
    %v6488 = vunpack.c.h.b16 %v3991
    %v6489 = vunpack.c.l.b16 %v3992
    %v6490 = vunpack.c.h.b16 %v3992
    %v6491 = vunpack.c.l.b16 %v3993
    %v6492 = vunpack.c.h.b16 %v3993
    %v6493 = vunpack.c.l.b16 %v3994
    %v6494 = vunpack.c.h.b16 %v3994
    %v6495 = vunpack.c.l.b16 %v3995
    %v6496 = vunpack.c.h.b16 %v3995
    %v6497 = vunpack.c.l.b16 %v3996
    %v6498 = vunpack.c.h.b16 %v3996
    %v6499 = vunpack.c.l.b16 %v3997
    %v6500 = vunpack.c.h.b16 %v3997
    %v6501 = vunpack.c.l.b16 %v3998
    %v6502 = vunpack.c.h.b16 %v3998
    %v6503 = vunpack.c.l.b16 %v3999
    %v6504 = vunpack.c.h.b16 %v3999
    %v6505 = vunpack.c.l.b16 %v4000
    %v6506 = vunpack.c.h.b16 %v4000
    %v6507 = vunpack.c.l.b16 %v4001
    %v6508 = vunpack.c.h.b16 %v4001
    %v6509 = vunpack.c.l.b16 %v4002
    %v6510 = vunpack.c.h.b16 %v4002
    %v6511 = vunpack.c.l.b16 %v4003
    %v6512 = vunpack.c.h.b16 %v4003
    %v6513 = vunpack.c.l.b16 %v4004
    %v6514 = vunpack.c.h.b16 %v4004
    %v6515 = vunpack.c.l.b16 %v4005
    %v6516 = vunpack.c.h.b16 %v4005
    %v6517 = vunpack.c.l.b16 %v4006
    %v6518 = vunpack.c.h.b16 %v4006
    %v6519 = vunpack.c.l.b16 %v4007
    %v6520 = vunpack.c.h.b16 %v4007
    %v6521 = vunpack.c.l.b16 %v4008
    %v6522 = vunpack.c.h.b16 %v4008
    %v6523 = vunpack.c.l.b16 %v4009
    %v6524 = vunpack.c.h.b16 %v4009
    %v6525 = vunpack.c.l.b16 %v4010
    %v6526 = vunpack.c.h.b16 %v4010
    %v6527 = vunpack.c.l.b16 %v4011
    %v6528 = vunpack.c.h.b16 %v4011
    %v6529 = vunpack.c.l.b16 %v4012
    %v6530 = vunpack.c.h.b16 %v4012
    %v6531 = vunpack.c.l.b16 %v4013
    %v6532 = vunpack.c.h.b16 %v4013
    %v6533 = vunpack.c.l.b16 %v4014
    %v6534 = vunpack.c.h.b16 %v4014
    %v6535 = vunpack.c.l.b16 %v4015
    %v6536 = vunpack.c.h.b16 %v4015
    %v6537 = vunpack.c.l.b16 %v4016
    %v6538 = vunpack.c.h.b16 %v4016
    %v6539 = vunpack.c.l.b16 %v4017
    %v6540 = vunpack.c.h.b16 %v4017
    %v6541 = vunpack.c.l.b16 %v4018
    %v6542 = vunpack.c.h.b16 %v4018
    %v6543 = vunpack.c.l.b16 %v4019
    %v6544 = vunpack.c.h.b16 %v4019
    %v6545 = vunpack.c.l.b16 %v4020
    %v6546 = vunpack.c.h.b16 %v4020
    %v6547 = vunpack.c.l.b16 %v4021
    %v6548 = vunpack.c.h.b16 %v4021
    %v6549 = vunpack.c.l.b16 %v4022
    %v6550 = vunpack.c.h.b16 %v4022
    %v6551 = vunpack.c.l.b16 %v4023
    %v6552 = vunpack.c.h.b16 %v4023
    %v6553 = vunpack.c.l.b16 %v4024
    %v6554 = vunpack.c.h.b16 %v4024
    %v6555 = vunpack.c.l.b16 %v4025
    %v6556 = vunpack.c.h.b16 %v4025
    %v6557 = vunpack.c.l.b16 %v4026
    %v6558 = vunpack.c.h.b16 %v4026
    %v6559 = vunpack.c.l.b16 %v4027
    %v6560 = vunpack.c.h.b16 %v4027
    %v6561 = vunpack.c.l.b16 %v4028
    %v6562 = vunpack.c.h.b16 %v4028
    %v6563 = vunpack.c.l.b16 %v4029
    %v6564 = vunpack.c.h.b16 %v4029
    %v6565 = vunpack.c.l.b16 %v4030
    %v6566 = vunpack.c.h.b16 %v4030
    %v6567 = vunpack.c.l.b16 %v4031
    %v6568 = vunpack.c.h.b16 %v4031
    %v6569 = vunpack.c.l.b16 %v4032
    %v6570 = vunpack.c.h.b16 %v4032
    %v6571 = vunpack.c.l.b16 %v4033
    %v6572 = vunpack.c.h.b16 %v4033
    %v6573 = vunpack.c.l.b16 %v4034
    %v6574 = vunpack.c.h.b16 %v4034
    %v6575 = vunpack.c.l.b16 %v4035
    %v6576 = vunpack.c.h.b16 %v4035
    %v6577 = vunpack.c.l.b16 %v4036
    %v6578 = vunpack.c.h.b16 %v4036
    %v6579 = vunpack.c.l.b16 %v4037
    %v6580 = vunpack.c.h.b16 %v4037
    %v6581 = vunpack.c.l.b16 %v4038
    %v6582 = vunpack.c.h.b16 %v4038
    %v6583 = vunpack.c.l.b16 %v4039
    %v6584 = vunpack.c.h.b16 %v4039
    %v6585 = vunpack.c.l.b16 %v4040
    %v6586 = vunpack.c.h.b16 %v4040
    %v6587 = vunpack.c.l.b16 %v4041
    %v6588 = vunpack.c.h.b16 %v4041
    %v6589 = vunpack.c.l.b16 %v4042
    %v6590 = vunpack.c.h.b16 %v4042
    %v6591 = vunpack.c.l.b16 %v4043
    %v6592 = vunpack.c.h.b16 %v4043
    %v6593 = vunpack.c.l.b16 %v4044
    %v6594 = vunpack.c.h.b16 %v4044
    %v6595 = vunpack.c.l.b16 %v4045
    %v6596 = vunpack.c.h.b16 %v4045
    %v6597 = vunpack.c.l.b16 %v4046
    %v6598 = vunpack.c.h.b16 %v4046
    %v6599 = vunpack.c.l.b16 %v4047
    %v6600 = vunpack.c.h.b16 %v4047
    %v6601 = vunpack.c.l.b16 %v4048
    %v6602 = vunpack.c.h.b16 %v4048
    %v6603 = vunpack.c.l.b16 %v4049
    %v6604 = vunpack.c.h.b16 %v4049
    %v6605 = vunpack.c.l.b16 %v4050
    %v6606 = vunpack.c.h.b16 %v4050
    %v6607 = vunpack.c.l.b16 %v4051
    %v6608 = vunpack.c.h.b16 %v4051
    %v6609 = vunpack.c.l.b16 %v4052
    %v6610 = vunpack.c.h.b16 %v4052
    %v6611 = vunpack.c.l.b16 %v4053
    %v6612 = vunpack.c.h.b16 %v4053
    %v6613 = vunpack.c.l.b16 %v4054
    %v6614 = vunpack.c.h.b16 %v4054
    %v6615 = vunpack.c.l.b16 %v4055
    %v6616 = vunpack.c.h.b16 %v4055
    %v6617 = vunpack.c.l.b16 %v4056
    %v6618 = vunpack.c.h.b16 %v4056
    %v6619 = vunpack.c.l.b16 %v4057
    %v6620 = vunpack.c.h.b16 %v4057
    %v6621 = vunpack.c.l.b16 %v4058
    %v6622 = vunpack.c.h.b16 %v4058
    %v6623 = vunpack.c.l.b16 %v4059
    %v6624 = vunpack.c.h.b16 %v4059
    %v6625 = vunpack.c.l.b16 %v4060
    %v6626 = vunpack.c.h.b16 %v4060
    %v6627 = vunpack.c.l.b16 %v4061
    %v6628 = vunpack.c.h.b16 %v4061
    %v6629 = vunpack.c.l.b16 %v4062
    %v6630 = vunpack.c.h.b16 %v4062
    %v6631 = vunpack.c.l.b16 %v4063
    %v6632 = vunpack.c.h.b16 %v4063
    %v6633 = vunpack.c.l.b16 %v4064
    %v6634 = vunpack.c.h.b16 %v4064
    %v6635 = vunpack.c.l.b16 %v4065
    %v6636 = vunpack.c.h.b16 %v4065
    %v6637 = vunpack.c.l.b16 %v4066
    %v6638 = vunpack.c.h.b16 %v4066
    %v6639 = vunpack.c.l.b16 %v4067
    %v6640 = vunpack.c.h.b16 %v4067
    %v6641 = vunpack.c.l.b16 %v4068
    %v6642 = vunpack.c.h.b16 %v4068
    %v6643 = vunpack.c.l.b16 %v4069
    %v6644 = vunpack.c.h.b16 %v4069
    %v6645 = vunpack.c.l.b16 %v4070
    %v6646 = vunpack.c.h.b16 %v4070
    %v6647 = vunpack.c.l.b16 %v4071
    %v6648 = vunpack.c.h.b16 %v4071
    %v6649 = vunpack.c.l.b16 %v4072
    %v6650 = vunpack.c.h.b16 %v4072
    %v6651 = vunpack.c.l.b16 %v4073
    %v6652 = vunpack.c.h.b16 %v4073
    %v6653 = vunpack.c.l.b16 %v4074
    %v6654 = vunpack.c.h.b16 %v4074
    %v6655 = vunpack.c.l.b16 %v4075
    %v6656 = vunpack.c.h.b16 %v4075
    %v6657 = vunpack.c.l.b16 %v4076
    %v6658 = vunpack.c.h.b16 %v4076
    %v6659 = vunpack.c.l.b16 %v4077
    %v6660 = vunpack.c.h.b16 %v4077
    %v6661 = vunpack.c.l.b16 %v4078
    %v6662 = vunpack.c.h.b16 %v4078
    %v6663 = vunpack.c.l.b16 %v4079
    %v6664 = vunpack.c.h.b16 %v4079
    %v6665 = vunpack.c.l.b16 %v4080
    %v6666 = vunpack.c.h.b16 %v4080
    %v6667 = vunpack.c.l.b16 %v4081
    %v6668 = vunpack.c.h.b16 %v4081
    %v6669 = vunpack.c.l.b16 %v4082
    %v6670 = vunpack.c.h.b16 %v4082
    %v6671 = vunpack.c.l.b16 %v4083
    %v6672 = vunpack.c.h.b16 %v4083
    %v6673 = vunpack.c.l.b16 %v4084
    %v6674 = vunpack.c.h.b16 %v4084
    %v6675 = vunpack.c.l.b16 %v4085
    %v6676 = vunpack.c.h.b16 %v4085
    %v6677 = vunpack.c.l.b16 %v4086
    %v6678 = vunpack.c.h.b16 %v4086
    %v6679 = vunpack.c.l.b16 %v4087
    %v6680 = vunpack.c.h.b16 %v4087
    %v6681 = vunpack.c.l.b16 %v4088
    %v6682 = vunpack.c.h.b16 %v4088
    %v6683 = vunpack.c.l.b16 %v4089
    %v6684 = vunpack.c.h.b16 %v4089
    %v6685 = vunpack.c.l.b16 %v4090
    %v6686 = vunpack.c.h.b16 %v4090
    %v6687 = vunpack.c.l.b16 %v4091
    %v6688 = vunpack.c.h.b16 %v4091
    %v6689 = vunpack.c.l.b16 %v4092
    %v6690 = vunpack.c.h.b16 %v4092
    %v6691 = vunpack.c.l.b16 %v4093
    %v6692 = vunpack.c.h.b16 %v4093
    %v6693 = vunpack.c.l.b16 %v4094
    %v6694 = vunpack.c.h.b16 %v4094
    %v6695 = vunpack.c.l.b16 %v4095
    %v6696 = vunpack.c.h.b16 %v4095
    %v6697 = vunpack.c.l.b16 %v4096
    %v6698 = vunpack.c.h.b16 %v4096
    %v6699 = vunpack.c.l.b16 %v4097
    %v6700 = vunpack.c.h.b16 %v4097
    %v6701 = vunpack.c.l.b16 %v4098
    %v6702 = vunpack.c.h.b16 %v4098
    %v6703 = vunpack.c.l.b16 %v4099
    %v6704 = vunpack.c.h.b16 %v4099
    %v6705 = vunpack.c.l.b16 %v4100
    %v6706 = vunpack.c.h.b16 %v4100
    %v6707 = vunpack.c.l.b16 %v4101
    %v6708 = vunpack.c.h.b16 %v4101
    %v6709 = vunpack.c.l.b16 %v4102
    %v6710 = vunpack.c.h.b16 %v4102
    %v6711 = vunpack.c.l.b16 %v4103
    %v6712 = vunpack.c.h.b16 %v4103
    %v6713 = vunpack.c.l.b16 %v4104
    %v6714 = vunpack.c.h.b16 %v4104
    %v6715 = vunpack.c.l.b16 %v4105
    %v6716 = vunpack.c.h.b16 %v4105
    %v6717 = vunpack.c.l.b16 %v4106
    %v6718 = vunpack.c.h.b16 %v4106
    %v6719 = vunpack.c.l.b16 %v4107
    %v6720 = vunpack.c.h.b16 %v4107
    %v6721 = vunpack.c.l.b16 %v4108
    %v6722 = vunpack.c.h.b16 %v4108
    %v6723 = vunpack.c.l.b16 %v4109
    %v6724 = vunpack.c.h.b16 %v4109
    %v6725 = vunpack.c.l.b16 %v4110
    %v6726 = vunpack.c.h.b16 %v4110
    %v6727 = vunpack.c.l.b16 %v4111
    %v6728 = vunpack.c.h.b16 %v4111
    %v6729 = vunpack.c.l.b16 %v4112
    %v6730 = vunpack.c.h.b16 %v4112
    %v6731 = vunpack.c.l.b16 %v4113
    %v6732 = vunpack.c.h.b16 %v4113
    %v6733 = vunpack.c.l.b16 %v4114
    %v6734 = vunpack.c.h.b16 %v4114
    %v6735 = vunpack.c.l.b16 %v4115
    %v6736 = vunpack.c.h.b16 %v4115
    %v6737 = vunpack.c.l.b16 %v4116
    %v6738 = vunpack.c.h.b16 %v4116
    %v6739 = vunpack.c.l.b16 %v4117
    %v6740 = vunpack.c.h.b16 %v4117
    %v6741 = vunpack.c.l.b16 %v4118
    %v6742 = vunpack.c.h.b16 %v4118
    %v6743 = vunpack.c.l.b16 %v4119
    %v6744 = vunpack.c.h.b16 %v4119
    %v6745 = vunpack.c.l.b16 %v4120
    %v6746 = vunpack.c.h.b16 %v4120
    %v6747 = vunpack.c.l.b16 %v4121
    %v6748 = vunpack.c.h.b16 %v4121
    %v6749 = vunpack.c.l.b16 %v4122
    %v6750 = vunpack.c.h.b16 %v4122
    %v6751 = vunpack.c.l.b16 %v4123
    %v6752 = vunpack.c.h.b16 %v4123
    %v6753 = vunpack.c.l.b16 %v4124
    %v6754 = vunpack.c.h.b16 %v4124
    %v6755 = vunpack.c.l.b16 %v4125
    %v6756 = vunpack.c.h.b16 %v4125
    %v6757 = vunpack.c.l.b16 %v4126
    %v6758 = vunpack.c.h.b16 %v4126
    %v6759 = vunpack.c.l.b16 %v4127
    %v6760 = vunpack.c.h.b16 %v4127
    %v6761 = vunpack.c.l.b16 %v4128
    %v6762 = vunpack.c.h.b16 %v4128
    %v6763 = vunpack.c.l.b16 %v4129
    %v6764 = vunpack.c.h.b16 %v4129
    %v6765 = vunpack.c.l.b16 %v4130
    %v6766 = vunpack.c.h.b16 %v4130
    %v6767 = vunpack.c.l.b16 %v4131
    %v6768 = vunpack.c.h.b16 %v4131
    %v6769 = vunpack.c.l.b16 %v4132
    %v6770 = vunpack.c.h.b16 %v4132
    %v6771 = vunpack.c.l.b16 %v4133
    %v6772 = vunpack.c.h.b16 %v4133
    %v6773 = vunpack.c.l.b16 %v4134
    %v6774 = vunpack.c.h.b16 %v4134
    %v6775 = vunpack.c.l.b16 %v4135
    %v6776 = vunpack.c.h.b16 %v4135
    %v6777 = vunpack.c.l.b16 %v4136
    %v6778 = vunpack.c.h.b16 %v4136
    %v6779 = vunpack.c.l.b16 %v4137
    %v6780 = vunpack.c.h.b16 %v4137
    %v6781 = vunpack.c.l.b16 %v4138
    %v6782 = vunpack.c.h.b16 %v4138
    %v6783 = vunpack.c.l.b16 %v4139
    %v6784 = vunpack.c.h.b16 %v4139
    %v6785 = vunpack.c.l.b16 %v4140
    %v6786 = vunpack.c.h.b16 %v4140
    %v6787 = vunpack.c.l.b16 %v4141
    %v6788 = vunpack.c.h.b16 %v4141
    %v6789 = vunpack.c.l.b16 %v4142
    %v6790 = vunpack.c.h.b16 %v4142
    %v6791 = vunpack.c.l.b16 %v4143
    %v6792 = vunpack.c.h.b16 %v4143
    %v6793 = vunpack.c.l.b16 %v4144
    %v6794 = vunpack.c.h.b16 %v4144
    %v6795 = vunpack.c.l.b16 %v4145
    %v6796 = vunpack.c.h.b16 %v4145
    %v6797 = vunpack.c.l.b16 %v4146
    %v6798 = vunpack.c.h.b16 %v4146
    %v6799 = vunpack.c.l.b16 %v4147
    %v6800 = vunpack.c.h.b16 %v4147
    %v6801 = vunpack.c.l.b16 %v4148
    %v6802 = vunpack.c.h.b16 %v4148
    %v6803 = vunpack.c.l.b16 %v4149
    %v6804 = vunpack.c.h.b16 %v4149
    %v6805 = vunpack.c.l.b16 %v4150
    %v6806 = vunpack.c.h.b16 %v4150
    %v6807 = vunpack.c.l.b16 %v4151
    %v6808 = vunpack.c.h.b16 %v4151
    %v6809 = vunpack.c.l.b16 %v4152
    %v6810 = vunpack.c.h.b16 %v4152
    %v6811 = vunpack.c.l.b16 %v4153
    %v6812 = vunpack.c.h.b16 %v4153
    %v6813 = vunpack.c.l.b16 %v4154
    %v6814 = vunpack.c.h.b16 %v4154
    %v6815 = vunpack.c.l.b16 %v4155
    %v6816 = vunpack.c.h.b16 %v4155
    %v6817 = vunpack.c.l.b16 %v4156
    %v6818 = vunpack.c.h.b16 %v4156
    %v6819 = vunpack.c.l.b16 %v4157
    %v6820 = vunpack.c.h.b16 %v4157
    %v6821 = vunpack.c.l.b16 %v4158
    %v6822 = vunpack.c.h.b16 %v4158
    %v6823 = vunpack.c.l.b16 %v4159
    %v6824 = vunpack.c.h.b16 %v4159
    %v6825 = vunpack.c.l.b16 %v4160
    %v6826 = vunpack.c.h.b16 %v4160
    %v6827 = vunpack.c.l.b16 %v4161
    %v6828 = vunpack.c.h.b16 %v4161
    %v6829 = vunpack.c.l.b16 %v4162
    %v6830 = vunpack.c.h.b16 %v4162
    %v6831 = vunpack.c.l.b16 %v4163
    %v6832 = vunpack.c.h.b16 %v4163
    %v6833 = vunpack.c.l.b16 %v4164
    %v6834 = vunpack.c.h.b16 %v4164
    %v6835 = vunpack.c.l.b16 %v4165
    %v6836 = vunpack.c.h.b16 %v4165
    %v6837 = vunpack.c.l.b16 %v4166
    %v6838 = vunpack.c.h.b16 %v4166
    %v6839 = vunpack.c.l.b16 %v4167
    %v6840 = vunpack.c.h.b16 %v4167
    %v6841 = vunpack.c.l.b16 %v4168
    %v6842 = vunpack.c.h.b16 %v4168
    %v6843 = vunpack.c.l.b16 %v4169
    %v6844 = vunpack.c.h.b16 %v4169
    %v6845 = vunpack.c.l.b16 %v4170
    %v6846 = vunpack.c.h.b16 %v4170
    %v6847 = vunpack.c.l.b16 %v4171
    %v6848 = vunpack.c.h.b16 %v4171
    %v6849 = vunpack.c.l.b16 %v4172
    %v6850 = vunpack.c.h.b16 %v4172
    %v6851 = vunpack.c.l.b16 %v4173
    %v6852 = vunpack.c.h.b16 %v4173
    %v6853 = vunpack.c.l.b16 %v4174
    %v6854 = vunpack.c.h.b16 %v4174
    %v6855 = vunpack.c.l.b16 %v4175
    %v6856 = vunpack.c.h.b16 %v4175
    %v6857 = vunpack.c.l.b16 %v4176
    %v6858 = vunpack.c.h.b16 %v4176
    %v6859 = vunpack.c.l.b16 %v4177
    %v6860 = vunpack.c.h.b16 %v4177
    %v6861 = vunpack.c.l.b16 %v4178
    %v6862 = vunpack.c.h.b16 %v4178
    %v6863 = vunpack.c.l.b16 %v4179
    %v6864 = vunpack.c.h.b16 %v4179
    %v6865 = vunpack.c.l.b16 %v4180
    %v6866 = vunpack.c.h.b16 %v4180
    %v6867 = vunpack.c.l.b16 %v4181
    %v6868 = vunpack.c.h.b16 %v4181
    %v6869 = vunpack.c.l.b16 %v4182
    %v6870 = vunpack.c.h.b16 %v4182
    %v6871 = vunpack.c.l.b16 %v4183
    %v6872 = vunpack.c.h.b16 %v4183
    %v6873 = vunpack.c.l.b16 %v4184
    %v6874 = vunpack.c.h.b16 %v4184
    %v6875 = vunpack.c.l.b16 %v4185
    %v6876 = vunpack.c.h.b16 %v4185
    %v6877 = vunpack.c.l.b16 %v4186
    %v6878 = vunpack.c.h.b16 %v4186
    %v6879 = vunpack.c.l.b16 %v4187
    %v6880 = vunpack.c.h.b16 %v4187
    %v6881 = vunpack.c.l.b16 %v4188
    %v6882 = vunpack.c.h.b16 %v4188
    %v6883 = vunpack.c.l.b16 %v4189
    %v6884 = vunpack.c.h.b16 %v4189
    %v6885 = vunpack.c.l.b16 %v4190
    %v6886 = vunpack.c.h.b16 %v4190
    %v6887 = vunpack.c.l.b16 %v4191
    %v6888 = vunpack.c.h.b16 %v4191
    %v6889 = vunpack.c.l.b16 %v4192
    %v6890 = vunpack.c.h.b16 %v4192
    %v6891 = vunpack.c.l.b16 %v4193
    %v6892 = vunpack.c.h.b16 %v4193
    %v6893 = vunpack.c.l.b16 %v4194
    %v6894 = vunpack.c.h.b16 %v4194
    %v6895 = vunpack.c.l.b16 %v4195
    %v6896 = vunpack.c.h.b16 %v4195
    %v6897 = vunpack.c.l.b16 %v4196
    %v6898 = vunpack.c.h.b16 %v4196
    %v6899 = vunpack.c.l.b16 %v4197
    %v6900 = vunpack.c.h.b16 %v4197
    %v6901 = vunpack.c.l.b16 %v4198
    %v6902 = vunpack.c.h.b16 %v4198
    %v6903 = vunpack.c.l.b16 %v4199
    %v6904 = vunpack.c.h.b16 %v4199
    %v6905 = vunpack.c.l.b16 %v4200
    %v6906 = vunpack.c.h.b16 %v4200
    %v6907 = vunpack.c.l.b16 %v4201
    %v6908 = vunpack.c.h.b16 %v4201
    %v6909 = vunpack.c.l.b16 %v4202
    %v6910 = vunpack.c.h.b16 %v4202
    %v6911 = vunpack.c.l.b16 %v4203
    %v6912 = vunpack.c.h.b16 %v4203
    %v6913 = vunpack.c.l.b16 %v4204
    %v6914 = vunpack.c.h.b16 %v4204
    %v6915 = vunpack.c.l.b16 %v4205
    %v6916 = vunpack.c.h.b16 %v4205
    %v6917 = vunpack.c.l.b16 %v4206
    %v6918 = vunpack.c.h.b16 %v4206
    %v6919 = vunpack.c.l.b16 %v4207
    %v6920 = vunpack.c.h.b16 %v4207
    %v6921 = vunpack.c.l.b16 %v4208
    %v6922 = vunpack.c.h.b16 %v4208
    %v6923 = vunpack.c.l.b16 %v4209
    %v6924 = vunpack.c.h.b16 %v4209
    %v6925 = vunpack.c.l.b16 %v4210
    %v6926 = vunpack.c.h.b16 %v4210
    %v6927 = vunpack.c.l.b16 %v4211
    %v6928 = vunpack.c.h.b16 %v4211
    %v6929 = vunpack.c.l.b16 %v4212
    %v6930 = vunpack.c.h.b16 %v4212
    %v6931 = vunpack.c.l.b16 %v4213
    %v6932 = vunpack.c.h.b16 %v4213
    %v6933 = vunpack.c.l.b16 %v4214
    %v6934 = vunpack.c.h.b16 %v4214
    %v6935 = vunpack.c.l.b16 %v4215
    %v6936 = vunpack.c.h.b16 %v4215
    %v6937 = vunpack.c.l.b16 %v4216
    %v6938 = vunpack.c.h.b16 %v4216
    %v6939 = vunpack.c.l.b16 %v4217
    %v6940 = vunpack.c.h.b16 %v4217
    %v6941 = vunpack.c.l.b16 %v4218
    %v6942 = vunpack.c.h.b16 %v4218
    %v6943 = vunpack.c.l.b16 %v4219
    %v6944 = vunpack.c.h.b16 %v4219
    %v6945 = vunpack.c.l.b16 %v4220
    %v6946 = vunpack.c.h.b16 %v4220
    %v6947 = vunpack.c.l.b16 %v4221
    %v6948 = vunpack.c.h.b16 %v4221
    %v6949 = vunpack.c.l.b16 %v4222
    %v6950 = vunpack.c.h.b16 %v4222
    %v6951 = vunpack.c.l.b16 %v4223
    %v6952 = vunpack.c.h.b16 %v4223
    %v6953 = vunpack.c.l.b16 %v4224
    %v6954 = vunpack.c.h.b16 %v4224
    %v6955 = vunpack.c.l.b16 %v4225
    %v6956 = vunpack.c.h.b16 %v4225
    %v6957 = vunpack.c.l.b16 %v4226
    %v6958 = vunpack.c.h.b16 %v4226
    %v6959 = vunpack.c.l.b16 %v4227
    %v6960 = vunpack.c.h.b16 %v4227
    %v6961 = vunpack.c.l.b16 %v4228
    %v6962 = vunpack.c.h.b16 %v4228
    %v6963 = vunpack.c.l.b16 %v4229
    %v6964 = vunpack.c.h.b16 %v4229
    %v6965 = vunpack.c.l.b16 %v4230
    %v6966 = vunpack.c.h.b16 %v4230
    %v6967 = vunpack.c.l.b16 %v4231
    %v6968 = vunpack.c.h.b16 %v4231
    %v6969 = vunpack.c.l.b16 %v4232
    %v6970 = vunpack.c.h.b16 %v4232
    %v6971 = vunpack.c.l.b16 %v4233
    %v6972 = vunpack.c.h.b16 %v4233
    %v6973 = vunpack.c.l.b16 %v4234
    %v6974 = vunpack.c.h.b16 %v4234
    %v6975 = vunpack.c.l.b16 %v4235
    %v6976 = vunpack.c.h.b16 %v4235
    %v6977 = vunpack.c.l.b16 %v4236
    %v6978 = vunpack.c.h.b16 %v4236
    %v6979 = vunpack.c.l.b16 %v4237
    %v6980 = vunpack.c.h.b16 %v4237
    %v6981 = vunpack.c.l.b16 %v4238
    %v6982 = vunpack.c.h.b16 %v4238
    %v6983 = vunpack.c.l.b16 %v4239
    %v6984 = vunpack.c.h.b16 %v4239
    %v6985 = vunpack.c.l.b16 %v4240
    %v6986 = vunpack.c.h.b16 %v4240
    %v6987 = vunpack.c.l.b16 %v4241
    %v6988 = vunpack.c.h.b16 %v4241
    %v6989 = vunpack.c.l.b16 %v4242
    %v6990 = vunpack.c.h.b16 %v4242
    %v6991 = vunpack.c.l.b16 %v4243
    %v6992 = vunpack.c.h.b16 %v4243
    %v6993 = vunpack.c.l.b16 %v4244
    %v6994 = vunpack.c.h.b16 %v4244
    %v6995 = vunpack.c.l.b16 %v4245
    %v6996 = vunpack.c.h.b16 %v4245
    %v6997 = vunpack.c.l.b16 %v4246
    %v6998 = vunpack.c.h.b16 %v4246
    %v6999 = vunpack.c.l.b16 %v4247
    %v7000 = vunpack.c.h.b16 %v4247
    %v7001 = vunpack.c.l.b16 %v4248
    %v7002 = vunpack.c.h.b16 %v4248
    %v7003 = vunpack.c.l.b16 %v4249
    %v7004 = vunpack.c.h.b16 %v4249
    %v7005 = vunpack.c.l.b16 %v4250
    %v7006 = vunpack.c.h.b16 %v4250
    %v7007 = vunpack.c.l.b16 %v4251
    %v7008 = vunpack.c.h.b16 %v4251
    %v7009 = vunpack.c.l.b16 %v4252
    %v7010 = vunpack.c.h.b16 %v4252
    %v7011 = vunpack.c.l.b16 %v4253
    %v7012 = vunpack.c.h.b16 %v4253
    %v7013 = vunpack.c.l.b16 %v4254
    %v7014 = vunpack.c.h.b16 %v4254
    %v7015 = vunpack.c.l.b16 %v4255
    %v7016 = vunpack.c.h.b16 %v4255
    %v7017 = vunpack.c.l.b16 %v4256
    %v7018 = vunpack.c.h.b16 %v4256
    %v7019 = vunpack.c.l.b16 %v4257
    %v7020 = vunpack.c.h.b16 %v4257
    %v7021 = vunpack.c.l.b16 %v4258
    %v7022 = vunpack.c.h.b16 %v4258
    %v7023 = vunpack.c.l.b16 %v4259
    %v7024 = vunpack.c.h.b16 %v4259
    %v7025 = vunpack.c.l.b16 %v4260
    %v7026 = vunpack.c.h.b16 %v4260
    %v7027 = vunpack.c.l.b16 %v4261
    %v7028 = vunpack.c.h.b16 %v4261
    %v7029 = vunpack.c.l.b16 %v4262
    %v7030 = vunpack.c.h.b16 %v4262
    %v7031 = vunpack.c.l.b16 %v4263
    %v7032 = vunpack.c.h.b16 %v4263
    %v7033 = vunpack.c.l.b16 %v4264
    %v7034 = vunpack.c.h.b16 %v4264
    %v7035 = vunpack.c.l.b16 %v4265
    %v7036 = vunpack.c.h.b16 %v4265
    %v7037 = vunpack.c.l.b16 %v4266
    %v7038 = vunpack.c.h.b16 %v4266
    %v7039 = vunpack.c.l.b16 %v4267
    %v7040 = vunpack.c.h.b16 %v4267
    %v7041 = vunpack.c.l.b16 %v4268
    %v7042 = vunpack.c.h.b16 %v4268
    %v7043 = vunpack.c.l.b16 %v4269
    %v7044 = vunpack.c.h.b16 %v4269
    %v7045 = vunpack.c.l.b16 %v4270
    %v7046 = vunpack.c.h.b16 %v4270
    %v7047 = vunpack.c.l.b16 %v4271
    %v7048 = vunpack.c.h.b16 %v4271
    %v7049 = vunpack.c.l.b16 %v4272
    %v7050 = vunpack.c.h.b16 %v4272
    %v7051 = vunpack.c.l.b16 %v4273
    %v7052 = vunpack.c.h.b16 %v4273
    %v7053 = vunpack.c.l.b16 %v4274
    %v7054 = vunpack.c.h.b16 %v4274
    %v7055 = vunpack.c.l.b16 %v4275
    %v7056 = vunpack.c.h.b16 %v4275
    %v7057 = vunpack.c.l.b16 %v4276
    %v7058 = vunpack.c.h.b16 %v4276
    %v7059 = vunpack.c.l.b16 %v4277
    %v7060 = vunpack.c.h.b16 %v4277
    %v7061 = vunpack.c.l.b16 %v4278
    %v7062 = vunpack.c.h.b16 %v4278
    %v7063 = vunpack.c.l.b16 %v4279
    %v7064 = vunpack.c.h.b16 %v4279
    %v7065 = vunpack.c.l.b16 %v4280
    %v7066 = vunpack.c.h.b16 %v4280
    %v7067 = vunpack.c.l.b16 %v4281
    %v7068 = vunpack.c.h.b16 %v4281
    %v7069 = vunpack.c.l.b16 %v4282
    %v7070 = vunpack.c.h.b16 %v4282
    %v7071 = vunpack.c.l.b16 %v4283
    %v7072 = vunpack.c.h.b16 %v4283
    %v7073 = vunpack.c.l.b16 %v4284
    %v7074 = vunpack.c.h.b16 %v4284
    %v7075 = vunpack.c.l.b16 %v4285
    %v7076 = vunpack.c.h.b16 %v4285
    %v7077 = vunpack.c.l.b16 %v4286
    %v7078 = vunpack.c.h.b16 %v4286
    %v7079 = vunpack.c.l.b16 %v4287
    %v7080 = vunpack.c.h.b16 %v4287
    %v7081 = vunpack.c.l.b16 %v4288
    %v7082 = vunpack.c.h.b16 %v4288
    %v7083 = vunpack.c.l.b16 %v4289
    %v7084 = vunpack.c.h.b16 %v4289
    %v7085 = vunpack.c.l.b16 %v4290
    %v7086 = vunpack.c.h.b16 %v4290
    %v7087 = vunpack.c.l.b16 %v4291
    %v7088 = vunpack.c.h.b16 %v4291
    %v7089 = vunpack.c.l.b16 %v4292
    %v7090 = vunpack.c.h.b16 %v4292
    %v7091 = vunpack.c.l.b16 %v4293
    %v7092 = vunpack.c.h.b16 %v4293
    %v7093 = vunpack.c.l.b16 %v4294
    %v7094 = vunpack.c.h.b16 %v4294
    %v7095 = vunpack.c.l.b16 %v4295
    %v7096 = vunpack.c.h.b16 %v4295
    %v7097 = vunpack.c.l.b16 %v4296
    %v7098 = vunpack.c.h.b16 %v4296
    %v7099 = vunpack.c.l.b16 %v4297
    %v7100 = vunpack.c.h.b16 %v4297
    %v7101 = vunpack.c.l.b16 %v4298
    %v7102 = vunpack.c.h.b16 %v4298
    %v7103 = vunpack.c.l.b16 %v4299
    %v7104 = vunpack.c.h.b16 %v4299
    %v7105 = vunpack.c.l.b16 %v4300
    %v7106 = vunpack.c.h.b16 %v4300
    %v7107 = vunpack.c.l.b16 %v4301
    %v7108 = vunpack.c.h.b16 %v4301
    %v7109 = vunpack.c.l.b16 %v4302
    %v7110 = vunpack.c.h.b16 %v4302
    %v7111 = vunpack.c.l.b16 %v4303
    %v7112 = vunpack.c.h.b16 %v4303
    %v7113 = vunpack.c.l.b16 %v4304
    %v7114 = vunpack.c.h.b16 %v4304
    %v7115 = vunpack.c.l.b16 %v4305
    %v7116 = vunpack.c.h.b16 %v4305
    %v7117 = vunpack.c.l.b16 %v4306
    %v7118 = vunpack.c.h.b16 %v4306
    %v7119 = vunpack.c.l.b16 %v4307
    %v7120 = vunpack.c.h.b16 %v4307
    %v7121 = vunpack.c.l.b16 %v4308
    %v7122 = vunpack.c.h.b16 %v4308
    %v7123 = vunpack.c.l.b16 %v4309
    %v7124 = vunpack.c.h.b16 %v4309
    %v7125 = vunpack.c.l.b16 %v4310
    %v7126 = vunpack.c.h.b16 %v4310
    %v7127 = vunpack.c.l.b16 %v4311
    %v7128 = vunpack.c.h.b16 %v4311
    %v7129 = vunpack.c.l.b16 %v4312
    %v7130 = vunpack.c.h.b16 %v4312
    %v7131 = vunpack.c.l.b16 %v4313
    %v7132 = vunpack.c.h.b16 %v4313
    %v7133 = vunpack.c.l.b16 %v4314
    %v7134 = vunpack.c.h.b16 %v4314
    %v7135 = vunpack.c.l.b16 %v4315
    %v7136 = vunpack.c.h.b16 %v4315
    %v7137 = vunpack.c.l.b16 %v4316
    %v7138 = vunpack.c.h.b16 %v4316
    %v7139 = vunpack.c.l.b16 %v4317
    %v7140 = vunpack.c.h.b16 %v4317
    %v7141 = vunpack.c.l.b16 %v4318
    %v7142 = vunpack.c.h.b16 %v4318
    %v7143 = vunpack.c.l.b16 %v4319
    %v7144 = vunpack.c.h.b16 %v4319
    %v7145 = vunpack.c.l.b16 %v4320
    %v7146 = vunpack.c.h.b16 %v4320
    %v7147 = vunpack.c.l.b16 %v4321
    %v7148 = vunpack.c.h.b16 %v4321
    %v7149 = vunpack.c.l.b16 %v4322
    %v7150 = vunpack.c.h.b16 %v4322
    %v7151 = vunpack.c.l.b16 %v4323
    %v7152 = vunpack.c.h.b16 %v4323
    %v7153 = vunpack.c.l.b16 %v4324
    %v7154 = vunpack.c.h.b16 %v4324
    %v7155 = vunpack.c.l.b16 %v4325
    %v7156 = vunpack.c.h.b16 %v4325
    %v7157 = vunpack.c.l.b16 %v4326
    %v7158 = vunpack.c.h.b16 %v4326
    %v7159 = vunpack.c.l.b16 %v4327
    %v7160 = vunpack.c.h.b16 %v4327
    %v7161 = vunpack.c.l.b16 %v4328
    %v7162 = vunpack.c.h.b16 %v4328
    %v7163 = vunpack.c.l.b16 %v4329
    %v7164 = vunpack.c.h.b16 %v4329
    %v7165 = vunpack.c.l.b16 %v4330
    %v7166 = vunpack.c.h.b16 %v4330
    %v7167 = vunpack.c.l.b16 %v4331
    %v7168 = vunpack.c.h.b16 %v4331
    %v7169 = vunpack.c.l.b16 %v4332
    %v7170 = vunpack.c.h.b16 %v4332
    %v7171 = vunpack.c.l.b16 %v4333
    %v7172 = vunpack.c.h.b16 %v4333
    %v7173 = vunpack.c.l.b16 %v4334
    %v7174 = vunpack.c.h.b16 %v4334
    %v7175 = vunpack.c.l.b16 %v4335
    %v7176 = vunpack.c.h.b16 %v4335
    %v7177 = vunpack.c.l.b16 %v4336
    %v7178 = vunpack.c.h.b16 %v4336
    %v7179 = vunpack.c.l.b16 %v4337
    %v7180 = vunpack.c.h.b16 %v4337
    %v7181 = vunpack.c.l.b16 %v4338
    %v7182 = vunpack.c.h.b16 %v4338
    %v7183 = vunpack.c.l.b16 %v4339
    %v7184 = vunpack.c.h.b16 %v4339
    %v7185 = vunpack.c.l.b16 %v4340
    %v7186 = vunpack.c.h.b16 %v4340
    %v7187 = vunpack.c.l.b16 %v4341
    %v7188 = vunpack.c.h.b16 %v4341
    %v7189 = vunpack.c.l.b16 %v4342
    %v7190 = vunpack.c.h.b16 %v4342
    %v7191 = vunpack.c.l.b16 %v4343
    %v7192 = vunpack.c.h.b16 %v4343
    %v7193 = vunpack.c.l.b16 %v4344
    %v7194 = vunpack.c.h.b16 %v4344
    %v7195 = vunpack.c.l.b16 %v4345
    %v7196 = vunpack.c.h.b16 %v4345
    %v7197 = vunpack.c.l.b16 %v4346
    %v7198 = vunpack.c.h.b16 %v4346
    %v7199 = vunpack.c.l.b16 %v4347
    %v7200 = vunpack.c.h.b16 %v4347
    %v7201 = vunpack.c.l.b16 %v4348
    %v7202 = vunpack.c.h.b16 %v4348
    %v7203 = vunpack.c.l.b16 %v4349
    %v7204 = vunpack.c.h.b16 %v4349
    %v7205 = vunpack.c.l.b16 %v4350
    %v7206 = vunpack.c.h.b16 %v4350
    %v7207 = vunpack.c.l.b16 %v4351
    %v7208 = vunpack.c.h.b16 %v4351
    %v7209 = vunpack.c.l.b16 %v4352
    %v7210 = vunpack.c.h.b16 %v4352
    %v7211 = vunpack.c.l.b16 %v4353
    %v7212 = vunpack.c.h.b16 %v4353
    %v7213 = vunpack.c.l.b16 %v4354
    %v7214 = vunpack.c.h.b16 %v4354
    %v7215 = vunpack.c.l.b16 %v4355
    %v7216 = vunpack.c.h.b16 %v4355
    %v7217 = vunpack.c.l.b16 %v4356
    %v7218 = vunpack.c.h.b16 %v4356
    %v7219 = vunpack.c.l.b16 %v4357
    %v7220 = vunpack.c.h.b16 %v4357
    %v7221 = vunpack.c.l.b16 %v4358
    %v7222 = vunpack.c.h.b16 %v4358
    %v7223 = vunpack.c.l.b16 %v4359
    %v7224 = vunpack.c.h.b16 %v4359
    %v7225 = vunpack.c.l.b16 %v4360
    %v7226 = vunpack.c.h.b16 %v4360
    %v7227 = vunpack.c.l.b16 %v4361
    %v7228 = vunpack.c.h.b16 %v4361
    %v7229 = vunpack.c.l.b16 %v4362
    %v7230 = vunpack.c.h.b16 %v4362
    %v7231 = vunpack.c.l.b16 %v4363
    %v7232 = vunpack.c.h.b16 %v4363
    %v7233 = vunpack.c.l.b16 %v4364
    %v7234 = vunpack.c.h.b16 %v4364
    %v7235 = vunpack.c.l.b16 %v4365
    %v7236 = vunpack.c.h.b16 %v4365
    %v7237 = vunpack.c.l.b16 %v4366
    %v7238 = vunpack.c.h.b16 %v4366
    %v7239 = vunpack.c.l.b16 %v4367
    %v7240 = vunpack.c.h.b16 %v4367
    %v7241 = vunpack.c.l.b16 %v4368
    %v7242 = vunpack.c.h.b16 %v4368
    %v7243 = vunpack.c.l.b16 %v4369
    %v7244 = vunpack.c.h.b16 %v4369
    %v7245 = vunpack.c.l.b16 %v4370
    %v7246 = vunpack.c.h.b16 %v4370
    %v7247 = vunpack.c.l.b16 %v4371
    %v7248 = vunpack.c.h.b16 %v4371
    %v7249 = vunpack.c.l.b16 %v4372
    %v7250 = vunpack.c.h.b16 %v4372
    %v7251 = vunpack.c.l.b16 %v4373
    %v7252 = vunpack.c.h.b16 %v4373
    %v7253 = vunpack.c.l.b16 %v4374
    %v7254 = vunpack.c.h.b16 %v4374
    %v7255 = vunpack.c.l.b16 %v4375
    %v7256 = vunpack.c.h.b16 %v4375
    %v7257 = vunpack.c.l.b16 %v4376
    %v7258 = vunpack.c.h.b16 %v4376
    %v7259 = vunpack.c.l.b16 %v4377
    %v7260 = vunpack.c.h.b16 %v4377
    %v7261 = vunpack.c.l.b16 %v4378
    %v7262 = vunpack.c.h.b16 %v4378
    %v7263 = vunpack.c.l.b16 %v4379
    %v7264 = vunpack.c.h.b16 %v4379
    %v7265 = vunpack.c.l.b16 %v4380
    %v7266 = vunpack.c.h.b16 %v4380
    %v7267 = vunpack.c.l.b16 %v4381
    %v7268 = vunpack.c.h.b16 %v4381
    %v7269 = vunpack.c.l.b16 %v4382
    %v7270 = vunpack.c.h.b16 %v4382
    %v7271 = vunpack.c.l.b16 %v4383
    %v7272 = vunpack.c.h.b16 %v4383
    %v7273 = vunpack.c.l.b16 %v4384
    %v7274 = vunpack.c.h.b16 %v4384
    %v7275 = vunpack.c.l.b16 %v4385
    %v7276 = vunpack.c.h.b16 %v4385
    %v7277 = vunpack.c.l.b16 %v4386
    %v7278 = vunpack.c.h.b16 %v4386
    %v7279 = vunpack.c.l.b16 %v4387
    %v7280 = vunpack.c.h.b16 %v4387
    %v7281 = vunpack.c.l.b16 %v4388
    %v7282 = vunpack.c.h.b16 %v4388
    %v7283 = vunpack.c.l.b16 %v4389
    %v7284 = vunpack.c.h.b16 %v4389
    %v7285 = vunpack.c.l.b16 %v4390
    %v7286 = vunpack.c.h.b16 %v4390
    %v7287 = vunpack.c.l.b16 %v4391
    %v7288 = vunpack.c.h.b16 %v4391
    %v7289 = vunpack.c.l.b16 %v4392
    %v7290 = vunpack.c.h.b16 %v4392
    %v7291 = vunpack.c.l.b16 %v4393
    %v7292 = vunpack.c.h.b16 %v4393
    %v7293 = vunpack.c.l.b16 %v4394
    %v7294 = vunpack.c.h.b16 %v4394
    %v7295 = vunpack.c.l.b16 %v4395
    %v7296 = vunpack.c.h.b16 %v4395
    %v7297 = vunpack.c.l.b16 %v4396
    %v7298 = vunpack.c.h.b16 %v4396
    %v7299 = vunpack.c.l.b16 %v4397
    %v7300 = vunpack.c.h.b16 %v4397
    %v7301 = vunpack.c.l.b16 %v4398
    %v7302 = vunpack.c.h.b16 %v4398
    %v7303 = vunpack.c.l.b16 %v4399
    %v7304 = vunpack.c.h.b16 %v4399
    %v7305 = vunpack.c.l.b16 %v4400
    %v7306 = vunpack.c.h.b16 %v4400
    %v7307 = vunpack.c.l.b16 %v4401
    %v7308 = vunpack.c.h.b16 %v4401
    %v7309 = vunpack.c.l.b16 %v4402
    %v7310 = vunpack.c.h.b16 %v4402
    %v7311 = vunpack.c.l.b16 %v4403
    %v7312 = vunpack.c.h.b16 %v4403
    %v7313 = vunpack.c.l.b16 %v4404
    %v7314 = vunpack.c.h.b16 %v4404
    %v7315 = vunpack.c.l.b16 %v4405
    %v7316 = vunpack.c.h.b16 %v4405
    %v7317 = vunpack.c.l.b16 %v4406
    %v7318 = vunpack.c.h.b16 %v4406
    %v7319 = vunpack.c.l.b16 %v4407
    %v7320 = vunpack.c.h.b16 %v4407
    %v7321 = vunpack.c.l.b16 %v4408
    %v7322 = vunpack.c.h.b16 %v4408
    %v7323 = vunpack.c.l.b16 %v4409
    %v7324 = vunpack.c.h.b16 %v4409
    %v7325 = vunpack.c.l.b16 %v4410
    %v7326 = vunpack.c.h.b16 %v4410
    %v7327 = vunpack.c.l.b16 %v4411
    %v7328 = vunpack.c.h.b16 %v4411
    %v7329 = vunpack.c.l.b16 %v4412
    %v7330 = vunpack.c.h.b16 %v4412
    %v7331 = vunpack.c.l.b16 %v4413
    %v7332 = vunpack.c.h.b16 %v4413
    %v7333 = vunpack.c.l.b16 %v4414
    %v7334 = vunpack.c.h.b16 %v4414
    %v7335 = vunpack.c.l.b16 %v4415
    %v7336 = vunpack.c.h.b16 %v4415
    %v7337 = vunpack.c.l.b16 %v4416
    %v7338 = vunpack.c.h.b16 %v4416
    %v7339 = vunpack.c.l.b16 %v4417
    %v7340 = vunpack.c.h.b16 %v4417
    %v7341 = vunpack.c.l.b16 %v4418
    %v7342 = vunpack.c.h.b16 %v4418
    %v7343 = vunpack.c.l.b16 %v4419
    %v7344 = vunpack.c.h.b16 %v4419
    %v7345 = vunpack.c.l.b16 %v4420
    %v7346 = vunpack.c.h.b16 %v4420
    %v7347 = vunpack.c.l.b16 %v4421
    %v7348 = vunpack.c.h.b16 %v4421
    %v7349 = vunpack.c.l.b16 %v4422
    %v7350 = vunpack.c.h.b16 %v4422
    %v7351 = vunpack.c.l.b16 %v4423
    %v7352 = vunpack.c.h.b16 %v4423
    %v7353 = vunpack.c.l.b16 %v4424
    %v7354 = vunpack.c.h.b16 %v4424
    %v7355 = vunpack.c.l.b16 %v4425
    %v7356 = vunpack.c.h.b16 %v4425
    %v7357 = vunpack.c.l.b16 %v4426
    %v7358 = vunpack.c.h.b16 %v4426
    %v7359 = vunpack.c.l.b16 %v4427
    %v7360 = vunpack.c.h.b16 %v4427
    %v7361 = vunpack.c.l.b16 %v4428
    %v7362 = vunpack.c.h.b16 %v4428
    %v7363 = vunpack.c.l.b16 %v4429
    %v7364 = vunpack.c.h.b16 %v4429
    %v7365 = vunpack.c.l.b16 %v4430
    %v7366 = vunpack.c.h.b16 %v4430
    %v7367 = vunpack.c.l.b16 %v4431
    %v7368 = vunpack.c.h.b16 %v4431
    %v7369 = vunpack.c.l.b16 %v4432
    %v7370 = vunpack.c.h.b16 %v4432
    %v7371 = vunpack.c.l.b16 %v4433
    %v7372 = vunpack.c.h.b16 %v4433
    %v7373 = vunpack.c.l.b16 %v4434
    %v7374 = vunpack.c.h.b16 %v4434
    %v7375 = vunpack.c.l.b16 %v4435
    %v7376 = vunpack.c.h.b16 %v4435
    %v7377 = vunpack.c.l.b16 %v4436
    %v7378 = vunpack.c.h.b16 %v4436
    %v7379 = vunpack.c.l.b16 %v4437
    %v7380 = vunpack.c.h.b16 %v4437
    %v7381 = vunpack.c.l.b16 %v4438
    %v7382 = vunpack.c.h.b16 %v4438
    %v7383 = vunpack.c.l.b16 %v4439
    %v7384 = vunpack.c.h.b16 %v4439
    %v7385 = vunpack.c.l.b16 %v4440
    %v7386 = vunpack.c.h.b16 %v4440
    %v7387 = vunpack.c.l.b16 %v4441
    %v7388 = vunpack.c.h.b16 %v4441
    %v7389 = vunpack.c.l.b16 %v4442
    %v7390 = vunpack.c.h.b16 %v4442
    %v7391 = vunpack.c.l.b16 %v4443
    %v7392 = vunpack.c.h.b16 %v4443
    %v7393 = vunpack.c.l.b16 %v4444
    %v7394 = vunpack.c.h.b16 %v4444
    %v7395 = vunpack.c.l.b16 %v4445
    %v7396 = vunpack.c.h.b16 %v4445
    %v7397 = vunpack.c.l.b16 %v4446
    %v7398 = vunpack.c.h.b16 %v4446
    %v7399 = vunpack.c.l.b16 %v4447
    %v7400 = vunpack.c.h.b16 %v4447
    %v7401 = vunpack.c.l.b16 %v4448
    %v7402 = vunpack.c.h.b16 %v4448
    %v7403 = vunpack.c.l.b16 %v4449
    %v7404 = vunpack.c.h.b16 %v4449
    %v7405 = vunpack.c.l.b16 %v4450
    %v7406 = vunpack.c.h.b16 %v4450
    %v7407 = vunpack.c.l.b16 %v4451
    %v7408 = vunpack.c.h.b16 %v4451
    %v7409 = vunpack.c.l.b16 %v4452
    %v7410 = vunpack.c.h.b16 %v4452
    %v7411 = vunpack.c.l.b16 %v4453
    %v7412 = vunpack.c.h.b16 %v4453
    %v7413 = vunpack.c.l.b16 %v4454
    %v7414 = vunpack.c.h.b16 %v4454
    %v7415 = vunpack.c.l.b16 %v4455
    %v7416 = vunpack.c.h.b16 %v4455
    %v7417 = vunpack.c.l.b16 %v4456
    %v7418 = vunpack.c.h.b16 %v4456
    %v7419 = vunpack.c.l.b16 %v4457
    %v7420 = vunpack.c.h.b16 %v4457
    %v7421 = vunpack.c.l.b16 %v4458
    %v7422 = vunpack.c.h.b16 %v4458
    %v7423 = vunpack.c.l.b16 %v4459
    %v7424 = vunpack.c.h.b16 %v4459
    %v7425 = vunpack.c.l.b16 %v4460
    %v7426 = vunpack.c.h.b16 %v4460
    %v7427 = vunpack.c.l.b16 %v4461
    %v7428 = vunpack.c.h.b16 %v4461
    %v7429 = vunpack.c.l.b16 %v4462
    %v7430 = vunpack.c.h.b16 %v4462
    %v7431 = vunpack.c.l.b16 %v4463
    %v7432 = vunpack.c.h.b16 %v4463
    %v7433 = vunpack.c.l.b16 %v4464
    %v7434 = vunpack.c.h.b16 %v4464
    %v7435 = vunpack.c.l.b16 %v4465
    %v7436 = vunpack.c.h.b16 %v4465
    %v7437 = vunpack.c.l.b16 %v4466
    %v7438 = vunpack.c.h.b16 %v4466
    %v7439 = vunpack.c.l.b16 %v4467
    %v7440 = vunpack.c.h.b16 %v4467
    %v7441 = vunpack.c.l.b16 %v4468
    %v7442 = vunpack.c.h.b16 %v4468
    %v7443 = vunpack.c.l.b16 %v4469
    %v7444 = vunpack.c.h.b16 %v4469
    %v7445 = vunpack.c.l.b16 %v4470
    %v7446 = vunpack.c.h.b16 %v4470
    %v7447 = vunpack.c.l.b16 %v4471
    %v7448 = vunpack.c.h.b16 %v4471
    %v7449 = vunpack.c.l.b16 %v4472
    %v7450 = vunpack.c.h.b16 %v4472
    %v7451 = vunpack.c.l.b16 %v4473
    %v7452 = vunpack.c.h.b16 %v4473
    %v7453 = vunpack.c.l.b16 %v4474
    %v7454 = vunpack.c.h.b16 %v4474
    %v7455 = vunpack.c.l.b16 %v4475
    %v7456 = vunpack.c.h.b16 %v4475
    %v7457 = vunpack.c.l.b16 %v4476
    %v7458 = vunpack.c.h.b16 %v4476
    %v7459 = vunpack.c.l.b16 %v4477
    %v7460 = vunpack.c.h.b16 %v4477
    %v7461 = vunpack.c.l.b16 %v4478
    %v7462 = vunpack.c.h.b16 %v4478
    %v7463 = vunpack.c.l.b16 %v4479
    %v7464 = vunpack.c.h.b16 %v4479
    %v7465 = vunpack.c.l.b16 %v4480
    %v7466 = vunpack.c.h.b16 %v4480
    %v7467 = vunpack.c.l.b16 %v4481
    %v7468 = vunpack.c.h.b16 %v4481
    %v7469 = vunpack.c.l.b16 %v4482
    %v7470 = vunpack.c.h.b16 %v4482
    %v7471 = vunpack.c.l.b16 %v4483
    %v7472 = vunpack.c.h.b16 %v4483
    %v7473 = vunpack.c.l.b16 %v4484
    %v7474 = vunpack.c.h.b16 %v4484
    %v7475 = vunpack.c.l.b16 %v4485
    %v7476 = vunpack.c.h.b16 %v4485
    %v7477 = vunpack.c.l.b16 %v4486
    %v7478 = vunpack.c.h.b16 %v4486
    %v7479 = vunpack.c.l.b16 %v4487
    %v7480 = vunpack.c.h.b16 %v4487
    %v7481 = vunpack.c.l.b16 %v4488
    %v7482 = vunpack.c.h.b16 %v4488
    %v7483 = vunpack.c.l.b16 %v4489
    %v7484 = vunpack.c.h.b16 %v4489
    %v7485 = vunpack.c.l.b16 %v4490
    %v7486 = vunpack.c.h.b16 %v4490
    %v7487 = vunpack.c.l.b16 %v4491
    %v7488 = vunpack.c.h.b16 %v4491
    %v7489 = vunpack.c.l.b16 %v4492
    %v7490 = vunpack.c.h.b16 %v4492
    %v7491 = vunpack.c.l.b16 %v4493
    %v7492 = vunpack.c.h.b16 %v4493
    %v7493 = vunpack.c.l.b16 %v4494
    %v7494 = vunpack.c.h.b16 %v4494
    %v7495 = vunpack.c.l.b16 %v4495
    %v7496 = vunpack.c.h.b16 %v4495
    %v7497 = vunpack.c.l.b16 %v4496
    %v7498 = vunpack.c.h.b16 %v4496
    %v7499 = vunpack.c.l.b16 %v4497
    %v7500 = vunpack.c.h.b16 %v4497
    %v7501 = vunpack.c.l.b16 %v4498
    %v7502 = vunpack.c.h.b16 %v4498
    %v7503 = vunpack.c.l.b16 %v4499
    %v7504 = vunpack.c.h.b16 %v4499
    %v7505 = vunpack.c.l.b16 %v4500
    %v7506 = vunpack.c.h.b16 %v4500
    %v7507 = vunpack.c.l.b16 %v4501
    %v7508 = vunpack.c.h.b16 %v4501
    %v7509 = vunpack.c.l.b16 %v4502
    %v7510 = vunpack.c.h.b16 %v4502
    %v7511 = vunpack.c.l.b16 %v4503
    %v7512 = vunpack.c.h.b16 %v4503
    %v7513 = vunpack.c.l.b16 %v4504
    %v7514 = vunpack.c.h.b16 %v4504
    %v7515 = vunpack.c.l.b16 %v4505
    %v7516 = vunpack.c.h.b16 %v4505
    %v7517 = vunpack.c.l.b16 %v4506
    %v7518 = vunpack.c.h.b16 %v4506
    %v7519 = vunpack.c.l.b16 %v4507
    %v7520 = vunpack.c.h.b16 %v4507
    %v7521 = vunpack.c.l.b16 %v4508
    %v7522 = vunpack.c.h.b16 %v4508
    %v7523 = vunpack.c.l.b16 %v4509
    %v7524 = vunpack.c.h.b16 %v4509
    %v7525 = vunpack.c.l.b16 %v4510
    %v7526 = vunpack.c.h.b16 %v4510
    %v7527 = vunpack.c.l.b16 %v4511
    %v7528 = vunpack.c.h.b16 %v4511
    %v7529 = vunpack.c.l.b16 %v4512
    %v7530 = vunpack.c.h.b16 %v4512
    %v7531 = vunpack.c.l.b16 %v4513
    %v7532 = vunpack.c.h.b16 %v4513
    %v7533 = vunpack.c.l.b16 %v4514
    %v7534 = vunpack.c.h.b16 %v4514
    %v7535 = vunpack.c.l.b16 %v4515
    %v7536 = vunpack.c.h.b16 %v4515
    %v7537 = vunpack.c.l.b16 %v4516
    %v7538 = vunpack.c.h.b16 %v4516
    %v7539 = vunpack.c.l.b16 %v4517
    %v7540 = vunpack.c.h.b16 %v4517
    %v7541 = vunpack.c.l.b16 %v4518
    %v7542 = vunpack.c.h.b16 %v4518
    %v7543 = vunpack.c.l.b16 %v4519
    %v7544 = vunpack.c.h.b16 %v4519
    %v7545 = vunpack.c.l.b16 %v4520
    %v7546 = vunpack.c.h.b16 %v4520
    %v7547 = vunpack.c.l.b16 %v4521
    %v7548 = vunpack.c.h.b16 %v4521
    %v7549 = vunpack.c.l.b16 %v4522
    %v7550 = vunpack.c.h.b16 %v4522
    %v7551 = vunpack.c.l.b16 %v4523
    %v7552 = vunpack.c.h.b16 %v4523
    %v7553 = vunpack.c.l.b16 %v4524
    %v7554 = vunpack.c.h.b16 %v4524
    %v7555 = vunpack.c.l.b16 %v4525
    %v7556 = vunpack.c.h.b16 %v4525
    %v7557 = vunpack.c.l.b16 %v4526
    %v7558 = vunpack.c.h.b16 %v4526
    %v7559 = vunpack.c.l.b16 %v4527
    %v7560 = vunpack.c.h.b16 %v4527
    %v7561 = vunpack.c.l.b16 %v4528
    %v7562 = vunpack.c.h.b16 %v4528
    %v7563 = vunpack.c.l.b16 %v4529
    %v7564 = vunpack.c.h.b16 %v4529
    %v7565 = vunpack.c.l.b16 %v4530
    %v7566 = vunpack.c.h.b16 %v4530
    %v7567 = vunpack.c.l.b16 %v4531
    %v7568 = vunpack.c.h.b16 %v4531
    %v7569 = vunpack.c.l.b16 %v4532
    %v7570 = vunpack.c.h.b16 %v4532
    %v7571 = vunpack.c.l.b16 %v4533
    %v7572 = vunpack.c.h.b16 %v4533
    %v7573 = vunpack.c.l.b16 %v4534
    %v7574 = vunpack.c.h.b16 %v4534
    %v7575 = vunpack.c.l.b16 %v4535
    %v7576 = vunpack.c.h.b16 %v4535
    %v7577 = vunpack.c.l.b16 %v4536
    %v7578 = vunpack.c.h.b16 %v4536
    %v7579 = vunpack.c.l.b16 %v4537
    %v7580 = vunpack.c.h.b16 %v4537
    %v7581 = vunpack.c.l.b16 %v4538
    %v7582 = vunpack.c.h.b16 %v4538
    %v7583 = vunpack.c.l.b16 %v4539
    %v7584 = vunpack.c.h.b16 %v4539
    %v7585 = vunpack.c.l.b16 %v4540
    %v7586 = vunpack.c.h.b16 %v4540
    %v7587 = vunpack.c.l.b16 %v4541
    %v7588 = vunpack.c.h.b16 %v4541
    %v7589 = vunpack.c.l.b16 %v4542
    %v7590 = vunpack.c.h.b16 %v4542
    %v7591 = vunpack.c.l.b16 %v4543
    %v7592 = vunpack.c.h.b16 %v4543
    %v7593 = vunpack.c.l.b16 %v4544
    %v7594 = vunpack.c.h.b16 %v4544
    %v7595 = vunpack.c.l.b16 %v4545
    %v7596 = vunpack.c.h.b16 %v4545
    %v7597 = vunpack.c.l.b16 %v4546
    %v7598 = vunpack.c.h.b16 %v4546
    %v7599 = vunpack.c.l.b16 %v4547
    %v7600 = vunpack.c.h.b16 %v4547
    %v7601 = vunpack.c.l.b16 %v4548
    %v7602 = vunpack.c.h.b16 %v4548
    %v7603 = vunpack.c.l.b16 %v4549
    %v7604 = vunpack.c.h.b16 %v4549
    %v7605 = vunpack.c.l.b16 %v4550
    %v7606 = vunpack.c.h.b16 %v4550
    %v7607 = vunpack.c.l.b16 %v4551
    %v7608 = vunpack.c.h.b16 %v4551
    %v7609 = vunpack.c.l.b16 %v4552
    %v7610 = vunpack.c.h.b16 %v4552
    %v7611 = vunpack.c.l.b16 %v4553
    %v7612 = vunpack.c.h.b16 %v4553
    %v7613 = vunpack.c.l.b16 %v4554
    %v7614 = vunpack.c.h.b16 %v4554
    %v7615 = vunpack.c.l.b16 %v4555
    %v7616 = vunpack.c.h.b16 %v4555
    %v7617 = vunpack.c.l.b16 %v4556
    %v7618 = vunpack.c.h.b16 %v4556
    %v7619 = vunpack.c.l.b16 %v4557
    %v7620 = vunpack.c.h.b16 %v4557
    %v7621 = vunpack.c.l.b16 %v4558
    %v7622 = vunpack.c.h.b16 %v4558
    %v7623 = vunpack.c.l.b16 %v4559
    %v7624 = vunpack.c.h.b16 %v4559
    %v7625 = vunpack.c.l.b16 %v4560
    %v7626 = vunpack.c.h.b16 %v4560
    %v7627 = vunpack.c.l.b16 %v4561
    %v7628 = vunpack.c.h.b16 %v4561
    %v7629 = vunpack.c.l.b16 %v4562
    %v7630 = vunpack.c.h.b16 %v4562
    %v7631 = vunpack.c.l.b16 %v4563
    %v7632 = vunpack.c.h.b16 %v4563
    %v7633 = vunpack.c.l.b16 %v4564
    %v7634 = vunpack.c.h.b16 %v4564
    %v7635 = vunpack.c.l.b16 %v4565
    %v7636 = vunpack.c.h.b16 %v4565
    %v7637 = vunpack.c.l.b16 %v4566
    %v7638 = vunpack.c.h.b16 %v4566
    %v7639 = vunpack.c.l.b16 %v4567
    %v7640 = vunpack.c.h.b16 %v4567
    %v7641 = vunpack.c.l.b16 %v4568
    %v7642 = vunpack.c.h.b16 %v4568
    %v7643 = vunpack.c.l.b16 %v4569
    %v7644 = vunpack.c.h.b16 %v4569
    %v7645 = vunpack.c.l.b16 %v4570
    %v7646 = vunpack.c.h.b16 %v4570
    %v7647 = vunpack.c.l.b16 %v4571
    %v7648 = vunpack.c.h.b16 %v4571
    %v7649 = vunpack.c.l.b16 %v4572
    %v7650 = vunpack.c.h.b16 %v4572
    %v7651 = vunpack.c.l.b16 %v4573
    %v7652 = vunpack.c.h.b16 %v4573
    %v7653 = vunpack.c.l.b16 %v4574
    %v7654 = vunpack.c.h.b16 %v4574
    %v7655 = vunpack.c.l.b16 %v4575
    %v7656 = vunpack.c.h.b16 %v4575
    %v7657 = vunpack.c.l.b16 %v4576
    %v7658 = vunpack.c.h.b16 %v4576
    %v7659 = vunpack.c.l.b16 %v4577
    %v7660 = vunpack.c.h.b16 %v4577
    %v7661 = vunpack.c.l.b16 %v4578
    %v7662 = vunpack.c.h.b16 %v4578
    %v7663 = vunpack.c.l.b16 %v4579
    %v7664 = vunpack.c.h.b16 %v4579
    %v7665 = vunpack.c.l.b16 %v4580
    %v7666 = vunpack.c.h.b16 %v4580
    %v7667 = vunpack.c.l.b16 %v4581
    %v7668 = vunpack.c.h.b16 %v4581
    %v7669 = vunpack.c.l.b16 %v4582
    %v7670 = vunpack.c.h.b16 %v4582
    %v7671 = vunpack.c.l.b16 %v4583
    %v7672 = vunpack.c.h.b16 %v4583
    %v7673 = vunpack.c.l.b16 %v4584
    %v7674 = vunpack.c.h.b16 %v4584
    %v7675 = vunpack.c.l.b16 %v4585
    %v7676 = vunpack.c.h.b16 %v4585
    %v7677 = vunpack.c.l.b16 %v4586
    %v7678 = vunpack.c.h.b16 %v4586
    %v7679 = vunpack.c.l.b16 %v4587
    %v7680 = vunpack.c.h.b16 %v4587
    %v7681 = vunpack.c.l.b16 %v4588
    %v7682 = vunpack.c.h.b16 %v4588
    %v7683 = vunpack.c.l.b16 %v4589
    %v7684 = vunpack.c.h.b16 %v4589
    %v7685 = vunpack.c.l.b16 %v4590
    %v7686 = vunpack.c.h.b16 %v4590
    %v7687 = vunpack.c.l.b16 %v4591
    %v7688 = vunpack.c.h.b16 %v4591
    %v7689 = vunpack.c.l.b16 %v4592
    %v7690 = vunpack.c.h.b16 %v4592
    %v7691 = vunpack.c.l.b16 %v4593
    %v7692 = vunpack.c.h.b16 %v4593
    %v7693 = vunpack.c.l.b16 %v4594
    %v7694 = vunpack.c.h.b16 %v4594
    %v7695 = vunpack.c.l.b16 %v4595
    %v7696 = vunpack.c.h.b16 %v4595
    %v7697 = vunpack.c.l.b16 %v4596
    %v7698 = vunpack.c.h.b16 %v4596
    %v7699 = vunpack.c.l.b16 %v4597
    %v7700 = vunpack.c.h.b16 %v4597
    %v7701 = vunpack.c.l.b16 %v4598
    %v7702 = vunpack.c.h.b16 %v4598
    %v7703 = vunpack.c.l.b16 %v4599
    %v7704 = vunpack.c.h.b16 %v4599
    %v7705 = vunpack.c.l.b16 %v4600
    %v7706 = vunpack.c.h.b16 %v4600
    %v7707 = vunpack.c.l.b16 %v4601
    %v7708 = vunpack.c.h.b16 %v4601
    %v7709 = vunpack.c.l.b16 %v4602
    %v7710 = vunpack.c.h.b16 %v4602
    %v7711 = vunpack.c.l.b16 %v4603
    %v7712 = vunpack.c.h.b16 %v4603
    %v7713 = vunpack.c.l.b16 %v4604
    %v7714 = vunpack.c.h.b16 %v4604
    %v7715 = vunpack.c.l.b16 %v4605
    %v7716 = vunpack.c.h.b16 %v4605
    %v7717 = vunpack.c.l.b16 %v4606
    %v7718 = vunpack.c.h.b16 %v4606
    %v7719 = vunpack.c.l.b16 %v4607
    %v7720 = vunpack.c.h.b16 %v4607
    %v7721 = vunpack.c.l.b16 %v4608
    %v7722 = vunpack.c.h.b16 %v4608
    %v7723 = vunpack.c.l.b16 %v4609
    %v7724 = vunpack.c.h.b16 %v4609
    %v7725 = vunpack.c.l.b16 %v4610
    %v7726 = vunpack.c.h.b16 %v4610
    %v7727 = vunpack.c.l.b16 %v4611
    %v7728 = vunpack.c.h.b16 %v4611
    %v7729 = vunpack.c.l.b16 %v4612
    %v7730 = vunpack.c.h.b16 %v4612
    %v7731 = vunpack.c.l.b16 %v4613
    %v7732 = vunpack.c.h.b16 %v4613
    %v7733 = vunpack.c.l.b16 %v4614
    %v7734 = vunpack.c.h.b16 %v4614
    %v7735 = vunpack.c.l.b16 %v4615
    %v7736 = vunpack.c.h.b16 %v4615
    %v7737 = vunpack.c.l.b16 %v4616
    %v7738 = vunpack.c.h.b16 %v4616
    %v7739 = vunpack.c.l.b16 %v4617
    %v7740 = vunpack.c.h.b16 %v4617
    %v7741 = vunpack.c.l.b16 %v4618
    %v7742 = vunpack.c.h.b16 %v4618
    %v7743 = vunpack.c.l.b16 %v4619
    %v7744 = vunpack.c.h.b16 %v4619
    %v7745 = vunpack.c.l.b16 %v4620
    %v7746 = vunpack.c.h.b16 %v4620
    %v7747 = vunpack.c.l.b16 %v4621
    %v7748 = vunpack.c.h.b16 %v4621
    %v7749 = vunpack.c.l.b16 %v4622
    %v7750 = vunpack.c.h.b16 %v4622
    %v7751 = vunpack.c.l.b16 %v4623
    %v7752 = vunpack.c.h.b16 %v4623
    %v7753 = vunpack.c.l.b16 %v4624
    %v7754 = vunpack.c.h.b16 %v4624
    %v7755 = vunpack.c.l.b16 %v4625
    %v7756 = vunpack.c.h.b16 %v4625
    %v7757 = vunpack.c.l.b16 %v4626
    %v7758 = vunpack.c.h.b16 %v4626
    %v7759 = vunpack.c.l.b16 %v4627
    %v7760 = vunpack.c.h.b16 %v4627
    %v7761 = vunpack.c.l.b16 %v4628
    %v7762 = vunpack.c.h.b16 %v4628
    %v7763 = vunpack.c.l.b16 %v4629
    %v7764 = vunpack.c.h.b16 %v4629
    %v7765 = vunpack.c.l.b16 %v4630
    %v7766 = vunpack.c.h.b16 %v4630
    %v7767 = vunpack.c.l.b16 %v4631
    %v7768 = vunpack.c.h.b16 %v4631
    %v7769 = vunpack.c.l.b16 %v4632
    %v7770 = vunpack.c.h.b16 %v4632
    %v7771 = vunpack.c.l.b16 %v4633
    %v7772 = vunpack.c.h.b16 %v4633
    %v7773 = vunpack.c.l.b16 %v4634
    %v7774 = vunpack.c.h.b16 %v4634
    %v7775 = vunpack.c.l.b16 %v4635
    %v7776 = vunpack.c.h.b16 %v4635
    %v7777 = vunpack.c.l.b16 %v4636
    %v7778 = vunpack.c.h.b16 %v4636
    %v7779 = vunpack.c.l.b16 %v4637
    %v7780 = vunpack.c.h.b16 %v4637
    %v7781 = vunpack.c.l.b16 %v4638
    %v7782 = vunpack.c.h.b16 %v4638
    %v7783 = vunpack.c.l.b16 %v4639
    %v7784 = vunpack.c.h.b16 %v4639
    %v7785 = vunpack.c.l.b16 %v4640
    %v7786 = vunpack.c.h.b16 %v4640
    %v7787 = vpack.c.b16 %v5747, %v5739
    %v7788 = vpack.c.b16 %v5748, %v5740
    %v7789 = vpack.c.b16 %v5749, %v5741
    %v7790 = vpack.c.b16 %v5750, %v5742
    %v7791 = vpack.c.b16 %v5751, %v5743
    %v7792 = vpack.c.b16 %v5752, %v5744
    %v7793 = vpack.c.b16 %v5753, %v5745
    %v7794 = vpack.c.b16 %v5754, %v5746
    %v7795 = vpack.c.b16 %v5763, %v5755
    %v7796 = vpack.c.b16 %v5764, %v5756
    %v7797 = vpack.c.b16 %v5765, %v5757
    %v7798 = vpack.c.b16 %v5766, %v5758
    %v7799 = vpack.c.b16 %v5767, %v5759
    %v7800 = vpack.c.b16 %v5768, %v5760
    %v7801 = vpack.c.b16 %v5769, %v5761
    %v7802 = vpack.c.b16 %v5770, %v5762
    %v7803 = vpack.c.b16 %v5779, %v5771
    %v7804 = vpack.c.b16 %v5780, %v5772
    %v7805 = vpack.c.b16 %v5781, %v5773
    %v7806 = vpack.c.b16 %v5782, %v5774
    %v7807 = vpack.c.b16 %v5783, %v5775
    %v7808 = vpack.c.b16 %v5784, %v5776
    %v7809 = vpack.c.b16 %v5785, %v5777
    %v7810 = vpack.c.b16 %v5786, %v5778
    %v7811 = vpack.c.b16 %v5795, %v5787
    %v7812 = vpack.c.b16 %v5796, %v5788
    %v7813 = vpack.c.b16 %v5797, %v5789
    %v7814 = vpack.c.b16 %v5798, %v5790
    %v7815 = vpack.c.b16 %v5799, %v5791
    %v7816 = vpack.c.b16 %v5800, %v5792
    %v7817 = vpack.c.b16 %v5801, %v5793
    %v7818 = vpack.c.b16 %v5802, %v5794
    %v7819 = vpack.c.b16 %v5811, %v5803
    %v7820 = vpack.c.b16 %v5812, %v5804
    %v7821 = vpack.c.b16 %v5813, %v5805
    %v7822 = vpack.c.b16 %v5814, %v5806
    %v7823 = vpack.c.b16 %v5815, %v5807
    %v7824 = vpack.c.b16 %v5816, %v5808
    %v7825 = vpack.c.b16 %v5817, %v5809
    %v7826 = vpack.c.b16 %v5818, %v5810
    %v7827 = vpack.c.b16 %v5827, %v5819
    %v7828 = vpack.c.b16 %v5828, %v5820
    %v7829 = vpack.c.b16 %v5829, %v5821
    %v7830 = vpack.c.b16 %v5830, %v5822
    %v7831 = vpack.c.b16 %v5831, %v5823
    %v7832 = vpack.c.b16 %v5832, %v5824
    %v7833 = vpack.c.b16 %v5833, %v5825
    %v7834 = vpack.c.b16 %v5834, %v5826
    %v7835 = vpack.c.b16 %v5843, %v5835
    %v7836 = vpack.c.b16 %v5844, %v5836
    %v7837 = vpack.c.b16 %v5845, %v5837
    %v7838 = vpack.c.b16 %v5846, %v5838
    %v7839 = vpack.c.b16 %v5847, %v5839
    %v7840 = vpack.c.b16 %v5848, %v5840
    %v7841 = vpack.c.b16 %v5849, %v5841
    %v7842 = vpack.c.b16 %v5850, %v5842
    %v7843 = vpack.c.b16 %v5859, %v5851
    %v7844 = vpack.c.b16 %v5860, %v5852
    %v7845 = vpack.c.b16 %v5861, %v5853
    %v7846 = vpack.c.b16 %v5862, %v5854
    %v7847 = vpack.c.b16 %v5863, %v5855
    %v7848 = vpack.c.b16 %v5864, %v5856
    %v7849 = vpack.c.b16 %v5865, %v5857
    %v7850 = vpack.c.b16 %v5866, %v5858
    %v7851 = vpack.c.b16 %v5875, %v5867
    %v7852 = vpack.c.b16 %v5876, %v5868
    %v7853 = vpack.c.b16 %v5877, %v5869
    %v7854 = vpack.c.b16 %v5878, %v5870
    %v7855 = vpack.c.b16 %v5879, %v5871
    %v7856 = vpack.c.b16 %v5880, %v5872
    %v7857 = vpack.c.b16 %v5881, %v5873
    %v7858 = vpack.c.b16 %v5882, %v5874
    %v7859 = vpack.c.b16 %v5891, %v5883
    %v7860 = vpack.c.b16 %v5892, %v5884
    %v7861 = vpack.c.b16 %v5893, %v5885
    %v7862 = vpack.c.b16 %v5894, %v5886
    %v7863 = vpack.c.b16 %v5895, %v5887
    %v7864 = vpack.c.b16 %v5896, %v5888
    %v7865 = vpack.c.b16 %v5897, %v5889
    %v7866 = vpack.c.b16 %v5898, %v5890
    %v7867 = vpack.c.b16 %v5907, %v5899
    %v7868 = vpack.c.b16 %v5908, %v5900
    %v7869 = vpack.c.b16 %v5909, %v5901
    %v7870 = vpack.c.b16 %v5910, %v5902
    %v7871 = vpack.c.b16 %v5911, %v5903
    %v7872 = vpack.c.b16 %v5912, %v5904
    %v7873 = vpack.c.b16 %v5913, %v5905
    %v7874 = vpack.c.b16 %v5914, %v5906
    %v7875 = vpack.c.b16 %v5923, %v5915
    %v7876 = vpack.c.b16 %v5924, %v5916
    %v7877 = vpack.c.b16 %v5925, %v5917
    %v7878 = vpack.c.b16 %v5926, %v5918
    %v7879 = vpack.c.b16 %v5927, %v5919
    %v7880 = vpack.c.b16 %v5928, %v5920
    %v7881 = vpack.c.b16 %v5929, %v5921
    %v7882 = vpack.c.b16 %v5930, %v5922
    %v7883 = vpack.c.b16 %v5939, %v5931
    %v7884 = vpack.c.b16 %v5940, %v5932
    %v7885 = vpack.c.b16 %v5941, %v5933
    %v7886 = vpack.c.b16 %v5942, %v5934
    %v7887 = vpack.c.b16 %v5943, %v5935
    %v7888 = vpack.c.b16 %v5944, %v5936
    %v7889 = vpack.c.b16 %v5945, %v5937
    %v7890 = vpack.c.b16 %v5946, %v5938
    %v7891 = vpack.c.b16 %v5955, %v5947
    %v7892 = vpack.c.b16 %v5956, %v5948
    %v7893 = vpack.c.b16 %v5957, %v5949
    %v7894 = vpack.c.b16 %v5958, %v5950
    %v7895 = vpack.c.b16 %v5959, %v5951
    %v7896 = vpack.c.b16 %v5960, %v5952
    %v7897 = vpack.c.b16 %v5961, %v5953
    %v7898 = vpack.c.b16 %v5962, %v5954
    %v7899 = vpack.c.b16 %v5971, %v5963
    %v7900 = vpack.c.b16 %v5972, %v5964
    %v7901 = vpack.c.b16 %v5973, %v5965
    %v7902 = vpack.c.b16 %v5974, %v5966
    %v7903 = vpack.c.b16 %v5975, %v5967
    %v7904 = vpack.c.b16 %v5976, %v5968
    %v7905 = vpack.c.b16 %v5977, %v5969
    %v7906 = vpack.c.b16 %v5978, %v5970
    %v7907 = vpack.c.b16 %v5987, %v5979
    %v7908 = vpack.c.b16 %v5988, %v5980
    %v7909 = vpack.c.b16 %v5989, %v5981
    %v7910 = vpack.c.b16 %v5990, %v5982
    %v7911 = vpack.c.b16 %v5991, %v5983
    %v7912 = vpack.c.b16 %v5992, %v5984
    %v7913 = vpack.c.b16 %v5993, %v5985
    %v7914 = vpack.c.b16 %v5994, %v5986
    %v7915 = vpack.c.b16 %v6003, %v5995
    %v7916 = vpack.c.b16 %v6004, %v5996
    %v7917 = vpack.c.b16 %v6005, %v5997
    %v7918 = vpack.c.b16 %v6006, %v5998
    %v7919 = vpack.c.b16 %v6007, %v5999
    %v7920 = vpack.c.b16 %v6008, %v6000
    %v7921 = vpack.c.b16 %v6009, %v6001
    %v7922 = vpack.c.b16 %v6010, %v6002
    %v7923 = vpack.c.b16 %v6019, %v6011
    %v7924 = vpack.c.b16 %v6020, %v6012
    %v7925 = vpack.c.b16 %v6021, %v6013
    %v7926 = vpack.c.b16 %v6022, %v6014
    %v7927 = vpack.c.b16 %v6023, %v6015
    %v7928 = vpack.c.b16 %v6024, %v6016
    %v7929 = vpack.c.b16 %v6025, %v6017
    %v7930 = vpack.c.b16 %v6026, %v6018
    %v7931 = vpack.c.b16 %v6035, %v6027
    %v7932 = vpack.c.b16 %v6036, %v6028
    %v7933 = vpack.c.b16 %v6037, %v6029
    %v7934 = vpack.c.b16 %v6038, %v6030
    %v7935 = vpack.c.b16 %v6039, %v6031
    %v7936 = vpack.c.b16 %v6040, %v6032
    %v7937 = vpack.c.b16 %v6041, %v6033
    %v7938 = vpack.c.b16 %v6042, %v6034
    %v7939 = vpack.c.b16 %v6051, %v6043
    %v7940 = vpack.c.b16 %v6052, %v6044
    %v7941 = vpack.c.b16 %v6053, %v6045
    %v7942 = vpack.c.b16 %v6054, %v6046
    %v7943 = vpack.c.b16 %v6055, %v6047
    %v7944 = vpack.c.b16 %v6056, %v6048
    %v7945 = vpack.c.b16 %v6057, %v6049
    %v7946 = vpack.c.b16 %v6058, %v6050
    %v7947 = vpack.c.b16 %v6067, %v6059
    %v7948 = vpack.c.b16 %v6068, %v6060
    %v7949 = vpack.c.b16 %v6069, %v6061
    %v7950 = vpack.c.b16 %v6070, %v6062
    %v7951 = vpack.c.b16 %v6071, %v6063
    %v7952 = vpack.c.b16 %v6072, %v6064
    %v7953 = vpack.c.b16 %v6073, %v6065
    %v7954 = vpack.c.b16 %v6074, %v6066
    %v7955 = vpack.c.b16 %v6083, %v6075
    %v7956 = vpack.c.b16 %v6084, %v6076
    %v7957 = vpack.c.b16 %v6085, %v6077
    %v7958 = vpack.c.b16 %v6086, %v6078
    %v7959 = vpack.c.b16 %v6087, %v6079
    %v7960 = vpack.c.b16 %v6088, %v6080
    %v7961 = vpack.c.b16 %v6089, %v6081
    %v7962 = vpack.c.b16 %v6090, %v6082
    %v7963 = vpack.c.b16 %v6099, %v6091
    %v7964 = vpack.c.b16 %v6100, %v6092
    %v7965 = vpack.c.b16 %v6101, %v6093
    %v7966 = vpack.c.b16 %v6102, %v6094
    %v7967 = vpack.c.b16 %v6103, %v6095
    %v7968 = vpack.c.b16 %v6104, %v6096
    %v7969 = vpack.c.b16 %v6105, %v6097
    %v7970 = vpack.c.b16 %v6106, %v6098
    %v7971 = vpack.c.b16 %v6115, %v6107
    %v7972 = vpack.c.b16 %v6116, %v6108
    %v7973 = vpack.c.b16 %v6117, %v6109
    %v7974 = vpack.c.b16 %v6118, %v6110
    %v7975 = vpack.c.b16 %v6119, %v6111
    %v7976 = vpack.c.b16 %v6120, %v6112
    %v7977 = vpack.c.b16 %v6121, %v6113
    %v7978 = vpack.c.b16 %v6122, %v6114
    %v7979 = vpack.c.b16 %v6131, %v6123
    %v7980 = vpack.c.b16 %v6132, %v6124
    %v7981 = vpack.c.b16 %v6133, %v6125
    %v7982 = vpack.c.b16 %v6134, %v6126
    %v7983 = vpack.c.b16 %v6135, %v6127
    %v7984 = vpack.c.b16 %v6136, %v6128
    %v7985 = vpack.c.b16 %v6137, %v6129
    %v7986 = vpack.c.b16 %v6138, %v6130
    %v7987 = vpack.c.b16 %v6147, %v6139
    %v7988 = vpack.c.b16 %v6148, %v6140
    %v7989 = vpack.c.b16 %v6149, %v6141
    %v7990 = vpack.c.b16 %v6150, %v6142
    %v7991 = vpack.c.b16 %v6151, %v6143
    %v7992 = vpack.c.b16 %v6152, %v6144
    %v7993 = vpack.c.b16 %v6153, %v6145
    %v7994 = vpack.c.b16 %v6154, %v6146
    %v7995 = vpack.c.b16 %v6163, %v6155
    %v7996 = vpack.c.b16 %v6164, %v6156
    %v7997 = vpack.c.b16 %v6165, %v6157
    %v7998 = vpack.c.b16 %v6166, %v6158
    %v7999 = vpack.c.b16 %v6167, %v6159
    %v8000 = vpack.c.b16 %v6168, %v6160
    %v8001 = vpack.c.b16 %v6169, %v6161
    %v8002 = vpack.c.b16 %v6170, %v6162
    %v8003 = vpack.c.b16 %v6179, %v6171
    %v8004 = vpack.c.b16 %v6180, %v6172
    %v8005 = vpack.c.b16 %v6181, %v6173
    %v8006 = vpack.c.b16 %v6182, %v6174
    %v8007 = vpack.c.b16 %v6183, %v6175
    %v8008 = vpack.c.b16 %v6184, %v6176
    %v8009 = vpack.c.b16 %v6185, %v6177
    %v8010 = vpack.c.b16 %v6186, %v6178
    %v8011 = vpack.c.b16 %v6195, %v6187
    %v8012 = vpack.c.b16 %v6196, %v6188
    %v8013 = vpack.c.b16 %v6197, %v6189
    %v8014 = vpack.c.b16 %v6198, %v6190
    %v8015 = vpack.c.b16 %v6199, %v6191
    %v8016 = vpack.c.b16 %v6200, %v6192
    %v8017 = vpack.c.b16 %v6201, %v6193
    %v8018 = vpack.c.b16 %v6202, %v6194
    %v8019 = vpack.c.b16 %v6211, %v6203
    %v8020 = vpack.c.b16 %v6212, %v6204
    %v8021 = vpack.c.b16 %v6213, %v6205
    %v8022 = vpack.c.b16 %v6214, %v6206
    %v8023 = vpack.c.b16 %v6215, %v6207
    %v8024 = vpack.c.b16 %v6216, %v6208
    %v8025 = vpack.c.b16 %v6217, %v6209
    %v8026 = vpack.c.b16 %v6218, %v6210
    %v8027 = vpack.c.b16 %v6227, %v6219
    %v8028 = vpack.c.b16 %v6228, %v6220
    %v8029 = vpack.c.b16 %v6229, %v6221
    %v8030 = vpack.c.b16 %v6230, %v6222
    %v8031 = vpack.c.b16 %v6231, %v6223
    %v8032 = vpack.c.b16 %v6232, %v6224
    %v8033 = vpack.c.b16 %v6233, %v6225
    %v8034 = vpack.c.b16 %v6234, %v6226
    %v8035 = vpack.c.b16 %v6243, %v6235
    %v8036 = vpack.c.b16 %v6244, %v6236
    %v8037 = vpack.c.b16 %v6245, %v6237
    %v8038 = vpack.c.b16 %v6246, %v6238
    %v8039 = vpack.c.b16 %v6247, %v6239
    %v8040 = vpack.c.b16 %v6248, %v6240
    %v8041 = vpack.c.b16 %v6249, %v6241
    %v8042 = vpack.c.b16 %v6250, %v6242
    %v8043 = vpack.c.b16 %v6259, %v6251
    %v8044 = vpack.c.b16 %v6260, %v6252
    %v8045 = vpack.c.b16 %v6261, %v6253
    %v8046 = vpack.c.b16 %v6262, %v6254
    %v8047 = vpack.c.b16 %v6263, %v6255
    %v8048 = vpack.c.b16 %v6264, %v6256
    %v8049 = vpack.c.b16 %v6265, %v6257
    %v8050 = vpack.c.b16 %v6266, %v6258
    %v8051 = vpack.c.b16 %v6275, %v6267
    %v8052 = vpack.c.b16 %v6276, %v6268
    %v8053 = vpack.c.b16 %v6277, %v6269
    %v8054 = vpack.c.b16 %v6278, %v6270
    %v8055 = vpack.c.b16 %v6279, %v6271
    %v8056 = vpack.c.b16 %v6280, %v6272
    %v8057 = vpack.c.b16 %v6281, %v6273
    %v8058 = vpack.c.b16 %v6282, %v6274
    %v8059 = vpack.c.b16 %v6291, %v6283
    %v8060 = vpack.c.b16 %v6292, %v6284
    %v8061 = vpack.c.b16 %v6293, %v6285
    %v8062 = vpack.c.b16 %v6294, %v6286
    %v8063 = vpack.c.b16 %v6295, %v6287
    %v8064 = vpack.c.b16 %v6296, %v6288
    %v8065 = vpack.c.b16 %v6297, %v6289
    %v8066 = vpack.c.b16 %v6298, %v6290
    %v8067 = vpack.c.b16 %v6307, %v6299
    %v8068 = vpack.c.b16 %v6308, %v6300
    %v8069 = vpack.c.b16 %v6309, %v6301
    %v8070 = vpack.c.b16 %v6310, %v6302
    %v8071 = vpack.c.b16 %v6311, %v6303
    %v8072 = vpack.c.b16 %v6312, %v6304
    %v8073 = vpack.c.b16 %v6313, %v6305
    %v8074 = vpack.c.b16 %v6314, %v6306
    %v8075 = vpack.c.b16 %v6323, %v6315
    %v8076 = vpack.c.b16 %v6324, %v6316
    %v8077 = vpack.c.b16 %v6325, %v6317
    %v8078 = vpack.c.b16 %v6326, %v6318
    %v8079 = vpack.c.b16 %v6327, %v6319
    %v8080 = vpack.c.b16 %v6328, %v6320
    %v8081 = vpack.c.b16 %v6329, %v6321
    %v8082 = vpack.c.b16 %v6330, %v6322
    %v8083 = vpack.c.b16 %v6339, %v6331
    %v8084 = vpack.c.b16 %v6340, %v6332
    %v8085 = vpack.c.b16 %v6341, %v6333
    %v8086 = vpack.c.b16 %v6342, %v6334
    %v8087 = vpack.c.b16 %v6343, %v6335
    %v8088 = vpack.c.b16 %v6344, %v6336
    %v8089 = vpack.c.b16 %v6345, %v6337
    %v8090 = vpack.c.b16 %v6346, %v6338
    %v8091 = vpack.c.b16 %v6355, %v6347
    %v8092 = vpack.c.b16 %v6356, %v6348
    %v8093 = vpack.c.b16 %v6357, %v6349
    %v8094 = vpack.c.b16 %v6358, %v6350
    %v8095 = vpack.c.b16 %v6359, %v6351
    %v8096 = vpack.c.b16 %v6360, %v6352
    %v8097 = vpack.c.b16 %v6361, %v6353
    %v8098 = vpack.c.b16 %v6362, %v6354
    %v8099 = vpack.c.b16 %v6371, %v6363
    %v8100 = vpack.c.b16 %v6372, %v6364
    %v8101 = vpack.c.b16 %v6373, %v6365
    %v8102 = vpack.c.b16 %v6374, %v6366
    %v8103 = vpack.c.b16 %v6375, %v6367
    %v8104 = vpack.c.b16 %v6376, %v6368
    %v8105 = vpack.c.b16 %v6377, %v6369
    %v8106 = vpack.c.b16 %v6378, %v6370
    %v8107 = vpack.c.b16 %v6387, %v6379
    %v8108 = vpack.c.b16 %v6388, %v6380
    %v8109 = vpack.c.b16 %v6389, %v6381
    %v8110 = vpack.c.b16 %v6390, %v6382
    %v8111 = vpack.c.b16 %v6391, %v6383
    %v8112 = vpack.c.b16 %v6392, %v6384
    %v8113 = vpack.c.b16 %v6393, %v6385
    %v8114 = vpack.c.b16 %v6394, %v6386
    %v8115 = vpack.c.b16 %v6403, %v6395
    %v8116 = vpack.c.b16 %v6404, %v6396
    %v8117 = vpack.c.b16 %v6405, %v6397
    %v8118 = vpack.c.b16 %v6406, %v6398
    %v8119 = vpack.c.b16 %v6407, %v6399
    %v8120 = vpack.c.b16 %v6408, %v6400
    %v8121 = vpack.c.b16 %v6409, %v6401
    %v8122 = vpack.c.b16 %v6410, %v6402
    %v8123 = vpack.c.b16 %v6419, %v6411
    %v8124 = vpack.c.b16 %v6420, %v6412
    %v8125 = vpack.c.b16 %v6421, %v6413
    %v8126 = vpack.c.b16 %v6422, %v6414
    %v8127 = vpack.c.b16 %v6423, %v6415
    %v8128 = vpack.c.b16 %v6424, %v6416
    %v8129 = vpack.c.b16 %v6425, %v6417
    %v8130 = vpack.c.b16 %v6426, %v6418
    %v8131 = vpack.c.b16 %v6435, %v6427
    %v8132 = vpack.c.b16 %v6436, %v6428
    %v8133 = vpack.c.b16 %v6437, %v6429
    %v8134 = vpack.c.b16 %v6438, %v6430
    %v8135 = vpack.c.b16 %v6439, %v6431
    %v8136 = vpack.c.b16 %v6440, %v6432
    %v8137 = vpack.c.b16 %v6441, %v6433
    %v8138 = vpack.c.b16 %v6442, %v6434
    %v8139 = vpack.c.b16 %v6451, %v6443
    %v8140 = vpack.c.b16 %v6452, %v6444
    %v8141 = vpack.c.b16 %v6453, %v6445
    %v8142 = vpack.c.b16 %v6454, %v6446
    %v8143 = vpack.c.b16 %v6455, %v6447
    %v8144 = vpack.c.b16 %v6456, %v6448
    %v8145 = vpack.c.b16 %v6457, %v6449
    %v8146 = vpack.c.b16 %v6458, %v6450
    %v8147 = vpack.c.b16 %v6467, %v6459
    %v8148 = vpack.c.b16 %v6468, %v6460
    %v8149 = vpack.c.b16 %v6469, %v6461
    %v8150 = vpack.c.b16 %v6470, %v6462
    %v8151 = vpack.c.b16 %v6471, %v6463
    %v8152 = vpack.c.b16 %v6472, %v6464
    %v8153 = vpack.c.b16 %v6473, %v6465
    %v8154 = vpack.c.b16 %v6474, %v6466
    %v8155 = vpack.c.b16 %v6483, %v6475
    %v8156 = vpack.c.b16 %v6484, %v6476
    %v8157 = vpack.c.b16 %v6485, %v6477
    %v8158 = vpack.c.b16 %v6486, %v6478
    %v8159 = vpack.c.b16 %v6487, %v6479
    %v8160 = vpack.c.b16 %v6488, %v6480
    %v8161 = vpack.c.b16 %v6489, %v6481
    %v8162 = vpack.c.b16 %v6490, %v6482
    %v8163 = vpack.c.b16 %v6499, %v6491
    %v8164 = vpack.c.b16 %v6500, %v6492
    %v8165 = vpack.c.b16 %v6501, %v6493
    %v8166 = vpack.c.b16 %v6502, %v6494
    %v8167 = vpack.c.b16 %v6503, %v6495
    %v8168 = vpack.c.b16 %v6504, %v6496
    %v8169 = vpack.c.b16 %v6505, %v6497
    %v8170 = vpack.c.b16 %v6506, %v6498
    %v8171 = vpack.c.b16 %v6515, %v6507
    %v8172 = vpack.c.b16 %v6516, %v6508
    %v8173 = vpack.c.b16 %v6517, %v6509
    %v8174 = vpack.c.b16 %v6518, %v6510
    %v8175 = vpack.c.b16 %v6519, %v6511
    %v8176 = vpack.c.b16 %v6520, %v6512
    %v8177 = vpack.c.b16 %v6521, %v6513
    %v8178 = vpack.c.b16 %v6522, %v6514
    %v8179 = vpack.c.b16 %v6531, %v6523
    %v8180 = vpack.c.b16 %v6532, %v6524
    %v8181 = vpack.c.b16 %v6533, %v6525
    %v8182 = vpack.c.b16 %v6534, %v6526
    %v8183 = vpack.c.b16 %v6535, %v6527
    %v8184 = vpack.c.b16 %v6536, %v6528
    %v8185 = vpack.c.b16 %v6537, %v6529
    %v8186 = vpack.c.b16 %v6538, %v6530
    %v8187 = vpack.c.b16 %v6547, %v6539
    %v8188 = vpack.c.b16 %v6548, %v6540
    %v8189 = vpack.c.b16 %v6549, %v6541
    %v8190 = vpack.c.b16 %v6550, %v6542
    %v8191 = vpack.c.b16 %v6551, %v6543
    %v8192 = vpack.c.b16 %v6552, %v6544
    %v8193 = vpack.c.b16 %v6553, %v6545
    %v8194 = vpack.c.b16 %v6554, %v6546
    %v8195 = vpack.c.b16 %v6563, %v6555
    %v8196 = vpack.c.b16 %v6564, %v6556
    %v8197 = vpack.c.b16 %v6565, %v6557
    %v8198 = vpack.c.b16 %v6566, %v6558
    %v8199 = vpack.c.b16 %v6567, %v6559
    %v8200 = vpack.c.b16 %v6568, %v6560
    %v8201 = vpack.c.b16 %v6569, %v6561
    %v8202 = vpack.c.b16 %v6570, %v6562
    %v8203 = vpack.c.b16 %v6579, %v6571
    %v8204 = vpack.c.b16 %v6580, %v6572
    %v8205 = vpack.c.b16 %v6581, %v6573
    %v8206 = vpack.c.b16 %v6582, %v6574
    %v8207 = vpack.c.b16 %v6583, %v6575
    %v8208 = vpack.c.b16 %v6584, %v6576
    %v8209 = vpack.c.b16 %v6585, %v6577
    %v8210 = vpack.c.b16 %v6586, %v6578
    %v8211 = vpack.c.b16 %v6595, %v6587
    %v8212 = vpack.c.b16 %v6596, %v6588
    %v8213 = vpack.c.b16 %v6597, %v6589
    %v8214 = vpack.c.b16 %v6598, %v6590
    %v8215 = vpack.c.b16 %v6599, %v6591
    %v8216 = vpack.c.b16 %v6600, %v6592
    %v8217 = vpack.c.b16 %v6601, %v6593
    %v8218 = vpack.c.b16 %v6602, %v6594
    %v8219 = vpack.c.b16 %v6611, %v6603
    %v8220 = vpack.c.b16 %v6612, %v6604
    %v8221 = vpack.c.b16 %v6613, %v6605
    %v8222 = vpack.c.b16 %v6614, %v6606
    %v8223 = vpack.c.b16 %v6615, %v6607
    %v8224 = vpack.c.b16 %v6616, %v6608
    %v8225 = vpack.c.b16 %v6617, %v6609
    %v8226 = vpack.c.b16 %v6618, %v6610
    %v8227 = vpack.c.b16 %v6627, %v6619
    %v8228 = vpack.c.b16 %v6628, %v6620
    %v8229 = vpack.c.b16 %v6629, %v6621
    %v8230 = vpack.c.b16 %v6630, %v6622
    %v8231 = vpack.c.b16 %v6631, %v6623
    %v8232 = vpack.c.b16 %v6632, %v6624
    %v8233 = vpack.c.b16 %v6633, %v6625
    %v8234 = vpack.c.b16 %v6634, %v6626
    %v8235 = vpack.c.b16 %v6643, %v6635
    %v8236 = vpack.c.b16 %v6644, %v6636
    %v8237 = vpack.c.b16 %v6645, %v6637
    %v8238 = vpack.c.b16 %v6646, %v6638
    %v8239 = vpack.c.b16 %v6647, %v6639
    %v8240 = vpack.c.b16 %v6648, %v6640
    %v8241 = vpack.c.b16 %v6649, %v6641
    %v8242 = vpack.c.b16 %v6650, %v6642
    %v8243 = vpack.c.b16 %v6659, %v6651
    %v8244 = vpack.c.b16 %v6660, %v6652
    %v8245 = vpack.c.b16 %v6661, %v6653
    %v8246 = vpack.c.b16 %v6662, %v6654
    %v8247 = vpack.c.b16 %v6663, %v6655
    %v8248 = vpack.c.b16 %v6664, %v6656
    %v8249 = vpack.c.b16 %v6665, %v6657
    %v8250 = vpack.c.b16 %v6666, %v6658
    %v8251 = vpack.c.b16 %v6675, %v6667
    %v8252 = vpack.c.b16 %v6676, %v6668
    %v8253 = vpack.c.b16 %v6677, %v6669
    %v8254 = vpack.c.b16 %v6678, %v6670
    %v8255 = vpack.c.b16 %v6679, %v6671
    %v8256 = vpack.c.b16 %v6680, %v6672
    %v8257 = vpack.c.b16 %v6681, %v6673
    %v8258 = vpack.c.b16 %v6682, %v6674
    %v8259 = vpack.c.b16 %v6691, %v6683
    %v8260 = vpack.c.b16 %v6692, %v6684
    %v8261 = vpack.c.b16 %v6693, %v6685
    %v8262 = vpack.c.b16 %v6694, %v6686
    %v8263 = vpack.c.b16 %v6695, %v6687
    %v8264 = vpack.c.b16 %v6696, %v6688
    %v8265 = vpack.c.b16 %v6697, %v6689
    %v8266 = vpack.c.b16 %v6698, %v6690
    %v8267 = vpack.c.b16 %v6707, %v6699
    %v8268 = vpack.c.b16 %v6708, %v6700
    %v8269 = vpack.c.b16 %v6709, %v6701
    %v8270 = vpack.c.b16 %v6710, %v6702
    %v8271 = vpack.c.b16 %v6711, %v6703
    %v8272 = vpack.c.b16 %v6712, %v6704
    %v8273 = vpack.c.b16 %v6713, %v6705
    %v8274 = vpack.c.b16 %v6714, %v6706
    %v8275 = vpack.c.b16 %v6723, %v6715
    %v8276 = vpack.c.b16 %v6724, %v6716
    %v8277 = vpack.c.b16 %v6725, %v6717
    %v8278 = vpack.c.b16 %v6726, %v6718
    %v8279 = vpack.c.b16 %v6727, %v6719
    %v8280 = vpack.c.b16 %v6728, %v6720
    %v8281 = vpack.c.b16 %v6729, %v6721
    %v8282 = vpack.c.b16 %v6730, %v6722
    %v8283 = vpack.c.b16 %v6739, %v6731
    %v8284 = vpack.c.b16 %v6740, %v6732
    %v8285 = vpack.c.b16 %v6741, %v6733
    %v8286 = vpack.c.b16 %v6742, %v6734
    %v8287 = vpack.c.b16 %v6743, %v6735
    %v8288 = vpack.c.b16 %v6744, %v6736
    %v8289 = vpack.c.b16 %v6745, %v6737
    %v8290 = vpack.c.b16 %v6746, %v6738
    %v8291 = vpack.c.b16 %v6755, %v6747
    %v8292 = vpack.c.b16 %v6756, %v6748
    %v8293 = vpack.c.b16 %v6757, %v6749
    %v8294 = vpack.c.b16 %v6758, %v6750
    %v8295 = vpack.c.b16 %v6759, %v6751
    %v8296 = vpack.c.b16 %v6760, %v6752
    %v8297 = vpack.c.b16 %v6761, %v6753
    %v8298 = vpack.c.b16 %v6762, %v6754
    %v8299 = vpack.c.b16 %v6771, %v6763
    %v8300 = vpack.c.b16 %v6772, %v6764
    %v8301 = vpack.c.b16 %v6773, %v6765
    %v8302 = vpack.c.b16 %v6774, %v6766
    %v8303 = vpack.c.b16 %v6775, %v6767
    %v8304 = vpack.c.b16 %v6776, %v6768
    %v8305 = vpack.c.b16 %v6777, %v6769
    %v8306 = vpack.c.b16 %v6778, %v6770
    %v8307 = vpack.c.b16 %v6787, %v6779
    %v8308 = vpack.c.b16 %v6788, %v6780
    %v8309 = vpack.c.b16 %v6789, %v6781
    %v8310 = vpack.c.b16 %v6790, %v6782
    %v8311 = vpack.c.b16 %v6791, %v6783
    %v8312 = vpack.c.b16 %v6792, %v6784
    %v8313 = vpack.c.b16 %v6793, %v6785
    %v8314 = vpack.c.b16 %v6794, %v6786
    %v8315 = vpack.c.b16 %v6803, %v6795
    %v8316 = vpack.c.b16 %v6804, %v6796
    %v8317 = vpack.c.b16 %v6805, %v6797
    %v8318 = vpack.c.b16 %v6806, %v6798
    %v8319 = vpack.c.b16 %v6807, %v6799
    %v8320 = vpack.c.b16 %v6808, %v6800
    %v8321 = vpack.c.b16 %v6809, %v6801
    %v8322 = vpack.c.b16 %v6810, %v6802
    %v8323 = vpack.c.b16 %v6819, %v6811
    %v8324 = vpack.c.b16 %v6820, %v6812
    %v8325 = vpack.c.b16 %v6821, %v6813
    %v8326 = vpack.c.b16 %v6822, %v6814
    %v8327 = vpack.c.b16 %v6823, %v6815
    %v8328 = vpack.c.b16 %v6824, %v6816
    %v8329 = vpack.c.b16 %v6825, %v6817
    %v8330 = vpack.c.b16 %v6826, %v6818
    %v8331 = vpack.c.b16 %v6835, %v6827
    %v8332 = vpack.c.b16 %v6836, %v6828
    %v8333 = vpack.c.b16 %v6837, %v6829
    %v8334 = vpack.c.b16 %v6838, %v6830
    %v8335 = vpack.c.b16 %v6839, %v6831
    %v8336 = vpack.c.b16 %v6840, %v6832
    %v8337 = vpack.c.b16 %v6841, %v6833
    %v8338 = vpack.c.b16 %v6842, %v6834
    %v8339 = vpack.c.b16 %v6851, %v6843
    %v8340 = vpack.c.b16 %v6852, %v6844
    %v8341 = vpack.c.b16 %v6853, %v6845
    %v8342 = vpack.c.b16 %v6854, %v6846
    %v8343 = vpack.c.b16 %v6855, %v6847
    %v8344 = vpack.c.b16 %v6856, %v6848
    %v8345 = vpack.c.b16 %v6857, %v6849
    %v8346 = vpack.c.b16 %v6858, %v6850
    %v8347 = vpack.c.b16 %v6867, %v6859
    %v8348 = vpack.c.b16 %v6868, %v6860
    %v8349 = vpack.c.b16 %v6869, %v6861
    %v8350 = vpack.c.b16 %v6870, %v6862
    %v8351 = vpack.c.b16 %v6871, %v6863
    %v8352 = vpack.c.b16 %v6872, %v6864
    %v8353 = vpack.c.b16 %v6873, %v6865
    %v8354 = vpack.c.b16 %v6874, %v6866
    %v8355 = vpack.c.b16 %v6883, %v6875
    %v8356 = vpack.c.b16 %v6884, %v6876
    %v8357 = vpack.c.b16 %v6885, %v6877
    %v8358 = vpack.c.b16 %v6886, %v6878
    %v8359 = vpack.c.b16 %v6887, %v6879
    %v8360 = vpack.c.b16 %v6888, %v6880
    %v8361 = vpack.c.b16 %v6889, %v6881
    %v8362 = vpack.c.b16 %v6890, %v6882
    %v8363 = vpack.c.b16 %v6899, %v6891
    %v8364 = vpack.c.b16 %v6900, %v6892
    %v8365 = vpack.c.b16 %v6901, %v6893
    %v8366 = vpack.c.b16 %v6902, %v6894
    %v8367 = vpack.c.b16 %v6903, %v6895
    %v8368 = vpack.c.b16 %v6904, %v6896
    %v8369 = vpack.c.b16 %v6905, %v6897
    %v8370 = vpack.c.b16 %v6906, %v6898
    %v8371 = vpack.c.b16 %v6915, %v6907
    %v8372 = vpack.c.b16 %v6916, %v6908
    %v8373 = vpack.c.b16 %v6917, %v6909
    %v8374 = vpack.c.b16 %v6918, %v6910
    %v8375 = vpack.c.b16 %v6919, %v6911
    %v8376 = vpack.c.b16 %v6920, %v6912
    %v8377 = vpack.c.b16 %v6921, %v6913
    %v8378 = vpack.c.b16 %v6922, %v6914
    %v8379 = vpack.c.b16 %v6931, %v6923
    %v8380 = vpack.c.b16 %v6932, %v6924
    %v8381 = vpack.c.b16 %v6933, %v6925
    %v8382 = vpack.c.b16 %v6934, %v6926
    %v8383 = vpack.c.b16 %v6935, %v6927
    %v8384 = vpack.c.b16 %v6936, %v6928
    %v8385 = vpack.c.b16 %v6937, %v6929
    %v8386 = vpack.c.b16 %v6938, %v6930
    %v8387 = vpack.c.b16 %v6947, %v6939
    %v8388 = vpack.c.b16 %v6948, %v6940
    %v8389 = vpack.c.b16 %v6949, %v6941
    %v8390 = vpack.c.b16 %v6950, %v6942
    %v8391 = vpack.c.b16 %v6951, %v6943
    %v8392 = vpack.c.b16 %v6952, %v6944
    %v8393 = vpack.c.b16 %v6953, %v6945
    %v8394 = vpack.c.b16 %v6954, %v6946
    %v8395 = vpack.c.b16 %v6963, %v6955
    %v8396 = vpack.c.b16 %v6964, %v6956
    %v8397 = vpack.c.b16 %v6965, %v6957
    %v8398 = vpack.c.b16 %v6966, %v6958
    %v8399 = vpack.c.b16 %v6967, %v6959
    %v8400 = vpack.c.b16 %v6968, %v6960
    %v8401 = vpack.c.b16 %v6969, %v6961
    %v8402 = vpack.c.b16 %v6970, %v6962
    %v8403 = vpack.c.b16 %v6979, %v6971
    %v8404 = vpack.c.b16 %v6980, %v6972
    %v8405 = vpack.c.b16 %v6981, %v6973
    %v8406 = vpack.c.b16 %v6982, %v6974
    %v8407 = vpack.c.b16 %v6983, %v6975
    %v8408 = vpack.c.b16 %v6984, %v6976
    %v8409 = vpack.c.b16 %v6985, %v6977
    %v8410 = vpack.c.b16 %v6986, %v6978
    %v8411 = vpack.c.b16 %v6995, %v6987
    %v8412 = vpack.c.b16 %v6996, %v6988
    %v8413 = vpack.c.b16 %v6997, %v6989
    %v8414 = vpack.c.b16 %v6998, %v6990
    %v8415 = vpack.c.b16 %v6999, %v6991
    %v8416 = vpack.c.b16 %v7000, %v6992
    %v8417 = vpack.c.b16 %v7001, %v6993
    %v8418 = vpack.c.b16 %v7002, %v6994
    %v8419 = vpack.c.b16 %v7011, %v7003
    %v8420 = vpack.c.b16 %v7012, %v7004
    %v8421 = vpack.c.b16 %v7013, %v7005
    %v8422 = vpack.c.b16 %v7014, %v7006
    %v8423 = vpack.c.b16 %v7015, %v7007
    %v8424 = vpack.c.b16 %v7016, %v7008
    %v8425 = vpack.c.b16 %v7017, %v7009
    %v8426 = vpack.c.b16 %v7018, %v7010
    %v8427 = vpack.c.b16 %v7027, %v7019
    %v8428 = vpack.c.b16 %v7028, %v7020
    %v8429 = vpack.c.b16 %v7029, %v7021
    %v8430 = vpack.c.b16 %v7030, %v7022
    %v8431 = vpack.c.b16 %v7031, %v7023
    %v8432 = vpack.c.b16 %v7032, %v7024
    %v8433 = vpack.c.b16 %v7033, %v7025
    %v8434 = vpack.c.b16 %v7034, %v7026
    %v8435 = vpack.c.b16 %v7043, %v7035
    %v8436 = vpack.c.b16 %v7044, %v7036
    %v8437 = vpack.c.b16 %v7045, %v7037
    %v8438 = vpack.c.b16 %v7046, %v7038
    %v8439 = vpack.c.b16 %v7047, %v7039
    %v8440 = vpack.c.b16 %v7048, %v7040
    %v8441 = vpack.c.b16 %v7049, %v7041
    %v8442 = vpack.c.b16 %v7050, %v7042
    %v8443 = vpack.c.b16 %v7059, %v7051
    %v8444 = vpack.c.b16 %v7060, %v7052
    %v8445 = vpack.c.b16 %v7061, %v7053
    %v8446 = vpack.c.b16 %v7062, %v7054
    %v8447 = vpack.c.b16 %v7063, %v7055
    %v8448 = vpack.c.b16 %v7064, %v7056
    %v8449 = vpack.c.b16 %v7065, %v7057
    %v8450 = vpack.c.b16 %v7066, %v7058
    %v8451 = vpack.c.b16 %v7075, %v7067
    %v8452 = vpack.c.b16 %v7076, %v7068
    %v8453 = vpack.c.b16 %v7077, %v7069
    %v8454 = vpack.c.b16 %v7078, %v7070
    %v8455 = vpack.c.b16 %v7079, %v7071
    %v8456 = vpack.c.b16 %v7080, %v7072
    %v8457 = vpack.c.b16 %v7081, %v7073
    %v8458 = vpack.c.b16 %v7082, %v7074
    %v8459 = vpack.c.b16 %v7091, %v7083
    %v8460 = vpack.c.b16 %v7092, %v7084
    %v8461 = vpack.c.b16 %v7093, %v7085
    %v8462 = vpack.c.b16 %v7094, %v7086
    %v8463 = vpack.c.b16 %v7095, %v7087
    %v8464 = vpack.c.b16 %v7096, %v7088
    %v8465 = vpack.c.b16 %v7097, %v7089
    %v8466 = vpack.c.b16 %v7098, %v7090
    %v8467 = vpack.c.b16 %v7107, %v7099
    %v8468 = vpack.c.b16 %v7108, %v7100
    %v8469 = vpack.c.b16 %v7109, %v7101
    %v8470 = vpack.c.b16 %v7110, %v7102
    %v8471 = vpack.c.b16 %v7111, %v7103
    %v8472 = vpack.c.b16 %v7112, %v7104
    %v8473 = vpack.c.b16 %v7113, %v7105
    %v8474 = vpack.c.b16 %v7114, %v7106
    %v8475 = vpack.c.b16 %v7123, %v7115
    %v8476 = vpack.c.b16 %v7124, %v7116
    %v8477 = vpack.c.b16 %v7125, %v7117
    %v8478 = vpack.c.b16 %v7126, %v7118
    %v8479 = vpack.c.b16 %v7127, %v7119
    %v8480 = vpack.c.b16 %v7128, %v7120
    %v8481 = vpack.c.b16 %v7129, %v7121
    %v8482 = vpack.c.b16 %v7130, %v7122
    %v8483 = vpack.c.b16 %v7139, %v7131
    %v8484 = vpack.c.b16 %v7140, %v7132
    %v8485 = vpack.c.b16 %v7141, %v7133
    %v8486 = vpack.c.b16 %v7142, %v7134
    %v8487 = vpack.c.b16 %v7143, %v7135
    %v8488 = vpack.c.b16 %v7144, %v7136
    %v8489 = vpack.c.b16 %v7145, %v7137
    %v8490 = vpack.c.b16 %v7146, %v7138
    %v8491 = vpack.c.b16 %v7155, %v7147
    %v8492 = vpack.c.b16 %v7156, %v7148
    %v8493 = vpack.c.b16 %v7157, %v7149
    %v8494 = vpack.c.b16 %v7158, %v7150
    %v8495 = vpack.c.b16 %v7159, %v7151
    %v8496 = vpack.c.b16 %v7160, %v7152
    %v8497 = vpack.c.b16 %v7161, %v7153
    %v8498 = vpack.c.b16 %v7162, %v7154
    %v8499 = vpack.c.b16 %v7171, %v7163
    %v8500 = vpack.c.b16 %v7172, %v7164
    %v8501 = vpack.c.b16 %v7173, %v7165
    %v8502 = vpack.c.b16 %v7174, %v7166
    %v8503 = vpack.c.b16 %v7175, %v7167
    %v8504 = vpack.c.b16 %v7176, %v7168
    %v8505 = vpack.c.b16 %v7177, %v7169
    %v8506 = vpack.c.b16 %v7178, %v7170
    %v8507 = vpack.c.b16 %v7187, %v7179
    %v8508 = vpack.c.b16 %v7188, %v7180
    %v8509 = vpack.c.b16 %v7189, %v7181
    %v8510 = vpack.c.b16 %v7190, %v7182
    %v8511 = vpack.c.b16 %v7191, %v7183
    %v8512 = vpack.c.b16 %v7192, %v7184
    %v8513 = vpack.c.b16 %v7193, %v7185
    %v8514 = vpack.c.b16 %v7194, %v7186
    %v8515 = vpack.c.b16 %v7203, %v7195
    %v8516 = vpack.c.b16 %v7204, %v7196
    %v8517 = vpack.c.b16 %v7205, %v7197
    %v8518 = vpack.c.b16 %v7206, %v7198
    %v8519 = vpack.c.b16 %v7207, %v7199
    %v8520 = vpack.c.b16 %v7208, %v7200
    %v8521 = vpack.c.b16 %v7209, %v7201
    %v8522 = vpack.c.b16 %v7210, %v7202
    %v8523 = vpack.c.b16 %v7219, %v7211
    %v8524 = vpack.c.b16 %v7220, %v7212
    %v8525 = vpack.c.b16 %v7221, %v7213
    %v8526 = vpack.c.b16 %v7222, %v7214
    %v8527 = vpack.c.b16 %v7223, %v7215
    %v8528 = vpack.c.b16 %v7224, %v7216
    %v8529 = vpack.c.b16 %v7225, %v7217
    %v8530 = vpack.c.b16 %v7226, %v7218
    %v8531 = vpack.c.b16 %v7235, %v7227
    %v8532 = vpack.c.b16 %v7236, %v7228
    %v8533 = vpack.c.b16 %v7237, %v7229
    %v8534 = vpack.c.b16 %v7238, %v7230
    %v8535 = vpack.c.b16 %v7239, %v7231
    %v8536 = vpack.c.b16 %v7240, %v7232
    %v8537 = vpack.c.b16 %v7241, %v7233
    %v8538 = vpack.c.b16 %v7242, %v7234
    %v8539 = vpack.c.b16 %v7251, %v7243
    %v8540 = vpack.c.b16 %v7252, %v7244
    %v8541 = vpack.c.b16 %v7253, %v7245
    %v8542 = vpack.c.b16 %v7254, %v7246
    %v8543 = vpack.c.b16 %v7255, %v7247
    %v8544 = vpack.c.b16 %v7256, %v7248
    %v8545 = vpack.c.b16 %v7257, %v7249
    %v8546 = vpack.c.b16 %v7258, %v7250
    %v8547 = vpack.c.b16 %v7267, %v7259
    %v8548 = vpack.c.b16 %v7268, %v7260
    %v8549 = vpack.c.b16 %v7269, %v7261
    %v8550 = vpack.c.b16 %v7270, %v7262
    %v8551 = vpack.c.b16 %v7271, %v7263
    %v8552 = vpack.c.b16 %v7272, %v7264
    %v8553 = vpack.c.b16 %v7273, %v7265
    %v8554 = vpack.c.b16 %v7274, %v7266
    %v8555 = vpack.c.b16 %v7283, %v7275
    %v8556 = vpack.c.b16 %v7284, %v7276
    %v8557 = vpack.c.b16 %v7285, %v7277
    %v8558 = vpack.c.b16 %v7286, %v7278
    %v8559 = vpack.c.b16 %v7287, %v7279
    %v8560 = vpack.c.b16 %v7288, %v7280
    %v8561 = vpack.c.b16 %v7289, %v7281
    %v8562 = vpack.c.b16 %v7290, %v7282
    %v8563 = vpack.c.b16 %v7299, %v7291
    %v8564 = vpack.c.b16 %v7300, %v7292
    %v8565 = vpack.c.b16 %v7301, %v7293
    %v8566 = vpack.c.b16 %v7302, %v7294
    %v8567 = vpack.c.b16 %v7303, %v7295
    %v8568 = vpack.c.b16 %v7304, %v7296
    %v8569 = vpack.c.b16 %v7305, %v7297
    %v8570 = vpack.c.b16 %v7306, %v7298
    %v8571 = vpack.c.b16 %v7315, %v7307
    %v8572 = vpack.c.b16 %v7316, %v7308
    %v8573 = vpack.c.b16 %v7317, %v7309
    %v8574 = vpack.c.b16 %v7318, %v7310
    %v8575 = vpack.c.b16 %v7319, %v7311
    %v8576 = vpack.c.b16 %v7320, %v7312
    %v8577 = vpack.c.b16 %v7321, %v7313
    %v8578 = vpack.c.b16 %v7322, %v7314
    %v8579 = vpack.c.b16 %v7331, %v7323
    %v8580 = vpack.c.b16 %v7332, %v7324
    %v8581 = vpack.c.b16 %v7333, %v7325
    %v8582 = vpack.c.b16 %v7334, %v7326
    %v8583 = vpack.c.b16 %v7335, %v7327
    %v8584 = vpack.c.b16 %v7336, %v7328
    %v8585 = vpack.c.b16 %v7337, %v7329
    %v8586 = vpack.c.b16 %v7338, %v7330
    %v8587 = vpack.c.b16 %v7347, %v7339
    %v8588 = vpack.c.b16 %v7348, %v7340
    %v8589 = vpack.c.b16 %v7349, %v7341
    %v8590 = vpack.c.b16 %v7350, %v7342
    %v8591 = vpack.c.b16 %v7351, %v7343
    %v8592 = vpack.c.b16 %v7352, %v7344
    %v8593 = vpack.c.b16 %v7353, %v7345
    %v8594 = vpack.c.b16 %v7354, %v7346
    %v8595 = vpack.c.b16 %v7363, %v7355
    %v8596 = vpack.c.b16 %v7364, %v7356
    %v8597 = vpack.c.b16 %v7365, %v7357
    %v8598 = vpack.c.b16 %v7366, %v7358
    %v8599 = vpack.c.b16 %v7367, %v7359
    %v8600 = vpack.c.b16 %v7368, %v7360
    %v8601 = vpack.c.b16 %v7369, %v7361
    %v8602 = vpack.c.b16 %v7370, %v7362
    %v8603 = vpack.c.b16 %v7379, %v7371
    %v8604 = vpack.c.b16 %v7380, %v7372
    %v8605 = vpack.c.b16 %v7381, %v7373
    %v8606 = vpack.c.b16 %v7382, %v7374
    %v8607 = vpack.c.b16 %v7383, %v7375
    %v8608 = vpack.c.b16 %v7384, %v7376
    %v8609 = vpack.c.b16 %v7385, %v7377
    %v8610 = vpack.c.b16 %v7386, %v7378
    %v8611 = vpack.c.b16 %v7395, %v7387
    %v8612 = vpack.c.b16 %v7396, %v7388
    %v8613 = vpack.c.b16 %v7397, %v7389
    %v8614 = vpack.c.b16 %v7398, %v7390
    %v8615 = vpack.c.b16 %v7399, %v7391
    %v8616 = vpack.c.b16 %v7400, %v7392
    %v8617 = vpack.c.b16 %v7401, %v7393
    %v8618 = vpack.c.b16 %v7402, %v7394
    %v8619 = vpack.c.b16 %v7411, %v7403
    %v8620 = vpack.c.b16 %v7412, %v7404
    %v8621 = vpack.c.b16 %v7413, %v7405
    %v8622 = vpack.c.b16 %v7414, %v7406
    %v8623 = vpack.c.b16 %v7415, %v7407
    %v8624 = vpack.c.b16 %v7416, %v7408
    %v8625 = vpack.c.b16 %v7417, %v7409
    %v8626 = vpack.c.b16 %v7418, %v7410
    %v8627 = vpack.c.b16 %v7427, %v7419
    %v8628 = vpack.c.b16 %v7428, %v7420
    %v8629 = vpack.c.b16 %v7429, %v7421
    %v8630 = vpack.c.b16 %v7430, %v7422
    %v8631 = vpack.c.b16 %v7431, %v7423
    %v8632 = vpack.c.b16 %v7432, %v7424
    %v8633 = vpack.c.b16 %v7433, %v7425
    %v8634 = vpack.c.b16 %v7434, %v7426
    %v8635 = vpack.c.b16 %v7443, %v7435
    %v8636 = vpack.c.b16 %v7444, %v7436
    %v8637 = vpack.c.b16 %v7445, %v7437
    %v8638 = vpack.c.b16 %v7446, %v7438
    %v8639 = vpack.c.b16 %v7447, %v7439
    %v8640 = vpack.c.b16 %v7448, %v7440
    %v8641 = vpack.c.b16 %v7449, %v7441
    %v8642 = vpack.c.b16 %v7450, %v7442
    %v8643 = vpack.c.b16 %v7459, %v7451
    %v8644 = vpack.c.b16 %v7460, %v7452
    %v8645 = vpack.c.b16 %v7461, %v7453
    %v8646 = vpack.c.b16 %v7462, %v7454
    %v8647 = vpack.c.b16 %v7463, %v7455
    %v8648 = vpack.c.b16 %v7464, %v7456
    %v8649 = vpack.c.b16 %v7465, %v7457
    %v8650 = vpack.c.b16 %v7466, %v7458
    %v8651 = vpack.c.b16 %v7475, %v7467
    %v8652 = vpack.c.b16 %v7476, %v7468
    %v8653 = vpack.c.b16 %v7477, %v7469
    %v8654 = vpack.c.b16 %v7478, %v7470
    %v8655 = vpack.c.b16 %v7479, %v7471
    %v8656 = vpack.c.b16 %v7480, %v7472
    %v8657 = vpack.c.b16 %v7481, %v7473
    %v8658 = vpack.c.b16 %v7482, %v7474
    %v8659 = vpack.c.b16 %v7491, %v7483
    %v8660 = vpack.c.b16 %v7492, %v7484
    %v8661 = vpack.c.b16 %v7493, %v7485
    %v8662 = vpack.c.b16 %v7494, %v7486
    %v8663 = vpack.c.b16 %v7495, %v7487
    %v8664 = vpack.c.b16 %v7496, %v7488
    %v8665 = vpack.c.b16 %v7497, %v7489
    %v8666 = vpack.c.b16 %v7498, %v7490
    %v8667 = vpack.c.b16 %v7507, %v7499
    %v8668 = vpack.c.b16 %v7508, %v7500
    %v8669 = vpack.c.b16 %v7509, %v7501
    %v8670 = vpack.c.b16 %v7510, %v7502
    %v8671 = vpack.c.b16 %v7511, %v7503
    %v8672 = vpack.c.b16 %v7512, %v7504
    %v8673 = vpack.c.b16 %v7513, %v7505
    %v8674 = vpack.c.b16 %v7514, %v7506
    %v8675 = vpack.c.b16 %v7523, %v7515
    %v8676 = vpack.c.b16 %v7524, %v7516
    %v8677 = vpack.c.b16 %v7525, %v7517
    %v8678 = vpack.c.b16 %v7526, %v7518
    %v8679 = vpack.c.b16 %v7527, %v7519
    %v8680 = vpack.c.b16 %v7528, %v7520
    %v8681 = vpack.c.b16 %v7529, %v7521
    %v8682 = vpack.c.b16 %v7530, %v7522
    %v8683 = vpack.c.b16 %v7539, %v7531
    %v8684 = vpack.c.b16 %v7540, %v7532
    %v8685 = vpack.c.b16 %v7541, %v7533
    %v8686 = vpack.c.b16 %v7542, %v7534
    %v8687 = vpack.c.b16 %v7543, %v7535
    %v8688 = vpack.c.b16 %v7544, %v7536
    %v8689 = vpack.c.b16 %v7545, %v7537
    %v8690 = vpack.c.b16 %v7546, %v7538
    %v8691 = vpack.c.b16 %v7555, %v7547
    %v8692 = vpack.c.b16 %v7556, %v7548
    %v8693 = vpack.c.b16 %v7557, %v7549
    %v8694 = vpack.c.b16 %v7558, %v7550
    %v8695 = vpack.c.b16 %v7559, %v7551
    %v8696 = vpack.c.b16 %v7560, %v7552
    %v8697 = vpack.c.b16 %v7561, %v7553
    %v8698 = vpack.c.b16 %v7562, %v7554
    %v8699 = vpack.c.b16 %v7571, %v7563
    %v8700 = vpack.c.b16 %v7572, %v7564
    %v8701 = vpack.c.b16 %v7573, %v7565
    %v8702 = vpack.c.b16 %v7574, %v7566
    %v8703 = vpack.c.b16 %v7575, %v7567
    %v8704 = vpack.c.b16 %v7576, %v7568
    %v8705 = vpack.c.b16 %v7577, %v7569
    %v8706 = vpack.c.b16 %v7578, %v7570
    %v8707 = vpack.c.b16 %v7587, %v7579
    %v8708 = vpack.c.b16 %v7588, %v7580
    %v8709 = vpack.c.b16 %v7589, %v7581
    %v8710 = vpack.c.b16 %v7590, %v7582
    %v8711 = vpack.c.b16 %v7591, %v7583
    %v8712 = vpack.c.b16 %v7592, %v7584
    %v8713 = vpack.c.b16 %v7593, %v7585
    %v8714 = vpack.c.b16 %v7594, %v7586
    %v8715 = vpack.c.b16 %v7603, %v7595
    %v8716 = vpack.c.b16 %v7604, %v7596
    %v8717 = vpack.c.b16 %v7605, %v7597
    %v8718 = vpack.c.b16 %v7606, %v7598
    %v8719 = vpack.c.b16 %v7607, %v7599
    %v8720 = vpack.c.b16 %v7608, %v7600
    %v8721 = vpack.c.b16 %v7609, %v7601
    %v8722 = vpack.c.b16 %v7610, %v7602
    %v8723 = vpack.c.b16 %v7619, %v7611
    %v8724 = vpack.c.b16 %v7620, %v7612
    %v8725 = vpack.c.b16 %v7621, %v7613
    %v8726 = vpack.c.b16 %v7622, %v7614
    %v8727 = vpack.c.b16 %v7623, %v7615
    %v8728 = vpack.c.b16 %v7624, %v7616
    %v8729 = vpack.c.b16 %v7625, %v7617
    %v8730 = vpack.c.b16 %v7626, %v7618
    %v8731 = vpack.c.b16 %v7635, %v7627
    %v8732 = vpack.c.b16 %v7636, %v7628
    %v8733 = vpack.c.b16 %v7637, %v7629
    %v8734 = vpack.c.b16 %v7638, %v7630
    %v8735 = vpack.c.b16 %v7639, %v7631
    %v8736 = vpack.c.b16 %v7640, %v7632
    %v8737 = vpack.c.b16 %v7641, %v7633
    %v8738 = vpack.c.b16 %v7642, %v7634
    %v8739 = vpack.c.b16 %v7651, %v7643
    %v8740 = vpack.c.b16 %v7652, %v7644
    %v8741 = vpack.c.b16 %v7653, %v7645
    %v8742 = vpack.c.b16 %v7654, %v7646
    %v8743 = vpack.c.b16 %v7655, %v7647
    %v8744 = vpack.c.b16 %v7656, %v7648
    %v8745 = vpack.c.b16 %v7657, %v7649
    %v8746 = vpack.c.b16 %v7658, %v7650
    %v8747 = vpack.c.b16 %v7667, %v7659
    %v8748 = vpack.c.b16 %v7668, %v7660
    %v8749 = vpack.c.b16 %v7669, %v7661
    %v8750 = vpack.c.b16 %v7670, %v7662
    %v8751 = vpack.c.b16 %v7671, %v7663
    %v8752 = vpack.c.b16 %v7672, %v7664
    %v8753 = vpack.c.b16 %v7673, %v7665
    %v8754 = vpack.c.b16 %v7674, %v7666
    %v8755 = vpack.c.b16 %v7683, %v7675
    %v8756 = vpack.c.b16 %v7684, %v7676
    %v8757 = vpack.c.b16 %v7685, %v7677
    %v8758 = vpack.c.b16 %v7686, %v7678
    %v8759 = vpack.c.b16 %v7687, %v7679
    %v8760 = vpack.c.b16 %v7688, %v7680
    %v8761 = vpack.c.b16 %v7689, %v7681
    %v8762 = vpack.c.b16 %v7690, %v7682
    %v8763 = vpack.c.b16 %v7699, %v7691
    %v8764 = vpack.c.b16 %v7700, %v7692
    %v8765 = vpack.c.b16 %v7701, %v7693
    %v8766 = vpack.c.b16 %v7702, %v7694
    %v8767 = vpack.c.b16 %v7703, %v7695
    %v8768 = vpack.c.b16 %v7704, %v7696
    %v8769 = vpack.c.b16 %v7705, %v7697
    %v8770 = vpack.c.b16 %v7706, %v7698
    %v8771 = vpack.c.b16 %v7715, %v7707
    %v8772 = vpack.c.b16 %v7716, %v7708
    %v8773 = vpack.c.b16 %v7717, %v7709
    %v8774 = vpack.c.b16 %v7718, %v7710
    %v8775 = vpack.c.b16 %v7719, %v7711
    %v8776 = vpack.c.b16 %v7720, %v7712
    %v8777 = vpack.c.b16 %v7721, %v7713
    %v8778 = vpack.c.b16 %v7722, %v7714
    %v8779 = vpack.c.b16 %v7731, %v7723
    %v8780 = vpack.c.b16 %v7732, %v7724
    %v8781 = vpack.c.b16 %v7733, %v7725
    %v8782 = vpack.c.b16 %v7734, %v7726
    %v8783 = vpack.c.b16 %v7735, %v7727
    %v8784 = vpack.c.b16 %v7736, %v7728
    %v8785 = vpack.c.b16 %v7737, %v7729
    %v8786 = vpack.c.b16 %v7738, %v7730
    %v8787 = vpack.c.b16 %v7747, %v7739
    %v8788 = vpack.c.b16 %v7748, %v7740
    %v8789 = vpack.c.b16 %v7749, %v7741
    %v8790 = vpack.c.b16 %v7750, %v7742
    %v8791 = vpack.c.b16 %v7751, %v7743
    %v8792 = vpack.c.b16 %v7752, %v7744
    %v8793 = vpack.c.b16 %v7753, %v7745
    %v8794 = vpack.c.b16 %v7754, %v7746
    %v8795 = vpack.c.b16 %v7763, %v7755
    %v8796 = vpack.c.b16 %v7764, %v7756
    %v8797 = vpack.c.b16 %v7765, %v7757
    %v8798 = vpack.c.b16 %v7766, %v7758
    %v8799 = vpack.c.b16 %v7767, %v7759
    %v8800 = vpack.c.b16 %v7768, %v7760
    %v8801 = vpack.c.b16 %v7769, %v7761
    %v8802 = vpack.c.b16 %v7770, %v7762
    %v8803 = vpack.c.b16 %v7779, %v7771
    %v8804 = vpack.c.b16 %v7780, %v7772
    %v8805 = vpack.c.b16 %v7781, %v7773
    %v8806 = vpack.c.b16 %v7782, %v7774
    %v8807 = vpack.c.b16 %v7783, %v7775
    %v8808 = vpack.c.b16 %v7784, %v7776
    %v8809 = vpack.c.b16 %v7785, %v7777
    %v8810 = vpack.c.b16 %v7786, %v7778
    %9835 = vmatpush.bf16.msra.mxu0 %v7843
    %9836 = vmatpush.bf16.msra.mxu0 %v7835
    %9837 = vmatpush.bf16.msra.mxu0 %v7827
    %9838 = vmatpush.bf16.msra.mxu0 %v7819
    %9839 = vmatpush.bf16.msra.mxu0 %v7811
    %9840 = vmatpush.bf16.msra.mxu0 %v7803
    %9841 = vmatpush.bf16.msra.mxu0 %v7795
    %9842 = vmatpush.bf16.msra.mxu0 %v7787
    %9843 = vmatmul.bf16.gmra.mxu0 %v4683
    %v9844 = vpop.f32.mrf.mxu0
    %v9845 = vadd.f32 %v4643, %v9844
    %v9846 = vpop.f32.mrf.mxu0
    %9847 = vdwg.mxu0
    %9848 = vmatpush.bf16.msra.mxu0 %v7907
    %9849 = vmatpush.bf16.msra.mxu0 %v7899
    %9850 = vmatpush.bf16.msra.mxu0 %v7891
    %9851 = vmatpush.bf16.msra.mxu0 %v7883
    %9852 = vmatpush.bf16.msra.mxu0 %v7875
    %9853 = vmatpush.bf16.msra.mxu0 %v7867
    %9854 = vmatpush.bf16.msra.mxu0 %v7859
    %9855 = vmatpush.bf16.msra.mxu0 %v7851
    %9856 = vmatmul.bf16.gmra.mxu0 %v4684
    %v9857 = vpop.f32.mrf.mxu0
    %v9858 = vadd.f32 %v9845, %v9857
    %v9859 = vpop.f32.mrf.mxu0
    %9860 = vdwg.mxu0
    %9861 = vmatpush.bf16.msra.mxu0 %v7971
    %9862 = vmatpush.bf16.msra.mxu0 %v7963
    %9863 = vmatpush.bf16.msra.mxu0 %v7955
    %9864 = vmatpush.bf16.msra.mxu0 %v7947
    %9865 = vmatpush.bf16.msra.mxu0 %v7939
    %9866 = vmatpush.bf16.msra.mxu0 %v7931
    %9867 = vmatpush.bf16.msra.mxu0 %v7923
    %9868 = vmatpush.bf16.msra.mxu0 %v7915
    %9869 = vmatmul.bf16.gmra.mxu0 %v4685
    %v9870 = vpop.f32.mrf.mxu0
    %v9871 = vadd.f32 %v9858, %v9870
    %v9872 = vpop.f32.mrf.mxu0
    %9873 = vdwg.mxu0
    %9874 = vmatpush.bf16.msra.mxu0 %v8035
    %9875 = vmatpush.bf16.msra.mxu0 %v8027
    %9876 = vmatpush.bf16.msra.mxu0 %v8019
    %9877 = vmatpush.bf16.msra.mxu0 %v8011
    %9878 = vmatpush.bf16.msra.mxu0 %v8003
    %9879 = vmatpush.bf16.msra.mxu0 %v7995
    %9880 = vmatpush.bf16.msra.mxu0 %v7987
    %9881 = vmatpush.bf16.msra.mxu0 %v7979
    %9882 = vmatmul.bf16.gmra.mxu0 %v4686
    %v9883 = vpop.f32.mrf.mxu0
    %v9884 = vadd.f32 %v9871, %v9883
    %v9885 = vpop.f32.mrf.mxu0
    %9886 = vdwg.mxu0
    %9887 = vmatpush.bf16.msra.mxu0 %v8099
    %9888 = vmatpush.bf16.msra.mxu0 %v8091
    %9889 = vmatpush.bf16.msra.mxu0 %v8083
    %9890 = vmatpush.bf16.msra.mxu0 %v8075
    %9891 = vmatpush.bf16.msra.mxu0 %v8067
    %9892 = vmatpush.bf16.msra.mxu0 %v8059
    %9893 = vmatpush.bf16.msra.mxu0 %v8051
    %9894 = vmatpush.bf16.msra.mxu0 %v8043
    %9895 = vmatmul.bf16.gmra.mxu0 %v4687
    %v9896 = vpop.f32.mrf.mxu0
    %v9897 = vadd.f32 %v9884, %v9896
    %v9898 = vpop.f32.mrf.mxu0
    %9899 = vdwg.mxu0
    %9900 = vmatpush.bf16.msra.mxu0 %v8163
    %9901 = vmatpush.bf16.msra.mxu0 %v8155
    %9902 = vmatpush.bf16.msra.mxu0 %v8147
    %9903 = vmatpush.bf16.msra.mxu0 %v8139
    %9904 = vmatpush.bf16.msra.mxu0 %v8131
    %9905 = vmatpush.bf16.msra.mxu0 %v8123
    %9906 = vmatpush.bf16.msra.mxu0 %v8115
    %9907 = vmatpush.bf16.msra.mxu0 %v8107
    %9908 = vmatmul.bf16.gmra.mxu0 %v4688
    %v9909 = vpop.f32.mrf.mxu0
    %v9910 = vadd.f32 %v9897, %v9909
    %v9911 = vpop.f32.mrf.mxu0
    %9912 = vdwg.mxu0
    %9913 = vmatpush.bf16.msra.mxu0 %v8227
    %9914 = vmatpush.bf16.msra.mxu0 %v8219
    %9915 = vmatpush.bf16.msra.mxu0 %v8211
    %9916 = vmatpush.bf16.msra.mxu0 %v8203
    %9917 = vmatpush.bf16.msra.mxu0 %v8195
    %9918 = vmatpush.bf16.msra.mxu0 %v8187
    %9919 = vmatpush.bf16.msra.mxu0 %v8179
    %9920 = vmatpush.bf16.msra.mxu0 %v8171
    %9921 = vmatmul.bf16.gmra.mxu0 %v4689
    %v9922 = vpop.f32.mrf.mxu0
    %v9923 = vadd.f32 %v9910, %v9922
    %v9924 = vpop.f32.mrf.mxu0
    %9925 = vdwg.mxu0
    %9926 = vmatpush.bf16.msra.mxu0 %v8291
    %9927 = vmatpush.bf16.msra.mxu0 %v8283
    %9928 = vmatpush.bf16.msra.mxu0 %v8275
    %9929 = vmatpush.bf16.msra.mxu0 %v8267
    %9930 = vmatpush.bf16.msra.mxu0 %v8259
    %9931 = vmatpush.bf16.msra.mxu0 %v8251
    %9932 = vmatpush.bf16.msra.mxu0 %v8243
    %9933 = vmatpush.bf16.msra.mxu0 %v8235
    %9934 = vmatmul.bf16.gmra.mxu0 %v4690
    %v9935 = vpop.f32.mrf.mxu0
    %v9936 = vadd.f32 %v9923, %v9935
    %v9937 = vpop.f32.mrf.mxu0
    %9938 = vdwg.mxu0
    %9939 = vmatpush.bf16.msra.mxu0 %v8355
    %9940 = vmatpush.bf16.msra.mxu0 %v8347
    %9941 = vmatpush.bf16.msra.mxu0 %v8339
    %9942 = vmatpush.bf16.msra.mxu0 %v8331
    %9943 = vmatpush.bf16.msra.mxu0 %v8323
    %9944 = vmatpush.bf16.msra.mxu0 %v8315
    %9945 = vmatpush.bf16.msra.mxu0 %v8307
    %9946 = vmatpush.bf16.msra.mxu0 %v8299
    %9947 = vmatmul.bf16.gmra.mxu0 %v4691
    %v9948 = vpop.f32.mrf.mxu0
    %v9949 = vadd.f32 %v9936, %v9948
    %v9950 = vpop.f32.mrf.mxu0
    %9951 = vdwg.mxu0
    %9952 = vmatpush.bf16.msra.mxu0 %v8419
    %9953 = vmatpush.bf16.msra.mxu0 %v8411
    %9954 = vmatpush.bf16.msra.mxu0 %v8403
    %9955 = vmatpush.bf16.msra.mxu0 %v8395
    %9956 = vmatpush.bf16.msra.mxu0 %v8387
    %9957 = vmatpush.bf16.msra.mxu0 %v8379
    %9958 = vmatpush.bf16.msra.mxu0 %v8371
    %9959 = vmatpush.bf16.msra.mxu0 %v8363
    %9960 = vmatmul.bf16.gmra.mxu0 %v4692
    %v9961 = vpop.f32.mrf.mxu0
    %v9962 = vadd.f32 %v9949, %v9961
    %v9963 = vpop.f32.mrf.mxu0
    %9964 = vdwg.mxu0
    %9965 = vmatpush.bf16.msra.mxu0 %v8483
    %9966 = vmatpush.bf16.msra.mxu0 %v8475
    %9967 = vmatpush.bf16.msra.mxu0 %v8467
    %9968 = vmatpush.bf16.msra.mxu0 %v8459
    %9969 = vmatpush.bf16.msra.mxu0 %v8451
    %9970 = vmatpush.bf16.msra.mxu0 %v8443
    %9971 = vmatpush.bf16.msra.mxu0 %v8435
    %9972 = vmatpush.bf16.msra.mxu0 %v8427
    %9973 = vmatmul.bf16.gmra.mxu0 %v4693
    %v9974 = vpop.f32.mrf.mxu0
    %v9975 = vadd.f32 %v9962, %v9974
    %v9976 = vpop.f32.mrf.mxu0
    %9977 = vdwg.mxu0
    %9978 = vmatpush.bf16.msra.mxu0 %v8547
    %9979 = vmatpush.bf16.msra.mxu0 %v8539
    %9980 = vmatpush.bf16.msra.mxu0 %v8531
    %9981 = vmatpush.bf16.msra.mxu0 %v8523
    %9982 = vmatpush.bf16.msra.mxu0 %v8515
    %9983 = vmatpush.bf16.msra.mxu0 %v8507
    %9984 = vmatpush.bf16.msra.mxu0 %v8499
    %9985 = vmatpush.bf16.msra.mxu0 %v8491
    %9986 = vmatmul.bf16.gmra.mxu0 %v4694
    %v9987 = vpop.f32.mrf.mxu0
    %v9988 = vadd.f32 %v9975, %v9987
    %v9989 = vpop.f32.mrf.mxu0
    %9990 = vdwg.mxu0
    %9991 = vmatpush.bf16.msra.mxu0 %v8611
    %9992 = vmatpush.bf16.msra.mxu0 %v8603
    %9993 = vmatpush.bf16.msra.mxu0 %v8595
    %9994 = vmatpush.bf16.msra.mxu0 %v8587
    %9995 = vmatpush.bf16.msra.mxu0 %v8579
    %9996 = vmatpush.bf16.msra.mxu0 %v8571
    %9997 = vmatpush.bf16.msra.mxu0 %v8563
    %9998 = vmatpush.bf16.msra.mxu0 %v8555
    %9999 = vmatmul.bf16.gmra.mxu0 %v4695
    %v10000 = vpop.f32.mrf.mxu0
    %v10001 = vadd.f32 %v9988, %v10000
    %v10002 = vpop.f32.mrf.mxu0
    %10003 = vdwg.mxu0
    %10004 = vmatpush.bf16.msra.mxu0 %v8675
    %10005 = vmatpush.bf16.msra.mxu0 %v8667
    %10006 = vmatpush.bf16.msra.mxu0 %v8659
    %10007 = vmatpush.bf16.msra.mxu0 %v8651
    %10008 = vmatpush.bf16.msra.mxu0 %v8643
    %10009 = vmatpush.bf16.msra.mxu0 %v8635
    %10010 = vmatpush.bf16.msra.mxu0 %v8627
    %10011 = vmatpush.bf16.msra.mxu0 %v8619
    %10012 = vmatmul.bf16.gmra.mxu0 %v4696
    %v10013 = vpop.f32.mrf.mxu0
    %v10014 = vadd.f32 %v10001, %v10013
    %v10015 = vpop.f32.mrf.mxu0
    %10016 = vdwg.mxu0
    %10017 = vmatpush.bf16.msra.mxu0 %v8739
    %10018 = vmatpush.bf16.msra.mxu0 %v8731
    %10019 = vmatpush.bf16.msra.mxu0 %v8723
    %10020 = vmatpush.bf16.msra.mxu0 %v8715
    %10021 = vmatpush.bf16.msra.mxu0 %v8707
    %10022 = vmatpush.bf16.msra.mxu0 %v8699
    %10023 = vmatpush.bf16.msra.mxu0 %v8691
    %10024 = vmatpush.bf16.msra.mxu0 %v8683
    %10025 = vmatmul.bf16.gmra.mxu0 %v4697
    %v10026 = vpop.f32.mrf.mxu0
    %v10027 = vadd.f32 %v10014, %v10026
    %v10028 = vpop.f32.mrf.mxu0
    %10029 = vdwg.mxu0
    %10030 = vmatpush.bf16.msra.mxu0 %v8803
    %10031 = vmatpush.bf16.msra.mxu0 %v8795
    %10032 = vmatpush.bf16.msra.mxu0 %v8787
    %10033 = vmatpush.bf16.msra.mxu0 %v8779
    %10034 = vmatpush.bf16.msra.mxu0 %v8771
    %10035 = vmatpush.bf16.msra.mxu0 %v8763
    %10036 = vmatpush.bf16.msra.mxu0 %v8755
    %10037 = vmatpush.bf16.msra.mxu0 %v8747
    %10038 = vmatmul.bf16.gmra.mxu0 %v4698
    %v10039 = vpop.f32.mrf.mxu0
    %v10040 = vadd.f32 %v10027, %v10039
    %v10041 = vpop.f32.mrf.mxu0
    %10042 = vdwg.mxu0
    %10043 = vmatpush.bf16.msra.mxu0 %v7844
    %10044 = vmatpush.bf16.msra.mxu0 %v7836
    %10045 = vmatpush.bf16.msra.mxu0 %v7828
    %10046 = vmatpush.bf16.msra.mxu0 %v7820
    %10047 = vmatpush.bf16.msra.mxu0 %v7812
    %10048 = vmatpush.bf16.msra.mxu0 %v7804
    %10049 = vmatpush.bf16.msra.mxu0 %v7796
    %10050 = vmatpush.bf16.msra.mxu0 %v7788
    %10051 = vmatmul.bf16.gmra.mxu0 %v4683
    %v10052 = vpop.f32.mrf.mxu0
    %v10053 = vadd.f32 %v4644, %v10052
    %v10054 = vpop.f32.mrf.mxu0
    %10055 = vdwg.mxu0
    %10056 = vmatpush.bf16.msra.mxu0 %v7908
    %10057 = vmatpush.bf16.msra.mxu0 %v7900
    %10058 = vmatpush.bf16.msra.mxu0 %v7892
    %10059 = vmatpush.bf16.msra.mxu0 %v7884
    %10060 = vmatpush.bf16.msra.mxu0 %v7876
    %10061 = vmatpush.bf16.msra.mxu0 %v7868
    %10062 = vmatpush.bf16.msra.mxu0 %v7860
    %10063 = vmatpush.bf16.msra.mxu0 %v7852
    %10064 = vmatmul.bf16.gmra.mxu0 %v4684
    %v10065 = vpop.f32.mrf.mxu0
    %v10066 = vadd.f32 %v10053, %v10065
    %v10067 = vpop.f32.mrf.mxu0
    %10068 = vdwg.mxu0
    %10069 = vmatpush.bf16.msra.mxu0 %v7972
    %10070 = vmatpush.bf16.msra.mxu0 %v7964
    %10071 = vmatpush.bf16.msra.mxu0 %v7956
    %10072 = vmatpush.bf16.msra.mxu0 %v7948
    %10073 = vmatpush.bf16.msra.mxu0 %v7940
    %10074 = vmatpush.bf16.msra.mxu0 %v7932
    %10075 = vmatpush.bf16.msra.mxu0 %v7924
    %10076 = vmatpush.bf16.msra.mxu0 %v7916
    %10077 = vmatmul.bf16.gmra.mxu0 %v4685
    %v10078 = vpop.f32.mrf.mxu0
    %v10079 = vadd.f32 %v10066, %v10078
    %v10080 = vpop.f32.mrf.mxu0
    %10081 = vdwg.mxu0
    %10082 = vmatpush.bf16.msra.mxu0 %v8036
    %10083 = vmatpush.bf16.msra.mxu0 %v8028
    %10084 = vmatpush.bf16.msra.mxu0 %v8020
    %10085 = vmatpush.bf16.msra.mxu0 %v8012
    %10086 = vmatpush.bf16.msra.mxu0 %v8004
    %10087 = vmatpush.bf16.msra.mxu0 %v7996
    %10088 = vmatpush.bf16.msra.mxu0 %v7988
    %10089 = vmatpush.bf16.msra.mxu0 %v7980
    %10090 = vmatmul.bf16.gmra.mxu0 %v4686
    %v10091 = vpop.f32.mrf.mxu0
    %v10092 = vadd.f32 %v10079, %v10091
    %v10093 = vpop.f32.mrf.mxu0
    %10094 = vdwg.mxu0
    %10095 = vmatpush.bf16.msra.mxu0 %v8100
    %10096 = vmatpush.bf16.msra.mxu0 %v8092
    %10097 = vmatpush.bf16.msra.mxu0 %v8084
    %10098 = vmatpush.bf16.msra.mxu0 %v8076
    %10099 = vmatpush.bf16.msra.mxu0 %v8068
    %10100 = vmatpush.bf16.msra.mxu0 %v8060
    %10101 = vmatpush.bf16.msra.mxu0 %v8052
    %10102 = vmatpush.bf16.msra.mxu0 %v8044
    %10103 = vmatmul.bf16.gmra.mxu0 %v4687
    %v10104 = vpop.f32.mrf.mxu0
    %v10105 = vadd.f32 %v10092, %v10104
    %v10106 = vpop.f32.mrf.mxu0
    %10107 = vdwg.mxu0
    %10108 = vmatpush.bf16.msra.mxu0 %v8164
    %10109 = vmatpush.bf16.msra.mxu0 %v8156
    %10110 = vmatpush.bf16.msra.mxu0 %v8148
    %10111 = vmatpush.bf16.msra.mxu0 %v8140
    %10112 = vmatpush.bf16.msra.mxu0 %v8132
    %10113 = vmatpush.bf16.msra.mxu0 %v8124
    %10114 = vmatpush.bf16.msra.mxu0 %v8116
    %10115 = vmatpush.bf16.msra.mxu0 %v8108
    %10116 = vmatmul.bf16.gmra.mxu0 %v4688
    %v10117 = vpop.f32.mrf.mxu0
    %v10118 = vadd.f32 %v10105, %v10117
    %v10119 = vpop.f32.mrf.mxu0
    %10120 = vdwg.mxu0
    %10121 = vmatpush.bf16.msra.mxu0 %v8228
    %10122 = vmatpush.bf16.msra.mxu0 %v8220
    %10123 = vmatpush.bf16.msra.mxu0 %v8212
    %10124 = vmatpush.bf16.msra.mxu0 %v8204
    %10125 = vmatpush.bf16.msra.mxu0 %v8196
    %10126 = vmatpush.bf16.msra.mxu0 %v8188
    %10127 = vmatpush.bf16.msra.mxu0 %v8180
    %10128 = vmatpush.bf16.msra.mxu0 %v8172
    %10129 = vmatmul.bf16.gmra.mxu0 %v4689
    %v10130 = vpop.f32.mrf.mxu0
    %v10131 = vadd.f32 %v10118, %v10130
    %v10132 = vpop.f32.mrf.mxu0
    %10133 = vdwg.mxu0
    %10134 = vmatpush.bf16.msra.mxu0 %v8292
    %10135 = vmatpush.bf16.msra.mxu0 %v8284
    %10136 = vmatpush.bf16.msra.mxu0 %v8276
    %10137 = vmatpush.bf16.msra.mxu0 %v8268
    %10138 = vmatpush.bf16.msra.mxu0 %v8260
    %10139 = vmatpush.bf16.msra.mxu0 %v8252
    %10140 = vmatpush.bf16.msra.mxu0 %v8244
    %10141 = vmatpush.bf16.msra.mxu0 %v8236
    %10142 = vmatmul.bf16.gmra.mxu0 %v4690
    %v10143 = vpop.f32.mrf.mxu0
    %v10144 = vadd.f32 %v10131, %v10143
    %v10145 = vpop.f32.mrf.mxu0
    %10146 = vdwg.mxu0
    %10147 = vmatpush.bf16.msra.mxu0 %v8356
    %10148 = vmatpush.bf16.msra.mxu0 %v8348
    %10149 = vmatpush.bf16.msra.mxu0 %v8340
    %10150 = vmatpush.bf16.msra.mxu0 %v8332
    %10151 = vmatpush.bf16.msra.mxu0 %v8324
    %10152 = vmatpush.bf16.msra.mxu0 %v8316
    %10153 = vmatpush.bf16.msra.mxu0 %v8308
    %10154 = vmatpush.bf16.msra.mxu0 %v8300
    %10155 = vmatmul.bf16.gmra.mxu0 %v4691
    %v10156 = vpop.f32.mrf.mxu0
    %v10157 = vadd.f32 %v10144, %v10156
    %v10158 = vpop.f32.mrf.mxu0
    %10159 = vdwg.mxu0
    %10160 = vmatpush.bf16.msra.mxu0 %v8420
    %10161 = vmatpush.bf16.msra.mxu0 %v8412
    %10162 = vmatpush.bf16.msra.mxu0 %v8404
    %10163 = vmatpush.bf16.msra.mxu0 %v8396
    %10164 = vmatpush.bf16.msra.mxu0 %v8388
    %10165 = vmatpush.bf16.msra.mxu0 %v8380
    %10166 = vmatpush.bf16.msra.mxu0 %v8372
    %10167 = vmatpush.bf16.msra.mxu0 %v8364
    %10168 = vmatmul.bf16.gmra.mxu0 %v4692
    %v10169 = vpop.f32.mrf.mxu0
    %v10170 = vadd.f32 %v10157, %v10169
    %v10171 = vpop.f32.mrf.mxu0
    %10172 = vdwg.mxu0
    %10173 = vmatpush.bf16.msra.mxu0 %v8484
    %10174 = vmatpush.bf16.msra.mxu0 %v8476
    %10175 = vmatpush.bf16.msra.mxu0 %v8468
    %10176 = vmatpush.bf16.msra.mxu0 %v8460
    %10177 = vmatpush.bf16.msra.mxu0 %v8452
    %10178 = vmatpush.bf16.msra.mxu0 %v8444
    %10179 = vmatpush.bf16.msra.mxu0 %v8436
    %10180 = vmatpush.bf16.msra.mxu0 %v8428
    %10181 = vmatmul.bf16.gmra.mxu0 %v4693
    %v10182 = vpop.f32.mrf.mxu0
    %v10183 = vadd.f32 %v10170, %v10182
    %v10184 = vpop.f32.mrf.mxu0
    %10185 = vdwg.mxu0
    %10186 = vmatpush.bf16.msra.mxu0 %v8548
    %10187 = vmatpush.bf16.msra.mxu0 %v8540
    %10188 = vmatpush.bf16.msra.mxu0 %v8532
    %10189 = vmatpush.bf16.msra.mxu0 %v8524
    %10190 = vmatpush.bf16.msra.mxu0 %v8516
    %10191 = vmatpush.bf16.msra.mxu0 %v8508
    %10192 = vmatpush.bf16.msra.mxu0 %v8500
    %10193 = vmatpush.bf16.msra.mxu0 %v8492
    %10194 = vmatmul.bf16.gmra.mxu0 %v4694
    %v10195 = vpop.f32.mrf.mxu0
    %v10196 = vadd.f32 %v10183, %v10195
    %v10197 = vpop.f32.mrf.mxu0
    %10198 = vdwg.mxu0
    %10199 = vmatpush.bf16.msra.mxu0 %v8612
    %10200 = vmatpush.bf16.msra.mxu0 %v8604
    %10201 = vmatpush.bf16.msra.mxu0 %v8596
    %10202 = vmatpush.bf16.msra.mxu0 %v8588
    %10203 = vmatpush.bf16.msra.mxu0 %v8580
    %10204 = vmatpush.bf16.msra.mxu0 %v8572
    %10205 = vmatpush.bf16.msra.mxu0 %v8564
    %10206 = vmatpush.bf16.msra.mxu0 %v8556
    %10207 = vmatmul.bf16.gmra.mxu0 %v4695
    %v10208 = vpop.f32.mrf.mxu0
    %v10209 = vadd.f32 %v10196, %v10208
    %v10210 = vpop.f32.mrf.mxu0
    %10211 = vdwg.mxu0
    %10212 = vmatpush.bf16.msra.mxu0 %v8676
    %10213 = vmatpush.bf16.msra.mxu0 %v8668
    %10214 = vmatpush.bf16.msra.mxu0 %v8660
    %10215 = vmatpush.bf16.msra.mxu0 %v8652
    %10216 = vmatpush.bf16.msra.mxu0 %v8644
    %10217 = vmatpush.bf16.msra.mxu0 %v8636
    %10218 = vmatpush.bf16.msra.mxu0 %v8628
    %10219 = vmatpush.bf16.msra.mxu0 %v8620
    %10220 = vmatmul.bf16.gmra.mxu0 %v4696
    %v10221 = vpop.f32.mrf.mxu0
    %v10222 = vadd.f32 %v10209, %v10221
    %v10223 = vpop.f32.mrf.mxu0
    %10224 = vdwg.mxu0
    %10225 = vmatpush.bf16.msra.mxu0 %v8740
    %10226 = vmatpush.bf16.msra.mxu0 %v8732
    %10227 = vmatpush.bf16.msra.mxu0 %v8724
    %10228 = vmatpush.bf16.msra.mxu0 %v8716
    %10229 = vmatpush.bf16.msra.mxu0 %v8708
    %10230 = vmatpush.bf16.msra.mxu0 %v8700
    %10231 = vmatpush.bf16.msra.mxu0 %v8692
    %10232 = vmatpush.bf16.msra.mxu0 %v8684
    %10233 = vmatmul.bf16.gmra.mxu0 %v4697
    %v10234 = vpop.f32.mrf.mxu0
    %v10235 = vadd.f32 %v10222, %v10234
    %v10236 = vpop.f32.mrf.mxu0
    %10237 = vdwg.mxu0
    %10238 = vmatpush.bf16.msra.mxu0 %v8804
    %10239 = vmatpush.bf16.msra.mxu0 %v8796
    %10240 = vmatpush.bf16.msra.mxu0 %v8788
    %10241 = vmatpush.bf16.msra.mxu0 %v8780
    %10242 = vmatpush.bf16.msra.mxu0 %v8772
    %10243 = vmatpush.bf16.msra.mxu0 %v8764
    %10244 = vmatpush.bf16.msra.mxu0 %v8756
    %10245 = vmatpush.bf16.msra.mxu0 %v8748
    %10246 = vmatmul.bf16.gmra.mxu0 %v4698
    %v10247 = vpop.f32.mrf.mxu0
    %v10248 = vadd.f32 %v10235, %v10247
    %v10249 = vpop.f32.mrf.mxu0
    %10250 = vdwg.mxu0
    %10251 = vmatpush.bf16.msra.mxu0 %v7845
    %10252 = vmatpush.bf16.msra.mxu0 %v7837
    %10253 = vmatpush.bf16.msra.mxu0 %v7829
    %10254 = vmatpush.bf16.msra.mxu0 %v7821
    %10255 = vmatpush.bf16.msra.mxu0 %v7813
    %10256 = vmatpush.bf16.msra.mxu0 %v7805
    %10257 = vmatpush.bf16.msra.mxu0 %v7797
    %10258 = vmatpush.bf16.msra.mxu0 %v7789
    %10259 = vmatmul.bf16.gmra.mxu0 %v4683
    %v10260 = vpop.f32.mrf.mxu0
    %v10261 = vadd.f32 %v4645, %v10260
    %v10262 = vpop.f32.mrf.mxu0
    %10263 = vdwg.mxu0
    %10264 = vmatpush.bf16.msra.mxu0 %v7909
    %10265 = vmatpush.bf16.msra.mxu0 %v7901
    %10266 = vmatpush.bf16.msra.mxu0 %v7893
    %10267 = vmatpush.bf16.msra.mxu0 %v7885
    %10268 = vmatpush.bf16.msra.mxu0 %v7877
    %10269 = vmatpush.bf16.msra.mxu0 %v7869
    %10270 = vmatpush.bf16.msra.mxu0 %v7861
    %10271 = vmatpush.bf16.msra.mxu0 %v7853
    %10272 = vmatmul.bf16.gmra.mxu0 %v4684
    %v10273 = vpop.f32.mrf.mxu0
    %v10274 = vadd.f32 %v10261, %v10273
    %v10275 = vpop.f32.mrf.mxu0
    %10276 = vdwg.mxu0
    %10277 = vmatpush.bf16.msra.mxu0 %v7973
    %10278 = vmatpush.bf16.msra.mxu0 %v7965
    %10279 = vmatpush.bf16.msra.mxu0 %v7957
    %10280 = vmatpush.bf16.msra.mxu0 %v7949
    %10281 = vmatpush.bf16.msra.mxu0 %v7941
    %10282 = vmatpush.bf16.msra.mxu0 %v7933
    %10283 = vmatpush.bf16.msra.mxu0 %v7925
    %10284 = vmatpush.bf16.msra.mxu0 %v7917
    %10285 = vmatmul.bf16.gmra.mxu0 %v4685
    %v10286 = vpop.f32.mrf.mxu0
    %v10287 = vadd.f32 %v10274, %v10286
    %v10288 = vpop.f32.mrf.mxu0
    %10289 = vdwg.mxu0
    %10290 = vmatpush.bf16.msra.mxu0 %v8037
    %10291 = vmatpush.bf16.msra.mxu0 %v8029
    %10292 = vmatpush.bf16.msra.mxu0 %v8021
    %10293 = vmatpush.bf16.msra.mxu0 %v8013
    %10294 = vmatpush.bf16.msra.mxu0 %v8005
    %10295 = vmatpush.bf16.msra.mxu0 %v7997
    %10296 = vmatpush.bf16.msra.mxu0 %v7989
    %10297 = vmatpush.bf16.msra.mxu0 %v7981
    %10298 = vmatmul.bf16.gmra.mxu0 %v4686
    %v10299 = vpop.f32.mrf.mxu0
    %v10300 = vadd.f32 %v10287, %v10299
    %v10301 = vpop.f32.mrf.mxu0
    %10302 = vdwg.mxu0
    %10303 = vmatpush.bf16.msra.mxu0 %v8101
    %10304 = vmatpush.bf16.msra.mxu0 %v8093
    %10305 = vmatpush.bf16.msra.mxu0 %v8085
    %10306 = vmatpush.bf16.msra.mxu0 %v8077
    %10307 = vmatpush.bf16.msra.mxu0 %v8069
    %10308 = vmatpush.bf16.msra.mxu0 %v8061
    %10309 = vmatpush.bf16.msra.mxu0 %v8053
    %10310 = vmatpush.bf16.msra.mxu0 %v8045
    %10311 = vmatmul.bf16.gmra.mxu0 %v4687
    %v10312 = vpop.f32.mrf.mxu0
    %v10313 = vadd.f32 %v10300, %v10312
    %v10314 = vpop.f32.mrf.mxu0
    %10315 = vdwg.mxu0
    %10316 = vmatpush.bf16.msra.mxu0 %v8165
    %10317 = vmatpush.bf16.msra.mxu0 %v8157
    %10318 = vmatpush.bf16.msra.mxu0 %v8149
    %10319 = vmatpush.bf16.msra.mxu0 %v8141
    %10320 = vmatpush.bf16.msra.mxu0 %v8133
    %10321 = vmatpush.bf16.msra.mxu0 %v8125
    %10322 = vmatpush.bf16.msra.mxu0 %v8117
    %10323 = vmatpush.bf16.msra.mxu0 %v8109
    %10324 = vmatmul.bf16.gmra.mxu0 %v4688
    %v10325 = vpop.f32.mrf.mxu0
    %v10326 = vadd.f32 %v10313, %v10325
    %v10327 = vpop.f32.mrf.mxu0
    %10328 = vdwg.mxu0
    %10329 = vmatpush.bf16.msra.mxu0 %v8229
    %10330 = vmatpush.bf16.msra.mxu0 %v8221
    %10331 = vmatpush.bf16.msra.mxu0 %v8213
    %10332 = vmatpush.bf16.msra.mxu0 %v8205
    %10333 = vmatpush.bf16.msra.mxu0 %v8197
    %10334 = vmatpush.bf16.msra.mxu0 %v8189
    %10335 = vmatpush.bf16.msra.mxu0 %v8181
    %10336 = vmatpush.bf16.msra.mxu0 %v8173
    %10337 = vmatmul.bf16.gmra.mxu0 %v4689
    %v10338 = vpop.f32.mrf.mxu0
    %v10339 = vadd.f32 %v10326, %v10338
    %v10340 = vpop.f32.mrf.mxu0
    %10341 = vdwg.mxu0
    %10342 = vmatpush.bf16.msra.mxu0 %v8293
    %10343 = vmatpush.bf16.msra.mxu0 %v8285
    %10344 = vmatpush.bf16.msra.mxu0 %v8277
    %10345 = vmatpush.bf16.msra.mxu0 %v8269
    %10346 = vmatpush.bf16.msra.mxu0 %v8261
    %10347 = vmatpush.bf16.msra.mxu0 %v8253
    %10348 = vmatpush.bf16.msra.mxu0 %v8245
    %10349 = vmatpush.bf16.msra.mxu0 %v8237
    %10350 = vmatmul.bf16.gmra.mxu0 %v4690
    %v10351 = vpop.f32.mrf.mxu0
    %v10352 = vadd.f32 %v10339, %v10351
    %v10353 = vpop.f32.mrf.mxu0
    %10354 = vdwg.mxu0
    %10355 = vmatpush.bf16.msra.mxu0 %v8357
    %10356 = vmatpush.bf16.msra.mxu0 %v8349
    %10357 = vmatpush.bf16.msra.mxu0 %v8341
    %10358 = vmatpush.bf16.msra.mxu0 %v8333
    %10359 = vmatpush.bf16.msra.mxu0 %v8325
    %10360 = vmatpush.bf16.msra.mxu0 %v8317
    %10361 = vmatpush.bf16.msra.mxu0 %v8309
    %10362 = vmatpush.bf16.msra.mxu0 %v8301
    %10363 = vmatmul.bf16.gmra.mxu0 %v4691
    %v10364 = vpop.f32.mrf.mxu0
    %v10365 = vadd.f32 %v10352, %v10364
    %v10366 = vpop.f32.mrf.mxu0
    %10367 = vdwg.mxu0
    %10368 = vmatpush.bf16.msra.mxu0 %v8421
    %10369 = vmatpush.bf16.msra.mxu0 %v8413
    %10370 = vmatpush.bf16.msra.mxu0 %v8405
    %10371 = vmatpush.bf16.msra.mxu0 %v8397
    %10372 = vmatpush.bf16.msra.mxu0 %v8389
    %10373 = vmatpush.bf16.msra.mxu0 %v8381
    %10374 = vmatpush.bf16.msra.mxu0 %v8373
    %10375 = vmatpush.bf16.msra.mxu0 %v8365
    %10376 = vmatmul.bf16.gmra.mxu0 %v4692
    %v10377 = vpop.f32.mrf.mxu0
    %v10378 = vadd.f32 %v10365, %v10377
    %v10379 = vpop.f32.mrf.mxu0
    %10380 = vdwg.mxu0
    %10381 = vmatpush.bf16.msra.mxu0 %v8485
    %10382 = vmatpush.bf16.msra.mxu0 %v8477
    %10383 = vmatpush.bf16.msra.mxu0 %v8469
    %10384 = vmatpush.bf16.msra.mxu0 %v8461
    %10385 = vmatpush.bf16.msra.mxu0 %v8453
    %10386 = vmatpush.bf16.msra.mxu0 %v8445
    %10387 = vmatpush.bf16.msra.mxu0 %v8437
    %10388 = vmatpush.bf16.msra.mxu0 %v8429
    %10389 = vmatmul.bf16.gmra.mxu0 %v4693
    %v10390 = vpop.f32.mrf.mxu0
    %v10391 = vadd.f32 %v10378, %v10390
    %v10392 = vpop.f32.mrf.mxu0
    %10393 = vdwg.mxu0
    %10394 = vmatpush.bf16.msra.mxu0 %v8549
    %10395 = vmatpush.bf16.msra.mxu0 %v8541
    %10396 = vmatpush.bf16.msra.mxu0 %v8533
    %10397 = vmatpush.bf16.msra.mxu0 %v8525
    %10398 = vmatpush.bf16.msra.mxu0 %v8517
    %10399 = vmatpush.bf16.msra.mxu0 %v8509
    %10400 = vmatpush.bf16.msra.mxu0 %v8501
    %10401 = vmatpush.bf16.msra.mxu0 %v8493
    %10402 = vmatmul.bf16.gmra.mxu0 %v4694
    %v10403 = vpop.f32.mrf.mxu0
    %v10404 = vadd.f32 %v10391, %v10403
    %v10405 = vpop.f32.mrf.mxu0
    %10406 = vdwg.mxu0
    %10407 = vmatpush.bf16.msra.mxu0 %v8613
    %10408 = vmatpush.bf16.msra.mxu0 %v8605
    %10409 = vmatpush.bf16.msra.mxu0 %v8597
    %10410 = vmatpush.bf16.msra.mxu0 %v8589
    %10411 = vmatpush.bf16.msra.mxu0 %v8581
    %10412 = vmatpush.bf16.msra.mxu0 %v8573
    %10413 = vmatpush.bf16.msra.mxu0 %v8565
    %10414 = vmatpush.bf16.msra.mxu0 %v8557
    %10415 = vmatmul.bf16.gmra.mxu0 %v4695
    %v10416 = vpop.f32.mrf.mxu0
    %v10417 = vadd.f32 %v10404, %v10416
    %v10418 = vpop.f32.mrf.mxu0
    %10419 = vdwg.mxu0
    %10420 = vmatpush.bf16.msra.mxu0 %v8677
    %10421 = vmatpush.bf16.msra.mxu0 %v8669
    %10422 = vmatpush.bf16.msra.mxu0 %v8661
    %10423 = vmatpush.bf16.msra.mxu0 %v8653
    %10424 = vmatpush.bf16.msra.mxu0 %v8645
    %10425 = vmatpush.bf16.msra.mxu0 %v8637
    %10426 = vmatpush.bf16.msra.mxu0 %v8629
    %10427 = vmatpush.bf16.msra.mxu0 %v8621
    %10428 = vmatmul.bf16.gmra.mxu0 %v4696
    %v10429 = vpop.f32.mrf.mxu0
    %v10430 = vadd.f32 %v10417, %v10429
    %v10431 = vpop.f32.mrf.mxu0
    %10432 = vdwg.mxu0
    %10433 = vmatpush.bf16.msra.mxu0 %v8741
    %10434 = vmatpush.bf16.msra.mxu0 %v8733
    %10435 = vmatpush.bf16.msra.mxu0 %v8725
    %10436 = vmatpush.bf16.msra.mxu0 %v8717
    %10437 = vmatpush.bf16.msra.mxu0 %v8709
    %10438 = vmatpush.bf16.msra.mxu0 %v8701
    %10439 = vmatpush.bf16.msra.mxu0 %v8693
    %10440 = vmatpush.bf16.msra.mxu0 %v8685
    %10441 = vmatmul.bf16.gmra.mxu0 %v4697
    %v10442 = vpop.f32.mrf.mxu0
    %v10443 = vadd.f32 %v10430, %v10442
    %v10444 = vpop.f32.mrf.mxu0
    %10445 = vdwg.mxu0
    %10446 = vmatpush.bf16.msra.mxu0 %v8805
    %10447 = vmatpush.bf16.msra.mxu0 %v8797
    %10448 = vmatpush.bf16.msra.mxu0 %v8789
    %10449 = vmatpush.bf16.msra.mxu0 %v8781
    %10450 = vmatpush.bf16.msra.mxu0 %v8773
    %10451 = vmatpush.bf16.msra.mxu0 %v8765
    %10452 = vmatpush.bf16.msra.mxu0 %v8757
    %10453 = vmatpush.bf16.msra.mxu0 %v8749
    %10454 = vmatmul.bf16.gmra.mxu0 %v4698
    %v10455 = vpop.f32.mrf.mxu0
    %v10456 = vadd.f32 %v10443, %v10455
    %v10457 = vpop.f32.mrf.mxu0
    %10458 = vdwg.mxu0
    %10459 = vmatpush.bf16.msra.mxu0 %v7846
    %10460 = vmatpush.bf16.msra.mxu0 %v7838
    %10461 = vmatpush.bf16.msra.mxu0 %v7830
    %10462 = vmatpush.bf16.msra.mxu0 %v7822
    %10463 = vmatpush.bf16.msra.mxu0 %v7814
    %10464 = vmatpush.bf16.msra.mxu0 %v7806
    %10465 = vmatpush.bf16.msra.mxu0 %v7798
    %10466 = vmatpush.bf16.msra.mxu0 %v7790
    %10467 = vmatmul.bf16.gmra.mxu0 %v4683
    %v10468 = vpop.f32.mrf.mxu0
    %v10469 = vadd.f32 %v4646, %v10468
    %v10470 = vpop.f32.mrf.mxu0
    %10471 = vdwg.mxu0
    %10472 = vmatpush.bf16.msra.mxu0 %v7910
    %10473 = vmatpush.bf16.msra.mxu0 %v7902
    %10474 = vmatpush.bf16.msra.mxu0 %v7894
    %10475 = vmatpush.bf16.msra.mxu0 %v7886
    %10476 = vmatpush.bf16.msra.mxu0 %v7878
    %10477 = vmatpush.bf16.msra.mxu0 %v7870
    %10478 = vmatpush.bf16.msra.mxu0 %v7862
    %10479 = vmatpush.bf16.msra.mxu0 %v7854
    %10480 = vmatmul.bf16.gmra.mxu0 %v4684
    %v10481 = vpop.f32.mrf.mxu0
    %v10482 = vadd.f32 %v10469, %v10481
    %v10483 = vpop.f32.mrf.mxu0
    %10484 = vdwg.mxu0
    %10485 = vmatpush.bf16.msra.mxu0 %v7974
    %10486 = vmatpush.bf16.msra.mxu0 %v7966
    %10487 = vmatpush.bf16.msra.mxu0 %v7958
    %10488 = vmatpush.bf16.msra.mxu0 %v7950
    %10489 = vmatpush.bf16.msra.mxu0 %v7942
    %10490 = vmatpush.bf16.msra.mxu0 %v7934
    %10491 = vmatpush.bf16.msra.mxu0 %v7926
    %10492 = vmatpush.bf16.msra.mxu0 %v7918
    %10493 = vmatmul.bf16.gmra.mxu0 %v4685
    %v10494 = vpop.f32.mrf.mxu0
    %v10495 = vadd.f32 %v10482, %v10494
    %v10496 = vpop.f32.mrf.mxu0
    %10497 = vdwg.mxu0
    %10498 = vmatpush.bf16.msra.mxu0 %v8038
    %10499 = vmatpush.bf16.msra.mxu0 %v8030
    %10500 = vmatpush.bf16.msra.mxu0 %v8022
    %10501 = vmatpush.bf16.msra.mxu0 %v8014
    %10502 = vmatpush.bf16.msra.mxu0 %v8006
    %10503 = vmatpush.bf16.msra.mxu0 %v7998
    %10504 = vmatpush.bf16.msra.mxu0 %v7990
    %10505 = vmatpush.bf16.msra.mxu0 %v7982
    %10506 = vmatmul.bf16.gmra.mxu0 %v4686
    %v10507 = vpop.f32.mrf.mxu0
    %v10508 = vadd.f32 %v10495, %v10507
    %v10509 = vpop.f32.mrf.mxu0
    %10510 = vdwg.mxu0
    %10511 = vmatpush.bf16.msra.mxu0 %v8102
    %10512 = vmatpush.bf16.msra.mxu0 %v8094
    %10513 = vmatpush.bf16.msra.mxu0 %v8086
    %10514 = vmatpush.bf16.msra.mxu0 %v8078
    %10515 = vmatpush.bf16.msra.mxu0 %v8070
    %10516 = vmatpush.bf16.msra.mxu0 %v8062
    %10517 = vmatpush.bf16.msra.mxu0 %v8054
    %10518 = vmatpush.bf16.msra.mxu0 %v8046
    %10519 = vmatmul.bf16.gmra.mxu0 %v4687
    %v10520 = vpop.f32.mrf.mxu0
    %v10521 = vadd.f32 %v10508, %v10520
    %v10522 = vpop.f32.mrf.mxu0
    %10523 = vdwg.mxu0
    %10524 = vmatpush.bf16.msra.mxu0 %v8166
    %10525 = vmatpush.bf16.msra.mxu0 %v8158
    %10526 = vmatpush.bf16.msra.mxu0 %v8150
    %10527 = vmatpush.bf16.msra.mxu0 %v8142
    %10528 = vmatpush.bf16.msra.mxu0 %v8134
    %10529 = vmatpush.bf16.msra.mxu0 %v8126
    %10530 = vmatpush.bf16.msra.mxu0 %v8118
    %10531 = vmatpush.bf16.msra.mxu0 %v8110
    %10532 = vmatmul.bf16.gmra.mxu0 %v4688
    %v10533 = vpop.f32.mrf.mxu0
    %v10534 = vadd.f32 %v10521, %v10533
    %v10535 = vpop.f32.mrf.mxu0
    %10536 = vdwg.mxu0
    %10537 = vmatpush.bf16.msra.mxu0 %v8230
    %10538 = vmatpush.bf16.msra.mxu0 %v8222
    %10539 = vmatpush.bf16.msra.mxu0 %v8214
    %10540 = vmatpush.bf16.msra.mxu0 %v8206
    %10541 = vmatpush.bf16.msra.mxu0 %v8198
    %10542 = vmatpush.bf16.msra.mxu0 %v8190
    %10543 = vmatpush.bf16.msra.mxu0 %v8182
    %10544 = vmatpush.bf16.msra.mxu0 %v8174
    %10545 = vmatmul.bf16.gmra.mxu0 %v4689
    %v10546 = vpop.f32.mrf.mxu0
    %v10547 = vadd.f32 %v10534, %v10546
    %v10548 = vpop.f32.mrf.mxu0
    %10549 = vdwg.mxu0
    %10550 = vmatpush.bf16.msra.mxu0 %v8294
    %10551 = vmatpush.bf16.msra.mxu0 %v8286
    %10552 = vmatpush.bf16.msra.mxu0 %v8278
    %10553 = vmatpush.bf16.msra.mxu0 %v8270
    %10554 = vmatpush.bf16.msra.mxu0 %v8262
    %10555 = vmatpush.bf16.msra.mxu0 %v8254
    %10556 = vmatpush.bf16.msra.mxu0 %v8246
    %10557 = vmatpush.bf16.msra.mxu0 %v8238
    %10558 = vmatmul.bf16.gmra.mxu0 %v4690
    %v10559 = vpop.f32.mrf.mxu0
    %v10560 = vadd.f32 %v10547, %v10559
    %v10561 = vpop.f32.mrf.mxu0
    %10562 = vdwg.mxu0
    %10563 = vmatpush.bf16.msra.mxu0 %v8358
    %10564 = vmatpush.bf16.msra.mxu0 %v8350
    %10565 = vmatpush.bf16.msra.mxu0 %v8342
    %10566 = vmatpush.bf16.msra.mxu0 %v8334
    %10567 = vmatpush.bf16.msra.mxu0 %v8326
    %10568 = vmatpush.bf16.msra.mxu0 %v8318
    %10569 = vmatpush.bf16.msra.mxu0 %v8310
    %10570 = vmatpush.bf16.msra.mxu0 %v8302
    %10571 = vmatmul.bf16.gmra.mxu0 %v4691
    %v10572 = vpop.f32.mrf.mxu0
    %v10573 = vadd.f32 %v10560, %v10572
    %v10574 = vpop.f32.mrf.mxu0
    %10575 = vdwg.mxu0
    %10576 = vmatpush.bf16.msra.mxu0 %v8422
    %10577 = vmatpush.bf16.msra.mxu0 %v8414
    %10578 = vmatpush.bf16.msra.mxu0 %v8406
    %10579 = vmatpush.bf16.msra.mxu0 %v8398
    %10580 = vmatpush.bf16.msra.mxu0 %v8390
    %10581 = vmatpush.bf16.msra.mxu0 %v8382
    %10582 = vmatpush.bf16.msra.mxu0 %v8374
    %10583 = vmatpush.bf16.msra.mxu0 %v8366
    %10584 = vmatmul.bf16.gmra.mxu0 %v4692
    %v10585 = vpop.f32.mrf.mxu0
    %v10586 = vadd.f32 %v10573, %v10585
    %v10587 = vpop.f32.mrf.mxu0
    %10588 = vdwg.mxu0
    %10589 = vmatpush.bf16.msra.mxu0 %v8486
    %10590 = vmatpush.bf16.msra.mxu0 %v8478
    %10591 = vmatpush.bf16.msra.mxu0 %v8470
    %10592 = vmatpush.bf16.msra.mxu0 %v8462
    %10593 = vmatpush.bf16.msra.mxu0 %v8454
    %10594 = vmatpush.bf16.msra.mxu0 %v8446
    %10595 = vmatpush.bf16.msra.mxu0 %v8438
    %10596 = vmatpush.bf16.msra.mxu0 %v8430
    %10597 = vmatmul.bf16.gmra.mxu0 %v4693
    %v10598 = vpop.f32.mrf.mxu0
    %v10599 = vadd.f32 %v10586, %v10598
    %v10600 = vpop.f32.mrf.mxu0
    %10601 = vdwg.mxu0
    %10602 = vmatpush.bf16.msra.mxu0 %v8550
    %10603 = vmatpush.bf16.msra.mxu0 %v8542
    %10604 = vmatpush.bf16.msra.mxu0 %v8534
    %10605 = vmatpush.bf16.msra.mxu0 %v8526
    %10606 = vmatpush.bf16.msra.mxu0 %v8518
    %10607 = vmatpush.bf16.msra.mxu0 %v8510
    %10608 = vmatpush.bf16.msra.mxu0 %v8502
    %10609 = vmatpush.bf16.msra.mxu0 %v8494
    %10610 = vmatmul.bf16.gmra.mxu0 %v4694
    %v10611 = vpop.f32.mrf.mxu0
    %v10612 = vadd.f32 %v10599, %v10611
    %v10613 = vpop.f32.mrf.mxu0
    %10614 = vdwg.mxu0
    %10615 = vmatpush.bf16.msra.mxu0 %v8614
    %10616 = vmatpush.bf16.msra.mxu0 %v8606
    %10617 = vmatpush.bf16.msra.mxu0 %v8598
    %10618 = vmatpush.bf16.msra.mxu0 %v8590
    %10619 = vmatpush.bf16.msra.mxu0 %v8582
    %10620 = vmatpush.bf16.msra.mxu0 %v8574
    %10621 = vmatpush.bf16.msra.mxu0 %v8566
    %10622 = vmatpush.bf16.msra.mxu0 %v8558
    %10623 = vmatmul.bf16.gmra.mxu0 %v4695
    %v10624 = vpop.f32.mrf.mxu0
    %v10625 = vadd.f32 %v10612, %v10624
    %v10626 = vpop.f32.mrf.mxu0
    %10627 = vdwg.mxu0
    %10628 = vmatpush.bf16.msra.mxu0 %v8678
    %10629 = vmatpush.bf16.msra.mxu0 %v8670
    %10630 = vmatpush.bf16.msra.mxu0 %v8662
    %10631 = vmatpush.bf16.msra.mxu0 %v8654
    %10632 = vmatpush.bf16.msra.mxu0 %v8646
    %10633 = vmatpush.bf16.msra.mxu0 %v8638
    %10634 = vmatpush.bf16.msra.mxu0 %v8630
    %10635 = vmatpush.bf16.msra.mxu0 %v8622
    %10636 = vmatmul.bf16.gmra.mxu0 %v4696
    %v10637 = vpop.f32.mrf.mxu0
    %v10638 = vadd.f32 %v10625, %v10637
    %v10639 = vpop.f32.mrf.mxu0
    %10640 = vdwg.mxu0
    %10641 = vmatpush.bf16.msra.mxu0 %v8742
    %10642 = vmatpush.bf16.msra.mxu0 %v8734
    %10643 = vmatpush.bf16.msra.mxu0 %v8726
    %10644 = vmatpush.bf16.msra.mxu0 %v8718
    %10645 = vmatpush.bf16.msra.mxu0 %v8710
    %10646 = vmatpush.bf16.msra.mxu0 %v8702
    %10647 = vmatpush.bf16.msra.mxu0 %v8694
    %10648 = vmatpush.bf16.msra.mxu0 %v8686
    %10649 = vmatmul.bf16.gmra.mxu0 %v4697
    %v10650 = vpop.f32.mrf.mxu0
    %v10651 = vadd.f32 %v10638, %v10650
    %v10652 = vpop.f32.mrf.mxu0
    %10653 = vdwg.mxu0
    %10654 = vmatpush.bf16.msra.mxu0 %v8806
    %10655 = vmatpush.bf16.msra.mxu0 %v8798
    %10656 = vmatpush.bf16.msra.mxu0 %v8790
    %10657 = vmatpush.bf16.msra.mxu0 %v8782
    %10658 = vmatpush.bf16.msra.mxu0 %v8774
    %10659 = vmatpush.bf16.msra.mxu0 %v8766
    %10660 = vmatpush.bf16.msra.mxu0 %v8758
    %10661 = vmatpush.bf16.msra.mxu0 %v8750
    %10662 = vmatmul.bf16.gmra.mxu0 %v4698
    %v10663 = vpop.f32.mrf.mxu0
    %v10664 = vadd.f32 %v10651, %v10663
    %v10665 = vpop.f32.mrf.mxu0
    %10666 = vdwg.mxu0
    %10667 = vmatpush.bf16.msra.mxu0 %v7847
    %10668 = vmatpush.bf16.msra.mxu0 %v7839
    %10669 = vmatpush.bf16.msra.mxu0 %v7831
    %10670 = vmatpush.bf16.msra.mxu0 %v7823
    %10671 = vmatpush.bf16.msra.mxu0 %v7815
    %10672 = vmatpush.bf16.msra.mxu0 %v7807
    %10673 = vmatpush.bf16.msra.mxu0 %v7799
    %10674 = vmatpush.bf16.msra.mxu0 %v7791
    %10675 = vmatmul.bf16.gmra.mxu0 %v4683
    %v10676 = vpop.f32.mrf.mxu0
    %v10677 = vadd.f32 %v4647, %v10676
    %v10678 = vpop.f32.mrf.mxu0
    %10679 = vdwg.mxu0
    %10680 = vmatpush.bf16.msra.mxu0 %v7911
    %10681 = vmatpush.bf16.msra.mxu0 %v7903
    %10682 = vmatpush.bf16.msra.mxu0 %v7895
    %10683 = vmatpush.bf16.msra.mxu0 %v7887
    %10684 = vmatpush.bf16.msra.mxu0 %v7879
    %10685 = vmatpush.bf16.msra.mxu0 %v7871
    %10686 = vmatpush.bf16.msra.mxu0 %v7863
    %10687 = vmatpush.bf16.msra.mxu0 %v7855
    %10688 = vmatmul.bf16.gmra.mxu0 %v4684
    %v10689 = vpop.f32.mrf.mxu0
    %v10690 = vadd.f32 %v10677, %v10689
    %v10691 = vpop.f32.mrf.mxu0
    %10692 = vdwg.mxu0
    %10693 = vmatpush.bf16.msra.mxu0 %v7975
    %10694 = vmatpush.bf16.msra.mxu0 %v7967
    %10695 = vmatpush.bf16.msra.mxu0 %v7959
    %10696 = vmatpush.bf16.msra.mxu0 %v7951
    %10697 = vmatpush.bf16.msra.mxu0 %v7943
    %10698 = vmatpush.bf16.msra.mxu0 %v7935
    %10699 = vmatpush.bf16.msra.mxu0 %v7927
    %10700 = vmatpush.bf16.msra.mxu0 %v7919
    %10701 = vmatmul.bf16.gmra.mxu0 %v4685
    %v10702 = vpop.f32.mrf.mxu0
    %v10703 = vadd.f32 %v10690, %v10702
    %v10704 = vpop.f32.mrf.mxu0
    %10705 = vdwg.mxu0
    %10706 = vmatpush.bf16.msra.mxu0 %v8039
    %10707 = vmatpush.bf16.msra.mxu0 %v8031
    %10708 = vmatpush.bf16.msra.mxu0 %v8023
    %10709 = vmatpush.bf16.msra.mxu0 %v8015
    %10710 = vmatpush.bf16.msra.mxu0 %v8007
    %10711 = vmatpush.bf16.msra.mxu0 %v7999
    %10712 = vmatpush.bf16.msra.mxu0 %v7991
    %10713 = vmatpush.bf16.msra.mxu0 %v7983
    %10714 = vmatmul.bf16.gmra.mxu0 %v4686
    %v10715 = vpop.f32.mrf.mxu0
    %v10716 = vadd.f32 %v10703, %v10715
    %v10717 = vpop.f32.mrf.mxu0
    %10718 = vdwg.mxu0
    %10719 = vmatpush.bf16.msra.mxu0 %v8103
    %10720 = vmatpush.bf16.msra.mxu0 %v8095
    %10721 = vmatpush.bf16.msra.mxu0 %v8087
    %10722 = vmatpush.bf16.msra.mxu0 %v8079
    %10723 = vmatpush.bf16.msra.mxu0 %v8071
    %10724 = vmatpush.bf16.msra.mxu0 %v8063
    %10725 = vmatpush.bf16.msra.mxu0 %v8055
    %10726 = vmatpush.bf16.msra.mxu0 %v8047
    %10727 = vmatmul.bf16.gmra.mxu0 %v4687
    %v10728 = vpop.f32.mrf.mxu0
    %v10729 = vadd.f32 %v10716, %v10728
    %v10730 = vpop.f32.mrf.mxu0
    %10731 = vdwg.mxu0
    %10732 = vmatpush.bf16.msra.mxu0 %v8167
    %10733 = vmatpush.bf16.msra.mxu0 %v8159
    %10734 = vmatpush.bf16.msra.mxu0 %v8151
    %10735 = vmatpush.bf16.msra.mxu0 %v8143
    %10736 = vmatpush.bf16.msra.mxu0 %v8135
    %10737 = vmatpush.bf16.msra.mxu0 %v8127
    %10738 = vmatpush.bf16.msra.mxu0 %v8119
    %10739 = vmatpush.bf16.msra.mxu0 %v8111
    %10740 = vmatmul.bf16.gmra.mxu0 %v4688
    %v10741 = vpop.f32.mrf.mxu0
    %v10742 = vadd.f32 %v10729, %v10741
    %v10743 = vpop.f32.mrf.mxu0
    %10744 = vdwg.mxu0
    %10745 = vmatpush.bf16.msra.mxu0 %v8231
    %10746 = vmatpush.bf16.msra.mxu0 %v8223
    %10747 = vmatpush.bf16.msra.mxu0 %v8215
    %10748 = vmatpush.bf16.msra.mxu0 %v8207
    %10749 = vmatpush.bf16.msra.mxu0 %v8199
    %10750 = vmatpush.bf16.msra.mxu0 %v8191
    %10751 = vmatpush.bf16.msra.mxu0 %v8183
    %10752 = vmatpush.bf16.msra.mxu0 %v8175
    %10753 = vmatmul.bf16.gmra.mxu0 %v4689
    %v10754 = vpop.f32.mrf.mxu0
    %v10755 = vadd.f32 %v10742, %v10754
    %v10756 = vpop.f32.mrf.mxu0
    %10757 = vdwg.mxu0
    %10758 = vmatpush.bf16.msra.mxu0 %v8295
    %10759 = vmatpush.bf16.msra.mxu0 %v8287
    %10760 = vmatpush.bf16.msra.mxu0 %v8279
    %10761 = vmatpush.bf16.msra.mxu0 %v8271
    %10762 = vmatpush.bf16.msra.mxu0 %v8263
    %10763 = vmatpush.bf16.msra.mxu0 %v8255
    %10764 = vmatpush.bf16.msra.mxu0 %v8247
    %10765 = vmatpush.bf16.msra.mxu0 %v8239
    %10766 = vmatmul.bf16.gmra.mxu0 %v4690
    %v10767 = vpop.f32.mrf.mxu0
    %v10768 = vadd.f32 %v10755, %v10767
    %v10769 = vpop.f32.mrf.mxu0
    %10770 = vdwg.mxu0
    %10771 = vmatpush.bf16.msra.mxu0 %v8359
    %10772 = vmatpush.bf16.msra.mxu0 %v8351
    %10773 = vmatpush.bf16.msra.mxu0 %v8343
    %10774 = vmatpush.bf16.msra.mxu0 %v8335
    %10775 = vmatpush.bf16.msra.mxu0 %v8327
    %10776 = vmatpush.bf16.msra.mxu0 %v8319
    %10777 = vmatpush.bf16.msra.mxu0 %v8311
    %10778 = vmatpush.bf16.msra.mxu0 %v8303
    %10779 = vmatmul.bf16.gmra.mxu0 %v4691
    %v10780 = vpop.f32.mrf.mxu0
    %v10781 = vadd.f32 %v10768, %v10780
    %v10782 = vpop.f32.mrf.mxu0
    %10783 = vdwg.mxu0
    %10784 = vmatpush.bf16.msra.mxu0 %v8423
    %10785 = vmatpush.bf16.msra.mxu0 %v8415
    %10786 = vmatpush.bf16.msra.mxu0 %v8407
    %10787 = vmatpush.bf16.msra.mxu0 %v8399
    %10788 = vmatpush.bf16.msra.mxu0 %v8391
    %10789 = vmatpush.bf16.msra.mxu0 %v8383
    %10790 = vmatpush.bf16.msra.mxu0 %v8375
    %10791 = vmatpush.bf16.msra.mxu0 %v8367
    %10792 = vmatmul.bf16.gmra.mxu0 %v4692
    %v10793 = vpop.f32.mrf.mxu0
    %v10794 = vadd.f32 %v10781, %v10793
    %v10795 = vpop.f32.mrf.mxu0
    %10796 = vdwg.mxu0
    %10797 = vmatpush.bf16.msra.mxu0 %v8487
    %10798 = vmatpush.bf16.msra.mxu0 %v8479
    %10799 = vmatpush.bf16.msra.mxu0 %v8471
    %10800 = vmatpush.bf16.msra.mxu0 %v8463
    %10801 = vmatpush.bf16.msra.mxu0 %v8455
    %10802 = vmatpush.bf16.msra.mxu0 %v8447
    %10803 = vmatpush.bf16.msra.mxu0 %v8439
    %10804 = vmatpush.bf16.msra.mxu0 %v8431
    %10805 = vmatmul.bf16.gmra.mxu0 %v4693
    %v10806 = vpop.f32.mrf.mxu0
    %v10807 = vadd.f32 %v10794, %v10806
    %v10808 = vpop.f32.mrf.mxu0
    %10809 = vdwg.mxu0
    %10810 = vmatpush.bf16.msra.mxu0 %v8551
    %10811 = vmatpush.bf16.msra.mxu0 %v8543
    %10812 = vmatpush.bf16.msra.mxu0 %v8535
    %10813 = vmatpush.bf16.msra.mxu0 %v8527
    %10814 = vmatpush.bf16.msra.mxu0 %v8519
    %10815 = vmatpush.bf16.msra.mxu0 %v8511
    %10816 = vmatpush.bf16.msra.mxu0 %v8503
    %10817 = vmatpush.bf16.msra.mxu0 %v8495
    %10818 = vmatmul.bf16.gmra.mxu0 %v4694
    %v10819 = vpop.f32.mrf.mxu0
    %v10820 = vadd.f32 %v10807, %v10819
    %v10821 = vpop.f32.mrf.mxu0
    %10822 = vdwg.mxu0
    %10823 = vmatpush.bf16.msra.mxu0 %v8615
    %10824 = vmatpush.bf16.msra.mxu0 %v8607
    %10825 = vmatpush.bf16.msra.mxu0 %v8599
    %10826 = vmatpush.bf16.msra.mxu0 %v8591
    %10827 = vmatpush.bf16.msra.mxu0 %v8583
    %10828 = vmatpush.bf16.msra.mxu0 %v8575
    %10829 = vmatpush.bf16.msra.mxu0 %v8567
    %10830 = vmatpush.bf16.msra.mxu0 %v8559
    %10831 = vmatmul.bf16.gmra.mxu0 %v4695
    %v10832 = vpop.f32.mrf.mxu0
    %v10833 = vadd.f32 %v10820, %v10832
    %v10834 = vpop.f32.mrf.mxu0
    %10835 = vdwg.mxu0
    %10836 = vmatpush.bf16.msra.mxu0 %v8679
    %10837 = vmatpush.bf16.msra.mxu0 %v8671
    %10838 = vmatpush.bf16.msra.mxu0 %v8663
    %10839 = vmatpush.bf16.msra.mxu0 %v8655
    %10840 = vmatpush.bf16.msra.mxu0 %v8647
    %10841 = vmatpush.bf16.msra.mxu0 %v8639
    %10842 = vmatpush.bf16.msra.mxu0 %v8631
    %10843 = vmatpush.bf16.msra.mxu0 %v8623
    %10844 = vmatmul.bf16.gmra.mxu0 %v4696
    %v10845 = vpop.f32.mrf.mxu0
    %v10846 = vadd.f32 %v10833, %v10845
    %v10847 = vpop.f32.mrf.mxu0
    %10848 = vdwg.mxu0
    %10849 = vmatpush.bf16.msra.mxu0 %v8743
    %10850 = vmatpush.bf16.msra.mxu0 %v8735
    %10851 = vmatpush.bf16.msra.mxu0 %v8727
    %10852 = vmatpush.bf16.msra.mxu0 %v8719
    %10853 = vmatpush.bf16.msra.mxu0 %v8711
    %10854 = vmatpush.bf16.msra.mxu0 %v8703
    %10855 = vmatpush.bf16.msra.mxu0 %v8695
    %10856 = vmatpush.bf16.msra.mxu0 %v8687
    %10857 = vmatmul.bf16.gmra.mxu0 %v4697
    %v10858 = vpop.f32.mrf.mxu0
    %v10859 = vadd.f32 %v10846, %v10858
    %v10860 = vpop.f32.mrf.mxu0
    %10861 = vdwg.mxu0
    %10862 = vmatpush.bf16.msra.mxu0 %v8807
    %10863 = vmatpush.bf16.msra.mxu0 %v8799
    %10864 = vmatpush.bf16.msra.mxu0 %v8791
    %10865 = vmatpush.bf16.msra.mxu0 %v8783
    %10866 = vmatpush.bf16.msra.mxu0 %v8775
    %10867 = vmatpush.bf16.msra.mxu0 %v8767
    %10868 = vmatpush.bf16.msra.mxu0 %v8759
    %10869 = vmatpush.bf16.msra.mxu0 %v8751
    %10870 = vmatmul.bf16.gmra.mxu0 %v4698
    %v10871 = vpop.f32.mrf.mxu0
    %v10872 = vadd.f32 %v10859, %v10871
    %v10873 = vpop.f32.mrf.mxu0
    %10874 = vdwg.mxu0
    %10875 = vmatpush.bf16.msra.mxu0 %v7848
    %10876 = vmatpush.bf16.msra.mxu0 %v7840
    %10877 = vmatpush.bf16.msra.mxu0 %v7832
    %10878 = vmatpush.bf16.msra.mxu0 %v7824
    %10879 = vmatpush.bf16.msra.mxu0 %v7816
    %10880 = vmatpush.bf16.msra.mxu0 %v7808
    %10881 = vmatpush.bf16.msra.mxu0 %v7800
    %10882 = vmatpush.bf16.msra.mxu0 %v7792
    %10883 = vmatmul.bf16.gmra.mxu0 %v4683
    %v10884 = vpop.f32.mrf.mxu0
    %v10885 = vadd.f32 %v4648, %v10884
    %v10886 = vpop.f32.mrf.mxu0
    %10887 = vdwg.mxu0
    %10888 = vmatpush.bf16.msra.mxu0 %v7912
    %10889 = vmatpush.bf16.msra.mxu0 %v7904
    %10890 = vmatpush.bf16.msra.mxu0 %v7896
    %10891 = vmatpush.bf16.msra.mxu0 %v7888
    %10892 = vmatpush.bf16.msra.mxu0 %v7880
    %10893 = vmatpush.bf16.msra.mxu0 %v7872
    %10894 = vmatpush.bf16.msra.mxu0 %v7864
    %10895 = vmatpush.bf16.msra.mxu0 %v7856
    %10896 = vmatmul.bf16.gmra.mxu0 %v4684
    %v10897 = vpop.f32.mrf.mxu0
    %v10898 = vadd.f32 %v10885, %v10897
    %v10899 = vpop.f32.mrf.mxu0
    %10900 = vdwg.mxu0
    %10901 = vmatpush.bf16.msra.mxu0 %v7976
    %10902 = vmatpush.bf16.msra.mxu0 %v7968
    %10903 = vmatpush.bf16.msra.mxu0 %v7960
    %10904 = vmatpush.bf16.msra.mxu0 %v7952
    %10905 = vmatpush.bf16.msra.mxu0 %v7944
    %10906 = vmatpush.bf16.msra.mxu0 %v7936
    %10907 = vmatpush.bf16.msra.mxu0 %v7928
    %10908 = vmatpush.bf16.msra.mxu0 %v7920
    %10909 = vmatmul.bf16.gmra.mxu0 %v4685
    %v10910 = vpop.f32.mrf.mxu0
    %v10911 = vadd.f32 %v10898, %v10910
    %v10912 = vpop.f32.mrf.mxu0
    %10913 = vdwg.mxu0
    %10914 = vmatpush.bf16.msra.mxu0 %v8040
    %10915 = vmatpush.bf16.msra.mxu0 %v8032
    %10916 = vmatpush.bf16.msra.mxu0 %v8024
    %10917 = vmatpush.bf16.msra.mxu0 %v8016
    %10918 = vmatpush.bf16.msra.mxu0 %v8008
    %10919 = vmatpush.bf16.msra.mxu0 %v8000
    %10920 = vmatpush.bf16.msra.mxu0 %v7992
    %10921 = vmatpush.bf16.msra.mxu0 %v7984
    %10922 = vmatmul.bf16.gmra.mxu0 %v4686
    %v10923 = vpop.f32.mrf.mxu0
    %v10924 = vadd.f32 %v10911, %v10923
    %v10925 = vpop.f32.mrf.mxu0
    %10926 = vdwg.mxu0
    %10927 = vmatpush.bf16.msra.mxu0 %v8104
    %10928 = vmatpush.bf16.msra.mxu0 %v8096
    %10929 = vmatpush.bf16.msra.mxu0 %v8088
    %10930 = vmatpush.bf16.msra.mxu0 %v8080
    %10931 = vmatpush.bf16.msra.mxu0 %v8072
    %10932 = vmatpush.bf16.msra.mxu0 %v8064
    %10933 = vmatpush.bf16.msra.mxu0 %v8056
    %10934 = vmatpush.bf16.msra.mxu0 %v8048
    %10935 = vmatmul.bf16.gmra.mxu0 %v4687
    %v10936 = vpop.f32.mrf.mxu0
    %v10937 = vadd.f32 %v10924, %v10936
    %v10938 = vpop.f32.mrf.mxu0
    %10939 = vdwg.mxu0
    %10940 = vmatpush.bf16.msra.mxu0 %v8168
    %10941 = vmatpush.bf16.msra.mxu0 %v8160
    %10942 = vmatpush.bf16.msra.mxu0 %v8152
    %10943 = vmatpush.bf16.msra.mxu0 %v8144
    %10944 = vmatpush.bf16.msra.mxu0 %v8136
    %10945 = vmatpush.bf16.msra.mxu0 %v8128
    %10946 = vmatpush.bf16.msra.mxu0 %v8120
    %10947 = vmatpush.bf16.msra.mxu0 %v8112
    %10948 = vmatmul.bf16.gmra.mxu0 %v4688
    %v10949 = vpop.f32.mrf.mxu0
    %v10950 = vadd.f32 %v10937, %v10949
    %v10951 = vpop.f32.mrf.mxu0
    %10952 = vdwg.mxu0
    %10953 = vmatpush.bf16.msra.mxu0 %v8232
    %10954 = vmatpush.bf16.msra.mxu0 %v8224
    %10955 = vmatpush.bf16.msra.mxu0 %v8216
    %10956 = vmatpush.bf16.msra.mxu0 %v8208
    %10957 = vmatpush.bf16.msra.mxu0 %v8200
    %10958 = vmatpush.bf16.msra.mxu0 %v8192
    %10959 = vmatpush.bf16.msra.mxu0 %v8184
    %10960 = vmatpush.bf16.msra.mxu0 %v8176
    %10961 = vmatmul.bf16.gmra.mxu0 %v4689
    %v10962 = vpop.f32.mrf.mxu0
    %v10963 = vadd.f32 %v10950, %v10962
    %v10964 = vpop.f32.mrf.mxu0
    %10965 = vdwg.mxu0
    %10966 = vmatpush.bf16.msra.mxu0 %v8296
    %10967 = vmatpush.bf16.msra.mxu0 %v8288
    %10968 = vmatpush.bf16.msra.mxu0 %v8280
    %10969 = vmatpush.bf16.msra.mxu0 %v8272
    %10970 = vmatpush.bf16.msra.mxu0 %v8264
    %10971 = vmatpush.bf16.msra.mxu0 %v8256
    %10972 = vmatpush.bf16.msra.mxu0 %v8248
    %10973 = vmatpush.bf16.msra.mxu0 %v8240
    %10974 = vmatmul.bf16.gmra.mxu0 %v4690
    %v10975 = vpop.f32.mrf.mxu0
    %v10976 = vadd.f32 %v10963, %v10975
    %v10977 = vpop.f32.mrf.mxu0
    %10978 = vdwg.mxu0
    %10979 = vmatpush.bf16.msra.mxu0 %v8360
    %10980 = vmatpush.bf16.msra.mxu0 %v8352
    %10981 = vmatpush.bf16.msra.mxu0 %v8344
    %10982 = vmatpush.bf16.msra.mxu0 %v8336
    %10983 = vmatpush.bf16.msra.mxu0 %v8328
    %10984 = vmatpush.bf16.msra.mxu0 %v8320
    %10985 = vmatpush.bf16.msra.mxu0 %v8312
    %10986 = vmatpush.bf16.msra.mxu0 %v8304
    %10987 = vmatmul.bf16.gmra.mxu0 %v4691
    %v10988 = vpop.f32.mrf.mxu0
    %v10989 = vadd.f32 %v10976, %v10988
    %v10990 = vpop.f32.mrf.mxu0
    %10991 = vdwg.mxu0
    %10992 = vmatpush.bf16.msra.mxu0 %v8424
    %10993 = vmatpush.bf16.msra.mxu0 %v8416
    %10994 = vmatpush.bf16.msra.mxu0 %v8408
    %10995 = vmatpush.bf16.msra.mxu0 %v8400
    %10996 = vmatpush.bf16.msra.mxu0 %v8392
    %10997 = vmatpush.bf16.msra.mxu0 %v8384
    %10998 = vmatpush.bf16.msra.mxu0 %v8376
    %10999 = vmatpush.bf16.msra.mxu0 %v8368
    %11000 = vmatmul.bf16.gmra.mxu0 %v4692
    %v11001 = vpop.f32.mrf.mxu0
    %v11002 = vadd.f32 %v10989, %v11001
    %v11003 = vpop.f32.mrf.mxu0
    %11004 = vdwg.mxu0
    %11005 = vmatpush.bf16.msra.mxu0 %v8488
    %11006 = vmatpush.bf16.msra.mxu0 %v8480
    %11007 = vmatpush.bf16.msra.mxu0 %v8472
    %11008 = vmatpush.bf16.msra.mxu0 %v8464
    %11009 = vmatpush.bf16.msra.mxu0 %v8456
    %11010 = vmatpush.bf16.msra.mxu0 %v8448
    %11011 = vmatpush.bf16.msra.mxu0 %v8440
    %11012 = vmatpush.bf16.msra.mxu0 %v8432
    %11013 = vmatmul.bf16.gmra.mxu0 %v4693
    %v11014 = vpop.f32.mrf.mxu0
    %v11015 = vadd.f32 %v11002, %v11014
    %v11016 = vpop.f32.mrf.mxu0
    %11017 = vdwg.mxu0
    %11018 = vmatpush.bf16.msra.mxu0 %v8552
    %11019 = vmatpush.bf16.msra.mxu0 %v8544
    %11020 = vmatpush.bf16.msra.mxu0 %v8536
    %11021 = vmatpush.bf16.msra.mxu0 %v8528
    %11022 = vmatpush.bf16.msra.mxu0 %v8520
    %11023 = vmatpush.bf16.msra.mxu0 %v8512
    %11024 = vmatpush.bf16.msra.mxu0 %v8504
    %11025 = vmatpush.bf16.msra.mxu0 %v8496
    %11026 = vmatmul.bf16.gmra.mxu0 %v4694
    %v11027 = vpop.f32.mrf.mxu0
    %v11028 = vadd.f32 %v11015, %v11027
    %v11029 = vpop.f32.mrf.mxu0
    %11030 = vdwg.mxu0
    %11031 = vmatpush.bf16.msra.mxu0 %v8616
    %11032 = vmatpush.bf16.msra.mxu0 %v8608
    %11033 = vmatpush.bf16.msra.mxu0 %v8600
    %11034 = vmatpush.bf16.msra.mxu0 %v8592
    %11035 = vmatpush.bf16.msra.mxu0 %v8584
    %11036 = vmatpush.bf16.msra.mxu0 %v8576
    %11037 = vmatpush.bf16.msra.mxu0 %v8568
    %11038 = vmatpush.bf16.msra.mxu0 %v8560
    %11039 = vmatmul.bf16.gmra.mxu0 %v4695
    %v11040 = vpop.f32.mrf.mxu0
    %v11041 = vadd.f32 %v11028, %v11040
    %v11042 = vpop.f32.mrf.mxu0
    %11043 = vdwg.mxu0
    %11044 = vmatpush.bf16.msra.mxu0 %v8680
    %11045 = vmatpush.bf16.msra.mxu0 %v8672
    %11046 = vmatpush.bf16.msra.mxu0 %v8664
    %11047 = vmatpush.bf16.msra.mxu0 %v8656
    %11048 = vmatpush.bf16.msra.mxu0 %v8648
    %11049 = vmatpush.bf16.msra.mxu0 %v8640
    %11050 = vmatpush.bf16.msra.mxu0 %v8632
    %11051 = vmatpush.bf16.msra.mxu0 %v8624
    %11052 = vmatmul.bf16.gmra.mxu0 %v4696
    %v11053 = vpop.f32.mrf.mxu0
    %v11054 = vadd.f32 %v11041, %v11053
    %v11055 = vpop.f32.mrf.mxu0
    %11056 = vdwg.mxu0
    %11057 = vmatpush.bf16.msra.mxu0 %v8744
    %11058 = vmatpush.bf16.msra.mxu0 %v8736
    %11059 = vmatpush.bf16.msra.mxu0 %v8728
    %11060 = vmatpush.bf16.msra.mxu0 %v8720
    %11061 = vmatpush.bf16.msra.mxu0 %v8712
    %11062 = vmatpush.bf16.msra.mxu0 %v8704
    %11063 = vmatpush.bf16.msra.mxu0 %v8696
    %11064 = vmatpush.bf16.msra.mxu0 %v8688
    %11065 = vmatmul.bf16.gmra.mxu0 %v4697
    %v11066 = vpop.f32.mrf.mxu0
    %v11067 = vadd.f32 %v11054, %v11066
    %v11068 = vpop.f32.mrf.mxu0
    %11069 = vdwg.mxu0
    %11070 = vmatpush.bf16.msra.mxu0 %v8808
    %11071 = vmatpush.bf16.msra.mxu0 %v8800
    %11072 = vmatpush.bf16.msra.mxu0 %v8792
    %11073 = vmatpush.bf16.msra.mxu0 %v8784
    %11074 = vmatpush.bf16.msra.mxu0 %v8776
    %11075 = vmatpush.bf16.msra.mxu0 %v8768
    %11076 = vmatpush.bf16.msra.mxu0 %v8760
    %11077 = vmatpush.bf16.msra.mxu0 %v8752
    %11078 = vmatmul.bf16.gmra.mxu0 %v4698
    %v11079 = vpop.f32.mrf.mxu0
    %v11080 = vadd.f32 %v11067, %v11079
    %v11081 = vpop.f32.mrf.mxu0
    %11082 = vdwg.mxu0
    %11083 = vmatpush.bf16.msra.mxu0 %v7849
    %11084 = vmatpush.bf16.msra.mxu0 %v7841
    %11085 = vmatpush.bf16.msra.mxu0 %v7833
    %11086 = vmatpush.bf16.msra.mxu0 %v7825
    %11087 = vmatpush.bf16.msra.mxu0 %v7817
    %11088 = vmatpush.bf16.msra.mxu0 %v7809
    %11089 = vmatpush.bf16.msra.mxu0 %v7801
    %11090 = vmatpush.bf16.msra.mxu0 %v7793
    %11091 = vmatmul.bf16.gmra.mxu0 %v4683
    %v11092 = vpop.f32.mrf.mxu0
    %v11093 = vadd.f32 %v4649, %v11092
    %v11094 = vpop.f32.mrf.mxu0
    %11095 = vdwg.mxu0
    %11096 = vmatpush.bf16.msra.mxu0 %v7913
    %11097 = vmatpush.bf16.msra.mxu0 %v7905
    %11098 = vmatpush.bf16.msra.mxu0 %v7897
    %11099 = vmatpush.bf16.msra.mxu0 %v7889
    %11100 = vmatpush.bf16.msra.mxu0 %v7881
    %11101 = vmatpush.bf16.msra.mxu0 %v7873
    %11102 = vmatpush.bf16.msra.mxu0 %v7865
    %11103 = vmatpush.bf16.msra.mxu0 %v7857
    %11104 = vmatmul.bf16.gmra.mxu0 %v4684
    %v11105 = vpop.f32.mrf.mxu0
    %v11106 = vadd.f32 %v11093, %v11105
    %v11107 = vpop.f32.mrf.mxu0
    %11108 = vdwg.mxu0
    %11109 = vmatpush.bf16.msra.mxu0 %v7977
    %11110 = vmatpush.bf16.msra.mxu0 %v7969
    %11111 = vmatpush.bf16.msra.mxu0 %v7961
    %11112 = vmatpush.bf16.msra.mxu0 %v7953
    %11113 = vmatpush.bf16.msra.mxu0 %v7945
    %11114 = vmatpush.bf16.msra.mxu0 %v7937
    %11115 = vmatpush.bf16.msra.mxu0 %v7929
    %11116 = vmatpush.bf16.msra.mxu0 %v7921
    %11117 = vmatmul.bf16.gmra.mxu0 %v4685
    %v11118 = vpop.f32.mrf.mxu0
    %v11119 = vadd.f32 %v11106, %v11118
    %v11120 = vpop.f32.mrf.mxu0
    %11121 = vdwg.mxu0
    %11122 = vmatpush.bf16.msra.mxu0 %v8041
    %11123 = vmatpush.bf16.msra.mxu0 %v8033
    %11124 = vmatpush.bf16.msra.mxu0 %v8025
    %11125 = vmatpush.bf16.msra.mxu0 %v8017
    %11126 = vmatpush.bf16.msra.mxu0 %v8009
    %11127 = vmatpush.bf16.msra.mxu0 %v8001
    %11128 = vmatpush.bf16.msra.mxu0 %v7993
    %11129 = vmatpush.bf16.msra.mxu0 %v7985
    %11130 = vmatmul.bf16.gmra.mxu0 %v4686
    %v11131 = vpop.f32.mrf.mxu0
    %v11132 = vadd.f32 %v11119, %v11131
    %v11133 = vpop.f32.mrf.mxu0
    %11134 = vdwg.mxu0
    %11135 = vmatpush.bf16.msra.mxu0 %v8105
    %11136 = vmatpush.bf16.msra.mxu0 %v8097
    %11137 = vmatpush.bf16.msra.mxu0 %v8089
    %11138 = vmatpush.bf16.msra.mxu0 %v8081
    %11139 = vmatpush.bf16.msra.mxu0 %v8073
    %11140 = vmatpush.bf16.msra.mxu0 %v8065
    %11141 = vmatpush.bf16.msra.mxu0 %v8057
    %11142 = vmatpush.bf16.msra.mxu0 %v8049
    %11143 = vmatmul.bf16.gmra.mxu0 %v4687
    %v11144 = vpop.f32.mrf.mxu0
    %v11145 = vadd.f32 %v11132, %v11144
    %v11146 = vpop.f32.mrf.mxu0
    %11147 = vdwg.mxu0
    %11148 = vmatpush.bf16.msra.mxu0 %v8169
    %11149 = vmatpush.bf16.msra.mxu0 %v8161
    %11150 = vmatpush.bf16.msra.mxu0 %v8153
    %11151 = vmatpush.bf16.msra.mxu0 %v8145
    %11152 = vmatpush.bf16.msra.mxu0 %v8137
    %11153 = vmatpush.bf16.msra.mxu0 %v8129
    %11154 = vmatpush.bf16.msra.mxu0 %v8121
    %11155 = vmatpush.bf16.msra.mxu0 %v8113
    %11156 = vmatmul.bf16.gmra.mxu0 %v4688
    %v11157 = vpop.f32.mrf.mxu0
    %v11158 = vadd.f32 %v11145, %v11157
    %v11159 = vpop.f32.mrf.mxu0
    %11160 = vdwg.mxu0
    %11161 = vmatpush.bf16.msra.mxu0 %v8233
    %11162 = vmatpush.bf16.msra.mxu0 %v8225
    %11163 = vmatpush.bf16.msra.mxu0 %v8217
    %11164 = vmatpush.bf16.msra.mxu0 %v8209
    %11165 = vmatpush.bf16.msra.mxu0 %v8201
    %11166 = vmatpush.bf16.msra.mxu0 %v8193
    %11167 = vmatpush.bf16.msra.mxu0 %v8185
    %11168 = vmatpush.bf16.msra.mxu0 %v8177
    %11169 = vmatmul.bf16.gmra.mxu0 %v4689
    %v11170 = vpop.f32.mrf.mxu0
    %v11171 = vadd.f32 %v11158, %v11170
    %v11172 = vpop.f32.mrf.mxu0
    %11173 = vdwg.mxu0
    %11174 = vmatpush.bf16.msra.mxu0 %v8297
    %11175 = vmatpush.bf16.msra.mxu0 %v8289
    %11176 = vmatpush.bf16.msra.mxu0 %v8281
    %11177 = vmatpush.bf16.msra.mxu0 %v8273
    %11178 = vmatpush.bf16.msra.mxu0 %v8265
    %11179 = vmatpush.bf16.msra.mxu0 %v8257
    %11180 = vmatpush.bf16.msra.mxu0 %v8249
    %11181 = vmatpush.bf16.msra.mxu0 %v8241
    %11182 = vmatmul.bf16.gmra.mxu0 %v4690
    %v11183 = vpop.f32.mrf.mxu0
    %v11184 = vadd.f32 %v11171, %v11183
    %v11185 = vpop.f32.mrf.mxu0
    %11186 = vdwg.mxu0
    %11187 = vmatpush.bf16.msra.mxu0 %v8361
    %11188 = vmatpush.bf16.msra.mxu0 %v8353
    %11189 = vmatpush.bf16.msra.mxu0 %v8345
    %11190 = vmatpush.bf16.msra.mxu0 %v8337
    %11191 = vmatpush.bf16.msra.mxu0 %v8329
    %11192 = vmatpush.bf16.msra.mxu0 %v8321
    %11193 = vmatpush.bf16.msra.mxu0 %v8313
    %11194 = vmatpush.bf16.msra.mxu0 %v8305
    %11195 = vmatmul.bf16.gmra.mxu0 %v4691
    %v11196 = vpop.f32.mrf.mxu0
    %v11197 = vadd.f32 %v11184, %v11196
    %v11198 = vpop.f32.mrf.mxu0
    %11199 = vdwg.mxu0
    %11200 = vmatpush.bf16.msra.mxu0 %v8425
    %11201 = vmatpush.bf16.msra.mxu0 %v8417
    %11202 = vmatpush.bf16.msra.mxu0 %v8409
    %11203 = vmatpush.bf16.msra.mxu0 %v8401
    %11204 = vmatpush.bf16.msra.mxu0 %v8393
    %11205 = vmatpush.bf16.msra.mxu0 %v8385
    %11206 = vmatpush.bf16.msra.mxu0 %v8377
    %11207 = vmatpush.bf16.msra.mxu0 %v8369
    %11208 = vmatmul.bf16.gmra.mxu0 %v4692
    %v11209 = vpop.f32.mrf.mxu0
    %v11210 = vadd.f32 %v11197, %v11209
    %v11211 = vpop.f32.mrf.mxu0
    %11212 = vdwg.mxu0
    %11213 = vmatpush.bf16.msra.mxu0 %v8489
    %11214 = vmatpush.bf16.msra.mxu0 %v8481
    %11215 = vmatpush.bf16.msra.mxu0 %v8473
    %11216 = vmatpush.bf16.msra.mxu0 %v8465
    %11217 = vmatpush.bf16.msra.mxu0 %v8457
    %11218 = vmatpush.bf16.msra.mxu0 %v8449
    %11219 = vmatpush.bf16.msra.mxu0 %v8441
    %11220 = vmatpush.bf16.msra.mxu0 %v8433
    %11221 = vmatmul.bf16.gmra.mxu0 %v4693
    %v11222 = vpop.f32.mrf.mxu0
    %v11223 = vadd.f32 %v11210, %v11222
    %v11224 = vpop.f32.mrf.mxu0
    %11225 = vdwg.mxu0
    %11226 = vmatpush.bf16.msra.mxu0 %v8553
    %11227 = vmatpush.bf16.msra.mxu0 %v8545
    %11228 = vmatpush.bf16.msra.mxu0 %v8537
    %11229 = vmatpush.bf16.msra.mxu0 %v8529
    %11230 = vmatpush.bf16.msra.mxu0 %v8521
    %11231 = vmatpush.bf16.msra.mxu0 %v8513
    %11232 = vmatpush.bf16.msra.mxu0 %v8505
    %11233 = vmatpush.bf16.msra.mxu0 %v8497
    %11234 = vmatmul.bf16.gmra.mxu0 %v4694
    %v11235 = vpop.f32.mrf.mxu0
    %v11236 = vadd.f32 %v11223, %v11235
    %v11237 = vpop.f32.mrf.mxu0
    %11238 = vdwg.mxu0
    %11239 = vmatpush.bf16.msra.mxu0 %v8617
    %11240 = vmatpush.bf16.msra.mxu0 %v8609
    %11241 = vmatpush.bf16.msra.mxu0 %v8601
    %11242 = vmatpush.bf16.msra.mxu0 %v8593
    %11243 = vmatpush.bf16.msra.mxu0 %v8585
    %11244 = vmatpush.bf16.msra.mxu0 %v8577
    %11245 = vmatpush.bf16.msra.mxu0 %v8569
    %11246 = vmatpush.bf16.msra.mxu0 %v8561
    %11247 = vmatmul.bf16.gmra.mxu0 %v4695
    %v11248 = vpop.f32.mrf.mxu0
    %v11249 = vadd.f32 %v11236, %v11248
    %v11250 = vpop.f32.mrf.mxu0
    %11251 = vdwg.mxu0
    %11252 = vmatpush.bf16.msra.mxu0 %v8681
    %11253 = vmatpush.bf16.msra.mxu0 %v8673
    %11254 = vmatpush.bf16.msra.mxu0 %v8665
    %11255 = vmatpush.bf16.msra.mxu0 %v8657
    %11256 = vmatpush.bf16.msra.mxu0 %v8649
    %11257 = vmatpush.bf16.msra.mxu0 %v8641
    %11258 = vmatpush.bf16.msra.mxu0 %v8633
    %11259 = vmatpush.bf16.msra.mxu0 %v8625
    %11260 = vmatmul.bf16.gmra.mxu0 %v4696
    %v11261 = vpop.f32.mrf.mxu0
    %v11262 = vadd.f32 %v11249, %v11261
    %v11263 = vpop.f32.mrf.mxu0
    %11264 = vdwg.mxu0
    %11265 = vmatpush.bf16.msra.mxu0 %v8745
    %11266 = vmatpush.bf16.msra.mxu0 %v8737
    %11267 = vmatpush.bf16.msra.mxu0 %v8729
    %11268 = vmatpush.bf16.msra.mxu0 %v8721
    %11269 = vmatpush.bf16.msra.mxu0 %v8713
    %11270 = vmatpush.bf16.msra.mxu0 %v8705
    %11271 = vmatpush.bf16.msra.mxu0 %v8697
    %11272 = vmatpush.bf16.msra.mxu0 %v8689
    %11273 = vmatmul.bf16.gmra.mxu0 %v4697
    %v11274 = vpop.f32.mrf.mxu0
    %v11275 = vadd.f32 %v11262, %v11274
    %v11276 = vpop.f32.mrf.mxu0
    %11277 = vdwg.mxu0
    %11278 = vmatpush.bf16.msra.mxu0 %v8809
    %11279 = vmatpush.bf16.msra.mxu0 %v8801
    %11280 = vmatpush.bf16.msra.mxu0 %v8793
    %11281 = vmatpush.bf16.msra.mxu0 %v8785
    %11282 = vmatpush.bf16.msra.mxu0 %v8777
    %11283 = vmatpush.bf16.msra.mxu0 %v8769
    %11284 = vmatpush.bf16.msra.mxu0 %v8761
    %11285 = vmatpush.bf16.msra.mxu0 %v8753
    %11286 = vmatmul.bf16.gmra.mxu0 %v4698
    %v11287 = vpop.f32.mrf.mxu0
    %v11288 = vadd.f32 %v11275, %v11287
    %v11289 = vpop.f32.mrf.mxu0
    %11290 = vdwg.mxu0
    %11291 = vmatpush.bf16.msra.mxu0 %v7850
    %11292 = vmatpush.bf16.msra.mxu0 %v7842
    %11293 = vmatpush.bf16.msra.mxu0 %v7834
    %11294 = vmatpush.bf16.msra.mxu0 %v7826
    %11295 = vmatpush.bf16.msra.mxu0 %v7818
    %11296 = vmatpush.bf16.msra.mxu0 %v7810
    %11297 = vmatpush.bf16.msra.mxu0 %v7802
    %11298 = vmatpush.bf16.msra.mxu0 %v7794
    %11299 = vmatmul.bf16.gmra.mxu0 %v4683
    %v11300 = vpop.f32.mrf.mxu0
    %v11301 = vadd.f32 %v4650, %v11300
    %v11302 = vpop.f32.mrf.mxu0
    %11303 = vdwg.mxu0
    %11304 = vmatpush.bf16.msra.mxu0 %v7914
    %11305 = vmatpush.bf16.msra.mxu0 %v7906
    %11306 = vmatpush.bf16.msra.mxu0 %v7898
    %11307 = vmatpush.bf16.msra.mxu0 %v7890
    %11308 = vmatpush.bf16.msra.mxu0 %v7882
    %11309 = vmatpush.bf16.msra.mxu0 %v7874
    %11310 = vmatpush.bf16.msra.mxu0 %v7866
    %11311 = vmatpush.bf16.msra.mxu0 %v7858
    %11312 = vmatmul.bf16.gmra.mxu0 %v4684
    %v11313 = vpop.f32.mrf.mxu0
    %v11314 = vadd.f32 %v11301, %v11313
    %v11315 = vpop.f32.mrf.mxu0
    %11316 = vdwg.mxu0
    %11317 = vmatpush.bf16.msra.mxu0 %v7978
    %11318 = vmatpush.bf16.msra.mxu0 %v7970
    %11319 = vmatpush.bf16.msra.mxu0 %v7962
    %11320 = vmatpush.bf16.msra.mxu0 %v7954
    %11321 = vmatpush.bf16.msra.mxu0 %v7946
    %11322 = vmatpush.bf16.msra.mxu0 %v7938
    %11323 = vmatpush.bf16.msra.mxu0 %v7930
    %11324 = vmatpush.bf16.msra.mxu0 %v7922
    %11325 = vmatmul.bf16.gmra.mxu0 %v4685
    %v11326 = vpop.f32.mrf.mxu0
    %v11327 = vadd.f32 %v11314, %v11326
    %v11328 = vpop.f32.mrf.mxu0
    %11329 = vdwg.mxu0
    %11330 = vmatpush.bf16.msra.mxu0 %v8042
    %11331 = vmatpush.bf16.msra.mxu0 %v8034
    %11332 = vmatpush.bf16.msra.mxu0 %v8026
    %11333 = vmatpush.bf16.msra.mxu0 %v8018
    %11334 = vmatpush.bf16.msra.mxu0 %v8010
    %11335 = vmatpush.bf16.msra.mxu0 %v8002
    %11336 = vmatpush.bf16.msra.mxu0 %v7994
    %11337 = vmatpush.bf16.msra.mxu0 %v7986
    %11338 = vmatmul.bf16.gmra.mxu0 %v4686
    %v11339 = vpop.f32.mrf.mxu0
    %v11340 = vadd.f32 %v11327, %v11339
    %v11341 = vpop.f32.mrf.mxu0
    %11342 = vdwg.mxu0
    %11343 = vmatpush.bf16.msra.mxu0 %v8106
    %11344 = vmatpush.bf16.msra.mxu0 %v8098
    %11345 = vmatpush.bf16.msra.mxu0 %v8090
    %11346 = vmatpush.bf16.msra.mxu0 %v8082
    %11347 = vmatpush.bf16.msra.mxu0 %v8074
    %11348 = vmatpush.bf16.msra.mxu0 %v8066
    %11349 = vmatpush.bf16.msra.mxu0 %v8058
    %11350 = vmatpush.bf16.msra.mxu0 %v8050
    %11351 = vmatmul.bf16.gmra.mxu0 %v4687
    %v11352 = vpop.f32.mrf.mxu0
    %v11353 = vadd.f32 %v11340, %v11352
    %v11354 = vpop.f32.mrf.mxu0
    %11355 = vdwg.mxu0
    %11356 = vmatpush.bf16.msra.mxu0 %v8170
    %11357 = vmatpush.bf16.msra.mxu0 %v8162
    %11358 = vmatpush.bf16.msra.mxu0 %v8154
    %11359 = vmatpush.bf16.msra.mxu0 %v8146
    %11360 = vmatpush.bf16.msra.mxu0 %v8138
    %11361 = vmatpush.bf16.msra.mxu0 %v8130
    %11362 = vmatpush.bf16.msra.mxu0 %v8122
    %11363 = vmatpush.bf16.msra.mxu0 %v8114
    %11364 = vmatmul.bf16.gmra.mxu0 %v4688
    %v11365 = vpop.f32.mrf.mxu0
    %v11366 = vadd.f32 %v11353, %v11365
    %v11367 = vpop.f32.mrf.mxu0
    %11368 = vdwg.mxu0
    %11369 = vmatpush.bf16.msra.mxu0 %v8234
    %11370 = vmatpush.bf16.msra.mxu0 %v8226
    %11371 = vmatpush.bf16.msra.mxu0 %v8218
    %11372 = vmatpush.bf16.msra.mxu0 %v8210
    %11373 = vmatpush.bf16.msra.mxu0 %v8202
    %11374 = vmatpush.bf16.msra.mxu0 %v8194
    %11375 = vmatpush.bf16.msra.mxu0 %v8186
    %11376 = vmatpush.bf16.msra.mxu0 %v8178
    %11377 = vmatmul.bf16.gmra.mxu0 %v4689
    %v11378 = vpop.f32.mrf.mxu0
    %v11379 = vadd.f32 %v11366, %v11378
    %v11380 = vpop.f32.mrf.mxu0
    %11381 = vdwg.mxu0
    %11382 = vmatpush.bf16.msra.mxu0 %v8298
    %11383 = vmatpush.bf16.msra.mxu0 %v8290
    %11384 = vmatpush.bf16.msra.mxu0 %v8282
    %11385 = vmatpush.bf16.msra.mxu0 %v8274
    %11386 = vmatpush.bf16.msra.mxu0 %v8266
    %11387 = vmatpush.bf16.msra.mxu0 %v8258
    %11388 = vmatpush.bf16.msra.mxu0 %v8250
    %11389 = vmatpush.bf16.msra.mxu0 %v8242
    %11390 = vmatmul.bf16.gmra.mxu0 %v4690
    %v11391 = vpop.f32.mrf.mxu0
    %v11392 = vadd.f32 %v11379, %v11391
    %v11393 = vpop.f32.mrf.mxu0
    %11394 = vdwg.mxu0
    %11395 = vmatpush.bf16.msra.mxu0 %v8362
    %11396 = vmatpush.bf16.msra.mxu0 %v8354
    %11397 = vmatpush.bf16.msra.mxu0 %v8346
    %11398 = vmatpush.bf16.msra.mxu0 %v8338
    %11399 = vmatpush.bf16.msra.mxu0 %v8330
    %11400 = vmatpush.bf16.msra.mxu0 %v8322
    %11401 = vmatpush.bf16.msra.mxu0 %v8314
    %11402 = vmatpush.bf16.msra.mxu0 %v8306
    %11403 = vmatmul.bf16.gmra.mxu0 %v4691
    %v11404 = vpop.f32.mrf.mxu0
    %v11405 = vadd.f32 %v11392, %v11404
    %v11406 = vpop.f32.mrf.mxu0
    %11407 = vdwg.mxu0
    %11408 = vmatpush.bf16.msra.mxu0 %v8426
    %11409 = vmatpush.bf16.msra.mxu0 %v8418
    %11410 = vmatpush.bf16.msra.mxu0 %v8410
    %11411 = vmatpush.bf16.msra.mxu0 %v8402
    %11412 = vmatpush.bf16.msra.mxu0 %v8394
    %11413 = vmatpush.bf16.msra.mxu0 %v8386
    %11414 = vmatpush.bf16.msra.mxu0 %v8378
    %11415 = vmatpush.bf16.msra.mxu0 %v8370
    %11416 = vmatmul.bf16.gmra.mxu0 %v4692
    %v11417 = vpop.f32.mrf.mxu0
    %v11418 = vadd.f32 %v11405, %v11417
    %v11419 = vpop.f32.mrf.mxu0
    %11420 = vdwg.mxu0
    %11421 = vmatpush.bf16.msra.mxu0 %v8490
    %11422 = vmatpush.bf16.msra.mxu0 %v8482
    %11423 = vmatpush.bf16.msra.mxu0 %v8474
    %11424 = vmatpush.bf16.msra.mxu0 %v8466
    %11425 = vmatpush.bf16.msra.mxu0 %v8458
    %11426 = vmatpush.bf16.msra.mxu0 %v8450
    %11427 = vmatpush.bf16.msra.mxu0 %v8442
    %11428 = vmatpush.bf16.msra.mxu0 %v8434
    %11429 = vmatmul.bf16.gmra.mxu0 %v4693
    %v11430 = vpop.f32.mrf.mxu0
    %v11431 = vadd.f32 %v11418, %v11430
    %v11432 = vpop.f32.mrf.mxu0
    %11433 = vdwg.mxu0
    %11434 = vmatpush.bf16.msra.mxu0 %v8554
    %11435 = vmatpush.bf16.msra.mxu0 %v8546
    %11436 = vmatpush.bf16.msra.mxu0 %v8538
    %11437 = vmatpush.bf16.msra.mxu0 %v8530
    %11438 = vmatpush.bf16.msra.mxu0 %v8522
    %11439 = vmatpush.bf16.msra.mxu0 %v8514
    %11440 = vmatpush.bf16.msra.mxu0 %v8506
    %11441 = vmatpush.bf16.msra.mxu0 %v8498
    %11442 = vmatmul.bf16.gmra.mxu0 %v4694
    %v11443 = vpop.f32.mrf.mxu0
    %v11444 = vadd.f32 %v11431, %v11443
    %v11445 = vpop.f32.mrf.mxu0
    %11446 = vdwg.mxu0
    %11447 = vmatpush.bf16.msra.mxu0 %v8618
    %11448 = vmatpush.bf16.msra.mxu0 %v8610
    %11449 = vmatpush.bf16.msra.mxu0 %v8602
    %11450 = vmatpush.bf16.msra.mxu0 %v8594
    %11451 = vmatpush.bf16.msra.mxu0 %v8586
    %11452 = vmatpush.bf16.msra.mxu0 %v8578
    %11453 = vmatpush.bf16.msra.mxu0 %v8570
    %11454 = vmatpush.bf16.msra.mxu0 %v8562
    %11455 = vmatmul.bf16.gmra.mxu0 %v4695
    %v11456 = vpop.f32.mrf.mxu0
    %v11457 = vadd.f32 %v11444, %v11456
    %v11458 = vpop.f32.mrf.mxu0
    %11459 = vdwg.mxu0
    %11460 = vmatpush.bf16.msra.mxu0 %v8682
    %11461 = vmatpush.bf16.msra.mxu0 %v8674
    %11462 = vmatpush.bf16.msra.mxu0 %v8666
    %11463 = vmatpush.bf16.msra.mxu0 %v8658
    %11464 = vmatpush.bf16.msra.mxu0 %v8650
    %11465 = vmatpush.bf16.msra.mxu0 %v8642
    %11466 = vmatpush.bf16.msra.mxu0 %v8634
    %11467 = vmatpush.bf16.msra.mxu0 %v8626
    %11468 = vmatmul.bf16.gmra.mxu0 %v4696
    %v11469 = vpop.f32.mrf.mxu0
    %v11470 = vadd.f32 %v11457, %v11469
    %v11471 = vpop.f32.mrf.mxu0
    %11472 = vdwg.mxu0
    %11473 = vmatpush.bf16.msra.mxu0 %v8746
    %11474 = vmatpush.bf16.msra.mxu0 %v8738
    %11475 = vmatpush.bf16.msra.mxu0 %v8730
    %11476 = vmatpush.bf16.msra.mxu0 %v8722
    %11477 = vmatpush.bf16.msra.mxu0 %v8714
    %11478 = vmatpush.bf16.msra.mxu0 %v8706
    %11479 = vmatpush.bf16.msra.mxu0 %v8698
    %11480 = vmatpush.bf16.msra.mxu0 %v8690
    %11481 = vmatmul.bf16.gmra.mxu0 %v4697
    %v11482 = vpop.f32.mrf.mxu0
    %v11483 = vadd.f32 %v11470, %v11482
    %v11484 = vpop.f32.mrf.mxu0
    %11485 = vdwg.mxu0
    %11486 = vmatpush.bf16.msra.mxu0 %v8810
    %11487 = vmatpush.bf16.msra.mxu0 %v8802
    %11488 = vmatpush.bf16.msra.mxu0 %v8794
    %11489 = vmatpush.bf16.msra.mxu0 %v8786
    %11490 = vmatpush.bf16.msra.mxu0 %v8778
    %11491 = vmatpush.bf16.msra.mxu0 %v8770
    %11492 = vmatpush.bf16.msra.mxu0 %v8762
    %11493 = vmatpush.bf16.msra.mxu0 %v8754
    %11494 = vmatmul.bf16.gmra.mxu0 %v4698
    %v11495 = vpop.f32.mrf.mxu0
    %v11496 = vadd.f32 %v11483, %v11495
    %v11497 = vpop.f32.mrf.mxu0
    %11498 = vdwg.mxu0
    %v11499 = vmax.f32 %v10040, 0.0
    %v11500 = vmax.f32 %v10248, 0.0
    %v11501 = vmax.f32 %v10456, 0.0
    %v11502 = vmax.f32 %v10664, 0.0
    %v11503 = vmax.f32 %v10872, 0.0
    %v11504 = vmax.f32 %v11080, 0.0
    %v11505 = vmax.f32 %v11288, 0.0
    %v11506 = vmax.f32 %v11496, 0.0
    %v11507 = vpack.c.bf16 %v11499, %v11499
    %v11508 = vpack.c.bf16 %v11500, %v11500
    %v11509 = vpack.c.bf16 %v11501, %v11501
    %v11510 = vpack.c.bf16 %v11502, %v11502
    %v11511 = vpack.c.bf16 %v11503, %v11503
    %v11512 = vpack.c.bf16 %v11504, %v11504
    %v11513 = vpack.c.bf16 %v11505, %v11505
    %v11514 = vpack.c.bf16 %v11506, %v11506
    %s11515 = smul.u32 4, 128
    %s11516 = smul.u32 %s11515, 4
    %s11517 = sshll.u32 %s11516, 4
    %11518 = dma.done %s231, %s11517
    %v11519 = vld [vmem:[#allocation3] sm:$0xff]
    %v11520 = vld [vmem:[#allocation3 + $0x8] sm:$0xff]
    %v11521 = vld [vmem:[#allocation3 + $0x10] sm:$0xff]
    %v11522 = vld [vmem:[#allocation3 + $0x18] sm:$0xff]
    %v11523 = vld [vmem:[#allocation3 + $0x20] sm:$0xff]
    %v11524 = vld [vmem:[#allocation3 + $0x28] sm:$0xff]
    %v11525 = vld [vmem:[#allocation3 + $0x30] sm:$0xff]
    %v11526 = vld [vmem:[#allocation3 + $0x38] sm:$0xff]
    %v11527 = vld [vmem:[#allocation3 + $0x40] sm:$0xff]
    %v11528 = vld [vmem:[#allocation3 + $0x48] sm:$0xff]
    %v11529 = vld [vmem:[#allocation3 + $0x50] sm:$0xff]
    %v11530 = vld [vmem:[#allocation3 + $0x58] sm:$0xff]
    %v11531 = vld [vmem:[#allocation3 + $0x60] sm:$0xff]
    %v11532 = vld [vmem:[#allocation3 + $0x68] sm:$0xff]
    %v11533 = vld [vmem:[#allocation3 + $0x70] sm:$0xff]
    %v11534 = vld [vmem:[#allocation3 + $0x78] sm:$0xff]
    %v11535 = vld [vmem:[#allocation3 + $0x80] sm:$0xff]
    %v11536 = vld [vmem:[#allocation3 + $0x88] sm:$0xff]
    %v11537 = vld [vmem:[#allocation3 + $0x90] sm:$0xff]
    %v11538 = vld [vmem:[#allocation3 + $0x98] sm:$0xff]
    %v11539 = vld [vmem:[#allocation3 + $0xa0] sm:$0xff]
    %v11540 = vld [vmem:[#allocation3 + $0xa8] sm:$0xff]
    %v11541 = vld [vmem:[#allocation3 + $0xb0] sm:$0xff]
    %v11542 = vld [vmem:[#allocation3 + $0xb8] sm:$0xff]
    %v11543 = vld [vmem:[#allocation3 + $0xc0] sm:$0xff]
    %v11544 = vld [vmem:[#allocation3 + $0xc8] sm:$0xff]
    %v11545 = vld [vmem:[#allocation3 + $0xd0] sm:$0xff]
    %v11546 = vld [vmem:[#allocation3 + $0xd8] sm:$0xff]
    %v11547 = vld [vmem:[#allocation3 + $0xe0] sm:$0xff]
    %v11548 = vld [vmem:[#allocation3 + $0xe8] sm:$0xff]
    %v11549 = vld [vmem:[#allocation3 + $0xf0] sm:$0xff]
    %v11550 = vld [vmem:[#allocation3 + $0xf8] sm:$0xff]
    %v11551 = vld [vmem:[#allocation3 + $0x100] sm:$0xff]
    %v11552 = vld [vmem:[#allocation3 + $0x108] sm:$0xff]
    %v11553 = vld [vmem:[#allocation3 + $0x110] sm:$0xff]
    %v11554 = vld [vmem:[#allocation3 + $0x118] sm:$0xff]
    %v11555 = vld [vmem:[#allocation3 + $0x120] sm:$0xff]
    %v11556 = vld [vmem:[#allocation3 + $0x128] sm:$0xff]
    %v11557 = vld [vmem:[#allocation3 + $0x130] sm:$0xff]
    %v11558 = vld [vmem:[#allocation3 + $0x138] sm:$0xff]
    %v11559 = vld [vmem:[#allocation3 + $0x140] sm:$0xff]
    %v11560 = vld [vmem:[#allocation3 + $0x148] sm:$0xff]
    %v11561 = vld [vmem:[#allocation3 + $0x150] sm:$0xff]
    %v11562 = vld [vmem:[#allocation3 + $0x158] sm:$0xff]
    %v11563 = vld [vmem:[#allocation3 + $0x160] sm:$0xff]
    %v11564 = vld [vmem:[#allocation3 + $0x168] sm:$0xff]
    %v11565 = vld [vmem:[#allocation3 + $0x170] sm:$0xff]
    %v11566 = vld [vmem:[#allocation3 + $0x178] sm:$0xff]
    %v11567 = vld [vmem:[#allocation3 + $0x180] sm:$0xff]
    %v11568 = vld [vmem:[#allocation3 + $0x188] sm:$0xff]
    %v11569 = vld [vmem:[#allocation3 + $0x190] sm:$0xff]
    %v11570 = vld [vmem:[#allocation3 + $0x198] sm:$0xff]
    %v11571 = vld [vmem:[#allocation3 + $0x1a0] sm:$0xff]
    %v11572 = vld [vmem:[#allocation3 + $0x1a8] sm:$0xff]
    %v11573 = vld [vmem:[#allocation3 + $0x1b0] sm:$0xff]
    %v11574 = vld [vmem:[#allocation3 + $0x1b8] sm:$0xff]
    %v11575 = vld [vmem:[#allocation3 + $0x1c0] sm:$0xff]
    %v11576 = vld [vmem:[#allocation3 + $0x1c8] sm:$0xff]
    %v11577 = vld [vmem:[#allocation3 + $0x1d0] sm:$0xff]
    %v11578 = vld [vmem:[#allocation3 + $0x1d8] sm:$0xff]
    %v11579 = vld [vmem:[#allocation3 + $0x1e0] sm:$0xff]
    %v11580 = vld [vmem:[#allocation3 + $0x1e8] sm:$0xff]
    %v11581 = vld [vmem:[#allocation3 + $0x1f0] sm:$0xff]
    %v11582 = vld [vmem:[#allocation3 + $0x1f8] sm:$0xff]
    %v11583 = vld [vmem:[#allocation3 + $0x200] sm:$0xff]
    %v11584 = vld [vmem:[#allocation3 + $0x208] sm:$0xff]
    %v11585 = vld [vmem:[#allocation3 + $0x210] sm:$0xff]
    %v11586 = vld [vmem:[#allocation3 + $0x218] sm:$0xff]
    %v11587 = vld [vmem:[#allocation3 + $0x220] sm:$0xff]
    %v11588 = vld [vmem:[#allocation3 + $0x228] sm:$0xff]
    %v11589 = vld [vmem:[#allocation3 + $0x230] sm:$0xff]
    %v11590 = vld [vmem:[#allocation3 + $0x238] sm:$0xff]
    %v11591 = vld [vmem:[#allocation3 + $0x240] sm:$0xff]
    %v11592 = vld [vmem:[#allocation3 + $0x248] sm:$0xff]
    %v11593 = vld [vmem:[#allocation3 + $0x250] sm:$0xff]
    %v11594 = vld [vmem:[#allocation3 + $0x258] sm:$0xff]
    %v11595 = vld [vmem:[#allocation3 + $0x260] sm:$0xff]
    %v11596 = vld [vmem:[#allocation3 + $0x268] sm:$0xff]
    %v11597 = vld [vmem:[#allocation3 + $0x270] sm:$0xff]
    %v11598 = vld [vmem:[#allocation3 + $0x278] sm:$0xff]
    %v11599 = vld [vmem:[#allocation3 + $0x280] sm:$0xff]
    %v11600 = vld [vmem:[#allocation3 + $0x288] sm:$0xff]
    %v11601 = vld [vmem:[#allocation3 + $0x290] sm:$0xff]
    %v11602 = vld [vmem:[#allocation3 + $0x298] sm:$0xff]
    %v11603 = vld [vmem:[#allocation3 + $0x2a0] sm:$0xff]
    %v11604 = vld [vmem:[#allocation3 + $0x2a8] sm:$0xff]
    %v11605 = vld [vmem:[#allocation3 + $0x2b0] sm:$0xff]
    %v11606 = vld [vmem:[#allocation3 + $0x2b8] sm:$0xff]
    %v11607 = vld [vmem:[#allocation3 + $0x2c0] sm:$0xff]
    %v11608 = vld [vmem:[#allocation3 + $0x2c8] sm:$0xff]
    %v11609 = vld [vmem:[#allocation3 + $0x2d0] sm:$0xff]
    %v11610 = vld [vmem:[#allocation3 + $0x2d8] sm:$0xff]
    %v11611 = vld [vmem:[#allocation3 + $0x2e0] sm:$0xff]
    %v11612 = vld [vmem:[#allocation3 + $0x2e8] sm:$0xff]
    %v11613 = vld [vmem:[#allocation3 + $0x2f0] sm:$0xff]
    %v11614 = vld [vmem:[#allocation3 + $0x2f8] sm:$0xff]
    %v11615 = vld [vmem:[#allocation3 + $0x300] sm:$0xff]
    %v11616 = vld [vmem:[#allocation3 + $0x308] sm:$0xff]
    %v11617 = vld [vmem:[#allocation3 + $0x310] sm:$0xff]
    %v11618 = vld [vmem:[#allocation3 + $0x318] sm:$0xff]
    %v11619 = vld [vmem:[#allocation3 + $0x320] sm:$0xff]
    %v11620 = vld [vmem:[#allocation3 + $0x328] sm:$0xff]
    %v11621 = vld [vmem:[#allocation3 + $0x330] sm:$0xff]
    %v11622 = vld [vmem:[#allocation3 + $0x338] sm:$0xff]
    %v11623 = vld [vmem:[#allocation3 + $0x340] sm:$0xff]
    %v11624 = vld [vmem:[#allocation3 + $0x348] sm:$0xff]
    %v11625 = vld [vmem:[#allocation3 + $0x350] sm:$0xff]
    %v11626 = vld [vmem:[#allocation3 + $0x358] sm:$0xff]
    %v11627 = vld [vmem:[#allocation3 + $0x360] sm:$0xff]
    %v11628 = vld [vmem:[#allocation3 + $0x368] sm:$0xff]
    %v11629 = vld [vmem:[#allocation3 + $0x370] sm:$0xff]
    %v11630 = vld [vmem:[#allocation3 + $0x378] sm:$0xff]
    %v11631 = vld [vmem:[#allocation3 + $0x380] sm:$0xff]
    %v11632 = vld [vmem:[#allocation3 + $0x388] sm:$0xff]
    %v11633 = vld [vmem:[#allocation3 + $0x390] sm:$0xff]
    %v11634 = vld [vmem:[#allocation3 + $0x398] sm:$0xff]
    %v11635 = vld [vmem:[#allocation3 + $0x3a0] sm:$0xff]
    %v11636 = vld [vmem:[#allocation3 + $0x3a8] sm:$0xff]
    %v11637 = vld [vmem:[#allocation3 + $0x3b0] sm:$0xff]
    %v11638 = vld [vmem:[#allocation3 + $0x3b8] sm:$0xff]
    %v11639 = vld [vmem:[#allocation3 + $0x3c0] sm:$0xff]
    %v11640 = vld [vmem:[#allocation3 + $0x3c8] sm:$0xff]
    %v11641 = vld [vmem:[#allocation3 + $0x3d0] sm:$0xff]
    %v11642 = vld [vmem:[#allocation3 + $0x3d8] sm:$0xff]
    %v11643 = vld [vmem:[#allocation3 + $0x3e0] sm:$0xff]
    %v11644 = vld [vmem:[#allocation3 + $0x3e8] sm:$0xff]
    %v11645 = vld [vmem:[#allocation3 + $0x3f0] sm:$0xff]
    %v11646 = vld [vmem:[#allocation3 + $0x3f8] sm:$0xff]
    %v11647 = vld [vmem:[#allocation3 + $0x400] sm:$0xff]
    %v11648 = vld [vmem:[#allocation3 + $0x408] sm:$0xff]
    %v11649 = vld [vmem:[#allocation3 + $0x410] sm:$0xff]
    %v11650 = vld [vmem:[#allocation3 + $0x418] sm:$0xff]
    %v11651 = vld [vmem:[#allocation3 + $0x420] sm:$0xff]
    %v11652 = vld [vmem:[#allocation3 + $0x428] sm:$0xff]
    %v11653 = vld [vmem:[#allocation3 + $0x430] sm:$0xff]
    %v11654 = vld [vmem:[#allocation3 + $0x438] sm:$0xff]
    %v11655 = vld [vmem:[#allocation3 + $0x440] sm:$0xff]
    %v11656 = vld [vmem:[#allocation3 + $0x448] sm:$0xff]
    %v11657 = vld [vmem:[#allocation3 + $0x450] sm:$0xff]
    %v11658 = vld [vmem:[#allocation3 + $0x458] sm:$0xff]
    %v11659 = vld [vmem:[#allocation3 + $0x460] sm:$0xff]
    %v11660 = vld [vmem:[#allocation3 + $0x468] sm:$0xff]
    %v11661 = vld [vmem:[#allocation3 + $0x470] sm:$0xff]
    %v11662 = vld [vmem:[#allocation3 + $0x478] sm:$0xff]
    %v11663 = vld [vmem:[#allocation3 + $0x480] sm:$0xff]
    %v11664 = vld [vmem:[#allocation3 + $0x488] sm:$0xff]
    %v11665 = vld [vmem:[#allocation3 + $0x490] sm:$0xff]
    %v11666 = vld [vmem:[#allocation3 + $0x498] sm:$0xff]
    %v11667 = vld [vmem:[#allocation3 + $0x4a0] sm:$0xff]
    %v11668 = vld [vmem:[#allocation3 + $0x4a8] sm:$0xff]
    %v11669 = vld [vmem:[#allocation3 + $0x4b0] sm:$0xff]
    %v11670 = vld [vmem:[#allocation3 + $0x4b8] sm:$0xff]
    %v11671 = vld [vmem:[#allocation3 + $0x4c0] sm:$0xff]
    %v11672 = vld [vmem:[#allocation3 + $0x4c8] sm:$0xff]
    %v11673 = vld [vmem:[#allocation3 + $0x4d0] sm:$0xff]
    %v11674 = vld [vmem:[#allocation3 + $0x4d8] sm:$0xff]
    %v11675 = vld [vmem:[#allocation3 + $0x4e0] sm:$0xff]
    %v11676 = vld [vmem:[#allocation3 + $0x4e8] sm:$0xff]
    %v11677 = vld [vmem:[#allocation3 + $0x4f0] sm:$0xff]
    %v11678 = vld [vmem:[#allocation3 + $0x4f8] sm:$0xff]
    %v11679 = vld [vmem:[#allocation3 + $0x500] sm:$0xff]
    %v11680 = vld [vmem:[#allocation3 + $0x508] sm:$0xff]
    %v11681 = vld [vmem:[#allocation3 + $0x510] sm:$0xff]
    %v11682 = vld [vmem:[#allocation3 + $0x518] sm:$0xff]
    %v11683 = vld [vmem:[#allocation3 + $0x520] sm:$0xff]
    %v11684 = vld [vmem:[#allocation3 + $0x528] sm:$0xff]
    %v11685 = vld [vmem:[#allocation3 + $0x530] sm:$0xff]
    %v11686 = vld [vmem:[#allocation3 + $0x538] sm:$0xff]
    %v11687 = vld [vmem:[#allocation3 + $0x540] sm:$0xff]
    %v11688 = vld [vmem:[#allocation3 + $0x548] sm:$0xff]
    %v11689 = vld [vmem:[#allocation3 + $0x550] sm:$0xff]
    %v11690 = vld [vmem:[#allocation3 + $0x558] sm:$0xff]
    %v11691 = vld [vmem:[#allocation3 + $0x560] sm:$0xff]
    %v11692 = vld [vmem:[#allocation3 + $0x568] sm:$0xff]
    %v11693 = vld [vmem:[#allocation3 + $0x570] sm:$0xff]
    %v11694 = vld [vmem:[#allocation3 + $0x578] sm:$0xff]
    %v11695 = vld [vmem:[#allocation3 + $0x580] sm:$0xff]
    %v11696 = vld [vmem:[#allocation3 + $0x588] sm:$0xff]
    %v11697 = vld [vmem:[#allocation3 + $0x590] sm:$0xff]
    %v11698 = vld [vmem:[#allocation3 + $0x598] sm:$0xff]
    %v11699 = vld [vmem:[#allocation3 + $0x5a0] sm:$0xff]
    %v11700 = vld [vmem:[#allocation3 + $0x5a8] sm:$0xff]
    %v11701 = vld [vmem:[#allocation3 + $0x5b0] sm:$0xff]
    %v11702 = vld [vmem:[#allocation3 + $0x5b8] sm:$0xff]
    %v11703 = vld [vmem:[#allocation3 + $0x5c0] sm:$0xff]
    %v11704 = vld [vmem:[#allocation3 + $0x5c8] sm:$0xff]
    %v11705 = vld [vmem:[#allocation3 + $0x5d0] sm:$0xff]
    %v11706 = vld [vmem:[#allocation3 + $0x5d8] sm:$0xff]
    %v11707 = vld [vmem:[#allocation3 + $0x5e0] sm:$0xff]
    %v11708 = vld [vmem:[#allocation3 + $0x5e8] sm:$0xff]
    %v11709 = vld [vmem:[#allocation3 + $0x5f0] sm:$0xff]
    %v11710 = vld [vmem:[#allocation3 + $0x5f8] sm:$0xff]
    %v11711 = vld [vmem:[#allocation3 + $0x600] sm:$0xff]
    %v11712 = vld [vmem:[#allocation3 + $0x608] sm:$0xff]
    %v11713 = vld [vmem:[#allocation3 + $0x610] sm:$0xff]
    %v11714 = vld [vmem:[#allocation3 + $0x618] sm:$0xff]
    %v11715 = vld [vmem:[#allocation3 + $0x620] sm:$0xff]
    %v11716 = vld [vmem:[#allocation3 + $0x628] sm:$0xff]
    %v11717 = vld [vmem:[#allocation3 + $0x630] sm:$0xff]
    %v11718 = vld [vmem:[#allocation3 + $0x638] sm:$0xff]
    %v11719 = vld [vmem:[#allocation3 + $0x640] sm:$0xff]
    %v11720 = vld [vmem:[#allocation3 + $0x648] sm:$0xff]
    %v11721 = vld [vmem:[#allocation3 + $0x650] sm:$0xff]
    %v11722 = vld [vmem:[#allocation3 + $0x658] sm:$0xff]
    %v11723 = vld [vmem:[#allocation3 + $0x660] sm:$0xff]
    %v11724 = vld [vmem:[#allocation3 + $0x668] sm:$0xff]
    %v11725 = vld [vmem:[#allocation3 + $0x670] sm:$0xff]
    %v11726 = vld [vmem:[#allocation3 + $0x678] sm:$0xff]
    %v11727 = vld [vmem:[#allocation3 + $0x680] sm:$0xff]
    %v11728 = vld [vmem:[#allocation3 + $0x688] sm:$0xff]
    %v11729 = vld [vmem:[#allocation3 + $0x690] sm:$0xff]
    %v11730 = vld [vmem:[#allocation3 + $0x698] sm:$0xff]
    %v11731 = vld [vmem:[#allocation3 + $0x6a0] sm:$0xff]
    %v11732 = vld [vmem:[#allocation3 + $0x6a8] sm:$0xff]
    %v11733 = vld [vmem:[#allocation3 + $0x6b0] sm:$0xff]
    %v11734 = vld [vmem:[#allocation3 + $0x6b8] sm:$0xff]
    %v11735 = vld [vmem:[#allocation3 + $0x6c0] sm:$0xff]
    %v11736 = vld [vmem:[#allocation3 + $0x6c8] sm:$0xff]
    %v11737 = vld [vmem:[#allocation3 + $0x6d0] sm:$0xff]
    %v11738 = vld [vmem:[#allocation3 + $0x6d8] sm:$0xff]
    %v11739 = vld [vmem:[#allocation3 + $0x6e0] sm:$0xff]
    %v11740 = vld [vmem:[#allocation3 + $0x6e8] sm:$0xff]
    %v11741 = vld [vmem:[#allocation3 + $0x6f0] sm:$0xff]
    %v11742 = vld [vmem:[#allocation3 + $0x6f8] sm:$0xff]
    %v11743 = vld [vmem:[#allocation3 + $0x700] sm:$0xff]
    %v11744 = vld [vmem:[#allocation3 + $0x708] sm:$0xff]
    %v11745 = vld [vmem:[#allocation3 + $0x710] sm:$0xff]
    %v11746 = vld [vmem:[#allocation3 + $0x718] sm:$0xff]
    %v11747 = vld [vmem:[#allocation3 + $0x720] sm:$0xff]
    %v11748 = vld [vmem:[#allocation3 + $0x728] sm:$0xff]
    %v11749 = vld [vmem:[#allocation3 + $0x730] sm:$0xff]
    %v11750 = vld [vmem:[#allocation3 + $0x738] sm:$0xff]
    %v11751 = vld [vmem:[#allocation3 + $0x740] sm:$0xff]
    %v11752 = vld [vmem:[#allocation3 + $0x748] sm:$0xff]
    %v11753 = vld [vmem:[#allocation3 + $0x750] sm:$0xff]
    %v11754 = vld [vmem:[#allocation3 + $0x758] sm:$0xff]
    %v11755 = vld [vmem:[#allocation3 + $0x760] sm:$0xff]
    %v11756 = vld [vmem:[#allocation3 + $0x768] sm:$0xff]
    %v11757 = vld [vmem:[#allocation3 + $0x770] sm:$0xff]
    %v11758 = vld [vmem:[#allocation3 + $0x778] sm:$0xff]
    %v11759 = vld [vmem:[#allocation3 + $0x780] sm:$0xff]
    %v11760 = vld [vmem:[#allocation3 + $0x788] sm:$0xff]
    %v11761 = vld [vmem:[#allocation3 + $0x790] sm:$0xff]
    %v11762 = vld [vmem:[#allocation3 + $0x798] sm:$0xff]
    %v11763 = vld [vmem:[#allocation3 + $0x7a0] sm:$0xff]
    %v11764 = vld [vmem:[#allocation3 + $0x7a8] sm:$0xff]
    %v11765 = vld [vmem:[#allocation3 + $0x7b0] sm:$0xff]
    %v11766 = vld [vmem:[#allocation3 + $0x7b8] sm:$0xff]
    %v11767 = vld [vmem:[#allocation3 + $0x7c0] sm:$0xff]
    %v11768 = vld [vmem:[#allocation3 + $0x7c8] sm:$0xff]
    %v11769 = vld [vmem:[#allocation3 + $0x7d0] sm:$0xff]
    %v11770 = vld [vmem:[#allocation3 + $0x7d8] sm:$0xff]
    %v11771 = vld [vmem:[#allocation3 + $0x7e0] sm:$0xff]
    %v11772 = vld [vmem:[#allocation3 + $0x7e8] sm:$0xff]
    %v11773 = vld [vmem:[#allocation3 + $0x7f0] sm:$0xff]
    %v11774 = vld [vmem:[#allocation3 + $0x7f8] sm:$0xff]
    %v11775 = vld [vmem:[#allocation23] sm:$0xf]
    %v11777 = vperm.slane %v11775, 0
    %v11778 = vperm.slane %v11775, 1
    %v11779 = vperm.slane %v11775, 2
    %v11780 = vperm.slane %v11775, 3
    %v12041 = vunpack.c.l.b16 %v11519
    %v12042 = vunpack.c.h.b16 %v11519
    %v12043 = vunpack.c.l.b16 %v11520
    %v12044 = vunpack.c.h.b16 %v11520
    %v12045 = vunpack.c.l.b16 %v11521
    %v12046 = vunpack.c.h.b16 %v11521
    %v12047 = vunpack.c.l.b16 %v11522
    %v12048 = vunpack.c.h.b16 %v11522
    %v12049 = vunpack.c.l.b16 %v11523
    %v12050 = vunpack.c.h.b16 %v11523
    %v12051 = vunpack.c.l.b16 %v11524
    %v12052 = vunpack.c.h.b16 %v11524
    %v12053 = vunpack.c.l.b16 %v11525
    %v12054 = vunpack.c.h.b16 %v11525
    %v12055 = vunpack.c.l.b16 %v11526
    %v12056 = vunpack.c.h.b16 %v11526
    %v12057 = vunpack.c.l.b16 %v11527
    %v12058 = vunpack.c.h.b16 %v11527
    %v12059 = vunpack.c.l.b16 %v11528
    %v12060 = vunpack.c.h.b16 %v11528
    %v12061 = vunpack.c.l.b16 %v11529
    %v12062 = vunpack.c.h.b16 %v11529
    %v12063 = vunpack.c.l.b16 %v11530
    %v12064 = vunpack.c.h.b16 %v11530
    %v12065 = vunpack.c.l.b16 %v11531
    %v12066 = vunpack.c.h.b16 %v11531
    %v12067 = vunpack.c.l.b16 %v11532
    %v12068 = vunpack.c.h.b16 %v11532
    %v12069 = vunpack.c.l.b16 %v11533
    %v12070 = vunpack.c.h.b16 %v11533
    %v12071 = vunpack.c.l.b16 %v11534
    %v12072 = vunpack.c.h.b16 %v11534
    %v12073 = vunpack.c.l.b16 %v11535
    %v12074 = vunpack.c.h.b16 %v11535
    %v12075 = vunpack.c.l.b16 %v11536
    %v12076 = vunpack.c.h.b16 %v11536
    %v12077 = vunpack.c.l.b16 %v11537
    %v12078 = vunpack.c.h.b16 %v11537
    %v12079 = vunpack.c.l.b16 %v11538
    %v12080 = vunpack.c.h.b16 %v11538
    %v12081 = vunpack.c.l.b16 %v11539
    %v12082 = vunpack.c.h.b16 %v11539
    %v12083 = vunpack.c.l.b16 %v11540
    %v12084 = vunpack.c.h.b16 %v11540
    %v12085 = vunpack.c.l.b16 %v11541
    %v12086 = vunpack.c.h.b16 %v11541
    %v12087 = vunpack.c.l.b16 %v11542
    %v12088 = vunpack.c.h.b16 %v11542
    %v12089 = vunpack.c.l.b16 %v11543
    %v12090 = vunpack.c.h.b16 %v11543
    %v12091 = vunpack.c.l.b16 %v11544
    %v12092 = vunpack.c.h.b16 %v11544
    %v12093 = vunpack.c.l.b16 %v11545
    %v12094 = vunpack.c.h.b16 %v11545
    %v12095 = vunpack.c.l.b16 %v11546
    %v12096 = vunpack.c.h.b16 %v11546
    %v12097 = vunpack.c.l.b16 %v11547
    %v12098 = vunpack.c.h.b16 %v11547
    %v12099 = vunpack.c.l.b16 %v11548
    %v12100 = vunpack.c.h.b16 %v11548
    %v12101 = vunpack.c.l.b16 %v11549
    %v12102 = vunpack.c.h.b16 %v11549
    %v12103 = vunpack.c.l.b16 %v11550
    %v12104 = vunpack.c.h.b16 %v11550
    %v12105 = vunpack.c.l.b16 %v11551
    %v12106 = vunpack.c.h.b16 %v11551
    %v12107 = vunpack.c.l.b16 %v11552
    %v12108 = vunpack.c.h.b16 %v11552
    %v12109 = vunpack.c.l.b16 %v11553
    %v12110 = vunpack.c.h.b16 %v11553
    %v12111 = vunpack.c.l.b16 %v11554
    %v12112 = vunpack.c.h.b16 %v11554
    %v12113 = vunpack.c.l.b16 %v11555
    %v12114 = vunpack.c.h.b16 %v11555
    %v12115 = vunpack.c.l.b16 %v11556
    %v12116 = vunpack.c.h.b16 %v11556
    %v12117 = vunpack.c.l.b16 %v11557
    %v12118 = vunpack.c.h.b16 %v11557
    %v12119 = vunpack.c.l.b16 %v11558
    %v12120 = vunpack.c.h.b16 %v11558
    %v12121 = vunpack.c.l.b16 %v11559
    %v12122 = vunpack.c.h.b16 %v11559
    %v12123 = vunpack.c.l.b16 %v11560
    %v12124 = vunpack.c.h.b16 %v11560
    %v12125 = vunpack.c.l.b16 %v11561
    %v12126 = vunpack.c.h.b16 %v11561
    %v12127 = vunpack.c.l.b16 %v11562
    %v12128 = vunpack.c.h.b16 %v11562
    %v12129 = vunpack.c.l.b16 %v11563
    %v12130 = vunpack.c.h.b16 %v11563
    %v12131 = vunpack.c.l.b16 %v11564
    %v12132 = vunpack.c.h.b16 %v11564
    %v12133 = vunpack.c.l.b16 %v11565
    %v12134 = vunpack.c.h.b16 %v11565
    %v12135 = vunpack.c.l.b16 %v11566
    %v12136 = vunpack.c.h.b16 %v11566
    %v12137 = vunpack.c.l.b16 %v11567
    %v12138 = vunpack.c.h.b16 %v11567
    %v12139 = vunpack.c.l.b16 %v11568
    %v12140 = vunpack.c.h.b16 %v11568
    %v12141 = vunpack.c.l.b16 %v11569
    %v12142 = vunpack.c.h.b16 %v11569
    %v12143 = vunpack.c.l.b16 %v11570
    %v12144 = vunpack.c.h.b16 %v11570
    %v12145 = vunpack.c.l.b16 %v11571
    %v12146 = vunpack.c.h.b16 %v11571
    %v12147 = vunpack.c.l.b16 %v11572
    %v12148 = vunpack.c.h.b16 %v11572
    %v12149 = vunpack.c.l.b16 %v11573
    %v12150 = vunpack.c.h.b16 %v11573
    %v12151 = vunpack.c.l.b16 %v11574
    %v12152 = vunpack.c.h.b16 %v11574
    %v12153 = vunpack.c.l.b16 %v11575
    %v12154 = vunpack.c.h.b16 %v11575
    %v12155 = vunpack.c.l.b16 %v11576
    %v12156 = vunpack.c.h.b16 %v11576
    %v12157 = vunpack.c.l.b16 %v11577
    %v12158 = vunpack.c.h.b16 %v11577
    %v12159 = vunpack.c.l.b16 %v11578
    %v12160 = vunpack.c.h.b16 %v11578
    %v12161 = vunpack.c.l.b16 %v11579
    %v12162 = vunpack.c.h.b16 %v11579
    %v12163 = vunpack.c.l.b16 %v11580
    %v12164 = vunpack.c.h.b16 %v11580
    %v12165 = vunpack.c.l.b16 %v11581
    %v12166 = vunpack.c.h.b16 %v11581
    %v12167 = vunpack.c.l.b16 %v11582
    %v12168 = vunpack.c.h.b16 %v11582
    %v12169 = vunpack.c.l.b16 %v11583
    %v12170 = vunpack.c.h.b16 %v11583
    %v12171 = vunpack.c.l.b16 %v11584
    %v12172 = vunpack.c.h.b16 %v11584
    %v12173 = vunpack.c.l.b16 %v11585
    %v12174 = vunpack.c.h.b16 %v11585
    %v12175 = vunpack.c.l.b16 %v11586
    %v12176 = vunpack.c.h.b16 %v11586
    %v12177 = vunpack.c.l.b16 %v11587
    %v12178 = vunpack.c.h.b16 %v11587
    %v12179 = vunpack.c.l.b16 %v11588
    %v12180 = vunpack.c.h.b16 %v11588
    %v12181 = vunpack.c.l.b16 %v11589
    %v12182 = vunpack.c.h.b16 %v11589
    %v12183 = vunpack.c.l.b16 %v11590
    %v12184 = vunpack.c.h.b16 %v11590
    %v12185 = vunpack.c.l.b16 %v11591
    %v12186 = vunpack.c.h.b16 %v11591
    %v12187 = vunpack.c.l.b16 %v11592
    %v12188 = vunpack.c.h.b16 %v11592
    %v12189 = vunpack.c.l.b16 %v11593
    %v12190 = vunpack.c.h.b16 %v11593
    %v12191 = vunpack.c.l.b16 %v11594
    %v12192 = vunpack.c.h.b16 %v11594
    %v12193 = vunpack.c.l.b16 %v11595
    %v12194 = vunpack.c.h.b16 %v11595
    %v12195 = vunpack.c.l.b16 %v11596
    %v12196 = vunpack.c.h.b16 %v11596
    %v12197 = vunpack.c.l.b16 %v11597
    %v12198 = vunpack.c.h.b16 %v11597
    %v12199 = vunpack.c.l.b16 %v11598
    %v12200 = vunpack.c.h.b16 %v11598
    %v12201 = vunpack.c.l.b16 %v11599
    %v12202 = vunpack.c.h.b16 %v11599
    %v12203 = vunpack.c.l.b16 %v11600
    %v12204 = vunpack.c.h.b16 %v11600
    %v12205 = vunpack.c.l.b16 %v11601
    %v12206 = vunpack.c.h.b16 %v11601
    %v12207 = vunpack.c.l.b16 %v11602
    %v12208 = vunpack.c.h.b16 %v11602
    %v12209 = vunpack.c.l.b16 %v11603
    %v12210 = vunpack.c.h.b16 %v11603
    %v12211 = vunpack.c.l.b16 %v11604
    %v12212 = vunpack.c.h.b16 %v11604
    %v12213 = vunpack.c.l.b16 %v11605
    %v12214 = vunpack.c.h.b16 %v11605
    %v12215 = vunpack.c.l.b16 %v11606
    %v12216 = vunpack.c.h.b16 %v11606
    %v12217 = vunpack.c.l.b16 %v11607
    %v12218 = vunpack.c.h.b16 %v11607
    %v12219 = vunpack.c.l.b16 %v11608
    %v12220 = vunpack.c.h.b16 %v11608
    %v12221 = vunpack.c.l.b16 %v11609
    %v12222 = vunpack.c.h.b16 %v11609
    %v12223 = vunpack.c.l.b16 %v11610
    %v12224 = vunpack.c.h.b16 %v11610
    %v12225 = vunpack.c.l.b16 %v11611
    %v12226 = vunpack.c.h.b16 %v11611
    %v12227 = vunpack.c.l.b16 %v11612
    %v12228 = vunpack.c.h.b16 %v11612
    %v12229 = vunpack.c.l.b16 %v11613
    %v12230 = vunpack.c.h.b16 %v11613
    %v12231 = vunpack.c.l.b16 %v11614
    %v12232 = vunpack.c.h.b16 %v11614
    %v12233 = vunpack.c.l.b16 %v11615
    %v12234 = vunpack.c.h.b16 %v11615
    %v12235 = vunpack.c.l.b16 %v11616
    %v12236 = vunpack.c.h.b16 %v11616
    %v12237 = vunpack.c.l.b16 %v11617
    %v12238 = vunpack.c.h.b16 %v11617
    %v12239 = vunpack.c.l.b16 %v11618
    %v12240 = vunpack.c.h.b16 %v11618
    %v12241 = vunpack.c.l.b16 %v11619
    %v12242 = vunpack.c.h.b16 %v11619
    %v12243 = vunpack.c.l.b16 %v11620
    %v12244 = vunpack.c.h.b16 %v11620
    %v12245 = vunpack.c.l.b16 %v11621
    %v12246 = vunpack.c.h.b16 %v11621
    %v12247 = vunpack.c.l.b16 %v11622
    %v12248 = vunpack.c.h.b16 %v11622
    %v12249 = vunpack.c.l.b16 %v11623
    %v12250 = vunpack.c.h.b16 %v11623
    %v12251 = vunpack.c.l.b16 %v11624
    %v12252 = vunpack.c.h.b16 %v11624
    %v12253 = vunpack.c.l.b16 %v11625
    %v12254 = vunpack.c.h.b16 %v11625
    %v12255 = vunpack.c.l.b16 %v11626
    %v12256 = vunpack.c.h.b16 %v11626
    %v12257 = vunpack.c.l.b16 %v11627
    %v12258 = vunpack.c.h.b16 %v11627
    %v12259 = vunpack.c.l.b16 %v11628
    %v12260 = vunpack.c.h.b16 %v11628
    %v12261 = vunpack.c.l.b16 %v11629
    %v12262 = vunpack.c.h.b16 %v11629
    %v12263 = vunpack.c.l.b16 %v11630
    %v12264 = vunpack.c.h.b16 %v11630
    %v12265 = vunpack.c.l.b16 %v11631
    %v12266 = vunpack.c.h.b16 %v11631
    %v12267 = vunpack.c.l.b16 %v11632
    %v12268 = vunpack.c.h.b16 %v11632
    %v12269 = vunpack.c.l.b16 %v11633
    %v12270 = vunpack.c.h.b16 %v11633
    %v12271 = vunpack.c.l.b16 %v11634
    %v12272 = vunpack.c.h.b16 %v11634
    %v12273 = vunpack.c.l.b16 %v11635
    %v12274 = vunpack.c.h.b16 %v11635
    %v12275 = vunpack.c.l.b16 %v11636
    %v12276 = vunpack.c.h.b16 %v11636
    %v12277 = vunpack.c.l.b16 %v11637
    %v12278 = vunpack.c.h.b16 %v11637
    %v12279 = vunpack.c.l.b16 %v11638
    %v12280 = vunpack.c.h.b16 %v11638
    %v12281 = vunpack.c.l.b16 %v11639
    %v12282 = vunpack.c.h.b16 %v11639
    %v12283 = vunpack.c.l.b16 %v11640
    %v12284 = vunpack.c.h.b16 %v11640
    %v12285 = vunpack.c.l.b16 %v11641
    %v12286 = vunpack.c.h.b16 %v11641
    %v12287 = vunpack.c.l.b16 %v11642
    %v12288 = vunpack.c.h.b16 %v11642
    %v12289 = vunpack.c.l.b16 %v11643
    %v12290 = vunpack.c.h.b16 %v11643
    %v12291 = vunpack.c.l.b16 %v11644
    %v12292 = vunpack.c.h.b16 %v11644
    %v12293 = vunpack.c.l.b16 %v11645
    %v12294 = vunpack.c.h.b16 %v11645
    %v12295 = vunpack.c.l.b16 %v11646
    %v12296 = vunpack.c.h.b16 %v11646
    %v12297 = vunpack.c.l.b16 %v11647
    %v12298 = vunpack.c.h.b16 %v11647
    %v12299 = vunpack.c.l.b16 %v11648
    %v12300 = vunpack.c.h.b16 %v11648
    %v12301 = vunpack.c.l.b16 %v11649
    %v12302 = vunpack.c.h.b16 %v11649
    %v12303 = vunpack.c.l.b16 %v11650
    %v12304 = vunpack.c.h.b16 %v11650
    %v12305 = vunpack.c.l.b16 %v11651
    %v12306 = vunpack.c.h.b16 %v11651
    %v12307 = vunpack.c.l.b16 %v11652
    %v12308 = vunpack.c.h.b16 %v11652
    %v12309 = vunpack.c.l.b16 %v11653
    %v12310 = vunpack.c.h.b16 %v11653
    %v12311 = vunpack.c.l.b16 %v11654
    %v12312 = vunpack.c.h.b16 %v11654
    %v12313 = vunpack.c.l.b16 %v11655
    %v12314 = vunpack.c.h.b16 %v11655
    %v12315 = vunpack.c.l.b16 %v11656
    %v12316 = vunpack.c.h.b16 %v11656
    %v12317 = vunpack.c.l.b16 %v11657
    %v12318 = vunpack.c.h.b16 %v11657
    %v12319 = vunpack.c.l.b16 %v11658
    %v12320 = vunpack.c.h.b16 %v11658
    %v12321 = vunpack.c.l.b16 %v11659
    %v12322 = vunpack.c.h.b16 %v11659
    %v12323 = vunpack.c.l.b16 %v11660
    %v12324 = vunpack.c.h.b16 %v11660
    %v12325 = vunpack.c.l.b16 %v11661
    %v12326 = vunpack.c.h.b16 %v11661
    %v12327 = vunpack.c.l.b16 %v11662
    %v12328 = vunpack.c.h.b16 %v11662
    %v12329 = vunpack.c.l.b16 %v11663
    %v12330 = vunpack.c.h.b16 %v11663
    %v12331 = vunpack.c.l.b16 %v11664
    %v12332 = vunpack.c.h.b16 %v11664
    %v12333 = vunpack.c.l.b16 %v11665
    %v12334 = vunpack.c.h.b16 %v11665
    %v12335 = vunpack.c.l.b16 %v11666
    %v12336 = vunpack.c.h.b16 %v11666
    %v12337 = vunpack.c.l.b16 %v11667
    %v12338 = vunpack.c.h.b16 %v11667
    %v12339 = vunpack.c.l.b16 %v11668
    %v12340 = vunpack.c.h.b16 %v11668
    %v12341 = vunpack.c.l.b16 %v11669
    %v12342 = vunpack.c.h.b16 %v11669
    %v12343 = vunpack.c.l.b16 %v11670
    %v12344 = vunpack.c.h.b16 %v11670
    %v12345 = vunpack.c.l.b16 %v11671
    %v12346 = vunpack.c.h.b16 %v11671
    %v12347 = vunpack.c.l.b16 %v11672
    %v12348 = vunpack.c.h.b16 %v11672
    %v12349 = vunpack.c.l.b16 %v11673
    %v12350 = vunpack.c.h.b16 %v11673
    %v12351 = vunpack.c.l.b16 %v11674
    %v12352 = vunpack.c.h.b16 %v11674
    %v12353 = vunpack.c.l.b16 %v11675
    %v12354 = vunpack.c.h.b16 %v11675
    %v12355 = vunpack.c.l.b16 %v11676
    %v12356 = vunpack.c.h.b16 %v11676
    %v12357 = vunpack.c.l.b16 %v11677
    %v12358 = vunpack.c.h.b16 %v11677
    %v12359 = vunpack.c.l.b16 %v11678
    %v12360 = vunpack.c.h.b16 %v11678
    %v12361 = vunpack.c.l.b16 %v11679
    %v12362 = vunpack.c.h.b16 %v11679
    %v12363 = vunpack.c.l.b16 %v11680
    %v12364 = vunpack.c.h.b16 %v11680
    %v12365 = vunpack.c.l.b16 %v11681
    %v12366 = vunpack.c.h.b16 %v11681
    %v12367 = vunpack.c.l.b16 %v11682
    %v12368 = vunpack.c.h.b16 %v11682
    %v12369 = vunpack.c.l.b16 %v11683
    %v12370 = vunpack.c.h.b16 %v11683
    %v12371 = vunpack.c.l.b16 %v11684
    %v12372 = vunpack.c.h.b16 %v11684
    %v12373 = vunpack.c.l.b16 %v11685
    %v12374 = vunpack.c.h.b16 %v11685
    %v12375 = vunpack.c.l.b16 %v11686
    %v12376 = vunpack.c.h.b16 %v11686
    %v12377 = vunpack.c.l.b16 %v11687
    %v12378 = vunpack.c.h.b16 %v11687
    %v12379 = vunpack.c.l.b16 %v11688
    %v12380 = vunpack.c.h.b16 %v11688
    %v12381 = vunpack.c.l.b16 %v11689
    %v12382 = vunpack.c.h.b16 %v11689
    %v12383 = vunpack.c.l.b16 %v11690
    %v12384 = vunpack.c.h.b16 %v11690
    %v12385 = vunpack.c.l.b16 %v11691
    %v12386 = vunpack.c.h.b16 %v11691
    %v12387 = vunpack.c.l.b16 %v11692
    %v12388 = vunpack.c.h.b16 %v11692
    %v12389 = vunpack.c.l.b16 %v11693
    %v12390 = vunpack.c.h.b16 %v11693
    %v12391 = vunpack.c.l.b16 %v11694
    %v12392 = vunpack.c.h.b16 %v11694
    %v12393 = vunpack.c.l.b16 %v11695
    %v12394 = vunpack.c.h.b16 %v11695
    %v12395 = vunpack.c.l.b16 %v11696
    %v12396 = vunpack.c.h.b16 %v11696
    %v12397 = vunpack.c.l.b16 %v11697
    %v12398 = vunpack.c.h.b16 %v11697
    %v12399 = vunpack.c.l.b16 %v11698
    %v12400 = vunpack.c.h.b16 %v11698
    %v12401 = vunpack.c.l.b16 %v11699
    %v12402 = vunpack.c.h.b16 %v11699
    %v12403 = vunpack.c.l.b16 %v11700
    %v12404 = vunpack.c.h.b16 %v11700
    %v12405 = vunpack.c.l.b16 %v11701
    %v12406 = vunpack.c.h.b16 %v11701
    %v12407 = vunpack.c.l.b16 %v11702
    %v12408 = vunpack.c.h.b16 %v11702
    %v12409 = vunpack.c.l.b16 %v11703
    %v12410 = vunpack.c.h.b16 %v11703
    %v12411 = vunpack.c.l.b16 %v11704
    %v12412 = vunpack.c.h.b16 %v11704
    %v12413 = vunpack.c.l.b16 %v11705
    %v12414 = vunpack.c.h.b16 %v11705
    %v12415 = vunpack.c.l.b16 %v11706
    %v12416 = vunpack.c.h.b16 %v11706
    %v12417 = vunpack.c.l.b16 %v11707
    %v12418 = vunpack.c.h.b16 %v11707
    %v12419 = vunpack.c.l.b16 %v11708
    %v12420 = vunpack.c.h.b16 %v11708
    %v12421 = vunpack.c.l.b16 %v11709
    %v12422 = vunpack.c.h.b16 %v11709
    %v12423 = vunpack.c.l.b16 %v11710
    %v12424 = vunpack.c.h.b16 %v11710
    %v12425 = vunpack.c.l.b16 %v11711
    %v12426 = vunpack.c.h.b16 %v11711
    %v12427 = vunpack.c.l.b16 %v11712
    %v12428 = vunpack.c.h.b16 %v11712
    %v12429 = vunpack.c.l.b16 %v11713
    %v12430 = vunpack.c.h.b16 %v11713
    %v12431 = vunpack.c.l.b16 %v11714
    %v12432 = vunpack.c.h.b16 %v11714
    %v12433 = vunpack.c.l.b16 %v11715
    %v12434 = vunpack.c.h.b16 %v11715
    %v12435 = vunpack.c.l.b16 %v11716
    %v12436 = vunpack.c.h.b16 %v11716
    %v12437 = vunpack.c.l.b16 %v11717
    %v12438 = vunpack.c.h.b16 %v11717
    %v12439 = vunpack.c.l.b16 %v11718
    %v12440 = vunpack.c.h.b16 %v11718
    %v12441 = vunpack.c.l.b16 %v11719
    %v12442 = vunpack.c.h.b16 %v11719
    %v12443 = vunpack.c.l.b16 %v11720
    %v12444 = vunpack.c.h.b16 %v11720
    %v12445 = vunpack.c.l.b16 %v11721
    %v12446 = vunpack.c.h.b16 %v11721
    %v12447 = vunpack.c.l.b16 %v11722
    %v12448 = vunpack.c.h.b16 %v11722
    %v12449 = vunpack.c.l.b16 %v11723
    %v12450 = vunpack.c.h.b16 %v11723
    %v12451 = vunpack.c.l.b16 %v11724
    %v12452 = vunpack.c.h.b16 %v11724
    %v12453 = vunpack.c.l.b16 %v11725
    %v12454 = vunpack.c.h.b16 %v11725
    %v12455 = vunpack.c.l.b16 %v11726
    %v12456 = vunpack.c.h.b16 %v11726
    %v12457 = vunpack.c.l.b16 %v11727
    %v12458 = vunpack.c.h.b16 %v11727
    %v12459 = vunpack.c.l.b16 %v11728
    %v12460 = vunpack.c.h.b16 %v11728
    %v12461 = vunpack.c.l.b16 %v11729
    %v12462 = vunpack.c.h.b16 %v11729
    %v12463 = vunpack.c.l.b16 %v11730
    %v12464 = vunpack.c.h.b16 %v11730
    %v12465 = vunpack.c.l.b16 %v11731
    %v12466 = vunpack.c.h.b16 %v11731
    %v12467 = vunpack.c.l.b16 %v11732
    %v12468 = vunpack.c.h.b16 %v11732
    %v12469 = vunpack.c.l.b16 %v11733
    %v12470 = vunpack.c.h.b16 %v11733
    %v12471 = vunpack.c.l.b16 %v11734
    %v12472 = vunpack.c.h.b16 %v11734
    %v12473 = vunpack.c.l.b16 %v11735
    %v12474 = vunpack.c.h.b16 %v11735
    %v12475 = vunpack.c.l.b16 %v11736
    %v12476 = vunpack.c.h.b16 %v11736
    %v12477 = vunpack.c.l.b16 %v11737
    %v12478 = vunpack.c.h.b16 %v11737
    %v12479 = vunpack.c.l.b16 %v11738
    %v12480 = vunpack.c.h.b16 %v11738
    %v12481 = vunpack.c.l.b16 %v11739
    %v12482 = vunpack.c.h.b16 %v11739
    %v12483 = vunpack.c.l.b16 %v11740
    %v12484 = vunpack.c.h.b16 %v11740
    %v12485 = vunpack.c.l.b16 %v11741
    %v12486 = vunpack.c.h.b16 %v11741
    %v12487 = vunpack.c.l.b16 %v11742
    %v12488 = vunpack.c.h.b16 %v11742
    %v12489 = vunpack.c.l.b16 %v11743
    %v12490 = vunpack.c.h.b16 %v11743
    %v12491 = vunpack.c.l.b16 %v11744
    %v12492 = vunpack.c.h.b16 %v11744
    %v12493 = vunpack.c.l.b16 %v11745
    %v12494 = vunpack.c.h.b16 %v11745
    %v12495 = vunpack.c.l.b16 %v11746
    %v12496 = vunpack.c.h.b16 %v11746
    %v12497 = vunpack.c.l.b16 %v11747
    %v12498 = vunpack.c.h.b16 %v11747
    %v12499 = vunpack.c.l.b16 %v11748
    %v12500 = vunpack.c.h.b16 %v11748
    %v12501 = vunpack.c.l.b16 %v11749
    %v12502 = vunpack.c.h.b16 %v11749
    %v12503 = vunpack.c.l.b16 %v11750
    %v12504 = vunpack.c.h.b16 %v11750
    %v12505 = vunpack.c.l.b16 %v11751
    %v12506 = vunpack.c.h.b16 %v11751
    %v12507 = vunpack.c.l.b16 %v11752
    %v12508 = vunpack.c.h.b16 %v11752
    %v12509 = vunpack.c.l.b16 %v11753
    %v12510 = vunpack.c.h.b16 %v11753
    %v12511 = vunpack.c.l.b16 %v11754
    %v12512 = vunpack.c.h.b16 %v11754
    %v12513 = vunpack.c.l.b16 %v11755
    %v12514 = vunpack.c.h.b16 %v11755
    %v12515 = vunpack.c.l.b16 %v11756
    %v12516 = vunpack.c.h.b16 %v11756
    %v12517 = vunpack.c.l.b16 %v11757
    %v12518 = vunpack.c.h.b16 %v11757
    %v12519 = vunpack.c.l.b16 %v11758
    %v12520 = vunpack.c.h.b16 %v11758
    %v12521 = vunpack.c.l.b16 %v11759
    %v12522 = vunpack.c.h.b16 %v11759
    %v12523 = vunpack.c.l.b16 %v11760
    %v12524 = vunpack.c.h.b16 %v11760
    %v12525 = vunpack.c.l.b16 %v11761
    %v12526 = vunpack.c.h.b16 %v11761
    %v12527 = vunpack.c.l.b16 %v11762
    %v12528 = vunpack.c.h.b16 %v11762
    %v12529 = vunpack.c.l.b16 %v11763
    %v12530 = vunpack.c.h.b16 %v11763
    %v12531 = vunpack.c.l.b16 %v11764
    %v12532 = vunpack.c.h.b16 %v11764
    %v12533 = vunpack.c.l.b16 %v11765
    %v12534 = vunpack.c.h.b16 %v11765
    %v12535 = vunpack.c.l.b16 %v11766
    %v12536 = vunpack.c.h.b16 %v11766
    %v12537 = vunpack.c.l.b16 %v11767
    %v12538 = vunpack.c.h.b16 %v11767
    %v12539 = vunpack.c.l.b16 %v11768
    %v12540 = vunpack.c.h.b16 %v11768
    %v12541 = vunpack.c.l.b16 %v11769
    %v12542 = vunpack.c.h.b16 %v11769
    %v12543 = vunpack.c.l.b16 %v11770
    %v12544 = vunpack.c.h.b16 %v11770
    %v12545 = vunpack.c.l.b16 %v11771
    %v12546 = vunpack.c.h.b16 %v11771
    %v12547 = vunpack.c.l.b16 %v11772
    %v12548 = vunpack.c.h.b16 %v11772
    %v12549 = vunpack.c.l.b16 %v11773
    %v12550 = vunpack.c.h.b16 %v11773
    %v12551 = vunpack.c.l.b16 %v11774
    %v12552 = vunpack.c.h.b16 %v11774
    %v12553 = vpack.c.b16 %v12045, %v12041
    %v12554 = vpack.c.b16 %v12046, %v12042
    %v12555 = vpack.c.b16 %v12047, %v12043
    %v12556 = vpack.c.b16 %v12048, %v12044
    %v12557 = vpack.c.b16 %v12053, %v12049
    %v12558 = vpack.c.b16 %v12054, %v12050
    %v12559 = vpack.c.b16 %v12055, %v12051
    %v12560 = vpack.c.b16 %v12056, %v12052
    %v12561 = vpack.c.b16 %v12061, %v12057
    %v12562 = vpack.c.b16 %v12062, %v12058
    %v12563 = vpack.c.b16 %v12063, %v12059
    %v12564 = vpack.c.b16 %v12064, %v12060
    %v12565 = vpack.c.b16 %v12069, %v12065
    %v12566 = vpack.c.b16 %v12070, %v12066
    %v12567 = vpack.c.b16 %v12071, %v12067
    %v12568 = vpack.c.b16 %v12072, %v12068
    %v12569 = vpack.c.b16 %v12077, %v12073
    %v12570 = vpack.c.b16 %v12078, %v12074
    %v12571 = vpack.c.b16 %v12079, %v12075
    %v12572 = vpack.c.b16 %v12080, %v12076
    %v12573 = vpack.c.b16 %v12085, %v12081
    %v12574 = vpack.c.b16 %v12086, %v12082
    %v12575 = vpack.c.b16 %v12087, %v12083
    %v12576 = vpack.c.b16 %v12088, %v12084
    %v12577 = vpack.c.b16 %v12093, %v12089
    %v12578 = vpack.c.b16 %v12094, %v12090
    %v12579 = vpack.c.b16 %v12095, %v12091
    %v12580 = vpack.c.b16 %v12096, %v12092
    %v12581 = vpack.c.b16 %v12101, %v12097
    %v12582 = vpack.c.b16 %v12102, %v12098
    %v12583 = vpack.c.b16 %v12103, %v12099
    %v12584 = vpack.c.b16 %v12104, %v12100
    %v12585 = vpack.c.b16 %v12109, %v12105
    %v12586 = vpack.c.b16 %v12110, %v12106
    %v12587 = vpack.c.b16 %v12111, %v12107
    %v12588 = vpack.c.b16 %v12112, %v12108
    %v12589 = vpack.c.b16 %v12117, %v12113
    %v12590 = vpack.c.b16 %v12118, %v12114
    %v12591 = vpack.c.b16 %v12119, %v12115
    %v12592 = vpack.c.b16 %v12120, %v12116
    %v12593 = vpack.c.b16 %v12125, %v12121
    %v12594 = vpack.c.b16 %v12126, %v12122
    %v12595 = vpack.c.b16 %v12127, %v12123
    %v12596 = vpack.c.b16 %v12128, %v12124
    %v12597 = vpack.c.b16 %v12133, %v12129
    %v12598 = vpack.c.b16 %v12134, %v12130
    %v12599 = vpack.c.b16 %v12135, %v12131
    %v12600 = vpack.c.b16 %v12136, %v12132
    %v12601 = vpack.c.b16 %v12141, %v12137
    %v12602 = vpack.c.b16 %v12142, %v12138
    %v12603 = vpack.c.b16 %v12143, %v12139
    %v12604 = vpack.c.b16 %v12144, %v12140
    %v12605 = vpack.c.b16 %v12149, %v12145
    %v12606 = vpack.c.b16 %v12150, %v12146
    %v12607 = vpack.c.b16 %v12151, %v12147
    %v12608 = vpack.c.b16 %v12152, %v12148
    %v12609 = vpack.c.b16 %v12157, %v12153
    %v12610 = vpack.c.b16 %v12158, %v12154
    %v12611 = vpack.c.b16 %v12159, %v12155
    %v12612 = vpack.c.b16 %v12160, %v12156
    %v12613 = vpack.c.b16 %v12165, %v12161
    %v12614 = vpack.c.b16 %v12166, %v12162
    %v12615 = vpack.c.b16 %v12167, %v12163
    %v12616 = vpack.c.b16 %v12168, %v12164
    %v12617 = vpack.c.b16 %v12173, %v12169
    %v12618 = vpack.c.b16 %v12174, %v12170
    %v12619 = vpack.c.b16 %v12175, %v12171
    %v12620 = vpack.c.b16 %v12176, %v12172
    %v12621 = vpack.c.b16 %v12181, %v12177
    %v12622 = vpack.c.b16 %v12182, %v12178
    %v12623 = vpack.c.b16 %v12183, %v12179
    %v12624 = vpack.c.b16 %v12184, %v12180
    %v12625 = vpack.c.b16 %v12189, %v12185
    %v12626 = vpack.c.b16 %v12190, %v12186
    %v12627 = vpack.c.b16 %v12191, %v12187
    %v12628 = vpack.c.b16 %v12192, %v12188
    %v12629 = vpack.c.b16 %v12197, %v12193
    %v12630 = vpack.c.b16 %v12198, %v12194
    %v12631 = vpack.c.b16 %v12199, %v12195
    %v12632 = vpack.c.b16 %v12200, %v12196
    %v12633 = vpack.c.b16 %v12205, %v12201
    %v12634 = vpack.c.b16 %v12206, %v12202
    %v12635 = vpack.c.b16 %v12207, %v12203
    %v12636 = vpack.c.b16 %v12208, %v12204
    %v12637 = vpack.c.b16 %v12213, %v12209
    %v12638 = vpack.c.b16 %v12214, %v12210
    %v12639 = vpack.c.b16 %v12215, %v12211
    %v12640 = vpack.c.b16 %v12216, %v12212
    %v12641 = vpack.c.b16 %v12221, %v12217
    %v12642 = vpack.c.b16 %v12222, %v12218
    %v12643 = vpack.c.b16 %v12223, %v12219
    %v12644 = vpack.c.b16 %v12224, %v12220
    %v12645 = vpack.c.b16 %v12229, %v12225
    %v12646 = vpack.c.b16 %v12230, %v12226
    %v12647 = vpack.c.b16 %v12231, %v12227
    %v12648 = vpack.c.b16 %v12232, %v12228
    %v12649 = vpack.c.b16 %v12237, %v12233
    %v12650 = vpack.c.b16 %v12238, %v12234
    %v12651 = vpack.c.b16 %v12239, %v12235
    %v12652 = vpack.c.b16 %v12240, %v12236
    %v12653 = vpack.c.b16 %v12245, %v12241
    %v12654 = vpack.c.b16 %v12246, %v12242
    %v12655 = vpack.c.b16 %v12247, %v12243
    %v12656 = vpack.c.b16 %v12248, %v12244
    %v12657 = vpack.c.b16 %v12253, %v12249
    %v12658 = vpack.c.b16 %v12254, %v12250
    %v12659 = vpack.c.b16 %v12255, %v12251
    %v12660 = vpack.c.b16 %v12256, %v12252
    %v12661 = vpack.c.b16 %v12261, %v12257
    %v12662 = vpack.c.b16 %v12262, %v12258
    %v12663 = vpack.c.b16 %v12263, %v12259
    %v12664 = vpack.c.b16 %v12264, %v12260
    %v12665 = vpack.c.b16 %v12269, %v12265
    %v12666 = vpack.c.b16 %v12270, %v12266
    %v12667 = vpack.c.b16 %v12271, %v12267
    %v12668 = vpack.c.b16 %v12272, %v12268
    %v12669 = vpack.c.b16 %v12277, %v12273
    %v12670 = vpack.c.b16 %v12278, %v12274
    %v12671 = vpack.c.b16 %v12279, %v12275
    %v12672 = vpack.c.b16 %v12280, %v12276
    %v12673 = vpack.c.b16 %v12285, %v12281
    %v12674 = vpack.c.b16 %v12286, %v12282
    %v12675 = vpack.c.b16 %v12287, %v12283
    %v12676 = vpack.c.b16 %v12288, %v12284
    %v12677 = vpack.c.b16 %v12293, %v12289
    %v12678 = vpack.c.b16 %v12294, %v12290
    %v12679 = vpack.c.b16 %v12295, %v12291
    %v12680 = vpack.c.b16 %v12296, %v12292
    %v12681 = vpack.c.b16 %v12301, %v12297
    %v12682 = vpack.c.b16 %v12302, %v12298
    %v12683 = vpack.c.b16 %v12303, %v12299
    %v12684 = vpack.c.b16 %v12304, %v12300
    %v12685 = vpack.c.b16 %v12309, %v12305
    %v12686 = vpack.c.b16 %v12310, %v12306
    %v12687 = vpack.c.b16 %v12311, %v12307
    %v12688 = vpack.c.b16 %v12312, %v12308
    %v12689 = vpack.c.b16 %v12317, %v12313
    %v12690 = vpack.c.b16 %v12318, %v12314
    %v12691 = vpack.c.b16 %v12319, %v12315
    %v12692 = vpack.c.b16 %v12320, %v12316
    %v12693 = vpack.c.b16 %v12325, %v12321
    %v12694 = vpack.c.b16 %v12326, %v12322
    %v12695 = vpack.c.b16 %v12327, %v12323
    %v12696 = vpack.c.b16 %v12328, %v12324
    %v12697 = vpack.c.b16 %v12333, %v12329
    %v12698 = vpack.c.b16 %v12334, %v12330
    %v12699 = vpack.c.b16 %v12335, %v12331
    %v12700 = vpack.c.b16 %v12336, %v12332
    %v12701 = vpack.c.b16 %v12341, %v12337
    %v12702 = vpack.c.b16 %v12342, %v12338
    %v12703 = vpack.c.b16 %v12343, %v12339
    %v12704 = vpack.c.b16 %v12344, %v12340
    %v12705 = vpack.c.b16 %v12349, %v12345
    %v12706 = vpack.c.b16 %v12350, %v12346
    %v12707 = vpack.c.b16 %v12351, %v12347
    %v12708 = vpack.c.b16 %v12352, %v12348
    %v12709 = vpack.c.b16 %v12357, %v12353
    %v12710 = vpack.c.b16 %v12358, %v12354
    %v12711 = vpack.c.b16 %v12359, %v12355
    %v12712 = vpack.c.b16 %v12360, %v12356
    %v12713 = vpack.c.b16 %v12365, %v12361
    %v12714 = vpack.c.b16 %v12366, %v12362
    %v12715 = vpack.c.b16 %v12367, %v12363
    %v12716 = vpack.c.b16 %v12368, %v12364
    %v12717 = vpack.c.b16 %v12373, %v12369
    %v12718 = vpack.c.b16 %v12374, %v12370
    %v12719 = vpack.c.b16 %v12375, %v12371
    %v12720 = vpack.c.b16 %v12376, %v12372
    %v12721 = vpack.c.b16 %v12381, %v12377
    %v12722 = vpack.c.b16 %v12382, %v12378
    %v12723 = vpack.c.b16 %v12383, %v12379
    %v12724 = vpack.c.b16 %v12384, %v12380
    %v12725 = vpack.c.b16 %v12389, %v12385
    %v12726 = vpack.c.b16 %v12390, %v12386
    %v12727 = vpack.c.b16 %v12391, %v12387
    %v12728 = vpack.c.b16 %v12392, %v12388
    %v12729 = vpack.c.b16 %v12397, %v12393
    %v12730 = vpack.c.b16 %v12398, %v12394
    %v12731 = vpack.c.b16 %v12399, %v12395
    %v12732 = vpack.c.b16 %v12400, %v12396
    %v12733 = vpack.c.b16 %v12405, %v12401
    %v12734 = vpack.c.b16 %v12406, %v12402
    %v12735 = vpack.c.b16 %v12407, %v12403
    %v12736 = vpack.c.b16 %v12408, %v12404
    %v12737 = vpack.c.b16 %v12413, %v12409
    %v12738 = vpack.c.b16 %v12414, %v12410
    %v12739 = vpack.c.b16 %v12415, %v12411
    %v12740 = vpack.c.b16 %v12416, %v12412
    %v12741 = vpack.c.b16 %v12421, %v12417
    %v12742 = vpack.c.b16 %v12422, %v12418
    %v12743 = vpack.c.b16 %v12423, %v12419
    %v12744 = vpack.c.b16 %v12424, %v12420
    %v12745 = vpack.c.b16 %v12429, %v12425
    %v12746 = vpack.c.b16 %v12430, %v12426
    %v12747 = vpack.c.b16 %v12431, %v12427
    %v12748 = vpack.c.b16 %v12432, %v12428
    %v12749 = vpack.c.b16 %v12437, %v12433
    %v12750 = vpack.c.b16 %v12438, %v12434
    %v12751 = vpack.c.b16 %v12439, %v12435
    %v12752 = vpack.c.b16 %v12440, %v12436
    %v12753 = vpack.c.b16 %v12445, %v12441
    %v12754 = vpack.c.b16 %v12446, %v12442
    %v12755 = vpack.c.b16 %v12447, %v12443
    %v12756 = vpack.c.b16 %v12448, %v12444
    %v12757 = vpack.c.b16 %v12453, %v12449
    %v12758 = vpack.c.b16 %v12454, %v12450
    %v12759 = vpack.c.b16 %v12455, %v12451
    %v12760 = vpack.c.b16 %v12456, %v12452
    %v12761 = vpack.c.b16 %v12461, %v12457
    %v12762 = vpack.c.b16 %v12462, %v12458
    %v12763 = vpack.c.b16 %v12463, %v12459
    %v12764 = vpack.c.b16 %v12464, %v12460
    %v12765 = vpack.c.b16 %v12469, %v12465
    %v12766 = vpack.c.b16 %v12470, %v12466
    %v12767 = vpack.c.b16 %v12471, %v12467
    %v12768 = vpack.c.b16 %v12472, %v12468
    %v12769 = vpack.c.b16 %v12477, %v12473
    %v12770 = vpack.c.b16 %v12478, %v12474
    %v12771 = vpack.c.b16 %v12479, %v12475
    %v12772 = vpack.c.b16 %v12480, %v12476
    %v12773 = vpack.c.b16 %v12485, %v12481
    %v12774 = vpack.c.b16 %v12486, %v12482
    %v12775 = vpack.c.b16 %v12487, %v12483
    %v12776 = vpack.c.b16 %v12488, %v12484
    %v12777 = vpack.c.b16 %v12493, %v12489
    %v12778 = vpack.c.b16 %v12494, %v12490
    %v12779 = vpack.c.b16 %v12495, %v12491
    %v12780 = vpack.c.b16 %v12496, %v12492
    %v12781 = vpack.c.b16 %v12501, %v12497
    %v12782 = vpack.c.b16 %v12502, %v12498
    %v12783 = vpack.c.b16 %v12503, %v12499
    %v12784 = vpack.c.b16 %v12504, %v12500
    %v12785 = vpack.c.b16 %v12509, %v12505
    %v12786 = vpack.c.b16 %v12510, %v12506
    %v12787 = vpack.c.b16 %v12511, %v12507
    %v12788 = vpack.c.b16 %v12512, %v12508
    %v12789 = vpack.c.b16 %v12517, %v12513
    %v12790 = vpack.c.b16 %v12518, %v12514
    %v12791 = vpack.c.b16 %v12519, %v12515
    %v12792 = vpack.c.b16 %v12520, %v12516
    %v12793 = vpack.c.b16 %v12525, %v12521
    %v12794 = vpack.c.b16 %v12526, %v12522
    %v12795 = vpack.c.b16 %v12527, %v12523
    %v12796 = vpack.c.b16 %v12528, %v12524
    %v12797 = vpack.c.b16 %v12533, %v12529
    %v12798 = vpack.c.b16 %v12534, %v12530
    %v12799 = vpack.c.b16 %v12535, %v12531
    %v12800 = vpack.c.b16 %v12536, %v12532
    %v12801 = vpack.c.b16 %v12541, %v12537
    %v12802 = vpack.c.b16 %v12542, %v12538
    %v12803 = vpack.c.b16 %v12543, %v12539
    %v12804 = vpack.c.b16 %v12544, %v12540
    %v12805 = vpack.c.b16 %v12549, %v12545
    %v12806 = vpack.c.b16 %v12550, %v12546
    %v12807 = vpack.c.b16 %v12551, %v12547
    %v12808 = vpack.c.b16 %v12552, %v12548
    %13065 = vmatpush.bf16.msra.mxu0 %v12581
    %13066 = vmatpush.bf16.msra.mxu0 %v12577
    %13067 = vmatpush.bf16.msra.mxu0 %v12573
    %13068 = vmatpush.bf16.msra.mxu0 %v12569
    %13069 = vmatpush.bf16.msra.mxu0 %v12565
    %13070 = vmatpush.bf16.msra.mxu0 %v12561
    %13071 = vmatpush.bf16.msra.mxu0 %v12557
    %13072 = vmatpush.bf16.msra.mxu0 %v12553
    %13073 = vmatmul.bf16.gmra.mxu0 %v11507
    %v13074 = vpop.f32.mrf.mxu0
    %v13075 = vadd.f32 %v11777, %v13074
    %v13076 = vpop.f32.mrf.mxu0
    %13077 = vdwg.mxu0
    %13078 = vmatpush.bf16.msra.mxu0 %v12613
    %13079 = vmatpush.bf16.msra.mxu0 %v12609
    %13080 = vmatpush.bf16.msra.mxu0 %v12605
    %13081 = vmatpush.bf16.msra.mxu0 %v12601
    %13082 = vmatpush.bf16.msra.mxu0 %v12597
    %13083 = vmatpush.bf16.msra.mxu0 %v12593
    %13084 = vmatpush.bf16.msra.mxu0 %v12589
    %13085 = vmatpush.bf16.msra.mxu0 %v12585
    %13086 = vmatmul.bf16.gmra.mxu0 %v11508
    %v13087 = vpop.f32.mrf.mxu0
    %v13088 = vadd.f32 %v13075, %v13087
    %v13089 = vpop.f32.mrf.mxu0
    %13090 = vdwg.mxu0
    %13091 = vmatpush.bf16.msra.mxu0 %v12645
    %13092 = vmatpush.bf16.msra.mxu0 %v12641
    %13093 = vmatpush.bf16.msra.mxu0 %v12637
    %13094 = vmatpush.bf16.msra.mxu0 %v12633
    %13095 = vmatpush.bf16.msra.mxu0 %v12629
    %13096 = vmatpush.bf16.msra.mxu0 %v12625
    %13097 = vmatpush.bf16.msra.mxu0 %v12621
    %13098 = vmatpush.bf16.msra.mxu0 %v12617
    %13099 = vmatmul.bf16.gmra.mxu0 %v11509
    %v13100 = vpop.f32.mrf.mxu0
    %v13101 = vadd.f32 %v13088, %v13100
    %v13102 = vpop.f32.mrf.mxu0
    %13103 = vdwg.mxu0
    %13104 = vmatpush.bf16.msra.mxu0 %v12677
    %13105 = vmatpush.bf16.msra.mxu0 %v12673
    %13106 = vmatpush.bf16.msra.mxu0 %v12669
    %13107 = vmatpush.bf16.msra.mxu0 %v12665
    %13108 = vmatpush.bf16.msra.mxu0 %v12661
    %13109 = vmatpush.bf16.msra.mxu0 %v12657
    %13110 = vmatpush.bf16.msra.mxu0 %v12653
    %13111 = vmatpush.bf16.msra.mxu0 %v12649
    %13112 = vmatmul.bf16.gmra.mxu0 %v11510
    %v13113 = vpop.f32.mrf.mxu0
    %v13114 = vadd.f32 %v13101, %v13113
    %v13115 = vpop.f32.mrf.mxu0
    %13116 = vdwg.mxu0
    %13117 = vmatpush.bf16.msra.mxu0 %v12709
    %13118 = vmatpush.bf16.msra.mxu0 %v12705
    %13119 = vmatpush.bf16.msra.mxu0 %v12701
    %13120 = vmatpush.bf16.msra.mxu0 %v12697
    %13121 = vmatpush.bf16.msra.mxu0 %v12693
    %13122 = vmatpush.bf16.msra.mxu0 %v12689
    %13123 = vmatpush.bf16.msra.mxu0 %v12685
    %13124 = vmatpush.bf16.msra.mxu0 %v12681
    %13125 = vmatmul.bf16.gmra.mxu0 %v11511
    %v13126 = vpop.f32.mrf.mxu0
    %v13127 = vadd.f32 %v13114, %v13126
    %v13128 = vpop.f32.mrf.mxu0
    %13129 = vdwg.mxu0
    %13130 = vmatpush.bf16.msra.mxu0 %v12741
    %13131 = vmatpush.bf16.msra.mxu0 %v12737
    %13132 = vmatpush.bf16.msra.mxu0 %v12733
    %13133 = vmatpush.bf16.msra.mxu0 %v12729
    %13134 = vmatpush.bf16.msra.mxu0 %v12725
    %13135 = vmatpush.bf16.msra.mxu0 %v12721
    %13136 = vmatpush.bf16.msra.mxu0 %v12717
    %13137 = vmatpush.bf16.msra.mxu0 %v12713
    %13138 = vmatmul.bf16.gmra.mxu0 %v11512
    %v13139 = vpop.f32.mrf.mxu0
    %v13140 = vadd.f32 %v13127, %v13139
    %v13141 = vpop.f32.mrf.mxu0
    %13142 = vdwg.mxu0
    %13143 = vmatpush.bf16.msra.mxu0 %v12773
    %13144 = vmatpush.bf16.msra.mxu0 %v12769
    %13145 = vmatpush.bf16.msra.mxu0 %v12765
    %13146 = vmatpush.bf16.msra.mxu0 %v12761
    %13147 = vmatpush.bf16.msra.mxu0 %v12757
    %13148 = vmatpush.bf16.msra.mxu0 %v12753
    %13149 = vmatpush.bf16.msra.mxu0 %v12749
    %13150 = vmatpush.bf16.msra.mxu0 %v12745
    %13151 = vmatmul.bf16.gmra.mxu0 %v11513
    %v13152 = vpop.f32.mrf.mxu0
    %v13153 = vadd.f32 %v13140, %v13152
    %v13154 = vpop.f32.mrf.mxu0
    %13155 = vdwg.mxu0
    %13156 = vmatpush.bf16.msra.mxu0 %v12805
    %13157 = vmatpush.bf16.msra.mxu0 %v12801
    %13158 = vmatpush.bf16.msra.mxu0 %v12797
    %13159 = vmatpush.bf16.msra.mxu0 %v12793
    %13160 = vmatpush.bf16.msra.mxu0 %v12789
    %13161 = vmatpush.bf16.msra.mxu0 %v12785
    %13162 = vmatpush.bf16.msra.mxu0 %v12781
    %13163 = vmatpush.bf16.msra.mxu0 %v12777
    %13164 = vmatmul.bf16.gmra.mxu0 %v11514
    %v13165 = vpop.f32.mrf.mxu0
    %v13166 = vadd.f32 %v13153, %v13165
    %v13167 = vpop.f32.mrf.mxu0
    %13168 = vdwg.mxu0
    %13169 = vmatpush.bf16.msra.mxu0 %v12582
    %13170 = vmatpush.bf16.msra.mxu0 %v12578
    %13171 = vmatpush.bf16.msra.mxu0 %v12574
    %13172 = vmatpush.bf16.msra.mxu0 %v12570
    %13173 = vmatpush.bf16.msra.mxu0 %v12566
    %13174 = vmatpush.bf16.msra.mxu0 %v12562
    %13175 = vmatpush.bf16.msra.mxu0 %v12558
    %13176 = vmatpush.bf16.msra.mxu0 %v12554
    %13177 = vmatmul.bf16.gmra.mxu0 %v11507
    %v13178 = vpop.f32.mrf.mxu0
    %v13179 = vadd.f32 %v11778, %v13178
    %v13180 = vpop.f32.mrf.mxu0
    %13181 = vdwg.mxu0
    %13182 = vmatpush.bf16.msra.mxu0 %v12614
    %13183 = vmatpush.bf16.msra.mxu0 %v12610
    %13184 = vmatpush.bf16.msra.mxu0 %v12606
    %13185 = vmatpush.bf16.msra.mxu0 %v12602
    %13186 = vmatpush.bf16.msra.mxu0 %v12598
    %13187 = vmatpush.bf16.msra.mxu0 %v12594
    %13188 = vmatpush.bf16.msra.mxu0 %v12590
    %13189 = vmatpush.bf16.msra.mxu0 %v12586
    %13190 = vmatmul.bf16.gmra.mxu0 %v11508
    %v13191 = vpop.f32.mrf.mxu0
    %v13192 = vadd.f32 %v13179, %v13191
    %v13193 = vpop.f32.mrf.mxu0
    %13194 = vdwg.mxu0
    %13195 = vmatpush.bf16.msra.mxu0 %v12646
    %13196 = vmatpush.bf16.msra.mxu0 %v12642
    %13197 = vmatpush.bf16.msra.mxu0 %v12638
    %13198 = vmatpush.bf16.msra.mxu0 %v12634
    %13199 = vmatpush.bf16.msra.mxu0 %v12630
    %13200 = vmatpush.bf16.msra.mxu0 %v12626
    %13201 = vmatpush.bf16.msra.mxu0 %v12622
    %13202 = vmatpush.bf16.msra.mxu0 %v12618
    %13203 = vmatmul.bf16.gmra.mxu0 %v11509
    %v13204 = vpop.f32.mrf.mxu0
    %v13205 = vadd.f32 %v13192, %v13204
    %v13206 = vpop.f32.mrf.mxu0
    %13207 = vdwg.mxu0
    %13208 = vmatpush.bf16.msra.mxu0 %v12678
    %13209 = vmatpush.bf16.msra.mxu0 %v12674
    %13210 = vmatpush.bf16.msra.mxu0 %v12670
    %13211 = vmatpush.bf16.msra.mxu0 %v12666
    %13212 = vmatpush.bf16.msra.mxu0 %v12662
    %13213 = vmatpush.bf16.msra.mxu0 %v12658
    %13214 = vmatpush.bf16.msra.mxu0 %v12654
    %13215 = vmatpush.bf16.msra.mxu0 %v12650
    %13216 = vmatmul.bf16.gmra.mxu0 %v11510
    %v13217 = vpop.f32.mrf.mxu0
    %v13218 = vadd.f32 %v13205, %v13217
    %v13219 = vpop.f32.mrf.mxu0
    %13220 = vdwg.mxu0
    %13221 = vmatpush.bf16.msra.mxu0 %v12710
    %13222 = vmatpush.bf16.msra.mxu0 %v12706
    %13223 = vmatpush.bf16.msra.mxu0 %v12702
    %13224 = vmatpush.bf16.msra.mxu0 %v12698
    %13225 = vmatpush.bf16.msra.mxu0 %v12694
    %13226 = vmatpush.bf16.msra.mxu0 %v12690
    %13227 = vmatpush.bf16.msra.mxu0 %v12686
    %13228 = vmatpush.bf16.msra.mxu0 %v12682
    %13229 = vmatmul.bf16.gmra.mxu0 %v11511
    %v13230 = vpop.f32.mrf.mxu0
    %v13231 = vadd.f32 %v13218, %v13230
    %v13232 = vpop.f32.mrf.mxu0
    %13233 = vdwg.mxu0
    %13234 = vmatpush.bf16.msra.mxu0 %v12742
    %13235 = vmatpush.bf16.msra.mxu0 %v12738
    %13236 = vmatpush.bf16.msra.mxu0 %v12734
    %13237 = vmatpush.bf16.msra.mxu0 %v12730
    %13238 = vmatpush.bf16.msra.mxu0 %v12726
    %13239 = vmatpush.bf16.msra.mxu0 %v12722
    %13240 = vmatpush.bf16.msra.mxu0 %v12718
    %13241 = vmatpush.bf16.msra.mxu0 %v12714
    %13242 = vmatmul.bf16.gmra.mxu0 %v11512
    %v13243 = vpop.f32.mrf.mxu0
    %v13244 = vadd.f32 %v13231, %v13243
    %v13245 = vpop.f32.mrf.mxu0
    %13246 = vdwg.mxu0
    %13247 = vmatpush.bf16.msra.mxu0 %v12774
    %13248 = vmatpush.bf16.msra.mxu0 %v12770
    %13249 = vmatpush.bf16.msra.mxu0 %v12766
    %13250 = vmatpush.bf16.msra.mxu0 %v12762
    %13251 = vmatpush.bf16.msra.mxu0 %v12758
    %13252 = vmatpush.bf16.msra.mxu0 %v12754
    %13253 = vmatpush.bf16.msra.mxu0 %v12750
    %13254 = vmatpush.bf16.msra.mxu0 %v12746
    %13255 = vmatmul.bf16.gmra.mxu0 %v11513
    %v13256 = vpop.f32.mrf.mxu0
    %v13257 = vadd.f32 %v13244, %v13256
    %v13258 = vpop.f32.mrf.mxu0
    %13259 = vdwg.mxu0
    %13260 = vmatpush.bf16.msra.mxu0 %v12806
    %13261 = vmatpush.bf16.msra.mxu0 %v12802
    %13262 = vmatpush.bf16.msra.mxu0 %v12798
    %13263 = vmatpush.bf16.msra.mxu0 %v12794
    %13264 = vmatpush.bf16.msra.mxu0 %v12790
    %13265 = vmatpush.bf16.msra.mxu0 %v12786
    %13266 = vmatpush.bf16.msra.mxu0 %v12782
    %13267 = vmatpush.bf16.msra.mxu0 %v12778
    %13268 = vmatmul.bf16.gmra.mxu0 %v11514
    %v13269 = vpop.f32.mrf.mxu0
    %v13270 = vadd.f32 %v13257, %v13269
    %v13271 = vpop.f32.mrf.mxu0
    %13272 = vdwg.mxu0
    %13273 = vmatpush.bf16.msra.mxu0 %v12583
    %13274 = vmatpush.bf16.msra.mxu0 %v12579
    %13275 = vmatpush.bf16.msra.mxu0 %v12575
    %13276 = vmatpush.bf16.msra.mxu0 %v12571
    %13277 = vmatpush.bf16.msra.mxu0 %v12567
    %13278 = vmatpush.bf16.msra.mxu0 %v12563
    %13279 = vmatpush.bf16.msra.mxu0 %v12559
    %13280 = vmatpush.bf16.msra.mxu0 %v12555
    %13281 = vmatmul.bf16.gmra.mxu0 %v11507
    %v13282 = vpop.f32.mrf.mxu0
    %v13283 = vadd.f32 %v11779, %v13282
    %v13284 = vpop.f32.mrf.mxu0
    %13285 = vdwg.mxu0
    %13286 = vmatpush.bf16.msra.mxu0 %v12615
    %13287 = vmatpush.bf16.msra.mxu0 %v12611
    %13288 = vmatpush.bf16.msra.mxu0 %v12607
    %13289 = vmatpush.bf16.msra.mxu0 %v12603
    %13290 = vmatpush.bf16.msra.mxu0 %v12599
    %13291 = vmatpush.bf16.msra.mxu0 %v12595
    %13292 = vmatpush.bf16.msra.mxu0 %v12591
    %13293 = vmatpush.bf16.msra.mxu0 %v12587
    %13294 = vmatmul.bf16.gmra.mxu0 %v11508
    %v13295 = vpop.f32.mrf.mxu0
    %v13296 = vadd.f32 %v13283, %v13295
    %v13297 = vpop.f32.mrf.mxu0
    %13298 = vdwg.mxu0
    %13299 = vmatpush.bf16.msra.mxu0 %v12647
    %13300 = vmatpush.bf16.msra.mxu0 %v12643
    %13301 = vmatpush.bf16.msra.mxu0 %v12639
    %13302 = vmatpush.bf16.msra.mxu0 %v12635
    %13303 = vmatpush.bf16.msra.mxu0 %v12631
    %13304 = vmatpush.bf16.msra.mxu0 %v12627
    %13305 = vmatpush.bf16.msra.mxu0 %v12623
    %13306 = vmatpush.bf16.msra.mxu0 %v12619
    %13307 = vmatmul.bf16.gmra.mxu0 %v11509
    %v13308 = vpop.f32.mrf.mxu0
    %v13309 = vadd.f32 %v13296, %v13308
    %v13310 = vpop.f32.mrf.mxu0
    %13311 = vdwg.mxu0
    %13312 = vmatpush.bf16.msra.mxu0 %v12679
    %13313 = vmatpush.bf16.msra.mxu0 %v12675
    %13314 = vmatpush.bf16.msra.mxu0 %v12671
    %13315 = vmatpush.bf16.msra.mxu0 %v12667
    %13316 = vmatpush.bf16.msra.mxu0 %v12663
    %13317 = vmatpush.bf16.msra.mxu0 %v12659
    %13318 = vmatpush.bf16.msra.mxu0 %v12655
    %13319 = vmatpush.bf16.msra.mxu0 %v12651
    %13320 = vmatmul.bf16.gmra.mxu0 %v11510
    %v13321 = vpop.f32.mrf.mxu0
    %v13322 = vadd.f32 %v13309, %v13321
    %v13323 = vpop.f32.mrf.mxu0
    %13324 = vdwg.mxu0
    %13325 = vmatpush.bf16.msra.mxu0 %v12711
    %13326 = vmatpush.bf16.msra.mxu0 %v12707
    %13327 = vmatpush.bf16.msra.mxu0 %v12703
    %13328 = vmatpush.bf16.msra.mxu0 %v12699
    %13329 = vmatpush.bf16.msra.mxu0 %v12695
    %13330 = vmatpush.bf16.msra.mxu0 %v12691
    %13331 = vmatpush.bf16.msra.mxu0 %v12687
    %13332 = vmatpush.bf16.msra.mxu0 %v12683
    %13333 = vmatmul.bf16.gmra.mxu0 %v11511
    %v13334 = vpop.f32.mrf.mxu0
    %v13335 = vadd.f32 %v13322, %v13334
    %v13336 = vpop.f32.mrf.mxu0
    %13337 = vdwg.mxu0
    %13338 = vmatpush.bf16.msra.mxu0 %v12743
    %13339 = vmatpush.bf16.msra.mxu0 %v12739
    %13340 = vmatpush.bf16.msra.mxu0 %v12735
    %13341 = vmatpush.bf16.msra.mxu0 %v12731
    %13342 = vmatpush.bf16.msra.mxu0 %v12727
    %13343 = vmatpush.bf16.msra.mxu0 %v12723
    %13344 = vmatpush.bf16.msra.mxu0 %v12719
    %13345 = vmatpush.bf16.msra.mxu0 %v12715
    %13346 = vmatmul.bf16.gmra.mxu0 %v11512
    %v13347 = vpop.f32.mrf.mxu0
    %v13348 = vadd.f32 %v13335, %v13347
    %v13349 = vpop.f32.mrf.mxu0
    %13350 = vdwg.mxu0
    %13351 = vmatpush.bf16.msra.mxu0 %v12775
    %13352 = vmatpush.bf16.msra.mxu0 %v12771
    %13353 = vmatpush.bf16.msra.mxu0 %v12767
    %13354 = vmatpush.bf16.msra.mxu0 %v12763
    %13355 = vmatpush.bf16.msra.mxu0 %v12759
    %13356 = vmatpush.bf16.msra.mxu0 %v12755
    %13357 = vmatpush.bf16.msra.mxu0 %v12751
    %13358 = vmatpush.bf16.msra.mxu0 %v12747
    %13359 = vmatmul.bf16.gmra.mxu0 %v11513
    %v13360 = vpop.f32.mrf.mxu0
    %v13361 = vadd.f32 %v13348, %v13360
    %v13362 = vpop.f32.mrf.mxu0
    %13363 = vdwg.mxu0
    %13364 = vmatpush.bf16.msra.mxu0 %v12807
    %13365 = vmatpush.bf16.msra.mxu0 %v12803
    %13366 = vmatpush.bf16.msra.mxu0 %v12799
    %13367 = vmatpush.bf16.msra.mxu0 %v12795
    %13368 = vmatpush.bf16.msra.mxu0 %v12791
    %13369 = vmatpush.bf16.msra.mxu0 %v12787
    %13370 = vmatpush.bf16.msra.mxu0 %v12783
    %13371 = vmatpush.bf16.msra.mxu0 %v12779
    %13372 = vmatmul.bf16.gmra.mxu0 %v11514
    %v13373 = vpop.f32.mrf.mxu0
    %v13374 = vadd.f32 %v13361, %v13373
    %v13375 = vpop.f32.mrf.mxu0
    %13376 = vdwg.mxu0
    %13377 = vmatpush.bf16.msra.mxu0 %v12584
    %13378 = vmatpush.bf16.msra.mxu0 %v12580
    %13379 = vmatpush.bf16.msra.mxu0 %v12576
    %13380 = vmatpush.bf16.msra.mxu0 %v12572
    %13381 = vmatpush.bf16.msra.mxu0 %v12568
    %13382 = vmatpush.bf16.msra.mxu0 %v12564
    %13383 = vmatpush.bf16.msra.mxu0 %v12560
    %13384 = vmatpush.bf16.msra.mxu0 %v12556
    %13385 = vmatmul.bf16.gmra.mxu0 %v11507
    %v13386 = vpop.f32.mrf.mxu0
    %v13387 = vadd.f32 %v11780, %v13386
    %v13388 = vpop.f32.mrf.mxu0
    %13389 = vdwg.mxu0
    %13390 = vmatpush.bf16.msra.mxu0 %v12616
    %13391 = vmatpush.bf16.msra.mxu0 %v12612
    %13392 = vmatpush.bf16.msra.mxu0 %v12608
    %13393 = vmatpush.bf16.msra.mxu0 %v12604
    %13394 = vmatpush.bf16.msra.mxu0 %v12600
    %13395 = vmatpush.bf16.msra.mxu0 %v12596
    %13396 = vmatpush.bf16.msra.mxu0 %v12592
    %13397 = vmatpush.bf16.msra.mxu0 %v12588
    %13398 = vmatmul.bf16.gmra.mxu0 %v11508
    %v13399 = vpop.f32.mrf.mxu0
    %v13400 = vadd.f32 %v13387, %v13399
    %v13401 = vpop.f32.mrf.mxu0
    %13402 = vdwg.mxu0
    %13403 = vmatpush.bf16.msra.mxu0 %v12648
    %13404 = vmatpush.bf16.msra.mxu0 %v12644
    %13405 = vmatpush.bf16.msra.mxu0 %v12640
    %13406 = vmatpush.bf16.msra.mxu0 %v12636
    %13407 = vmatpush.bf16.msra.mxu0 %v12632
    %13408 = vmatpush.bf16.msra.mxu0 %v12628
    %13409 = vmatpush.bf16.msra.mxu0 %v12624
    %13410 = vmatpush.bf16.msra.mxu0 %v12620
    %13411 = vmatmul.bf16.gmra.mxu0 %v11509
    %v13412 = vpop.f32.mrf.mxu0
    %v13413 = vadd.f32 %v13400, %v13412
    %v13414 = vpop.f32.mrf.mxu0
    %13415 = vdwg.mxu0
    %13416 = vmatpush.bf16.msra.mxu0 %v12680
    %13417 = vmatpush.bf16.msra.mxu0 %v12676
    %13418 = vmatpush.bf16.msra.mxu0 %v12672
    %13419 = vmatpush.bf16.msra.mxu0 %v12668
    %13420 = vmatpush.bf16.msra.mxu0 %v12664
    %13421 = vmatpush.bf16.msra.mxu0 %v12660
    %13422 = vmatpush.bf16.msra.mxu0 %v12656
    %13423 = vmatpush.bf16.msra.mxu0 %v12652
    %13424 = vmatmul.bf16.gmra.mxu0 %v11510
    %v13425 = vpop.f32.mrf.mxu0
    %v13426 = vadd.f32 %v13413, %v13425
    %v13427 = vpop.f32.mrf.mxu0
    %13428 = vdwg.mxu0
    %13429 = vmatpush.bf16.msra.mxu0 %v12712
    %13430 = vmatpush.bf16.msra.mxu0 %v12708
    %13431 = vmatpush.bf16.msra.mxu0 %v12704
    %13432 = vmatpush.bf16.msra.mxu0 %v12700
    %13433 = vmatpush.bf16.msra.mxu0 %v12696
    %13434 = vmatpush.bf16.msra.mxu0 %v12692
    %13435 = vmatpush.bf16.msra.mxu0 %v12688
    %13436 = vmatpush.bf16.msra.mxu0 %v12684
    %13437 = vmatmul.bf16.gmra.mxu0 %v11511
    %v13438 = vpop.f32.mrf.mxu0
    %v13439 = vadd.f32 %v13426, %v13438
    %v13440 = vpop.f32.mrf.mxu0
    %13441 = vdwg.mxu0
    %13442 = vmatpush.bf16.msra.mxu0 %v12744
    %13443 = vmatpush.bf16.msra.mxu0 %v12740
    %13444 = vmatpush.bf16.msra.mxu0 %v12736
    %13445 = vmatpush.bf16.msra.mxu0 %v12732
    %13446 = vmatpush.bf16.msra.mxu0 %v12728
    %13447 = vmatpush.bf16.msra.mxu0 %v12724
    %13448 = vmatpush.bf16.msra.mxu0 %v12720
    %13449 = vmatpush.bf16.msra.mxu0 %v12716
    %13450 = vmatmul.bf16.gmra.mxu0 %v11512
    %v13451 = vpop.f32.mrf.mxu0
    %v13452 = vadd.f32 %v13439, %v13451
    %v13453 = vpop.f32.mrf.mxu0
    %13454 = vdwg.mxu0
    %13455 = vmatpush.bf16.msra.mxu0 %v12776
    %13456 = vmatpush.bf16.msra.mxu0 %v12772
    %13457 = vmatpush.bf16.msra.mxu0 %v12768
    %13458 = vmatpush.bf16.msra.mxu0 %v12764
    %13459 = vmatpush.bf16.msra.mxu0 %v12760
    %13460 = vmatpush.bf16.msra.mxu0 %v12756
    %13461 = vmatpush.bf16.msra.mxu0 %v12752
    %13462 = vmatpush.bf16.msra.mxu0 %v12748
    %13463 = vmatmul.bf16.gmra.mxu0 %v11513
    %v13464 = vpop.f32.mrf.mxu0
    %v13465 = vadd.f32 %v13452, %v13464
    %v13466 = vpop.f32.mrf.mxu0
    %13467 = vdwg.mxu0
    %13468 = vmatpush.bf16.msra.mxu0 %v12808
    %13469 = vmatpush.bf16.msra.mxu0 %v12804
    %13470 = vmatpush.bf16.msra.mxu0 %v12800
    %13471 = vmatpush.bf16.msra.mxu0 %v12796
    %13472 = vmatpush.bf16.msra.mxu0 %v12792
    %13473 = vmatpush.bf16.msra.mxu0 %v12788
    %13474 = vmatpush.bf16.msra.mxu0 %v12784
    %13475 = vmatpush.bf16.msra.mxu0 %v12780
    %13476 = vmatmul.bf16.gmra.mxu0 %v11514
    %v13477 = vpop.f32.mrf.mxu0
    %v13478 = vadd.f32 %v13465, %v13477
    %v13479 = vpop.f32.mrf.mxu0
    %13480 = vdwg.mxu0
    %v13481 = vmax.f32 %v13166, 0.0
    %v13482 = vmax.f32 %v13270, 0.0
    %v13483 = vmax.f32 %v13374, 0.0
    %v13484 = vmax.f32 %v13478, 0.0
    %v13485 = vpack.c.bf16 %v13481, %v13481
    %v13486 = vpack.c.bf16 %v13482, %v13482
    %v13487 = vpack.c.bf16 %v13483, %v13483
    %v13488 = vpack.c.bf16 %v13484, %v13484
    %v13489 = vld [vmem:[#allocation19] sm:$0xf]
    %v13490 = vld [vmem:[#allocation19 + $0x4] sm:$0xf]
    %v13491 = vld [vmem:[#allocation19 + $0x8] sm:$0xf]
    %v13492 = vld [vmem:[#allocation19 + $0xc] sm:$0xf]
    %v13493 = vld [vmem:[#allocation19 + $0x10] sm:$0xf]
    %v13494 = vld [vmem:[#allocation19 + $0x14] sm:$0xf]
    %v13495 = vld [vmem:[#allocation19 + $0x18] sm:$0xf]
    %v13496 = vld [vmem:[#allocation19 + $0x1c] sm:$0xf]
    %v13497 = vld [vmem:[#allocation19 + $0x20] sm:$0xf]
    %v13498 = vld [vmem:[#allocation19 + $0x24] sm:$0xf]
    %v13499 = vld [vmem:[#allocation19 + $0x28] sm:$0xf]
    %v13500 = vld [vmem:[#allocation19 + $0x2c] sm:$0xf]
    %v13501 = vld [vmem:[#allocation19 + $0x30] sm:$0xf]
    %v13502 = vld [vmem:[#allocation19 + $0x34] sm:$0xf]
    %v13503 = vld [vmem:[#allocation19 + $0x38] sm:$0xf]
    %v13504 = vld [vmem:[#allocation19 + $0x3c] sm:$0xf]
    %v13505 = vld [vmem:[#allocation19 + $0x40] sm:$0xf]
    %v13506 = vld [vmem:[#allocation19 + $0x44] sm:$0xf]
    %v13507 = vld [vmem:[#allocation19 + $0x48] sm:$0xf]
    %v13508 = vld [vmem:[#allocation19 + $0x4c] sm:$0xf]
    %v13509 = vld [vmem:[#allocation19 + $0x50] sm:$0xf]
    %v13510 = vld [vmem:[#allocation19 + $0x54] sm:$0xf]
    %v13511 = vld [vmem:[#allocation19 + $0x58] sm:$0xf]
    %v13512 = vld [vmem:[#allocation19 + $0x5c] sm:$0xf]
    %v13513 = vld [vmem:[#allocation19 + $0x60] sm:$0xf]
    %v13514 = vld [vmem:[#allocation19 + $0x64] sm:$0xf]
    %v13515 = vld [vmem:[#allocation19 + $0x68] sm:$0xf]
    %v13516 = vld [vmem:[#allocation19 + $0x6c] sm:$0xf]
    %v13517 = vld [vmem:[#allocation19 + $0x70] sm:$0xf]
    %v13518 = vld [vmem:[#allocation19 + $0x74] sm:$0xf]
    %v13519 = vld [vmem:[#allocation19 + $0x78] sm:$0xf]
    %v13520 = vld [vmem:[#allocation19 + $0x7c] sm:$0xf]
    %v13521 = vld [vmem:[#allocation19 + $0x80] sm:$0xf]
    %v13522 = vld [vmem:[#allocation19 + $0x84] sm:$0xf]
    %v13523 = vld [vmem:[#allocation19 + $0x88] sm:$0xf]
    %v13524 = vld [vmem:[#allocation19 + $0x8c] sm:$0xf]
    %v13525 = vld [vmem:[#allocation19 + $0x90] sm:$0xf]
    %v13526 = vld [vmem:[#allocation19 + $0x94] sm:$0xf]
    %v13527 = vld [vmem:[#allocation19 + $0x98] sm:$0xf]
    %v13528 = vld [vmem:[#allocation19 + $0x9c] sm:$0xf]
    %v13529 = vld [vmem:[#allocation19 + $0xa0] sm:$0xf]
    %v13530 = vld [vmem:[#allocation19 + $0xa4] sm:$0xf]
    %v13531 = vld [vmem:[#allocation19 + $0xa8] sm:$0xf]
    %v13532 = vld [vmem:[#allocation19 + $0xac] sm:$0xf]
    %v13533 = vld [vmem:[#allocation19 + $0xb0] sm:$0xf]
    %v13534 = vld [vmem:[#allocation19 + $0xb4] sm:$0xf]
    %v13535 = vld [vmem:[#allocation19 + $0xb8] sm:$0xf]
    %v13536 = vld [vmem:[#allocation19 + $0xbc] sm:$0xf]
    %v13537 = vld [vmem:[#allocation19 + $0xc0] sm:$0xf]
    %v13538 = vld [vmem:[#allocation19 + $0xc4] sm:$0xf]
    %v13539 = vld [vmem:[#allocation19 + $0xc8] sm:$0xf]
    %v13540 = vld [vmem:[#allocation19 + $0xcc] sm:$0xf]
    %v13541 = vld [vmem:[#allocation19 + $0xd0] sm:$0xf]
    %v13542 = vld [vmem:[#allocation19 + $0xd4] sm:$0xf]
    %v13543 = vld [vmem:[#allocation19 + $0xd8] sm:$0xf]
    %v13544 = vld [vmem:[#allocation19 + $0xdc] sm:$0xf]
    %v13545 = vld [vmem:[#allocation19 + $0xe0] sm:$0xf]
    %v13546 = vld [vmem:[#allocation19 + $0xe4] sm:$0xf]
    %v13547 = vld [vmem:[#allocation19 + $0xe8] sm:$0xf]
    %v13548 = vld [vmem:[#allocation19 + $0xec] sm:$0xf]
    %v13549 = vld [vmem:[#allocation19 + $0xf0] sm:$0xf]
    %v13550 = vld [vmem:[#allocation19 + $0xf4] sm:$0xf]
    %v13551 = vld [vmem:[#allocation19 + $0xf8] sm:$0xf]
    %v13552 = vld [vmem:[#allocation19 + $0xfc] sm:$0xf]
    %v13617 = vunpack.c.l.b16 %v13489
    %v13618 = vunpack.c.l.b16 %v13490
    %v13619 = vunpack.c.l.b16 %v13491
    %v13620 = vunpack.c.l.b16 %v13492
    %v13621 = vunpack.c.l.b16 %v13493
    %v13622 = vunpack.c.l.b16 %v13494
    %v13623 = vunpack.c.l.b16 %v13495
    %v13624 = vunpack.c.l.b16 %v13496
    %v13625 = vunpack.c.l.b16 %v13497
    %v13626 = vunpack.c.l.b16 %v13498
    %v13627 = vunpack.c.l.b16 %v13499
    %v13628 = vunpack.c.l.b16 %v13500
    %v13629 = vunpack.c.l.b16 %v13501
    %v13630 = vunpack.c.l.b16 %v13502
    %v13631 = vunpack.c.l.b16 %v13503
    %v13632 = vunpack.c.l.b16 %v13504
    %v13633 = vunpack.c.l.b16 %v13505
    %v13634 = vunpack.c.l.b16 %v13506
    %v13635 = vunpack.c.l.b16 %v13507
    %v13636 = vunpack.c.l.b16 %v13508
    %v13637 = vunpack.c.l.b16 %v13509
    %v13638 = vunpack.c.l.b16 %v13510
    %v13639 = vunpack.c.l.b16 %v13511
    %v13640 = vunpack.c.l.b16 %v13512
    %v13641 = vunpack.c.l.b16 %v13513
    %v13642 = vunpack.c.l.b16 %v13514
    %v13643 = vunpack.c.l.b16 %v13515
    %v13644 = vunpack.c.l.b16 %v13516
    %v13645 = vunpack.c.l.b16 %v13517
    %v13646 = vunpack.c.l.b16 %v13518
    %v13647 = vunpack.c.l.b16 %v13519
    %v13648 = vunpack.c.l.b16 %v13520
    %v13649 = vunpack.c.l.b16 %v13521
    %v13650 = vunpack.c.l.b16 %v13522
    %v13651 = vunpack.c.l.b16 %v13523
    %v13652 = vunpack.c.l.b16 %v13524
    %v13653 = vunpack.c.l.b16 %v13525
    %v13654 = vunpack.c.l.b16 %v13526
    %v13655 = vunpack.c.l.b16 %v13527
    %v13656 = vunpack.c.l.b16 %v13528
    %v13657 = vunpack.c.l.b16 %v13529
    %v13658 = vunpack.c.l.b16 %v13530
    %v13659 = vunpack.c.l.b16 %v13531
    %v13660 = vunpack.c.l.b16 %v13532
    %v13661 = vunpack.c.l.b16 %v13533
    %v13662 = vunpack.c.l.b16 %v13534
    %v13663 = vunpack.c.l.b16 %v13535
    %v13664 = vunpack.c.l.b16 %v13536
    %v13665 = vunpack.c.l.b16 %v13537
    %v13666 = vunpack.c.l.b16 %v13538
    %v13667 = vunpack.c.l.b16 %v13539
    %v13668 = vunpack.c.l.b16 %v13540
    %v13669 = vunpack.c.l.b16 %v13541
    %v13670 = vunpack.c.l.b16 %v13542
    %v13671 = vunpack.c.l.b16 %v13543
    %v13672 = vunpack.c.l.b16 %v13544
    %v13673 = vunpack.c.l.b16 %v13545
    %v13674 = vunpack.c.l.b16 %v13546
    %v13675 = vunpack.c.l.b16 %v13547
    %v13676 = vunpack.c.l.b16 %v13548
    %v13677 = vunpack.c.l.b16 %v13549
    %v13678 = vunpack.c.l.b16 %v13550
    %v13679 = vunpack.c.l.b16 %v13551
    %v13680 = vunpack.c.l.b16 %v13552
    %v13681 = vpack.c.b16 %v13618, %v13617
    %v13682 = vpack.c.b16 %v13620, %v13619
    %v13683 = vpack.c.b16 %v13622, %v13621
    %v13684 = vpack.c.b16 %v13624, %v13623
    %v13685 = vpack.c.b16 %v13626, %v13625
    %v13686 = vpack.c.b16 %v13628, %v13627
    %v13687 = vpack.c.b16 %v13630, %v13629
    %v13688 = vpack.c.b16 %v13632, %v13631
    %v13689 = vpack.c.b16 %v13634, %v13633
    %v13690 = vpack.c.b16 %v13636, %v13635
    %v13691 = vpack.c.b16 %v13638, %v13637
    %v13692 = vpack.c.b16 %v13640, %v13639
    %v13693 = vpack.c.b16 %v13642, %v13641
    %v13694 = vpack.c.b16 %v13644, %v13643
    %v13695 = vpack.c.b16 %v13646, %v13645
    %v13696 = vpack.c.b16 %v13648, %v13647
    %v13697 = vpack.c.b16 %v13650, %v13649
    %v13698 = vpack.c.b16 %v13652, %v13651
    %v13699 = vpack.c.b16 %v13654, %v13653
    %v13700 = vpack.c.b16 %v13656, %v13655
    %v13701 = vpack.c.b16 %v13658, %v13657
    %v13702 = vpack.c.b16 %v13660, %v13659
    %v13703 = vpack.c.b16 %v13662, %v13661
    %v13704 = vpack.c.b16 %v13664, %v13663
    %v13705 = vpack.c.b16 %v13666, %v13665
    %v13706 = vpack.c.b16 %v13668, %v13667
    %v13707 = vpack.c.b16 %v13670, %v13669
    %v13708 = vpack.c.b16 %v13672, %v13671
    %v13709 = vpack.c.b16 %v13674, %v13673
    %v13710 = vpack.c.b16 %v13676, %v13675
    %v13711 = vpack.c.b16 %v13678, %v13677
    %v13712 = vpack.c.b16 %v13680, %v13679
    %13745 = vmatpush.bf16.msra.mxu0 %v13688
    %13746 = vmatpush.bf16.msra.mxu0 %v13687
    %13747 = vmatpush.bf16.msra.mxu0 %v13686
    %13748 = vmatpush.bf16.msra.mxu0 %v13685
    %13749 = vmatpush.bf16.msra.mxu0 %v13684
    %13750 = vmatpush.bf16.msra.mxu0 %v13683
    %13751 = vmatpush.bf16.msra.mxu0 %v13682
    %13752 = vmatpush.bf16.msra.mxu0 %v13681
    %13753 = vmatmul.bf16.gmra.mxu0 %v13485
    %v13754 = vpop.f32.mrf.mxu0
    %v13755 = vadd.f32 0.0, %v13754
    %v13756 = vpop.f32.mrf.mxu0
    %13757 = vdwg.mxu0
    %13758 = vmatpush.bf16.msra.mxu0 %v13696
    %13759 = vmatpush.bf16.msra.mxu0 %v13695
    %13760 = vmatpush.bf16.msra.mxu0 %v13694
    %13761 = vmatpush.bf16.msra.mxu0 %v13693
    %13762 = vmatpush.bf16.msra.mxu0 %v13692
    %13763 = vmatpush.bf16.msra.mxu0 %v13691
    %13764 = vmatpush.bf16.msra.mxu0 %v13690
    %13765 = vmatpush.bf16.msra.mxu0 %v13689
    %13766 = vmatmul.bf16.gmra.mxu0 %v13486
    %v13767 = vpop.f32.mrf.mxu0
    %v13768 = vadd.f32 %v13755, %v13767
    %v13769 = vpop.f32.mrf.mxu0
    %13770 = vdwg.mxu0
    %13771 = vmatpush.bf16.msra.mxu0 %v13704
    %13772 = vmatpush.bf16.msra.mxu0 %v13703
    %13773 = vmatpush.bf16.msra.mxu0 %v13702
    %13774 = vmatpush.bf16.msra.mxu0 %v13701
    %13775 = vmatpush.bf16.msra.mxu0 %v13700
    %13776 = vmatpush.bf16.msra.mxu0 %v13699
    %13777 = vmatpush.bf16.msra.mxu0 %v13698
    %13778 = vmatpush.bf16.msra.mxu0 %v13697
    %13779 = vmatmul.bf16.gmra.mxu0 %v13487
    %v13780 = vpop.f32.mrf.mxu0
    %v13781 = vadd.f32 %v13768, %v13780
    %v13782 = vpop.f32.mrf.mxu0
    %13783 = vdwg.mxu0
    %13784 = vmatpush.bf16.msra.mxu0 %v13712
    %13785 = vmatpush.bf16.msra.mxu0 %v13711
    %13786 = vmatpush.bf16.msra.mxu0 %v13710
    %13787 = vmatpush.bf16.msra.mxu0 %v13709
    %13788 = vmatpush.bf16.msra.mxu0 %v13708
    %13789 = vmatpush.bf16.msra.mxu0 %v13707
    %13790 = vmatpush.bf16.msra.mxu0 %v13706
    %13791 = vmatpush.bf16.msra.mxu0 %v13705
    %13792 = vmatmul.bf16.gmra.mxu0 %v13488
    %v13793 = vpop.f32.mrf.mxu0
    %v13794 = vadd.f32 %v13781, %v13793
    %v13795 = vpop.f32.mrf.mxu0
    %13796 = vdwg.mxu0
    %v13829 = vunpack.c.l.b16 %v3581
    %v13830 = vunpack.c.l.b16 %v3582
    %v13831 = vunpack.c.l.b16 %v3583
    %v13832 = vunpack.c.l.b16 %v3584
    %v13833 = vunpack.c.l.b16 %v3585
    %v13834 = vunpack.c.l.b16 %v3586
    %v13835 = vunpack.c.l.b16 %v3587
    %v13836 = vunpack.c.l.b16 %v3588
    %v13837 = vunpack.c.l.b16 %v3589
    %v13838 = vunpack.c.l.b16 %v3590
    %v13839 = vunpack.c.l.b16 %v3591
    %v13840 = vunpack.c.l.b16 %v3592
    %v13841 = vunpack.c.l.b16 %v3593
    %v13842 = vunpack.c.l.b16 %v3594
    %v13843 = vunpack.c.l.b16 %v3595
    %v13844 = vunpack.c.l.b16 %v3596
    %v13845 = vunpack.c.l.b16 %v3597
    %v13846 = vunpack.c.l.b16 %v3598
    %v13847 = vunpack.c.l.b16 %v3599
    %v13848 = vunpack.c.l.b16 %v3600
    %v13849 = vunpack.c.l.b16 %v3601
    %v13850 = vunpack.c.l.b16 %v3602
    %v13851 = vunpack.c.l.b16 %v3603
    %v13852 = vunpack.c.l.b16 %v3604
    %v13853 = vunpack.c.l.b16 %v3605
    %v13854 = vunpack.c.l.b16 %v3606
    %v13855 = vunpack.c.l.b16 %v3607
    %v13856 = vunpack.c.l.b16 %v3608
    %v13857 = vunpack.c.l.b16 %v3609
    %v13858 = vunpack.c.l.b16 %v3610
    %v13859 = vunpack.c.l.b16 %v3611
    %v13860 = vunpack.c.l.b16 %v3612
    %v13861 = vpack.c.b16 %v13830, %v13829
    %v13862 = vpack.c.b16 %v13832, %v13831
    %v13863 = vpack.c.b16 %v13834, %v13833
    %v13864 = vpack.c.b16 %v13836, %v13835
    %v13865 = vpack.c.b16 %v13838, %v13837
    %v13866 = vpack.c.b16 %v13840, %v13839
    %v13867 = vpack.c.b16 %v13842, %v13841
    %v13868 = vpack.c.b16 %v13844, %v13843
    %v13869 = vpack.c.b16 %v13846, %v13845
    %v13870 = vpack.c.b16 %v13848, %v13847
    %v13871 = vpack.c.b16 %v13850, %v13849
    %v13872 = vpack.c.b16 %v13852, %v13851
    %v13873 = vpack.c.b16 %v13854, %v13853
    %v13874 = vpack.c.b16 %v13856, %v13855
    %v13875 = vpack.c.b16 %v13858, %v13857
    %v13876 = vpack.c.b16 %v13860, %v13859
    %13893 = vmatpush.bf16.msra.mxu0 %v13868
    %13894 = vmatpush.bf16.msra.mxu0 %v13867
    %13895 = vmatpush.bf16.msra.mxu0 %v13866
    %13896 = vmatpush.bf16.msra.mxu0 %v13865
    %13897 = vmatpush.bf16.msra.mxu0 %v13864
    %13898 = vmatpush.bf16.msra.mxu0 %v13863
    %13899 = vmatpush.bf16.msra.mxu0 %v13862
    %13900 = vmatpush.bf16.msra.mxu0 %v13861
    %13901 = vmatmul.bf16.gmra.mxu0 %v3579
    %v13902 = vpop.f32.mrf.mxu0
    %v13903 = vadd.f32 %v13794, %v13902
    %v13904 = vpop.f32.mrf.mxu0
    %13905 = vdwg.mxu0
    %13906 = vmatpush.bf16.msra.mxu0 %v13876
    %13907 = vmatpush.bf16.msra.mxu0 %v13875
    %13908 = vmatpush.bf16.msra.mxu0 %v13874
    %13909 = vmatpush.bf16.msra.mxu0 %v13873
    %13910 = vmatpush.bf16.msra.mxu0 %v13872
    %13911 = vmatpush.bf16.msra.mxu0 %v13871
    %13912 = vmatpush.bf16.msra.mxu0 %v13870
    %13913 = vmatpush.bf16.msra.mxu0 %v13869
    %13914 = vmatmul.bf16.gmra.mxu0 %v3580
    %v13915 = vpop.f32.mrf.mxu0
    %v13916 = vadd.f32 %v13903, %v13915
    %v13917 = vpop.f32.mrf.mxu0
    %13918 = vdwg.mxu0
    %v13919 = vld [vmem:[#allocation20] sm:$0x1]
    %v13921 = vperm.slane %v13919, 0
    %v13923 = vadd.f32 %v13916, %v13921
    %13924 = vst [vmem:[#allocation25] sm:$0xff] %v13923
    // Predicated region
    $region106: #{tpu_custom_call.1} parent=1 // pred_check
      _
    $region107: #{tpu_custom_call.1} parent=1 // pred_check_branch
      %13926 = sbr.rel (0) target = $region109
    $region108: #{tpu_custom_call.1} parent=1 // pred_region
      %13928 = vsyncadd [#allocation7], 0
      %s13930 = sshll.u32 [#allocation25], 4
      %s13931 = int_to_ptr.vmem [resolvable:$true] %s13930
      %s13932 = sshll.u32 %s14, 4
      %s13933 = int_to_ptr.hbm [resolvable:$true] %s13932
      %13935 = dma.vmem_to_hbm [thread:$0]  %s13931, 128, %s13933, [#allocation7]
    $region109: #{tpu_custom_call.1} parent=1 // pred_fallthru
      _
    // Predicated region
    $region110: #{tpu_custom_call.1} parent=1 // pred_check
      _
    $region111: #{tpu_custom_call.1} parent=1 // pred_check_branch
      %13937 = sbr.rel (0) target = $region113
    $region112: #{tpu_custom_call.1} parent=1 // pred_region
      %13939 = dma.done [#allocation7], 128
    $region113: #{tpu_custom_call.1} parent=1 // pred_fallthru
      _
    %13940 = vsyncpa [#allocation6], 1
    %13941 = vsyncpa [#allocation9], 1
    %13942 = vsyncpa [#allocation12], 1
    %13943 = vsyncpa [#allocation15], 1
    %13944 = vsyncpa [#allocation18], 1
    %13945 = vsyncpa [#allocation21], 1
    %13946 = vsyncpa [#allocation24], 1
    %13947 = vsyncpa [#allocation7], 1
  %13948 = vsyncmov [#allocation4]
  %s13949 = vpop.sfrf %13948
  %p13950 = scmp.eq.s32.totalorder %s13949, 0
  %p13951 = pneg %p13950
  %13953 = shalt.err (%p13951)
  %s13954 = scalar_lea.sflag [#allocation4], 1
  %13955 = vsyncmov %s13954
  %s13956 = vpop.sfrf %13955
  %p13957 = scmp.eq.s32.totalorder %s13956, 0
  %p13958 = pneg %p13957
  %13960 = shalt.err (%p13958)

</llo_original>
